<compile_context>
chip_gen: v6e
topology: v6e:2x2x1
jax: 0.10.0
libtpu: 0.0.40
codegen_flags: <defaults>
</compile_context>

<pallas_src>
import functools

import jax
import jax.numpy as jnp
from jax.experimental import pallas as pl
from jax.experimental.pallas import tpu as pltpu


# ---------------------------------------------------------------------------
# Pallas kernel.
#   idx_ref : (8, tp)          int32   -- per-pixel LUT index for each of the 8 branches
#   lut_ref : (8, K_pad, L3)   float32 -- per-branch LUT (columns already permuted for
#                                         the branch's rotate-back; rows padded to K_pad)
#   out_ref : (K_pad, tp)      float32 -- sum over the 8 branches of LUT[idx], * 0.5
# Gather is expressed as lut(K_pad, L3) @ one_hot(L3, tp) so it runs on the MXU.
# ---------------------------------------------------------------------------
def _hslut_kernel(idx_ref, lut_ref, out_ref, *, n_cfg, n_entries):
    tp = idx_ref.shape[1]
    k_pad = out_ref.shape[0]
    idx = idx_ref[...]                                                # (n_cfg, tp)
    # one shared iota for all branches (hoisted out of the loop)
    ent = jax.lax.broadcasted_iota(jnp.int32, (n_entries, tp), 0)     # (L3, tp)
    acc = jnp.zeros((k_pad, tp), jnp.float32)
    for cfg in range(n_cfg):
        one_hot = (ent == idx[cfg][None, :]).astype(jnp.float32)      # (L3, tp)
        acc = acc + jnp.dot(lut_ref[cfg], one_hot,
                            preferred_element_type=jnp.float32)       # (k_pad, tp)
    out_ref[...] = acc * jnp.float32(0.5)                             # / avg_factor (=2.0)


# ---------------------------------------------------------------------------
# Per-rotation permutation of the 2x2 (u x u) sub-pixel columns.
# For branch rotation r, the value landing at original-frame sub-pixel (a, b)
# is weight[..., ki*u + kj] with (ki, kj) given below (derived from rot90(tmp, 4-r)).
# ---------------------------------------------------------------------------
def _perm_cols(r, u):
    cols = []
    for a in range(u):
        for b in range(u):
            if r == 0:
                ki, kj = a, b
            elif r == 1:
                ki, kj = u - 1 - b, a
            elif r == 2:
                ki, kj = u - 1 - a, u - 1 - b
            else:  # r == 3
                ki, kj = b, u - 1 - a
            cols.append(ki * u + kj)
    return cols


# ---------------------------------------------------------------------------
# HSLUT forward (JAX glue + single Pallas call)
# ---------------------------------------------------------------------------
def hslut_forward(img_lr, h_weight, s_weight, L, upscale=2, tp=2048):
    assert tp % 128 == 0, "tp must be a multiple of 128 (lane dim)"
    B, C, H, W = img_lr.shape
    u = upscale
    K = u * u
    K_pad = ((K + 7) // 8) * 8            # full-sublane output rows
    L3 = L ** 3
    n_cfg = 8                              # 2 ktypes x 4 rotations

    # ---- per-branch LUTs: rows = original-frame sub-pixel, padded to K_pad ----
    luts = []
    for ktype in ('h', 's'):
        w = (h_weight if ktype == 'h' else s_weight).reshape(L3, K).astype(jnp.float32)
        for r in range(4):
            cols = jnp.asarray(_perm_cols(r, u), dtype=jnp.int32)
            lut = jnp.transpose(w[:, cols])                     # (K, L3)
            lut = jnp.pad(lut, ((0, K_pad - K), (0, 0)))        # (K_pad, L3)
            luts.append(lut)
    lut_all = jnp.stack(luts, axis=0)                           # (8, K_pad, L3)

    # ---- per-branch indices, rotated back so all 8 align per original pixel ----
    idx_list = []
    for ktype in ('h', 's'):
        for r in range(4):
            rot = jnp.rot90(img_lr, k=r, axes=(2, 3))
            Hr, Wr = rot.shape[2], rot.shape[3]
            padded = jnp.pad(rot, ((0, 0), (0, 0), (0, 2), (0, 2)),
                             mode='edge').astype(jnp.int32)
            if ktype == 'h':
                a = padded[:, :, 0:Hr, 0:Wr]
                b = padded[:, :, 0:Hr, 1:1 + Wr]
                c = padded[:, :, 0:Hr, 2:2 + Wr]
            else:  # 's' : diagonal neighbours
                a = padded[:, :, 0:Hr, 0:Wr]
                b = padded[:, :, 1:1 + Hr, 1:1 + Wr]
                c = padded[:, :, 2:2 + Hr, 2:2 + Wr]
            idx = a * (L * L) + b * L + c                       # (B,C,Hr,Wr)
            idx_back = jnp.rot90(idx, k=4 - r, axes=(2, 3))     # (B,C,H,W)
            idx_list.append(idx_back.reshape(-1))
    idx_all = jnp.stack(idx_list, axis=0)                       # (8, P)

    # ---- tile pixels and run the kernel ----
    P = B * C * H * W
    nt = pl.cdiv(P, tp)
    Npad = nt * tp
    idx_p = jnp.pad(idx_all, ((0, 0), (0, Npad - P)))           # pad tail with idx 0

    out = pl.pallas_call(
        functools.partial(_hslut_kernel, n_cfg=n_cfg, n_entries=L3),
        out_shape=jax.ShapeDtypeStruct((K_pad, Npad), jnp.float32),
        grid_spec=pltpu.PrefetchScalarGridSpec(
            num_scalar_prefetch=0,
            grid=(nt,),
            in_specs=[
                pl.BlockSpec((n_cfg, tp), lambda i: (0, i)),        # per-tile indices
                pl.BlockSpec((n_cfg, K_pad, L3), lambda i: (0, 0, 0)),  # resident LUTs
            ],
            out_specs=pl.BlockSpec((K_pad, tp), lambda i: (0, i)),
        ),
        compiler_params=pltpu.CompilerParams(
            dimension_semantics=("parallel",),
            vmem_limit_bytes=48 * 1024 * 1024,
        ),
    )(idx_p, lut_all)                                           # (K_pad, Npad)

    # ---- pixel shuffle (K is already in original-frame sub-pixel order) ----
    vals = out[:K, :P]                                          # (K, P)
    v = vals.reshape(u, u, B, C, H, W)
    v = jnp.transpose(v, (2, 3, 4, 0, 5, 1)).reshape(B, C, H * u, W * u)
    return v


# ---------------------------------------------------------------------------
# Pure-JAX reference (mirrors the PyTorch forward with jnp.take)
# ---------------------------------------------------------------------------
def hslut_ref(img_lr, h_weight, s_weight, L, upscale=2):
    B, C, H, W = img_lr.shape
    L3 = L ** 3
    out = jnp.zeros((B, C, H * upscale, W * upscale), jnp.float32)
    for ktype in ('h', 's'):
        weight = h_weight if ktype == 'h' else s_weight
        for r in range(4):
            rot = jnp.rot90(img_lr, k=r, axes=(2, 3))
            Hr, Wr = rot.shape[2], rot.shape[3]
            p = jnp.pad(rot, ((0, 0), (0, 0), (0, 2), (0, 2)),
                        mode='edge').astype(jnp.int32)
            if ktype == 'h':
                a = p[:, :, 0:Hr, 0:Wr]
                b = p[:, :, 0:Hr, 1:1 + Wr]
                c = p[:, :, 0:Hr, 2:2 + Wr]
            else:
                a = p[:, :, 1 - 1:0 + Hr, 0:Wr]
                b = p[:, :, 1:1 + Hr, 1:1 + Wr]
                c = p[:, :, 2:2 + Hr, 2:2 + Wr]
            idx = (a * L * L + b * L + c).reshape(-1)
            tmp = jnp.take(weight.reshape(L3, upscale * upscale), idx, axis=0)
            tmp = tmp.reshape(B, C, Hr, Wr, upscale, upscale)
            tmp = jnp.transpose(tmp, (0, 1, 2, 4, 3, 5)).reshape(
                B, C, Hr * upscale, Wr * upscale)
            out = out + jnp.rot90(tmp, k=4 - r, axes=(2, 3))
    return out / 2.0


if __name__ == "__main__":
    L = 8
    upscale = 2
    B, C, H, W = 2, 4, 16, 16

    key = jax.random.PRNGKey(0)
    k1, k2, k3 = jax.random.split(key, 3)
    # deterministic synthetic LUT weights: (L^3, upscale*upscale)
    h_weight = jax.random.normal(k1, (L ** 3, upscale * upscale), jnp.float32)
    s_weight = jax.random.normal(k2, (L ** 3, upscale * upscale), jnp.float32)
    # quantized LR image (NCHW, values in [0, L))
    img_lr = jax.random.randint(k3, (B, C, H, W), 0, L, dtype=jnp.int32)

    # tp=512 keeps the test multi-tile (P = 2048 pixels -> 4 grid steps);
    # default tp=2048 is the tuned production setting.
    fwd = jax.jit(functools.partial(hslut_forward, L=L, upscale=upscale, tp=512))
    out = fwd(img_lr, h_weight, s_weight)
    out = jax.block_until_ready(out)

    ref = hslut_ref(img_lr, h_weight, s_weight, L, upscale)
    assert out.shape == (B, C, H * upscale, W * upscale), out.shape
    assert jnp.allclose(out, ref, atol=1e-4, rtol=1e-4), \
        float(jnp.max(jnp.abs(out - ref)))
    print("KERNEL_OK")
</pallas_src>

<mosaic_0001>
module attributes {stable_mosaic.version = 11 : i64} {
  func.func @_hslut_kernel(%arg0: i32, %arg1: memref<8x512xi32, #tpu.memory_space<vmem>>, %arg2: memref<8x8x512xf32, #tpu.memory_space<vmem>>, %arg3: memref<8x512xf32, #tpu.memory_space<vmem>>) attributes {dimension_semantics = [#tpu.dimension_semantics<parallel>], iteration_bounds = array<i64: 4>, scalar_prefetch = 0 : i64, scratch_operands = 0 : i64, tpu.core_type = #tpu.core_type<tc>, window_params = [{transform_indices = @transform_0, window_bounds = array<i64: 8, 512>}, {pipeline_mode = #tpu.pipeline_mode<synchronous>, transform_indices = @transform_1, window_bounds = array<i64: 8, 8, 512>}, {transform_indices = @transform_2, window_bounds = array<i64: 8, 512>}]} {
    %c0 = arith.constant 0 : index
    %c0_0 = arith.constant 0 : index
    %0 = vector.load %arg1[%c0, %c0_0] : memref<8x512xi32, #tpu.memory_space<vmem>>, vector<8x512xi32>
    %1 = tpu.iota {dimensions = array<i32: 0>} : vector<512x512xi32>
    %cst = arith.constant 0.000000e+00 : f32
    %2 = vector.broadcast %cst : f32 to vector<8x512xf32>
    %3 = vector.extract_strided_slice %0 {offsets = [0, 0], sizes = [1, 512], strides = [1, 1]} : vector<8x512xi32> to vector<1x512xi32>
    %4 = vector.shape_cast %3 : vector<1x512xi32> to vector<512xi32>
    %5 = vector.shape_cast %4 : vector<512xi32> to vector<1x512xi32>
    %6 = vector.broadcast %5 : vector<1x512xi32> to vector<512x512xi32>
    %7 = arith.cmpi eq, %1, %6 : vector<512x512xi32>
    %8 = arith.extui %7 : vector<512x512xi1> to vector<512x512xi32>
    %9 = arith.sitofp %8 : vector<512x512xi32> to vector<512x512xf32>
    %c0_1 = arith.constant 0 : index
    %c0_2 = arith.constant 0 : index
    %c0_3 = arith.constant 0 : index
    %10 = vector.load %arg2[%c0_1, %c0_2, %c0_3] : memref<8x8x512xf32, #tpu.memory_space<vmem>>, vector<1x8x512xf32>
    %11 = vector.shape_cast %10 : vector<1x8x512xf32> to vector<8x512xf32>
    %cst_4 = arith.constant dense<0.000000e+00> : vector<8x512xf32>
    %12 = tpu.matmul %11, %9, %cst_4 {dimension_numbers = #tpu.dot_dimension_numbers<[1], [0], [0], [1], [0, 0, 1, 1], [], []>} : vector<8x512xf32>, vector<512x512xf32>, vector<8x512xf32> -> vector<8x512xf32>
    %13 = arith.addf %2, %12 : vector<8x512xf32>
    %14 = vector.extract_strided_slice %0 {offsets = [1, 0], sizes = [1, 512], strides = [1, 1]} : vector<8x512xi32> to vector<1x512xi32>
    %15 = vector.shape_cast %14 : vector<1x512xi32> to vector<512xi32>
    %16 = vector.shape_cast %15 : vector<512xi32> to vector<1x512xi32>
    %17 = vector.broadcast %16 : vector<1x512xi32> to vector<512x512xi32>
    %18 = arith.cmpi eq, %1, %17 : vector<512x512xi32>
    %19 = arith.extui %18 : vector<512x512xi1> to vector<512x512xi32>
    %20 = arith.sitofp %19 : vector<512x512xi32> to vector<512x512xf32>
    %c1 = arith.constant 1 : index
    %c0_5 = arith.constant 0 : index
    %c0_6 = arith.constant 0 : index
    %21 = vector.load %arg2[%c1, %c0_5, %c0_6] : memref<8x8x512xf32, #tpu.memory_space<vmem>>, vector<1x8x512xf32>
    %22 = vector.shape_cast %21 : vector<1x8x512xf32> to vector<8x512xf32>
    %cst_7 = arith.constant dense<0.000000e+00> : vector<8x512xf32>
    %23 = tpu.matmul %22, %20, %cst_7 {dimension_numbers = #tpu.dot_dimension_numbers<[1], [0], [0], [1], [0, 0, 1, 1], [], []>} : vector<8x512xf32>, vector<512x512xf32>, vector<8x512xf32> -> vector<8x512xf32>
    %24 = arith.addf %13, %23 : vector<8x512xf32>
    %25 = vector.extract_strided_slice %0 {offsets = [2, 0], sizes = [1, 512], strides = [1, 1]} : vector<8x512xi32> to vector<1x512xi32>
    %26 = vector.shape_cast %25 : vector<1x512xi32> to vector<512xi32>
    %27 = vector.shape_cast %26 : vector<512xi32> to vector<1x512xi32>
    %28 = vector.broadcast %27 : vector<1x512xi32> to vector<512x512xi32>
    %29 = arith.cmpi eq, %1, %28 : vector<512x512xi32>
    %30 = arith.extui %29 : vector<512x512xi1> to vector<512x512xi32>
    %31 = arith.sitofp %30 : vector<512x512xi32> to vector<512x512xf32>
    %c2 = arith.constant 2 : index
    %c0_8 = arith.constant 0 : index
    %c0_9 = arith.constant 0 : index
    %32 = vector.load %arg2[%c2, %c0_8, %c0_9] : memref<8x8x512xf32, #tpu.memory_space<vmem>>, vector<1x8x512xf32>
    %33 = vector.shape_cast %32 : vector<1x8x512xf32> to vector<8x512xf32>
    %cst_10 = arith.constant dense<0.000000e+00> : vector<8x512xf32>
    %34 = tpu.matmul %33, %31, %cst_10 {dimension_numbers = #tpu.dot_dimension_numbers<[1], [0], [0], [1], [0, 0, 1, 1], [], []>} : vector<8x512xf32>, vector<512x512xf32>, vector<8x512xf32> -> vector<8x512xf32>
    %35 = arith.addf %24, %34 : vector<8x512xf32>
    %36 = vector.extract_strided_slice %0 {offsets = [3, 0], sizes = [1, 512], strides = [1, 1]} : vector<8x512xi32> to vector<1x512xi32>
    %37 = vector.shape_cast %36 : vector<1x512xi32> to vector<512xi32>
    %38 = vector.shape_cast %37 : vector<512xi32> to vector<1x512xi32>
    %39 = vector.broadcast %38 : vector<1x512xi32> to vector<512x512xi32>
    %40 = arith.cmpi eq, %1, %39 : vector<512x512xi32>
    %41 = arith.extui %40 : vector<512x512xi1> to vector<512x512xi32>
    %42 = arith.sitofp %41 : vector<512x512xi32> to vector<512x512xf32>
    %c3 = arith.constant 3 : index
    %c0_11 = arith.constant 0 : index
    %c0_12 = arith.constant 0 : index
    %43 = vector.load %arg2[%c3, %c0_11, %c0_12] : memref<8x8x512xf32, #tpu.memory_space<vmem>>, vector<1x8x512xf32>
    %44 = vector.shape_cast %43 : vector<1x8x512xf32> to vector<8x512xf32>
    %cst_13 = arith.constant dense<0.000000e+00> : vector<8x512xf32>
    %45 = tpu.matmul %44, %42, %cst_13 {dimension_numbers = #tpu.dot_dimension_numbers<[1], [0], [0], [1], [0, 0, 1, 1], [], []>} : vector<8x512xf32>, vector<512x512xf32>, vector<8x512xf32> -> vector<8x512xf32>
    %46 = arith.addf %35, %45 : vector<8x512xf32>
    %47 = vector.extract_strided_slice %0 {offsets = [4, 0], sizes = [1, 512], strides = [1, 1]} : vector<8x512xi32> to vector<1x512xi32>
    %48 = vector.shape_cast %47 : vector<1x512xi32> to vector<512xi32>
    %49 = vector.shape_cast %48 : vector<512xi32> to vector<1x512xi32>
    %50 = vector.broadcast %49 : vector<1x512xi32> to vector<512x512xi32>
    %51 = arith.cmpi eq, %1, %50 : vector<512x512xi32>
    %52 = arith.extui %51 : vector<512x512xi1> to vector<512x512xi32>
    %53 = arith.sitofp %52 : vector<512x512xi32> to vector<512x512xf32>
    %c4 = arith.constant 4 : index
    %c0_14 = arith.constant 0 : index
    %c0_15 = arith.constant 0 : index
    %54 = vector.load %arg2[%c4, %c0_14, %c0_15] : memref<8x8x512xf32, #tpu.memory_space<vmem>>, vector<1x8x512xf32>
    %55 = vector.shape_cast %54 : vector<1x8x512xf32> to vector<8x512xf32>
    %cst_16 = arith.constant dense<0.000000e+00> : vector<8x512xf32>
    %56 = tpu.matmul %55, %53, %cst_16 {dimension_numbers = #tpu.dot_dimension_numbers<[1], [0], [0], [1], [0, 0, 1, 1], [], []>} : vector<8x512xf32>, vector<512x512xf32>, vector<8x512xf32> -> vector<8x512xf32>
    %57 = arith.addf %46, %56 : vector<8x512xf32>
    %58 = vector.extract_strided_slice %0 {offsets = [5, 0], sizes = [1, 512], strides = [1, 1]} : vector<8x512xi32> to vector<1x512xi32>
    %59 = vector.shape_cast %58 : vector<1x512xi32> to vector<512xi32>
    %60 = vector.shape_cast %59 : vector<512xi32> to vector<1x512xi32>
    %61 = vector.broadcast %60 : vector<1x512xi32> to vector<512x512xi32>
    %62 = arith.cmpi eq, %1, %61 : vector<512x512xi32>
    %63 = arith.extui %62 : vector<512x512xi1> to vector<512x512xi32>
    %64 = arith.sitofp %63 : vector<512x512xi32> to vector<512x512xf32>
    %c5 = arith.constant 5 : index
    %c0_17 = arith.constant 0 : index
    %c0_18 = arith.constant 0 : index
    %65 = vector.load %arg2[%c5, %c0_17, %c0_18] : memref<8x8x512xf32, #tpu.memory_space<vmem>>, vector<1x8x512xf32>
    %66 = vector.shape_cast %65 : vector<1x8x512xf32> to vector<8x512xf32>
    %cst_19 = arith.constant dense<0.000000e+00> : vector<8x512xf32>
    %67 = tpu.matmul %66, %64, %cst_19 {dimension_numbers = #tpu.dot_dimension_numbers<[1], [0], [0], [1], [0, 0, 1, 1], [], []>} : vector<8x512xf32>, vector<512x512xf32>, vector<8x512xf32> -> vector<8x512xf32>
    %68 = arith.addf %57, %67 : vector<8x512xf32>
    %69 = vector.extract_strided_slice %0 {offsets = [6, 0], sizes = [1, 512], strides = [1, 1]} : vector<8x512xi32> to vector<1x512xi32>
    %70 = vector.shape_cast %69 : vector<1x512xi32> to vector<512xi32>
    %71 = vector.shape_cast %70 : vector<512xi32> to vector<1x512xi32>
    %72 = vector.broadcast %71 : vector<1x512xi32> to vector<512x512xi32>
    %73 = arith.cmpi eq, %1, %72 : vector<512x512xi32>
    %74 = arith.extui %73 : vector<512x512xi1> to vector<512x512xi32>
    %75 = arith.sitofp %74 : vector<512x512xi32> to vector<512x512xf32>
    %c6 = arith.constant 6 : index
    %c0_20 = arith.constant 0 : index
    %c0_21 = arith.constant 0 : index
    %76 = vector.load %arg2[%c6, %c0_20, %c0_21] : memref<8x8x512xf32, #tpu.memory_space<vmem>>, vector<1x8x512xf32>
    %77 = vector.shape_cast %76 : vector<1x8x512xf32> to vector<8x512xf32>
    %cst_22 = arith.constant dense<0.000000e+00> : vector<8x512xf32>
    %78 = tpu.matmul %77, %75, %cst_22 {dimension_numbers = #tpu.dot_dimension_numbers<[1], [0], [0], [1], [0, 0, 1, 1], [], []>} : vector<8x512xf32>, vector<512x512xf32>, vector<8x512xf32> -> vector<8x512xf32>
    %79 = arith.addf %68, %78 : vector<8x512xf32>
    %80 = vector.extract_strided_slice %0 {offsets = [7, 0], sizes = [1, 512], strides = [1, 1]} : vector<8x512xi32> to vector<1x512xi32>
    %81 = vector.shape_cast %80 : vector<1x512xi32> to vector<512xi32>
    %82 = vector.shape_cast %81 : vector<512xi32> to vector<1x512xi32>
    %83 = vector.broadcast %82 : vector<1x512xi32> to vector<512x512xi32>
    %84 = arith.cmpi eq, %1, %83 : vector<512x512xi32>
    %85 = arith.extui %84 : vector<512x512xi1> to vector<512x512xi32>
    %86 = arith.sitofp %85 : vector<512x512xi32> to vector<512x512xf32>
    %c7 = arith.constant 7 : index
    %c0_23 = arith.constant 0 : index
    %c0_24 = arith.constant 0 : index
    %87 = vector.load %arg2[%c7, %c0_23, %c0_24] : memref<8x8x512xf32, #tpu.memory_space<vmem>>, vector<1x8x512xf32>
    %88 = vector.shape_cast %87 : vector<1x8x512xf32> to vector<8x512xf32>
    %cst_25 = arith.constant dense<0.000000e+00> : vector<8x512xf32>
    %89 = tpu.matmul %88, %86, %cst_25 {dimension_numbers = #tpu.dot_dimension_numbers<[1], [0], [0], [1], [0, 0, 1, 1], [], []>} : vector<8x512xf32>, vector<512x512xf32>, vector<8x512xf32> -> vector<8x512xf32>
    %90 = arith.addf %79, %89 : vector<8x512xf32>
    %cst_26 = arith.constant 5.000000e-01 : f32
    %91 = vector.broadcast %cst_26 : f32 to vector<8x512xf32>
    %92 = arith.mulf %90, %91 : vector<8x512xf32>
    %c0_27 = arith.constant 0 : index
    %c0_28 = arith.constant 0 : index
    %93 = vector.load %arg3[%c0_27, %c0_28] : memref<8x512xf32, #tpu.memory_space<vmem>>, vector<8x512xf32>
    tpu.vector_store %arg3[%c0_27, %c0_28], %92 {strides = array<i32>} : memref<8x512xf32, #tpu.memory_space<vmem>>, vector<8x512xf32>,
    return
  }
  func.func @transform_0(%arg0: i32) -> (i32, i32) {
    %c0_i32 = arith.constant 0 : i32
    %c0_i32_0 = arith.constant 0 : i32
    return %c0_i32, %arg0 : i32, i32
  }
  func.func @transform_1(%arg0: i32) -> (i32, i32, i32) {
    %c0_i32 = arith.constant 0 : i32
    %c0_i32_0 = arith.constant 0 : i32
    %c0_i32_1 = arith.constant 0 : i32
    %c0_i32_2 = arith.constant 0 : i32
    return %c0_i32, %c0_i32_0, %c0_i32_1 : i32, i32, i32
  }
  func.func @transform_2(%arg0: i32) -> (i32, i32) {
    %c0_i32 = arith.constant 0 : i32
    %c0_i32_0 = arith.constant 0 : i32
    return %c0_i32, %arg0 : i32, i32
  }
}

</mosaic_0001>

<llo_original>
// kernel: reverse.1
$region0: #{reverse.1}
  %s0 = inlined_call_operand.vmem [shape: s32[2,4,1,16], index: 0, kind: input, shape index: {}]
  %s1 = inlined_call_operand.vmem [shape: s32[2,4,1,16], index: 1, kind: output, shape index: {}]
  %v2 = vlaneseq
  %v3 = vsub.s32 15, %v2
  %4 = vset.pattern.permute.xlu0 %v3
  $region1: #{reverse.1} parent=0
    #allocation0 [shape = 'u8[65536]{0}', space=vmem, size = 0x10000, scoped, tag = 'operand span for operand 0']
    #allocation1 [shape = 'u8[8192]{0}', space=vmem, size = 0x2000, scoped, tag = 'packed  for operand 0']
    #allocation2 [shape = 'u8[32768]{0}', space=vmem, size = 0x8000, scoped, tag = 'operand span for operand 1']
    #allocation3 [shape = 'u8[4096]{0}', space=vmem, size = 0x1000, scoped, tag = 'packed  for operand 1']
    %s5 = scalar_lea.vmem [#allocation1], 1
    // Predicated region
    $region2: #{reverse.1} parent=1 // pred_check
      _
    $region3: #{reverse.1} parent=1 // pred_check_branch
      %7 = sbr.rel (0) target = $region5
    $region4: #{reverse.1} parent=1 // pred_region
      // Predicated region
      $region6: #{reverse.1} parent=4 // pred_check
        _
      $region7: #{reverse.1} parent=4 // pred_check_branch
        %9 = sbr.rel target = $region9
      $region8: #{reverse.1} parent=4 // pred_region
        // Predicated region
        $region21: #{reverse.1} parent=8 // pred_check
          _
        $region22: #{reverse.1} parent=8 // pred_check_branch
          %39 = sbr.rel (0) target = $region24
        $region23: #{reverse.1} parent=8 // pred_region
          loop: start=0, step=1, limit=1
          $region25: #{reverse.1} parent=23 // loop_pre_header
            _
          $region26: #{reverse.1} parent=23 // loop_header
            %s41 = sphi 0, %s45
            %p42 = scmp.ge.s32.totalorder %s41, 1
            %s46 = sphi %s0, %s0
            %s47 = sphi %s5, %s5
          $region27: #{reverse.1} parent=23 // loop_header_branch
            %44 = sbr.rel (%p42) target = $region31
          $region28: #{reverse.1} parent=23 // loop_body
            _
          $region29: #{reverse.1} parent=23 // loop_footer
            %s45 = sadd.s32 1, %s41
          $region30: #{reverse.1} parent=23 // loop_footer_branch
            %40 = sbr.rel target = $region26
          $region31: #{reverse.1} parent=23 // loop_exit
            _
          %s49 = ssub.s32 2, 1
          loop: start=0, step=1, limit=1
          $region32: #{reverse.1} parent=23 // loop_pre_header
            _
          $region33: #{reverse.1} parent=23 // loop_header
            %s51 = sphi 0, %s55
            %p52 = scmp.ge.s32.totalorder %s51, 1
            %s56 = sphi %s0, %s0
            %s57 = sphi %s5, %s5
          $region34: #{reverse.1} parent=23 // loop_header_branch
            %54 = sbr.rel (%p52) target = $region38
          $region35: #{reverse.1} parent=23 // loop_body
            %v58 = vld [vmem:[%s56] sm:%s49]
            %59 = vst [vmem:[%s57] sm:%s49] %v58
            %v60 = vld [vmem:[%s56 + $0x1] sm:%s49]
            %61 = vst [vmem:[%s57 + $0x2] sm:%s49] %v60
            %v62 = vld [vmem:[%s56 + $0x2] sm:%s49]
            %63 = vst [vmem:[%s57 + $0x4] sm:%s49] %v62
            %v64 = vld [vmem:[%s56 + $0x3] sm:%s49]
            %65 = vst [vmem:[%s57 + $0x6] sm:%s49] %v64
            %v66 = vld [vmem:[%s56 + $0x4] sm:%s49]
            %67 = vst [vmem:[%s57 + $0x8] sm:%s49] %v66
            %v68 = vld [vmem:[%s56 + $0x5] sm:%s49]
            %69 = vst [vmem:[%s57 + $0xa] sm:%s49] %v68
            %v70 = vld [vmem:[%s56 + $0x6] sm:%s49]
            %71 = vst [vmem:[%s57 + $0xc] sm:%s49] %v70
            %v72 = vld [vmem:[%s56 + $0x7] sm:%s49]
            %73 = vst [vmem:[%s57 + $0xe] sm:%s49] %v72
          $region36: #{reverse.1} parent=23 // loop_footer
            %s55 = sadd.s32 1, %s51
          $region37: #{reverse.1} parent=23 // loop_footer_branch
            %50 = sbr.rel target = $region33
          $region38: #{reverse.1} parent=23 // loop_exit
            _
        $region24: #{reverse.1} parent=8 // pred_fallthru
          _
      $region9: #{reverse.1} parent=4 // pred_fallthru
        _
      // Predicated region
      $region10: #{reverse.1} parent=4 // pred_check
        _
      $region11: #{reverse.1} parent=4 // pred_check_branch
        %11 = sbr.rel (0) target = $region13
      $region12: #{reverse.1} parent=4 // pred_region
        %s13 = ssub.s32 2, 1
        loop: start=0, step=1, limit=1
        $region14: #{reverse.1} parent=12 // loop_pre_header
          _
        $region15: #{reverse.1} parent=12 // loop_header
          %s15 = sphi 0, %s19
          %p16 = scmp.ge.s32.totalorder %s15, 1
          %s20 = sphi %s0, %s0
          %s21 = sphi %s5, %s5
        $region16: #{reverse.1} parent=12 // loop_header_branch
          %18 = sbr.rel (%p16) target = $region20
        $region17: #{reverse.1} parent=12 // loop_body
          %v22 = vld [vmem:[%s20] sm:%s13]
          %23 = vst [vmem:[%s21] sm:%s13] %v22
          %v24 = vld [vmem:[%s20 + $0x1] sm:%s13]
          %25 = vst [vmem:[%s21 + $0x2] sm:%s13] %v24
          %v26 = vld [vmem:[%s20 + $0x2] sm:%s13]
          %27 = vst [vmem:[%s21 + $0x4] sm:%s13] %v26
          %v28 = vld [vmem:[%s20 + $0x3] sm:%s13]
          %29 = vst [vmem:[%s21 + $0x6] sm:%s13] %v28
          %v30 = vld [vmem:[%s20 + $0x4] sm:%s13]
          %31 = vst [vmem:[%s21 + $0x8] sm:%s13] %v30
          %v32 = vld [vmem:[%s20 + $0x5] sm:%s13]
          %33 = vst [vmem:[%s21 + $0xa] sm:%s13] %v32
          %v34 = vld [vmem:[%s20 + $0x6] sm:%s13]
          %35 = vst [vmem:[%s21 + $0xc] sm:%s13] %v34
          %v36 = vld [vmem:[%s20 + $0x7] sm:%s13]
          %37 = vst [vmem:[%s21 + $0xe] sm:%s13] %v36
        $region18: #{reverse.1} parent=12 // loop_footer
          %s19 = sadd.s32 1, %s15
        $region19: #{reverse.1} parent=12 // loop_footer_branch
          %14 = sbr.rel target = $region15
        $region20: #{reverse.1} parent=12 // loop_exit
          _
      $region13: #{reverse.1} parent=4 // pred_fallthru
        _
    $region5: #{reverse.1} parent=1 // pred_fallthru
      _
    %74 = vnop
    %s76 = sshll.u32 1, 1
    %s77 = ssub.s32 %s76, 1
    %s78 = smul.addr 1, 15
    %s79 = scalar_lea.vmem [#allocation1], %s78
    %v80 = vld [vmem:[%s79] sm:%s77]
    %s81 = scalar_lea.vmem [#allocation0], 120
    %82 = vst [vmem:[%s81] sm:%s77] %v80
    %s83 = smul.addr 1, 14
    %s84 = scalar_lea.vmem [#allocation1], %s83
    %v85 = vld [vmem:[%s84] sm:%s77]
    %s86 = scalar_lea.vmem [#allocation0], 112
    %87 = vst [vmem:[%s86] sm:%s77] %v85
    %s88 = smul.addr 1, 13
    %s89 = scalar_lea.vmem [#allocation1], %s88
    %v90 = vld [vmem:[%s89] sm:%s77]
    %s91 = scalar_lea.vmem [#allocation0], 104
    %92 = vst [vmem:[%s91] sm:%s77] %v90
    %s93 = smul.addr 1, 12
    %s94 = scalar_lea.vmem [#allocation1], %s93
    %v95 = vld [vmem:[%s94] sm:%s77]
    %s96 = scalar_lea.vmem [#allocation0], 96
    %97 = vst [vmem:[%s96] sm:%s77] %v95
    %s98 = smul.addr 1, 11
    %s99 = scalar_lea.vmem [#allocation1], %s98
    %v100 = vld [vmem:[%s99] sm:%s77]
    %s101 = scalar_lea.vmem [#allocation0], 88
    %102 = vst [vmem:[%s101] sm:%s77] %v100
    %s103 = smul.addr 1, 10
    %s104 = scalar_lea.vmem [#allocation1], %s103
    %v105 = vld [vmem:[%s104] sm:%s77]
    %s106 = scalar_lea.vmem [#allocation0], 80
    %107 = vst [vmem:[%s106] sm:%s77] %v105
    %s108 = smul.addr 1, 9
    %s109 = scalar_lea.vmem [#allocation1], %s108
    %v110 = vld [vmem:[%s109] sm:%s77]
    %s111 = scalar_lea.vmem [#allocation0], 72
    %112 = vst [vmem:[%s111] sm:%s77] %v110
    %s113 = smul.addr 1, 8
    %s114 = scalar_lea.vmem [#allocation1], %s113
    %v115 = vld [vmem:[%s114] sm:%s77]
    %s116 = scalar_lea.vmem [#allocation0], 64
    %117 = vst [vmem:[%s116] sm:%s77] %v115
    %s118 = smul.addr 1, 7
    %s119 = scalar_lea.vmem [#allocation1], %s118
    %v120 = vld [vmem:[%s119] sm:%s77]
    %s121 = scalar_lea.vmem [#allocation0], 56
    %122 = vst [vmem:[%s121] sm:%s77] %v120
    %s123 = smul.addr 1, 6
    %s124 = scalar_lea.vmem [#allocation1], %s123
    %v125 = vld [vmem:[%s124] sm:%s77]
    %s126 = scalar_lea.vmem [#allocation0], 48
    %127 = vst [vmem:[%s126] sm:%s77] %v125
    %s128 = smul.addr 1, 5
    %s129 = scalar_lea.vmem [#allocation1], %s128
    %v130 = vld [vmem:[%s129] sm:%s77]
    %s131 = scalar_lea.vmem [#allocation0], 40
    %132 = vst [vmem:[%s131] sm:%s77] %v130
    %s133 = smul.addr 1, 4
    %s134 = scalar_lea.vmem [#allocation1], %s133
    %v135 = vld [vmem:[%s134] sm:%s77]
    %s136 = scalar_lea.vmem [#allocation0], 32
    %137 = vst [vmem:[%s136] sm:%s77] %v135
    %s138 = smul.addr 1, 3
    %s139 = scalar_lea.vmem [#allocation1], %s138
    %v140 = vld [vmem:[%s139] sm:%s77]
    %s141 = scalar_lea.vmem [#allocation0], 24
    %142 = vst [vmem:[%s141] sm:%s77] %v140
    %s143 = smul.addr 1, 2
    %s144 = scalar_lea.vmem [#allocation1], %s143
    %v145 = vld [vmem:[%s144] sm:%s77]
    %s146 = scalar_lea.vmem [#allocation0], 16
    %147 = vst [vmem:[%s146] sm:%s77] %v145
    %s148 = scalar_lea.vmem [#allocation1], 1
    %v149 = vld [vmem:[%s148] sm:%s77]
    %s150 = scalar_lea.vmem [#allocation0], 8
    %151 = vst [vmem:[%s150] sm:%s77] %v149
    %v152 = vld [vmem:[#allocation1] sm:%s77]
    %153 = vst [vmem:[#allocation0] sm:%s77] %v152
    %s154 = scalar_lea.vmem [#allocation0], 7
    %v155 = vld [vmem:[%s154] ss:$-1 sm:$0xff]
    %v156 = vrot.slane %v155, 7
    %157 = vperm.xlu0 %4, %v156
    %v158 = vpop.permute.xlu0 %157
    %159 = vst [vmem:[#allocation2] sm:$0xff] %v158
    %s160 = scalar_lea.vmem [#allocation0], 8
    %s161 = scalar_lea.vmem %s160, 7 [#allocation0]
    %v162 = vld [vmem:[%s161] ss:$-1 sm:$0xff]
    %v163 = vrot.slane %v162, 7
    %164 = vperm.xlu0 %4, %v163
    %v165 = vpop.permute.xlu0 %164
    %v166 = vlaneseq
    %v167 = vshrl.u32 %v166, 7
    %vm168 = vcmp.lt.s32.totalorder %v167, 1
    %169 = vst.msk [vmem:[#allocation2] sm:$0xff] %vm168, %v165
    %s170 = scalar_lea.vmem [#allocation2], 8
    %s171 = scalar_lea.vmem [#allocation0], 16
    %s172 = scalar_lea.vmem %s171, 7 [#allocation0]
    %v173 = vld [vmem:[%s172] ss:$-1 sm:$0xff]
    %v174 = vrot.slane %v173, 7
    %175 = vperm.xlu0 %4, %v174
    %v176 = vpop.permute.xlu0 %175
    %177 = vst [vmem:[%s170] sm:$0xff] %v176
    %s178 = scalar_lea.vmem %s171, 8 [#allocation0]
    %s179 = scalar_lea.vmem %s178, 7 [#allocation0]
    %v180 = vld [vmem:[%s179] ss:$-1 sm:$0xff]
    %v181 = vrot.slane %v180, 7
    %182 = vperm.xlu0 %4, %v181
    %v183 = vpop.permute.xlu0 %182
    %v184 = vlaneseq
    %v185 = vshrl.u32 %v184, 7
    %vm186 = vcmp.lt.s32.totalorder %v185, 1
    %187 = vst.msk [vmem:[%s170] sm:$0xff] %vm186, %v183
    %s188 = scalar_lea.vmem [#allocation2], 16
    %s189 = scalar_lea.vmem [#allocation0], 32
    %s190 = scalar_lea.vmem %s189, 7 [#allocation0]
    %v191 = vld [vmem:[%s190] ss:$-1 sm:$0xff]
    %v192 = vrot.slane %v191, 7
    %193 = vperm.xlu0 %4, %v192
    %v194 = vpop.permute.xlu0 %193
    %195 = vst [vmem:[%s188] sm:$0xff] %v194
    %s196 = scalar_lea.vmem %s189, 8 [#allocation0]
    %s197 = scalar_lea.vmem %s196, 7 [#allocation0]
    %v198 = vld [vmem:[%s197] ss:$-1 sm:$0xff]
    %v199 = vrot.slane %v198, 7
    %200 = vperm.xlu0 %4, %v199
    %v201 = vpop.permute.xlu0 %200
    %v202 = vlaneseq
    %v203 = vshrl.u32 %v202, 7
    %vm204 = vcmp.lt.s32.totalorder %v203, 1
    %205 = vst.msk [vmem:[%s188] sm:$0xff] %vm204, %v201
    %s206 = scalar_lea.vmem [#allocation2], 24
    %s207 = scalar_lea.vmem [#allocation0], 48
    %s208 = scalar_lea.vmem %s207, 7 [#allocation0]
    %v209 = vld [vmem:[%s208] ss:$-1 sm:$0xff]
    %v210 = vrot.slane %v209, 7
    %211 = vperm.xlu0 %4, %v210
    %v212 = vpop.permute.xlu0 %211
    %213 = vst [vmem:[%s206] sm:$0xff] %v212
    %s214 = scalar_lea.vmem %s207, 8 [#allocation0]
    %s215 = scalar_lea.vmem %s214, 7 [#allocation0]
    %v216 = vld [vmem:[%s215] ss:$-1 sm:$0xff]
    %v217 = vrot.slane %v216, 7
    %218 = vperm.xlu0 %4, %v217
    %v219 = vpop.permute.xlu0 %218
    %v220 = vlaneseq
    %v221 = vshrl.u32 %v220, 7
    %vm222 = vcmp.lt.s32.totalorder %v221, 1
    %223 = vst.msk [vmem:[%s206] sm:$0xff] %vm222, %v219
    %s224 = scalar_lea.vmem [#allocation2], 32
    %s225 = scalar_lea.vmem [#allocation0], 64
    %s226 = scalar_lea.vmem %s225, 7 [#allocation0]
    %v227 = vld [vmem:[%s226] ss:$-1 sm:$0xff]
    %v228 = vrot.slane %v227, 7
    %229 = vperm.xlu0 %4, %v228
    %v230 = vpop.permute.xlu0 %229
    %231 = vst [vmem:[%s224] sm:$0xff] %v230
    %s232 = scalar_lea.vmem %s225, 8 [#allocation0]
    %s233 = scalar_lea.vmem %s232, 7 [#allocation0]
    %v234 = vld [vmem:[%s233] ss:$-1 sm:$0xff]
    %v235 = vrot.slane %v234, 7
    %236 = vperm.xlu0 %4, %v235
    %v237 = vpop.permute.xlu0 %236
    %v238 = vlaneseq
    %v239 = vshrl.u32 %v238, 7
    %vm240 = vcmp.lt.s32.totalorder %v239, 1
    %241 = vst.msk [vmem:[%s224] sm:$0xff] %vm240, %v237
    %s242 = scalar_lea.vmem [#allocation2], 40
    %s243 = scalar_lea.vmem [#allocation0], 80
    %s244 = scalar_lea.vmem %s243, 7 [#allocation0]
    %v245 = vld [vmem:[%s244] ss:$-1 sm:$0xff]
    %v246 = vrot.slane %v245, 7
    %247 = vperm.xlu0 %4, %v246
    %v248 = vpop.permute.xlu0 %247
    %249 = vst [vmem:[%s242] sm:$0xff] %v248
    %s250 = scalar_lea.vmem %s243, 8 [#allocation0]
    %s251 = scalar_lea.vmem %s250, 7 [#allocation0]
    %v252 = vld [vmem:[%s251] ss:$-1 sm:$0xff]
    %v253 = vrot.slane %v252, 7
    %254 = vperm.xlu0 %4, %v253
    %v255 = vpop.permute.xlu0 %254
    %v256 = vlaneseq
    %v257 = vshrl.u32 %v256, 7
    %vm258 = vcmp.lt.s32.totalorder %v257, 1
    %259 = vst.msk [vmem:[%s242] sm:$0xff] %vm258, %v255
    %s260 = scalar_lea.vmem [#allocation2], 48
    %s261 = scalar_lea.vmem [#allocation0], 96
    %s262 = scalar_lea.vmem %s261, 7 [#allocation0]
    %v263 = vld [vmem:[%s262] ss:$-1 sm:$0xff]
    %v264 = vrot.slane %v263, 7
    %265 = vperm.xlu0 %4, %v264
    %v266 = vpop.permute.xlu0 %265
    %267 = vst [vmem:[%s260] sm:$0xff] %v266
    %s268 = scalar_lea.vmem %s261, 8 [#allocation0]
    %s269 = scalar_lea.vmem %s268, 7 [#allocation0]
    %v270 = vld [vmem:[%s269] ss:$-1 sm:$0xff]
    %v271 = vrot.slane %v270, 7
    %272 = vperm.xlu0 %4, %v271
    %v273 = vpop.permute.xlu0 %272
    %v274 = vlaneseq
    %v275 = vshrl.u32 %v274, 7
    %vm276 = vcmp.lt.s32.totalorder %v275, 1
    %277 = vst.msk [vmem:[%s260] sm:$0xff] %vm276, %v273
    %s278 = scalar_lea.vmem [#allocation2], 56
    %s279 = scalar_lea.vmem [#allocation0], 112
    %s280 = scalar_lea.vmem %s279, 7 [#allocation0]
    %v281 = vld [vmem:[%s280] ss:$-1 sm:$0xff]
    %v282 = vrot.slane %v281, 7
    %283 = vperm.xlu0 %4, %v282
    %v284 = vpop.permute.xlu0 %283
    %285 = vst [vmem:[%s278] sm:$0xff] %v284
    %s286 = scalar_lea.vmem %s279, 8 [#allocation0]
    %s287 = scalar_lea.vmem %s286, 7 [#allocation0]
    %v288 = vld [vmem:[%s287] ss:$-1 sm:$0xff]
    %v289 = vrot.slane %v288, 7
    %290 = vperm.xlu0 %4, %v289
    %v291 = vpop.permute.xlu0 %290
    %v292 = vlaneseq
    %v293 = vshrl.u32 %v292, 7
    %vm294 = vcmp.lt.s32.totalorder %v293, 1
    %295 = vst.msk [vmem:[%s278] sm:$0xff] %vm294, %v291
    %s297 = sshll.u32 1, 1
    %s298 = ssub.s32 %s297, 1
    %v300 = vld [vmem:[#allocation2] sm:%s298]
    %s301 = sshll.u32 1, 1
    %s302 = ssub.s32 %s301, 1
    %303 = vst [vmem:[#allocation3] sm:%s302] %v300
    %s304 = scalar_lea.vmem [#allocation2], 8
    %v305 = vld [vmem:[%s304] sm:%s298]
    %s306 = sshll.u32 1, 1
    %s307 = ssub.s32 %s306, 1
    %s308 = scalar_lea.vmem [#allocation3], 1
    %309 = vst [vmem:[%s308] sm:%s307] %v305
    %s310 = scalar_lea.vmem [#allocation2], 16
    %v311 = vld [vmem:[%s310] sm:%s298]
    %s312 = sshll.u32 1, 1
    %s313 = ssub.s32 %s312, 1
    %s314 = smul.addr 1, 2
    %s315 = scalar_lea.vmem [#allocation3], %s314
    %316 = vst [vmem:[%s315] sm:%s313] %v311
    %s317 = scalar_lea.vmem [#allocation2], 24
    %v318 = vld [vmem:[%s317] sm:%s298]
    %s319 = sshll.u32 1, 1
    %s320 = ssub.s32 %s319, 1
    %s321 = smul.addr 1, 3
    %s322 = scalar_lea.vmem [#allocation3], %s321
    %323 = vst [vmem:[%s322] sm:%s320] %v318
    %s324 = scalar_lea.vmem [#allocation2], 32
    %v325 = vld [vmem:[%s324] sm:%s298]
    %s326 = sshll.u32 1, 1
    %s327 = ssub.s32 %s326, 1
    %s328 = smul.addr 1, 4
    %s329 = scalar_lea.vmem [#allocation3], %s328
    %330 = vst [vmem:[%s329] sm:%s327] %v325
    %s331 = scalar_lea.vmem [#allocation2], 40
    %v332 = vld [vmem:[%s331] sm:%s298]
    %s333 = sshll.u32 1, 1
    %s334 = ssub.s32 %s333, 1
    %s335 = smul.addr 1, 5
    %s336 = scalar_lea.vmem [#allocation3], %s335
    %337 = vst [vmem:[%s336] sm:%s334] %v332
    %s338 = scalar_lea.vmem [#allocation2], 48
    %v339 = vld [vmem:[%s338] sm:%s298]
    %s340 = sshll.u32 1, 1
    %s341 = ssub.s32 %s340, 1
    %s342 = smul.addr 1, 6
    %s343 = scalar_lea.vmem [#allocation3], %s342
    %344 = vst [vmem:[%s343] sm:%s341] %v339
    %s345 = scalar_lea.vmem [#allocation2], 56
    %v346 = vld [vmem:[%s345] sm:%s298]
    %s347 = sshll.u32 1, 1
    %s348 = ssub.s32 %s347, 1
    %s349 = smul.addr 1, 7
    %s350 = scalar_lea.vmem [#allocation3], %s349
    %351 = vst [vmem:[%s350] sm:%s348] %v346
    // Predicated region
    $region39: #{reverse.1} parent=1 // pred_check
      _
    $region40: #{reverse.1} parent=1 // pred_check_branch
      %353 = sbr.rel (0) target = $region42
    $region41: #{reverse.1} parent=1 // pred_region
      // Predicated region
      $region43: #{reverse.1} parent=41 // pred_check
        _
      $region44: #{reverse.1} parent=41 // pred_check_branch
        %355 = sbr.rel (0) target = $region46
      $region45: #{reverse.1} parent=41 // pred_region
        // Predicated region
        $region58: #{reverse.1} parent=45 // pred_check
          _
        $region59: #{reverse.1} parent=45 // pred_check_branch
          %371 = sbr.rel (0) target = $region61
        $region60: #{reverse.1} parent=45 // pred_region
          loop: start=0, step=1, limit=1
          $region62: #{reverse.1} parent=60 // loop_pre_header
            _
          $region63: #{reverse.1} parent=60 // loop_header
            %s373 = sphi 0, %s377
            %p374 = scmp.ge.s32.totalorder %s373, 1
            %s378 = sphi [#allocation3], [#allocation3]
            %s379 = sphi %s1, %s1
          $region64: #{reverse.1} parent=60 // loop_header_branch
            %376 = sbr.rel (%p374) target = $region68
          $region65: #{reverse.1} parent=60 // loop_body
            %v380 = vld [vmem:[%s378] sm:$0xff]
            %381 = vst [vmem:[%s379] sm:$0xff] %v380
          $region66: #{reverse.1} parent=60 // loop_footer
            %s377 = sadd.s32 1, %s373
          $region67: #{reverse.1} parent=60 // loop_footer_branch
            %372 = sbr.rel target = $region63
          $region68: #{reverse.1} parent=60 // loop_exit
            _
        $region61: #{reverse.1} parent=45 // pred_fallthru
          _
        // Predicated region
        $region69: #{reverse.1} parent=45 // pred_check
          _
        $region70: #{reverse.1} parent=45 // pred_check_branch
          %383 = sbr.rel target = $region72
        $region71: #{reverse.1} parent=45 // pred_region
          _
        $region72: #{reverse.1} parent=45 // pred_fallthru
          _
      $region46: #{reverse.1} parent=41 // pred_fallthru
        _
      // Predicated region
      $region47: #{reverse.1} parent=41 // pred_check
        _
      $region48: #{reverse.1} parent=41 // pred_check_branch
        %357 = sbr.rel target = $region50
      $region49: #{reverse.1} parent=41 // pred_region
        %s359 = ssub.s32 256, 1
        loop: start=0, step=1, limit=1
        $region51: #{reverse.1} parent=49 // loop_pre_header
          _
        $region52: #{reverse.1} parent=49 // loop_header
          %s361 = sphi 0, %s365
          %p362 = scmp.ge.s32.totalorder %s361, 1
          %s366 = sphi [#allocation3], [#allocation3]
          %s367 = sphi %s1, %s1
        $region53: #{reverse.1} parent=49 // loop_header_branch
          %364 = sbr.rel (%p362) target = $region57
        $region54: #{reverse.1} parent=49 // loop_body
          %v368 = vld [vmem:[%s366] sm:%s359]
          %369 = vst [vmem:[%s367] sm:%s359] %v368
        $region55: #{reverse.1} parent=49 // loop_footer
          %s365 = sadd.s32 1, %s361
        $region56: #{reverse.1} parent=49 // loop_footer_branch
          %360 = sbr.rel target = $region52
        $region57: #{reverse.1} parent=49 // loop_exit
          _
      $region50: #{reverse.1} parent=41 // pred_fallthru
        _
    $region42: #{reverse.1} parent=1 // pred_fallthru
      _
    %384 = vnop

// kernel: reverse.3
$region0: #{reverse.3}
  %s0 = inlined_call_operand.vmem [shape: s32[2,4,1,16], index: 0, kind: input, shape index: {}]
  %s1 = inlined_call_operand.vmem [shape: s32[2,4,1,16], index: 1, kind: output, shape index: {}]
  %v2 = vlaneseq
  %v3 = vsub.s32 15, %v2
  %4 = vset.pattern.permute.xlu0 %v3
  $region1: #{reverse.3} parent=0
    #allocation0 [shape = 'u8[32768]{0}', space=vmem, size = 0x8000, scoped, tag = 'operand span for operand 0']
    #allocation1 [shape = 'u8[4096]{0}', space=vmem, size = 0x1000, scoped, tag = 'packed  for operand 0']
    #allocation2 [shape = 'u8[32768]{0}', space=vmem, size = 0x8000, scoped, tag = 'operand span for operand 1']
    #allocation3 [shape = 'u8[4096]{0}', space=vmem, size = 0x1000, scoped, tag = 'packed  for operand 1']
    // Predicated region
    $region2: #{reverse.3} parent=1 // pred_check
      _
    $region3: #{reverse.3} parent=1 // pred_check_branch
      %6 = sbr.rel (0) target = $region5
    $region4: #{reverse.3} parent=1 // pred_region
      // Predicated region
      $region6: #{reverse.3} parent=4 // pred_check
        _
      $region7: #{reverse.3} parent=4 // pred_check_branch
        %8 = sbr.rel (0) target = $region9
      $region8: #{reverse.3} parent=4 // pred_region
        // Predicated region
        $region21: #{reverse.3} parent=8 // pred_check
          _
        $region22: #{reverse.3} parent=8 // pred_check_branch
          %24 = sbr.rel (0) target = $region24
        $region23: #{reverse.3} parent=8 // pred_region
          loop: start=0, step=1, limit=1
          $region25: #{reverse.3} parent=23 // loop_pre_header
            _
          $region26: #{reverse.3} parent=23 // loop_header
            %s26 = sphi 0, %s30
            %p27 = scmp.ge.s32.totalorder %s26, 1
            %s31 = sphi %s0, %s0
            %s32 = sphi [#allocation1], [#allocation1]
          $region27: #{reverse.3} parent=23 // loop_header_branch
            %29 = sbr.rel (%p27) target = $region31
          $region28: #{reverse.3} parent=23 // loop_body
            %v33 = vld [vmem:[%s31] sm:$0xff]
            %34 = vst [vmem:[%s32] sm:$0xff] %v33
          $region29: #{reverse.3} parent=23 // loop_footer
            %s30 = sadd.s32 1, %s26
          $region30: #{reverse.3} parent=23 // loop_footer_branch
            %25 = sbr.rel target = $region26
          $region31: #{reverse.3} parent=23 // loop_exit
            _
        $region24: #{reverse.3} parent=8 // pred_fallthru
          _
        // Predicated region
        $region32: #{reverse.3} parent=8 // pred_check
          _
        $region33: #{reverse.3} parent=8 // pred_check_branch
          %36 = sbr.rel target = $region35
        $region34: #{reverse.3} parent=8 // pred_region
          _
        $region35: #{reverse.3} parent=8 // pred_fallthru
          _
      $region9: #{reverse.3} parent=4 // pred_fallthru
        _
      // Predicated region
      $region10: #{reverse.3} parent=4 // pred_check
        _
      $region11: #{reverse.3} parent=4 // pred_check_branch
        %10 = sbr.rel target = $region13
      $region12: #{reverse.3} parent=4 // pred_region
        %s12 = ssub.s32 256, 1
        loop: start=0, step=1, limit=1
        $region14: #{reverse.3} parent=12 // loop_pre_header
          _
        $region15: #{reverse.3} parent=12 // loop_header
          %s14 = sphi 0, %s18
          %p15 = scmp.ge.s32.totalorder %s14, 1
          %s19 = sphi %s0, %s0
          %s20 = sphi [#allocation1], [#allocation1]
        $region16: #{reverse.3} parent=12 // loop_header_branch
          %17 = sbr.rel (%p15) target = $region20
        $region17: #{reverse.3} parent=12 // loop_body
          %v21 = vld [vmem:[%s19] sm:%s12]
          %22 = vst [vmem:[%s20] sm:%s12] %v21
        $region18: #{reverse.3} parent=12 // loop_footer
          %s18 = sadd.s32 1, %s14
        $region19: #{reverse.3} parent=12 // loop_footer_branch
          %13 = sbr.rel target = $region15
        $region20: #{reverse.3} parent=12 // loop_exit
          _
      $region13: #{reverse.3} parent=4 // pred_fallthru
        _
    $region5: #{reverse.3} parent=1 // pred_fallthru
      _
    %37 = vnop
    %s39 = sshll.u32 1, 1
    %s40 = ssub.s32 %s39, 1
    %s41 = smul.addr 1, 7
    %s42 = scalar_lea.vmem [#allocation1], %s41
    %v43 = vld [vmem:[%s42] sm:%s40]
    %s44 = scalar_lea.vmem [#allocation0], 56
    %45 = vst [vmem:[%s44] sm:%s40] %v43
    %s46 = smul.addr 1, 6
    %s47 = scalar_lea.vmem [#allocation1], %s46
    %v48 = vld [vmem:[%s47] sm:%s40]
    %s49 = scalar_lea.vmem [#allocation0], 48
    %50 = vst [vmem:[%s49] sm:%s40] %v48
    %s51 = smul.addr 1, 5
    %s52 = scalar_lea.vmem [#allocation1], %s51
    %v53 = vld [vmem:[%s52] sm:%s40]
    %s54 = scalar_lea.vmem [#allocation0], 40
    %55 = vst [vmem:[%s54] sm:%s40] %v53
    %s56 = smul.addr 1, 4
    %s57 = scalar_lea.vmem [#allocation1], %s56
    %v58 = vld [vmem:[%s57] sm:%s40]
    %s59 = scalar_lea.vmem [#allocation0], 32
    %60 = vst [vmem:[%s59] sm:%s40] %v58
    %s61 = smul.addr 1, 3
    %s62 = scalar_lea.vmem [#allocation1], %s61
    %v63 = vld [vmem:[%s62] sm:%s40]
    %s64 = scalar_lea.vmem [#allocation0], 24
    %65 = vst [vmem:[%s64] sm:%s40] %v63
    %s66 = smul.addr 1, 2
    %s67 = scalar_lea.vmem [#allocation1], %s66
    %v68 = vld [vmem:[%s67] sm:%s40]
    %s69 = scalar_lea.vmem [#allocation0], 16
    %70 = vst [vmem:[%s69] sm:%s40] %v68
    %s71 = scalar_lea.vmem [#allocation1], 1
    %v72 = vld [vmem:[%s71] sm:%s40]
    %s73 = scalar_lea.vmem [#allocation0], 8
    %74 = vst [vmem:[%s73] sm:%s40] %v72
    %v75 = vld [vmem:[#allocation1] sm:%s40]
    %76 = vst [vmem:[#allocation0] sm:%s40] %v75
    %v77 = vld [vmem:[#allocation0] sm:$0xff]
    %78 = vperm.xlu0 %4, %v77
    %v79 = vpop.permute.xlu0 %78
    %80 = vst [vmem:[#allocation2] sm:$0xff] %v79
    %s81 = scalar_lea.vmem [#allocation2], 8
    %s82 = scalar_lea.vmem [#allocation0], 8
    %v83 = vld [vmem:[%s82] sm:$0xff]
    %84 = vperm.xlu0 %4, %v83
    %v85 = vpop.permute.xlu0 %84
    %86 = vst [vmem:[%s81] sm:$0xff] %v85
    %s87 = scalar_lea.vmem [#allocation2], 16
    %s88 = scalar_lea.vmem [#allocation0], 16
    %v89 = vld [vmem:[%s88] sm:$0xff]
    %90 = vperm.xlu0 %4, %v89
    %v91 = vpop.permute.xlu0 %90
    %92 = vst [vmem:[%s87] sm:$0xff] %v91
    %s93 = scalar_lea.vmem [#allocation2], 24
    %s94 = scalar_lea.vmem [#allocation0], 24
    %v95 = vld [vmem:[%s94] sm:$0xff]
    %96 = vperm.xlu0 %4, %v95
    %v97 = vpop.permute.xlu0 %96
    %98 = vst [vmem:[%s93] sm:$0xff] %v97
    %s99 = scalar_lea.vmem [#allocation2], 32
    %s100 = scalar_lea.vmem [#allocation0], 32
    %v101 = vld [vmem:[%s100] sm:$0xff]
    %102 = vperm.xlu0 %4, %v101
    %v103 = vpop.permute.xlu0 %102
    %104 = vst [vmem:[%s99] sm:$0xff] %v103
    %s105 = scalar_lea.vmem [#allocation2], 40
    %s106 = scalar_lea.vmem [#allocation0], 40
    %v107 = vld [vmem:[%s106] sm:$0xff]
    %108 = vperm.xlu0 %4, %v107
    %v109 = vpop.permute.xlu0 %108
    %110 = vst [vmem:[%s105] sm:$0xff] %v109
    %s111 = scalar_lea.vmem [#allocation2], 48
    %s112 = scalar_lea.vmem [#allocation0], 48
    %v113 = vld [vmem:[%s112] sm:$0xff]
    %114 = vperm.xlu0 %4, %v113
    %v115 = vpop.permute.xlu0 %114
    %116 = vst [vmem:[%s111] sm:$0xff] %v115
    %s117 = scalar_lea.vmem [#allocation2], 56
    %s118 = scalar_lea.vmem [#allocation0], 56
    %v119 = vld [vmem:[%s118] sm:$0xff]
    %120 = vperm.xlu0 %4, %v119
    %v121 = vpop.permute.xlu0 %120
    %122 = vst [vmem:[%s117] sm:$0xff] %v121
    %s124 = sshll.u32 1, 1
    %s125 = ssub.s32 %s124, 1
    %v127 = vld [vmem:[#allocation2] sm:%s125]
    %s128 = sshll.u32 1, 1
    %s129 = ssub.s32 %s128, 1
    %130 = vst [vmem:[#allocation3] sm:%s129] %v127
    %s131 = scalar_lea.vmem [#allocation2], 8
    %v132 = vld [vmem:[%s131] sm:%s125]
    %s133 = sshll.u32 1, 1
    %s134 = ssub.s32 %s133, 1
    %s135 = scalar_lea.vmem [#allocation3], 1
    %136 = vst [vmem:[%s135] sm:%s134] %v132
    %s137 = scalar_lea.vmem [#allocation2], 16
    %v138 = vld [vmem:[%s137] sm:%s125]
    %s139 = sshll.u32 1, 1
    %s140 = ssub.s32 %s139, 1
    %s141 = smul.addr 1, 2
    %s142 = scalar_lea.vmem [#allocation3], %s141
    %143 = vst [vmem:[%s142] sm:%s140] %v138
    %s144 = scalar_lea.vmem [#allocation2], 24
    %v145 = vld [vmem:[%s144] sm:%s125]
    %s146 = sshll.u32 1, 1
    %s147 = ssub.s32 %s146, 1
    %s148 = smul.addr 1, 3
    %s149 = scalar_lea.vmem [#allocation3], %s148
    %150 = vst [vmem:[%s149] sm:%s147] %v145
    %s151 = scalar_lea.vmem [#allocation2], 32
    %v152 = vld [vmem:[%s151] sm:%s125]
    %s153 = sshll.u32 1, 1
    %s154 = ssub.s32 %s153, 1
    %s155 = smul.addr 1, 4
    %s156 = scalar_lea.vmem [#allocation3], %s155
    %157 = vst [vmem:[%s156] sm:%s154] %v152
    %s158 = scalar_lea.vmem [#allocation2], 40
    %v159 = vld [vmem:[%s158] sm:%s125]
    %s160 = sshll.u32 1, 1
    %s161 = ssub.s32 %s160, 1
    %s162 = smul.addr 1, 5
    %s163 = scalar_lea.vmem [#allocation3], %s162
    %164 = vst [vmem:[%s163] sm:%s161] %v159
    %s165 = scalar_lea.vmem [#allocation2], 48
    %v166 = vld [vmem:[%s165] sm:%s125]
    %s167 = sshll.u32 1, 1
    %s168 = ssub.s32 %s167, 1
    %s169 = smul.addr 1, 6
    %s170 = scalar_lea.vmem [#allocation3], %s169
    %171 = vst [vmem:[%s170] sm:%s168] %v166
    %s172 = scalar_lea.vmem [#allocation2], 56
    %v173 = vld [vmem:[%s172] sm:%s125]
    %s174 = sshll.u32 1, 1
    %s175 = ssub.s32 %s174, 1
    %s176 = smul.addr 1, 7
    %s177 = scalar_lea.vmem [#allocation3], %s176
    %178 = vst [vmem:[%s177] sm:%s175] %v173
    // Predicated region
    $region36: #{reverse.3} parent=1 // pred_check
      _
    $region37: #{reverse.3} parent=1 // pred_check_branch
      %180 = sbr.rel (0) target = $region39
    $region38: #{reverse.3} parent=1 // pred_region
      // Predicated region
      $region40: #{reverse.3} parent=38 // pred_check
        _
      $region41: #{reverse.3} parent=38 // pred_check_branch
        %182 = sbr.rel (0) target = $region43
      $region42: #{reverse.3} parent=38 // pred_region
        // Predicated region
        $region55: #{reverse.3} parent=42 // pred_check
          _
        $region56: #{reverse.3} parent=42 // pred_check_branch
          %198 = sbr.rel (0) target = $region58
        $region57: #{reverse.3} parent=42 // pred_region
          loop: start=0, step=1, limit=1
          $region59: #{reverse.3} parent=57 // loop_pre_header
            _
          $region60: #{reverse.3} parent=57 // loop_header
            %s200 = sphi 0, %s204
            %p201 = scmp.ge.s32.totalorder %s200, 1
            %s205 = sphi [#allocation3], [#allocation3]
            %s206 = sphi %s1, %s1
          $region61: #{reverse.3} parent=57 // loop_header_branch
            %203 = sbr.rel (%p201) target = $region65
          $region62: #{reverse.3} parent=57 // loop_body
            %v207 = vld [vmem:[%s205] sm:$0xff]
            %208 = vst [vmem:[%s206] sm:$0xff] %v207
          $region63: #{reverse.3} parent=57 // loop_footer
            %s204 = sadd.s32 1, %s200
          $region64: #{reverse.3} parent=57 // loop_footer_branch
            %199 = sbr.rel target = $region60
          $region65: #{reverse.3} parent=57 // loop_exit
            _
        $region58: #{reverse.3} parent=42 // pred_fallthru
          _
        // Predicated region
        $region66: #{reverse.3} parent=42 // pred_check
          _
        $region67: #{reverse.3} parent=42 // pred_check_branch
          %210 = sbr.rel target = $region69
        $region68: #{reverse.3} parent=42 // pred_region
          _
        $region69: #{reverse.3} parent=42 // pred_fallthru
          _
      $region43: #{reverse.3} parent=38 // pred_fallthru
        _
      // Predicated region
      $region44: #{reverse.3} parent=38 // pred_check
        _
      $region45: #{reverse.3} parent=38 // pred_check_branch
        %184 = sbr.rel target = $region47
      $region46: #{reverse.3} parent=38 // pred_region
        %s186 = ssub.s32 256, 1
        loop: start=0, step=1, limit=1
        $region48: #{reverse.3} parent=46 // loop_pre_header
          _
        $region49: #{reverse.3} parent=46 // loop_header
          %s188 = sphi 0, %s192
          %p189 = scmp.ge.s32.totalorder %s188, 1
          %s193 = sphi [#allocation3], [#allocation3]
          %s194 = sphi %s1, %s1
        $region50: #{reverse.3} parent=46 // loop_header_branch
          %191 = sbr.rel (%p189) target = $region54
        $region51: #{reverse.3} parent=46 // loop_body
          %v195 = vld [vmem:[%s193] sm:%s186]
          %196 = vst [vmem:[%s194] sm:%s186] %v195
        $region52: #{reverse.3} parent=46 // loop_footer
          %s192 = sadd.s32 1, %s188
        $region53: #{reverse.3} parent=46 // loop_footer_branch
          %187 = sbr.rel target = $region49
        $region54: #{reverse.3} parent=46 // loop_exit
          _
      $region47: #{reverse.3} parent=38 // pred_fallthru
        _
    $region39: #{reverse.3} parent=1 // pred_fallthru
      _
    %211 = vnop

// kernel: hslut_forward.1
$region0: #{hslut_forward.1}
  #allocation0 [shape = 'u32[]', space=smem, size = 0x4, offset = 0x4, fixed_abs, tag = 'smem constant byte address 0x4 - core index']
  #allocation1 [shape = 'u32[144,128]{1,0:T(1,128)}', space=vmem, size = 0x12000, scoped, tag = 'internal scratch']
  %s0 = inlined_call_operand.vmem [shape: s32[8,2048], index: 0, kind: input, shape index: {}]
  %s1 = inlined_call_operand.vmem [shape: f32[8,8,512], index: 1, kind: input, shape index: {}]
  %s2 = inlined_call_operand.vmem [shape: f32[8,2048], index: 2, kind: output, shape index: {}]
  %s3 = sld [smem:[#allocation0]]
  $region41: #{hslut_forward.1} parent=0
    _
  %s5 = ssub.s32 1, %s3
  %s6 = scalar_select 0, %s5, %s3
  loop: start=0, step=1, limit=6
  $region2: #{hslut_forward.1} parent=0 // loop_pre_header
    _
  $region3: #{hslut_forward.1} parent=0 // loop_header
    %s8 = sphi 0, %s12
    %p9 = scmp.ge.s32.totalorder %s8, 6
    %s18 = sphi 0, %s20
    %s21 = sphi 0, %s18
    %s22 = sphi 0, %s21
    %s38 = sphi 0, %s22
    %s42 = sphi 0, %s42
    %s44 = sphi 0, %s42
    %s45 = sphi 0, %s44
    %s59 = sphi 0, %s45
    %s65 = sphi 0, %s67
    %s68 = sphi 0, %s65
    %s69 = sphi 0, %s68
    %s85 = sphi 0, %s69
  $region4: #{hslut_forward.1} parent=0 // loop_header_branch
    %11 = sbr.rel (%p9) target = $region8
  $region5: #{hslut_forward.1} parent=0 // loop_body
    %s13 = ssub.s32 %s8, 1
    %s14 = ssub.s32 %s8, 2
    %s15 = sadd.s32 %s8, 1
    %s16 = ssub.s32 %s8, %s15
    %p17 = scmp.eq.s32.totalorder %s16, 0
    %s19 = sadd.s32 %s18, 1
    %s20 = scalar_select %p17, %s18, %s19
    %p23 = pneg %p17
    %p24 = scmp.eq.s32.totalorder %s8, 3
    %p25 = por %p23, %p24
    %p26 = scmp.ne.s32.totalorder %s18, %s21
    %p27 = scmp.eq.s32.totalorder %s8, 0
    %p28 = por %p26, %p27
    %p29 = scmp.ne.s32.totalorder %s18, %s21
    %p30 = scmp.eq.s32.totalorder %s13, 3
    %p31 = por %p29, %p30
    %p32 = scmp.ne.s32.totalorder %s21, %s22
    %p33 = scmp.eq.s32.totalorder %s13, 0
    %p34 = por %p32, %p33
    %p35 = scmp.ne.s32.totalorder %s21, %s22
    %p36 = scmp.eq.s32.totalorder %s14, 3
    %p37 = por %p35, %p36
    %p39 = scmp.ne.s32.totalorder %s22, %s38
    %p40 = scmp.eq.s32.totalorder %s14, 0
    %p41 = por %p39, %p40
    %s43 = sadd.s32 %s42, 1
    %p46 = scmp.eq.s32.totalorder %s8, 3
    %p47 = scmp.ne.s32.totalorder %s42, %s44
    %p48 = scmp.eq.s32.totalorder %s8, 0
    %p49 = por %p47, %p48
    %p50 = scmp.ne.s32.totalorder %s42, %s44
    %p51 = scmp.eq.s32.totalorder %s13, 3
    %p52 = por %p50, %p51
    %p53 = scmp.ne.s32.totalorder %s44, %s45
    %p54 = scmp.eq.s32.totalorder %s13, 0
    %p55 = por %p53, %p54
    %p56 = scmp.ne.s32.totalorder %s44, %s45
    %p57 = scmp.eq.s32.totalorder %s14, 3
    %p58 = por %p56, %p57
    %p60 = scmp.ne.s32.totalorder %s45, %s59
    %p61 = scmp.eq.s32.totalorder %s14, 0
    %p62 = por %p60, %p61
    %s63 = ssub.s32 %s8, %s15
    %p64 = scmp.eq.s32.totalorder %s63, 0
    %s66 = sadd.s32 %s65, 1
    %s67 = scalar_select %p64, %s65, %s66
    %p70 = pneg %p64
    %p71 = scmp.eq.s32.totalorder %s8, 3
    %p72 = por %p70, %p71
    %p73 = scmp.ne.s32.totalorder %s65, %s68
    %p74 = scmp.eq.s32.totalorder %s8, 0
    %p75 = por %p73, %p74
    %p76 = scmp.ne.s32.totalorder %s65, %s68
    %p77 = scmp.eq.s32.totalorder %s13, 3
    %p78 = por %p76, %p77
    %p79 = scmp.ne.s32.totalorder %s68, %s69
    %p80 = scmp.eq.s32.totalorder %s13, 0
    %p81 = por %p79, %p80
    %p82 = scmp.ne.s32.totalorder %s68, %s69
    %p83 = scmp.eq.s32.totalorder %s14, 3
    %p84 = por %p82, %p83
    %p86 = scmp.ne.s32.totalorder %s69, %s85
    %p87 = scmp.eq.s32.totalorder %s14, 0
    %p88 = por %p86, %p87
    %p89 = scmp.le.s32.totalorder 1, %s8
    %p90 = scmp.lt.s32.totalorder %s8, 5
    %p91 = pnand %p89, %p90
    %p92 = pneg %p91
    // Predicated region
    $region9: #{hslut_forward.1} parent=5 // pred_check
      _
    $region10: #{hslut_forward.1} parent=5 // pred_check_branch
      %94 = sbr.rel (%p91) target = $region12
    $region11: #{hslut_forward.1} parent=5 // pred_region
      %s95 = ssub.s32 %s8, 1
      // Predicated region
      $region13: #{hslut_forward.1} parent=11 // pred_check
        %p96 = pneg %p55
      $region14: #{hslut_forward.1} parent=11 // pred_check_branch
        %98 = sbr.rel (%p96) target = $region16
      $region15: #{hslut_forward.1} parent=11 // pred_region
        _
      $region16: #{hslut_forward.1} parent=11 // pred_fallthru
        _
    $region12: #{hslut_forward.1} parent=5 // pred_fallthru
      _
    %p99 = scmp.lt.s32.totalorder %s8, 4
    // Predicated region
    $region17: #{hslut_forward.1} parent=5 // pred_check
      %p100 = pneg %p99
    $region18: #{hslut_forward.1} parent=5 // pred_check_branch
      %102 = sbr.rel (%p100) target = $region20
    $region19: #{hslut_forward.1} parent=5 // pred_region
      // Predicated region
      $region21: #{hslut_forward.1} parent=19 // pred_check
        %p103 = pneg %p28
      $region22: #{hslut_forward.1} parent=19 // pred_check_branch
        %105 = sbr.rel (%p103) target = $region24
      $region23: #{hslut_forward.1} parent=19 // pred_region
        %s106 = smul.u32 4, %s8
        %p107 = scmp.lt.s32.totalorder %s106, 15
        %s108 = scalar_select %p107, %s106, 15
        %s109 = smul.addr %s108, 8
        %s110 = scalar_lea.vmem %s0, %s109
        %s111 = smul.u32 4, %s8
      $region24: #{hslut_forward.1} parent=19 // pred_fallthru
        _
    $region20: #{hslut_forward.1} parent=5 // pred_fallthru
      _
    %p112 = scmp.le.s32.totalorder 1, %s8
    %p113 = scmp.lt.s32.totalorder %s8, 5
    %p114 = pnand %p112, %p113
    %p115 = pneg %p114
    // Predicated region
    $region25: #{hslut_forward.1} parent=5 // pred_check
      _
    $region26: #{hslut_forward.1} parent=5 // pred_check_branch
      %117 = sbr.rel (%p114) target = $region28
    $region27: #{hslut_forward.1} parent=5 // pred_region
      %s118 = ssub.s32 %s8, 1
      %s119 = smul.u32 4, %s13
      %p120 = scmp.lt.s32.totalorder %s119, 15
      %s121 = scalar_select %p120, %s119, 15
      %s122 = smul.addr %s121, 8
      %s123 = scalar_lea.vmem %s0, %s122
      %p124 = pneg %p34
      %p125 = pneg %p31
      %p126 = pneg %p55
      %p127 = pneg %p52
      %p128 = pneg %p81
      %p129 = pneg %p78
      %s130 = smul.u32 4, %s13
      %p131 = scmp.lt.s32.totalorder %s130, 15
      %s132 = scalar_select %p131, %s130, 15
      %s133 = smul.addr %s132, 8
      %s134 = scalar_lea.vmem %s2, %s133
      %s135 = smul.u32 4, %s13
      %p136 = scmp.lt.s32.totalorder %s135, 15
      %s137 = scalar_select %p136, %s135, 15
      %s138 = smul.addr %s137, 8
      %s139 = scalar_lea.vmem %s0, %s138
      %s140 = smul.u32 4, %s13
      %s141 = smul.u32 4, %s13
      %p142 = scmp.lt.s32.totalorder %s141, 15
      %s143 = scalar_select %p142, %s141, 15
      %s144 = smul.addr %s143, 8
      %s145 = scalar_lea.vmem %s2, %s144
      %s146 = smul.u32 4, %s13
      %v147 = vld [vmem:[%s139] sm:$0xff]
      %v148 = vld [vmem:[%s139 + $0x8] sm:$0xff]
      %v149 = vld [vmem:[%s139 + $0x10] sm:$0xff]
      %v150 = vld [vmem:[%s139 + $0x18] sm:$0xff]
      %v151 = vlaneseq
      %v152 = vshrl.u32 %v151, 7
      %v153 = vadd.s32 %v152, 8
      %v154 = vadd.s32 %v152, 16
      %v155 = vadd.s32 %v152, 24
      %v156 = vadd.s32 %v152, 32
      %v157 = vadd.s32 %v152, 40
      %v158 = vadd.s32 %v152, 48
      %v159 = vadd.s32 %v152, 56
      %v160 = vadd.s32 %v152, 64
      %v161 = vadd.s32 %v152, 72
      %v162 = vadd.s32 %v152, 80
      %v163 = vadd.s32 %v152, 88
      %v164 = vadd.s32 %v152, 96
      %v165 = vadd.s32 %v152, 104
      %v166 = vadd.s32 %v152, 112
      %v167 = vadd.s32 %v152, 120
      %v168 = vadd.s32 %v152, 128
      %v169 = vadd.s32 %v152, 136
      %v170 = vadd.s32 %v152, 144
      %v171 = vadd.s32 %v152, 152
      %v172 = vadd.s32 %v152, 160
      %v173 = vadd.s32 %v152, 168
      %v174 = vadd.s32 %v152, 176
      %v175 = vadd.s32 %v152, 184
      %v176 = vadd.s32 %v152, 192
      %v177 = vadd.s32 %v152, 200
      %v178 = vadd.s32 %v152, 208
      %v179 = vadd.s32 %v152, 216
      %v180 = vadd.s32 %v152, 224
      %v181 = vadd.s32 %v152, 232
      %v182 = vadd.s32 %v152, 240
      %v183 = vadd.s32 %v152, 248
      %v184 = vadd.s32 %v152, 256
      %v185 = vadd.s32 %v152, 264
      %v186 = vadd.s32 %v152, 272
      %v187 = vadd.s32 %v152, 280
      %v188 = vadd.s32 %v152, 288
      %v189 = vadd.s32 %v152, 296
      %v190 = vadd.s32 %v152, 304
      %v191 = vadd.s32 %v152, 312
      %v192 = vadd.s32 %v152, 320
      %v193 = vadd.s32 %v152, 328
      %v194 = vadd.s32 %v152, 336
      %v195 = vadd.s32 %v152, 344
      %v196 = vadd.s32 %v152, 352
      %v197 = vadd.s32 %v152, 360
      %v198 = vadd.s32 %v152, 368
      %v199 = vadd.s32 %v152, 376
      %v200 = vadd.s32 %v152, 384
      %v201 = vadd.s32 %v152, 392
      %v202 = vadd.s32 %v152, 400
      %v203 = vadd.s32 %v152, 408
      %v204 = vadd.s32 %v152, 416
      %v205 = vadd.s32 %v152, 424
      %v206 = vadd.s32 %v152, 432
      %v207 = vadd.s32 %v152, 440
      %v208 = vadd.s32 %v152, 448
      %v209 = vadd.s32 %v152, 456
      %v210 = vadd.s32 %v152, 464
      %v211 = vadd.s32 %v152, 472
      %v212 = vadd.s32 %v152, 480
      %v213 = vadd.s32 %v152, 488
      %v214 = vadd.s32 %v152, 496
      %v215 = vadd.s32 %v152, 504
      %v216 = vlaneseq
      %v217 = vshrl.u32 %v216, 7
      %v218 = vsub.s32 0, %v217
      %v219 = vrot.slane %v147, %v218
      %v220 = vlaneseq
      %v221 = vshrl.u32 %v220, 7
      %v222 = vsub.s32 0, %v221
      %v223 = vrot.slane %v148, %v222
      %v224 = vlaneseq
      %v225 = vshrl.u32 %v224, 7
      %v226 = vsub.s32 0, %v225
      %v227 = vrot.slane %v149, %v226
      %v228 = vlaneseq
      %v229 = vshrl.u32 %v228, 7
      %v230 = vsub.s32 0, %v229
      %v231 = vrot.slane %v150, %v230
      %vm232 = vcmp.eq.s32.totalorder %v152, %v219
      %vm233 = vcmp.eq.s32.totalorder %v152, %v223
      %vm234 = vcmp.eq.s32.totalorder %v152, %v227
      %vm235 = vcmp.eq.s32.totalorder %v152, %v231
      %vm236 = vcmp.eq.s32.totalorder %v153, %v219
      %vm237 = vcmp.eq.s32.totalorder %v153, %v223
      %vm238 = vcmp.eq.s32.totalorder %v153, %v227
      %vm239 = vcmp.eq.s32.totalorder %v153, %v231
      %vm240 = vcmp.eq.s32.totalorder %v154, %v219
      %vm241 = vcmp.eq.s32.totalorder %v154, %v223
      %vm242 = vcmp.eq.s32.totalorder %v154, %v227
      %vm243 = vcmp.eq.s32.totalorder %v154, %v231
      %vm244 = vcmp.eq.s32.totalorder %v155, %v219
      %vm245 = vcmp.eq.s32.totalorder %v155, %v223
      %vm246 = vcmp.eq.s32.totalorder %v155, %v227
      %vm247 = vcmp.eq.s32.totalorder %v155, %v231
      %vm248 = vcmp.eq.s32.totalorder %v156, %v219
      %vm249 = vcmp.eq.s32.totalorder %v156, %v223
      %vm250 = vcmp.eq.s32.totalorder %v156, %v227
      %vm251 = vcmp.eq.s32.totalorder %v156, %v231
      %vm252 = vcmp.eq.s32.totalorder %v157, %v219
      %vm253 = vcmp.eq.s32.totalorder %v157, %v223
      %vm254 = vcmp.eq.s32.totalorder %v157, %v227
      %vm255 = vcmp.eq.s32.totalorder %v157, %v231
      %vm256 = vcmp.eq.s32.totalorder %v158, %v219
      %vm257 = vcmp.eq.s32.totalorder %v158, %v223
      %vm258 = vcmp.eq.s32.totalorder %v158, %v227
      %vm259 = vcmp.eq.s32.totalorder %v158, %v231
      %vm260 = vcmp.eq.s32.totalorder %v159, %v219
      %vm261 = vcmp.eq.s32.totalorder %v159, %v223
      %vm262 = vcmp.eq.s32.totalorder %v159, %v227
      %vm263 = vcmp.eq.s32.totalorder %v159, %v231
      %vm264 = vcmp.eq.s32.totalorder %v160, %v219
      %vm265 = vcmp.eq.s32.totalorder %v160, %v223
      %vm266 = vcmp.eq.s32.totalorder %v160, %v227
      %vm267 = vcmp.eq.s32.totalorder %v160, %v231
      %vm268 = vcmp.eq.s32.totalorder %v161, %v219
      %vm269 = vcmp.eq.s32.totalorder %v161, %v223
      %vm270 = vcmp.eq.s32.totalorder %v161, %v227
      %vm271 = vcmp.eq.s32.totalorder %v161, %v231
      %vm272 = vcmp.eq.s32.totalorder %v162, %v219
      %vm273 = vcmp.eq.s32.totalorder %v162, %v223
      %vm274 = vcmp.eq.s32.totalorder %v162, %v227
      %vm275 = vcmp.eq.s32.totalorder %v162, %v231
      %vm276 = vcmp.eq.s32.totalorder %v163, %v219
      %vm277 = vcmp.eq.s32.totalorder %v163, %v223
      %vm278 = vcmp.eq.s32.totalorder %v163, %v227
      %vm279 = vcmp.eq.s32.totalorder %v163, %v231
      %vm280 = vcmp.eq.s32.totalorder %v164, %v219
      %vm281 = vcmp.eq.s32.totalorder %v164, %v223
      %vm282 = vcmp.eq.s32.totalorder %v164, %v227
      %vm283 = vcmp.eq.s32.totalorder %v164, %v231
      %vm284 = vcmp.eq.s32.totalorder %v165, %v219
      %vm285 = vcmp.eq.s32.totalorder %v165, %v223
      %vm286 = vcmp.eq.s32.totalorder %v165, %v227
      %vm287 = vcmp.eq.s32.totalorder %v165, %v231
      %vm288 = vcmp.eq.s32.totalorder %v166, %v219
      %vm289 = vcmp.eq.s32.totalorder %v166, %v223
      %vm290 = vcmp.eq.s32.totalorder %v166, %v227
      %vm291 = vcmp.eq.s32.totalorder %v166, %v231
      %vm292 = vcmp.eq.s32.totalorder %v167, %v219
      %vm293 = vcmp.eq.s32.totalorder %v167, %v223
      %vm294 = vcmp.eq.s32.totalorder %v167, %v227
      %vm295 = vcmp.eq.s32.totalorder %v167, %v231
      %vm296 = vcmp.eq.s32.totalorder %v168, %v219
      %vm297 = vcmp.eq.s32.totalorder %v168, %v223
      %vm298 = vcmp.eq.s32.totalorder %v168, %v227
      %vm299 = vcmp.eq.s32.totalorder %v168, %v231
      %vm300 = vcmp.eq.s32.totalorder %v169, %v219
      %vm301 = vcmp.eq.s32.totalorder %v169, %v223
      %vm302 = vcmp.eq.s32.totalorder %v169, %v227
      %vm303 = vcmp.eq.s32.totalorder %v169, %v231
      %vm304 = vcmp.eq.s32.totalorder %v170, %v219
      %vm305 = vcmp.eq.s32.totalorder %v170, %v223
      %vm306 = vcmp.eq.s32.totalorder %v170, %v227
      %vm307 = vcmp.eq.s32.totalorder %v170, %v231
      %vm308 = vcmp.eq.s32.totalorder %v171, %v219
      %vm309 = vcmp.eq.s32.totalorder %v171, %v223
      %vm310 = vcmp.eq.s32.totalorder %v171, %v227
      %vm311 = vcmp.eq.s32.totalorder %v171, %v231
      %vm312 = vcmp.eq.s32.totalorder %v172, %v219
      %vm313 = vcmp.eq.s32.totalorder %v172, %v223
      %vm314 = vcmp.eq.s32.totalorder %v172, %v227
      %vm315 = vcmp.eq.s32.totalorder %v172, %v231
      %vm316 = vcmp.eq.s32.totalorder %v173, %v219
      %vm317 = vcmp.eq.s32.totalorder %v173, %v223
      %vm318 = vcmp.eq.s32.totalorder %v173, %v227
      %vm319 = vcmp.eq.s32.totalorder %v173, %v231
      %vm320 = vcmp.eq.s32.totalorder %v174, %v219
      %vm321 = vcmp.eq.s32.totalorder %v174, %v223
      %vm322 = vcmp.eq.s32.totalorder %v174, %v227
      %vm323 = vcmp.eq.s32.totalorder %v174, %v231
      %vm324 = vcmp.eq.s32.totalorder %v175, %v219
      %vm325 = vcmp.eq.s32.totalorder %v175, %v223
      %vm326 = vcmp.eq.s32.totalorder %v175, %v227
      %vm327 = vcmp.eq.s32.totalorder %v175, %v231
      %vm328 = vcmp.eq.s32.totalorder %v176, %v219
      %vm329 = vcmp.eq.s32.totalorder %v176, %v223
      %vm330 = vcmp.eq.s32.totalorder %v176, %v227
      %vm331 = vcmp.eq.s32.totalorder %v176, %v231
      %vm332 = vcmp.eq.s32.totalorder %v177, %v219
      %vm333 = vcmp.eq.s32.totalorder %v177, %v223
      %vm334 = vcmp.eq.s32.totalorder %v177, %v227
      %vm335 = vcmp.eq.s32.totalorder %v177, %v231
      %vm336 = vcmp.eq.s32.totalorder %v178, %v219
      %vm337 = vcmp.eq.s32.totalorder %v178, %v223
      %vm338 = vcmp.eq.s32.totalorder %v178, %v227
      %vm339 = vcmp.eq.s32.totalorder %v178, %v231
      %vm340 = vcmp.eq.s32.totalorder %v179, %v219
      %vm341 = vcmp.eq.s32.totalorder %v179, %v223
      %vm342 = vcmp.eq.s32.totalorder %v179, %v227
      %vm343 = vcmp.eq.s32.totalorder %v179, %v231
      %vm344 = vcmp.eq.s32.totalorder %v180, %v219
      %vm345 = vcmp.eq.s32.totalorder %v180, %v223
      %vm346 = vcmp.eq.s32.totalorder %v180, %v227
      %vm347 = vcmp.eq.s32.totalorder %v180, %v231
      %vm348 = vcmp.eq.s32.totalorder %v181, %v219
      %vm349 = vcmp.eq.s32.totalorder %v181, %v223
      %vm350 = vcmp.eq.s32.totalorder %v181, %v227
      %vm351 = vcmp.eq.s32.totalorder %v181, %v231
      %vm352 = vcmp.eq.s32.totalorder %v182, %v219
      %vm353 = vcmp.eq.s32.totalorder %v182, %v223
      %vm354 = vcmp.eq.s32.totalorder %v182, %v227
      %vm355 = vcmp.eq.s32.totalorder %v182, %v231
      %vm356 = vcmp.eq.s32.totalorder %v183, %v219
      %vm357 = vcmp.eq.s32.totalorder %v183, %v223
      %vm358 = vcmp.eq.s32.totalorder %v183, %v227
      %vm359 = vcmp.eq.s32.totalorder %v183, %v231
      %vm360 = vcmp.eq.s32.totalorder %v184, %v219
      %vm361 = vcmp.eq.s32.totalorder %v184, %v223
      %vm362 = vcmp.eq.s32.totalorder %v184, %v227
      %vm363 = vcmp.eq.s32.totalorder %v184, %v231
      %vm364 = vcmp.eq.s32.totalorder %v185, %v219
      %vm365 = vcmp.eq.s32.totalorder %v185, %v223
      %vm366 = vcmp.eq.s32.totalorder %v185, %v227
      %vm367 = vcmp.eq.s32.totalorder %v185, %v231
      %vm368 = vcmp.eq.s32.totalorder %v186, %v219
      %vm369 = vcmp.eq.s32.totalorder %v186, %v223
      %vm370 = vcmp.eq.s32.totalorder %v186, %v227
      %vm371 = vcmp.eq.s32.totalorder %v186, %v231
      %vm372 = vcmp.eq.s32.totalorder %v187, %v219
      %vm373 = vcmp.eq.s32.totalorder %v187, %v223
      %vm374 = vcmp.eq.s32.totalorder %v187, %v227
      %vm375 = vcmp.eq.s32.totalorder %v187, %v231
      %vm376 = vcmp.eq.s32.totalorder %v188, %v219
      %vm377 = vcmp.eq.s32.totalorder %v188, %v223
      %vm378 = vcmp.eq.s32.totalorder %v188, %v227
      %vm379 = vcmp.eq.s32.totalorder %v188, %v231
      %vm380 = vcmp.eq.s32.totalorder %v189, %v219
      %vm381 = vcmp.eq.s32.totalorder %v189, %v223
      %vm382 = vcmp.eq.s32.totalorder %v189, %v227
      %vm383 = vcmp.eq.s32.totalorder %v189, %v231
      %vm384 = vcmp.eq.s32.totalorder %v190, %v219
      %vm385 = vcmp.eq.s32.totalorder %v190, %v223
      %vm386 = vcmp.eq.s32.totalorder %v190, %v227
      %vm387 = vcmp.eq.s32.totalorder %v190, %v231
      %vm388 = vcmp.eq.s32.totalorder %v191, %v219
      %vm389 = vcmp.eq.s32.totalorder %v191, %v223
      %vm390 = vcmp.eq.s32.totalorder %v191, %v227
      %vm391 = vcmp.eq.s32.totalorder %v191, %v231
      %vm392 = vcmp.eq.s32.totalorder %v192, %v219
      %vm393 = vcmp.eq.s32.totalorder %v192, %v223
      %vm394 = vcmp.eq.s32.totalorder %v192, %v227
      %vm395 = vcmp.eq.s32.totalorder %v192, %v231
      %vm396 = vcmp.eq.s32.totalorder %v193, %v219
      %vm397 = vcmp.eq.s32.totalorder %v193, %v223
      %vm398 = vcmp.eq.s32.totalorder %v193, %v227
      %vm399 = vcmp.eq.s32.totalorder %v193, %v231
      %vm400 = vcmp.eq.s32.totalorder %v194, %v219
      %vm401 = vcmp.eq.s32.totalorder %v194, %v223
      %vm402 = vcmp.eq.s32.totalorder %v194, %v227
      %vm403 = vcmp.eq.s32.totalorder %v194, %v231
      %vm404 = vcmp.eq.s32.totalorder %v195, %v219
      %vm405 = vcmp.eq.s32.totalorder %v195, %v223
      %vm406 = vcmp.eq.s32.totalorder %v195, %v227
      %vm407 = vcmp.eq.s32.totalorder %v195, %v231
      %vm408 = vcmp.eq.s32.totalorder %v196, %v219
      %vm409 = vcmp.eq.s32.totalorder %v196, %v223
      %vm410 = vcmp.eq.s32.totalorder %v196, %v227
      %vm411 = vcmp.eq.s32.totalorder %v196, %v231
      %vm412 = vcmp.eq.s32.totalorder %v197, %v219
      %vm413 = vcmp.eq.s32.totalorder %v197, %v223
      %vm414 = vcmp.eq.s32.totalorder %v197, %v227
      %vm415 = vcmp.eq.s32.totalorder %v197, %v231
      %vm416 = vcmp.eq.s32.totalorder %v198, %v219
      %vm417 = vcmp.eq.s32.totalorder %v198, %v223
      %vm418 = vcmp.eq.s32.totalorder %v198, %v227
      %vm419 = vcmp.eq.s32.totalorder %v198, %v231
      %vm420 = vcmp.eq.s32.totalorder %v199, %v219
      %vm421 = vcmp.eq.s32.totalorder %v199, %v223
      %vm422 = vcmp.eq.s32.totalorder %v199, %v227
      %vm423 = vcmp.eq.s32.totalorder %v199, %v231
      %vm424 = vcmp.eq.s32.totalorder %v200, %v219
      %vm425 = vcmp.eq.s32.totalorder %v200, %v223
      %vm426 = vcmp.eq.s32.totalorder %v200, %v227
      %vm427 = vcmp.eq.s32.totalorder %v200, %v231
      %vm428 = vcmp.eq.s32.totalorder %v201, %v219
      %vm429 = vcmp.eq.s32.totalorder %v201, %v223
      %vm430 = vcmp.eq.s32.totalorder %v201, %v227
      %vm431 = vcmp.eq.s32.totalorder %v201, %v231
      %vm432 = vcmp.eq.s32.totalorder %v202, %v219
      %vm433 = vcmp.eq.s32.totalorder %v202, %v223
      %vm434 = vcmp.eq.s32.totalorder %v202, %v227
      %vm435 = vcmp.eq.s32.totalorder %v202, %v231
      %vm436 = vcmp.eq.s32.totalorder %v203, %v219
      %vm437 = vcmp.eq.s32.totalorder %v203, %v223
      %vm438 = vcmp.eq.s32.totalorder %v203, %v227
      %vm439 = vcmp.eq.s32.totalorder %v203, %v231
      %vm440 = vcmp.eq.s32.totalorder %v204, %v219
      %vm441 = vcmp.eq.s32.totalorder %v204, %v223
      %vm442 = vcmp.eq.s32.totalorder %v204, %v227
      %vm443 = vcmp.eq.s32.totalorder %v204, %v231
      %vm444 = vcmp.eq.s32.totalorder %v205, %v219
      %vm445 = vcmp.eq.s32.totalorder %v205, %v223
      %vm446 = vcmp.eq.s32.totalorder %v205, %v227
      %vm447 = vcmp.eq.s32.totalorder %v205, %v231
      %vm448 = vcmp.eq.s32.totalorder %v206, %v219
      %vm449 = vcmp.eq.s32.totalorder %v206, %v223
      %vm450 = vcmp.eq.s32.totalorder %v206, %v227
      %vm451 = vcmp.eq.s32.totalorder %v206, %v231
      %vm452 = vcmp.eq.s32.totalorder %v207, %v219
      %vm453 = vcmp.eq.s32.totalorder %v207, %v223
      %vm454 = vcmp.eq.s32.totalorder %v207, %v227
      %vm455 = vcmp.eq.s32.totalorder %v207, %v231
      %vm456 = vcmp.eq.s32.totalorder %v208, %v219
      %vm457 = vcmp.eq.s32.totalorder %v208, %v223
      %vm458 = vcmp.eq.s32.totalorder %v208, %v227
      %vm459 = vcmp.eq.s32.totalorder %v208, %v231
      %vm460 = vcmp.eq.s32.totalorder %v209, %v219
      %vm461 = vcmp.eq.s32.totalorder %v209, %v223
      %vm462 = vcmp.eq.s32.totalorder %v209, %v227
      %vm463 = vcmp.eq.s32.totalorder %v209, %v231
      %vm464 = vcmp.eq.s32.totalorder %v210, %v219
      %vm465 = vcmp.eq.s32.totalorder %v210, %v223
      %vm466 = vcmp.eq.s32.totalorder %v210, %v227
      %vm467 = vcmp.eq.s32.totalorder %v210, %v231
      %vm468 = vcmp.eq.s32.totalorder %v211, %v219
      %vm469 = vcmp.eq.s32.totalorder %v211, %v223
      %vm470 = vcmp.eq.s32.totalorder %v211, %v227
      %vm471 = vcmp.eq.s32.totalorder %v211, %v231
      %vm472 = vcmp.eq.s32.totalorder %v212, %v219
      %vm473 = vcmp.eq.s32.totalorder %v212, %v223
      %vm474 = vcmp.eq.s32.totalorder %v212, %v227
      %vm475 = vcmp.eq.s32.totalorder %v212, %v231
      %vm476 = vcmp.eq.s32.totalorder %v213, %v219
      %vm477 = vcmp.eq.s32.totalorder %v213, %v223
      %vm478 = vcmp.eq.s32.totalorder %v213, %v227
      %vm479 = vcmp.eq.s32.totalorder %v213, %v231
      %vm480 = vcmp.eq.s32.totalorder %v214, %v219
      %vm481 = vcmp.eq.s32.totalorder %v214, %v223
      %vm482 = vcmp.eq.s32.totalorder %v214, %v227
      %vm483 = vcmp.eq.s32.totalorder %v214, %v231
      %vm484 = vcmp.eq.s32.totalorder %v215, %v219
      %vm485 = vcmp.eq.s32.totalorder %v215, %v223
      %vm486 = vcmp.eq.s32.totalorder %v215, %v227
      %vm487 = vcmp.eq.s32.totalorder %v215, %v231
      %v488 = vsel %vm232, 1, 0
      %v489 = vsel %vm233, 1, 0
      %v490 = vsel %vm234, 1, 0
      %v491 = vsel %vm235, 1, 0
      %v492 = vsel %vm236, 1, 0
      %v493 = vsel %vm237, 1, 0
      %v494 = vsel %vm238, 1, 0
      %v495 = vsel %vm239, 1, 0
      %v496 = vsel %vm240, 1, 0
      %v497 = vsel %vm241, 1, 0
      %v498 = vsel %vm242, 1, 0
      %v499 = vsel %vm243, 1, 0
      %v500 = vsel %vm244, 1, 0
      %v501 = vsel %vm245, 1, 0
      %v502 = vsel %vm246, 1, 0
      %v503 = vsel %vm247, 1, 0
      %v504 = vsel %vm248, 1, 0
      %v505 = vsel %vm249, 1, 0
      %v506 = vsel %vm250, 1, 0
      %v507 = vsel %vm251, 1, 0
      %v508 = vsel %vm252, 1, 0
      %v509 = vsel %vm253, 1, 0
      %v510 = vsel %vm254, 1, 0
      %v511 = vsel %vm255, 1, 0
      %v512 = vsel %vm256, 1, 0
      %v513 = vsel %vm257, 1, 0
      %v514 = vsel %vm258, 1, 0
      %v515 = vsel %vm259, 1, 0
      %v516 = vsel %vm260, 1, 0
      %v517 = vsel %vm261, 1, 0
      %v518 = vsel %vm262, 1, 0
      %v519 = vsel %vm263, 1, 0
      %v520 = vsel %vm264, 1, 0
      %v521 = vsel %vm265, 1, 0
      %v522 = vsel %vm266, 1, 0
      %v523 = vsel %vm267, 1, 0
      %v524 = vsel %vm268, 1, 0
      %v525 = vsel %vm269, 1, 0
      %v526 = vsel %vm270, 1, 0
      %v527 = vsel %vm271, 1, 0
      %v528 = vsel %vm272, 1, 0
      %v529 = vsel %vm273, 1, 0
      %v530 = vsel %vm274, 1, 0
      %v531 = vsel %vm275, 1, 0
      %v532 = vsel %vm276, 1, 0
      %v533 = vsel %vm277, 1, 0
      %v534 = vsel %vm278, 1, 0
      %v535 = vsel %vm279, 1, 0
      %v536 = vsel %vm280, 1, 0
      %v537 = vsel %vm281, 1, 0
      %v538 = vsel %vm282, 1, 0
      %v539 = vsel %vm283, 1, 0
      %v540 = vsel %vm284, 1, 0
      %v541 = vsel %vm285, 1, 0
      %v542 = vsel %vm286, 1, 0
      %v543 = vsel %vm287, 1, 0
      %v544 = vsel %vm288, 1, 0
      %v545 = vsel %vm289, 1, 0
      %v546 = vsel %vm290, 1, 0
      %v547 = vsel %vm291, 1, 0
      %v548 = vsel %vm292, 1, 0
      %v549 = vsel %vm293, 1, 0
      %v550 = vsel %vm294, 1, 0
      %v551 = vsel %vm295, 1, 0
      %v552 = vsel %vm296, 1, 0
      %v553 = vsel %vm297, 1, 0
      %v554 = vsel %vm298, 1, 0
      %v555 = vsel %vm299, 1, 0
      %v556 = vsel %vm300, 1, 0
      %v557 = vsel %vm301, 1, 0
      %v558 = vsel %vm302, 1, 0
      %v559 = vsel %vm303, 1, 0
      %v560 = vsel %vm304, 1, 0
      %v561 = vsel %vm305, 1, 0
      %v562 = vsel %vm306, 1, 0
      %v563 = vsel %vm307, 1, 0
      %v564 = vsel %vm308, 1, 0
      %v565 = vsel %vm309, 1, 0
      %v566 = vsel %vm310, 1, 0
      %v567 = vsel %vm311, 1, 0
      %v568 = vsel %vm312, 1, 0
      %v569 = vsel %vm313, 1, 0
      %v570 = vsel %vm314, 1, 0
      %v571 = vsel %vm315, 1, 0
      %v572 = vsel %vm316, 1, 0
      %v573 = vsel %vm317, 1, 0
      %v574 = vsel %vm318, 1, 0
      %v575 = vsel %vm319, 1, 0
      %v576 = vsel %vm320, 1, 0
      %v577 = vsel %vm321, 1, 0
      %v578 = vsel %vm322, 1, 0
      %v579 = vsel %vm323, 1, 0
      %v580 = vsel %vm324, 1, 0
      %v581 = vsel %vm325, 1, 0
      %v582 = vsel %vm326, 1, 0
      %v583 = vsel %vm327, 1, 0
      %v584 = vsel %vm328, 1, 0
      %v585 = vsel %vm329, 1, 0
      %v586 = vsel %vm330, 1, 0
      %v587 = vsel %vm331, 1, 0
      %v588 = vsel %vm332, 1, 0
      %v589 = vsel %vm333, 1, 0
      %v590 = vsel %vm334, 1, 0
      %v591 = vsel %vm335, 1, 0
      %v592 = vsel %vm336, 1, 0
      %v593 = vsel %vm337, 1, 0
      %v594 = vsel %vm338, 1, 0
      %v595 = vsel %vm339, 1, 0
      %v596 = vsel %vm340, 1, 0
      %v597 = vsel %vm341, 1, 0
      %v598 = vsel %vm342, 1, 0
      %v599 = vsel %vm343, 1, 0
      %v600 = vsel %vm344, 1, 0
      %v601 = vsel %vm345, 1, 0
      %v602 = vsel %vm346, 1, 0
      %v603 = vsel %vm347, 1, 0
      %v604 = vsel %vm348, 1, 0
      %v605 = vsel %vm349, 1, 0
      %v606 = vsel %vm350, 1, 0
      %v607 = vsel %vm351, 1, 0
      %v608 = vsel %vm352, 1, 0
      %v609 = vsel %vm353, 1, 0
      %v610 = vsel %vm354, 1, 0
      %v611 = vsel %vm355, 1, 0
      %v612 = vsel %vm356, 1, 0
      %v613 = vsel %vm357, 1, 0
      %v614 = vsel %vm358, 1, 0
      %v615 = vsel %vm359, 1, 0
      %v616 = vsel %vm360, 1, 0
      %v617 = vsel %vm361, 1, 0
      %v618 = vsel %vm362, 1, 0
      %v619 = vsel %vm363, 1, 0
      %v620 = vsel %vm364, 1, 0
      %v621 = vsel %vm365, 1, 0
      %v622 = vsel %vm366, 1, 0
      %v623 = vsel %vm367, 1, 0
      %v624 = vsel %vm368, 1, 0
      %v625 = vsel %vm369, 1, 0
      %v626 = vsel %vm370, 1, 0
      %v627 = vsel %vm371, 1, 0
      %v628 = vsel %vm372, 1, 0
      %v629 = vsel %vm373, 1, 0
      %v630 = vsel %vm374, 1, 0
      %v631 = vsel %vm375, 1, 0
      %v632 = vsel %vm376, 1, 0
      %v633 = vsel %vm377, 1, 0
      %v634 = vsel %vm378, 1, 0
      %v635 = vsel %vm379, 1, 0
      %v636 = vsel %vm380, 1, 0
      %v637 = vsel %vm381, 1, 0
      %v638 = vsel %vm382, 1, 0
      %v639 = vsel %vm383, 1, 0
      %v640 = vsel %vm384, 1, 0
      %v641 = vsel %vm385, 1, 0
      %v642 = vsel %vm386, 1, 0
      %v643 = vsel %vm387, 1, 0
      %v644 = vsel %vm388, 1, 0
      %v645 = vsel %vm389, 1, 0
      %v646 = vsel %vm390, 1, 0
      %v647 = vsel %vm391, 1, 0
      %v648 = vsel %vm392, 1, 0
      %v649 = vsel %vm393, 1, 0
      %v650 = vsel %vm394, 1, 0
      %v651 = vsel %vm395, 1, 0
      %v652 = vsel %vm396, 1, 0
      %v653 = vsel %vm397, 1, 0
      %v654 = vsel %vm398, 1, 0
      %v655 = vsel %vm399, 1, 0
      %v656 = vsel %vm400, 1, 0
      %v657 = vsel %vm401, 1, 0
      %v658 = vsel %vm402, 1, 0
      %v659 = vsel %vm403, 1, 0
      %v660 = vsel %vm404, 1, 0
      %v661 = vsel %vm405, 1, 0
      %v662 = vsel %vm406, 1, 0
      %v663 = vsel %vm407, 1, 0
      %v664 = vsel %vm408, 1, 0
      %v665 = vsel %vm409, 1, 0
      %v666 = vsel %vm410, 1, 0
      %v667 = vsel %vm411, 1, 0
      %v668 = vsel %vm412, 1, 0
      %v669 = vsel %vm413, 1, 0
      %v670 = vsel %vm414, 1, 0
      %v671 = vsel %vm415, 1, 0
      %v672 = vsel %vm416, 1, 0
      %v673 = vsel %vm417, 1, 0
      %v674 = vsel %vm418, 1, 0
      %v675 = vsel %vm419, 1, 0
      %v676 = vsel %vm420, 1, 0
      %v677 = vsel %vm421, 1, 0
      %v678 = vsel %vm422, 1, 0
      %v679 = vsel %vm423, 1, 0
      %v680 = vsel %vm424, 1, 0
      %v681 = vsel %vm425, 1, 0
      %v682 = vsel %vm426, 1, 0
      %v683 = vsel %vm427, 1, 0
      %v684 = vsel %vm428, 1, 0
      %v685 = vsel %vm429, 1, 0
      %v686 = vsel %vm430, 1, 0
      %v687 = vsel %vm431, 1, 0
      %v688 = vsel %vm432, 1, 0
      %v689 = vsel %vm433, 1, 0
      %v690 = vsel %vm434, 1, 0
      %v691 = vsel %vm435, 1, 0
      %v692 = vsel %vm436, 1, 0
      %v693 = vsel %vm437, 1, 0
      %v694 = vsel %vm438, 1, 0
      %v695 = vsel %vm439, 1, 0
      %v696 = vsel %vm440, 1, 0
      %v697 = vsel %vm441, 1, 0
      %v698 = vsel %vm442, 1, 0
      %v699 = vsel %vm443, 1, 0
      %v700 = vsel %vm444, 1, 0
      %v701 = vsel %vm445, 1, 0
      %v702 = vsel %vm446, 1, 0
      %v703 = vsel %vm447, 1, 0
      %v704 = vsel %vm448, 1, 0
      %v705 = vsel %vm449, 1, 0
      %v706 = vsel %vm450, 1, 0
      %v707 = vsel %vm451, 1, 0
      %v708 = vsel %vm452, 1, 0
      %v709 = vsel %vm453, 1, 0
      %v710 = vsel %vm454, 1, 0
      %v711 = vsel %vm455, 1, 0
      %v712 = vsel %vm456, 1, 0
      %v713 = vsel %vm457, 1, 0
      %v714 = vsel %vm458, 1, 0
      %v715 = vsel %vm459, 1, 0
      %v716 = vsel %vm460, 1, 0
      %v717 = vsel %vm461, 1, 0
      %v718 = vsel %vm462, 1, 0
      %v719 = vsel %vm463, 1, 0
      %v720 = vsel %vm464, 1, 0
      %v721 = vsel %vm465, 1, 0
      %v722 = vsel %vm466, 1, 0
      %v723 = vsel %vm467, 1, 0
      %v724 = vsel %vm468, 1, 0
      %v725 = vsel %vm469, 1, 0
      %v726 = vsel %vm470, 1, 0
      %v727 = vsel %vm471, 1, 0
      %v728 = vsel %vm472, 1, 0
      %v729 = vsel %vm473, 1, 0
      %v730 = vsel %vm474, 1, 0
      %v731 = vsel %vm475, 1, 0
      %v732 = vsel %vm476, 1, 0
      %v733 = vsel %vm477, 1, 0
      %v734 = vsel %vm478, 1, 0
      %v735 = vsel %vm479, 1, 0
      %v736 = vsel %vm480, 1, 0
      %v737 = vsel %vm481, 1, 0
      %v738 = vsel %vm482, 1, 0
      %v739 = vsel %vm483, 1, 0
      %v740 = vsel %vm484, 1, 0
      %v741 = vsel %vm485, 1, 0
      %v742 = vsel %vm486, 1, 0
      %v743 = vsel %vm487, 1, 0
      %v744 = vcvt.s32.f32 %v488
      %v745 = vcvt.s32.f32 %v489
      %v746 = vcvt.s32.f32 %v490
      %v747 = vcvt.s32.f32 %v491
      %v748 = vcvt.s32.f32 %v492
      %v749 = vcvt.s32.f32 %v493
      %v750 = vcvt.s32.f32 %v494
      %v751 = vcvt.s32.f32 %v495
      %v752 = vcvt.s32.f32 %v496
      %v753 = vcvt.s32.f32 %v497
      %v754 = vcvt.s32.f32 %v498
      %v755 = vcvt.s32.f32 %v499
      %v756 = vcvt.s32.f32 %v500
      %v757 = vcvt.s32.f32 %v501
      %v758 = vcvt.s32.f32 %v502
      %v759 = vcvt.s32.f32 %v503
      %v760 = vcvt.s32.f32 %v504
      %v761 = vcvt.s32.f32 %v505
      %v762 = vcvt.s32.f32 %v506
      %v763 = vcvt.s32.f32 %v507
      %v764 = vcvt.s32.f32 %v508
      %v765 = vcvt.s32.f32 %v509
      %v766 = vcvt.s32.f32 %v510
      %v767 = vcvt.s32.f32 %v511
      %v768 = vcvt.s32.f32 %v512
      %v769 = vcvt.s32.f32 %v513
      %v770 = vcvt.s32.f32 %v514
      %v771 = vcvt.s32.f32 %v515
      %v772 = vcvt.s32.f32 %v516
      %v773 = vcvt.s32.f32 %v517
      %v774 = vcvt.s32.f32 %v518
      %v775 = vcvt.s32.f32 %v519
      %v776 = vcvt.s32.f32 %v520
      %v777 = vcvt.s32.f32 %v521
      %v778 = vcvt.s32.f32 %v522
      %v779 = vcvt.s32.f32 %v523
      %v780 = vcvt.s32.f32 %v524
      %v781 = vcvt.s32.f32 %v525
      %v782 = vcvt.s32.f32 %v526
      %v783 = vcvt.s32.f32 %v527
      %v784 = vcvt.s32.f32 %v528
      %v785 = vcvt.s32.f32 %v529
      %v786 = vcvt.s32.f32 %v530
      %v787 = vcvt.s32.f32 %v531
      %v788 = vcvt.s32.f32 %v532
      %v789 = vcvt.s32.f32 %v533
      %v790 = vcvt.s32.f32 %v534
      %v791 = vcvt.s32.f32 %v535
      %v792 = vcvt.s32.f32 %v536
      %v793 = vcvt.s32.f32 %v537
      %v794 = vcvt.s32.f32 %v538
      %v795 = vcvt.s32.f32 %v539
      %v796 = vcvt.s32.f32 %v540
      %v797 = vcvt.s32.f32 %v541
      %v798 = vcvt.s32.f32 %v542
      %v799 = vcvt.s32.f32 %v543
      %v800 = vcvt.s32.f32 %v544
      %v801 = vcvt.s32.f32 %v545
      %v802 = vcvt.s32.f32 %v546
      %v803 = vcvt.s32.f32 %v547
      %v804 = vcvt.s32.f32 %v548
      %v805 = vcvt.s32.f32 %v549
      %v806 = vcvt.s32.f32 %v550
      %v807 = vcvt.s32.f32 %v551
      %v808 = vcvt.s32.f32 %v552
      %v809 = vcvt.s32.f32 %v553
      %v810 = vcvt.s32.f32 %v554
      %v811 = vcvt.s32.f32 %v555
      %v812 = vcvt.s32.f32 %v556
      %v813 = vcvt.s32.f32 %v557
      %v814 = vcvt.s32.f32 %v558
      %v815 = vcvt.s32.f32 %v559
      %v816 = vcvt.s32.f32 %v560
      %v817 = vcvt.s32.f32 %v561
      %v818 = vcvt.s32.f32 %v562
      %v819 = vcvt.s32.f32 %v563
      %v820 = vcvt.s32.f32 %v564
      %v821 = vcvt.s32.f32 %v565
      %v822 = vcvt.s32.f32 %v566
      %v823 = vcvt.s32.f32 %v567
      %v824 = vcvt.s32.f32 %v568
      %v825 = vcvt.s32.f32 %v569
      %v826 = vcvt.s32.f32 %v570
      %v827 = vcvt.s32.f32 %v571
      %v828 = vcvt.s32.f32 %v572
      %v829 = vcvt.s32.f32 %v573
      %v830 = vcvt.s32.f32 %v574
      %v831 = vcvt.s32.f32 %v575
      %v832 = vcvt.s32.f32 %v576
      %v833 = vcvt.s32.f32 %v577
      %v834 = vcvt.s32.f32 %v578
      %v835 = vcvt.s32.f32 %v579
      %v836 = vcvt.s32.f32 %v580
      %v837 = vcvt.s32.f32 %v581
      %v838 = vcvt.s32.f32 %v582
      %v839 = vcvt.s32.f32 %v583
      %v840 = vcvt.s32.f32 %v584
      %v841 = vcvt.s32.f32 %v585
      %v842 = vcvt.s32.f32 %v586
      %v843 = vcvt.s32.f32 %v587
      %v844 = vcvt.s32.f32 %v588
      %v845 = vcvt.s32.f32 %v589
      %v846 = vcvt.s32.f32 %v590
      %v847 = vcvt.s32.f32 %v591
      %v848 = vcvt.s32.f32 %v592
      %v849 = vcvt.s32.f32 %v593
      %v850 = vcvt.s32.f32 %v594
      %v851 = vcvt.s32.f32 %v595
      %v852 = vcvt.s32.f32 %v596
      %v853 = vcvt.s32.f32 %v597
      %v854 = vcvt.s32.f32 %v598
      %v855 = vcvt.s32.f32 %v599
      %v856 = vcvt.s32.f32 %v600
      %v857 = vcvt.s32.f32 %v601
      %v858 = vcvt.s32.f32 %v602
      %v859 = vcvt.s32.f32 %v603
      %v860 = vcvt.s32.f32 %v604
      %v861 = vcvt.s32.f32 %v605
      %v862 = vcvt.s32.f32 %v606
      %v863 = vcvt.s32.f32 %v607
      %v864 = vcvt.s32.f32 %v608
      %v865 = vcvt.s32.f32 %v609
      %v866 = vcvt.s32.f32 %v610
      %v867 = vcvt.s32.f32 %v611
      %v868 = vcvt.s32.f32 %v612
      %v869 = vcvt.s32.f32 %v613
      %v870 = vcvt.s32.f32 %v614
      %v871 = vcvt.s32.f32 %v615
      %v872 = vcvt.s32.f32 %v616
      %v873 = vcvt.s32.f32 %v617
      %v874 = vcvt.s32.f32 %v618
      %v875 = vcvt.s32.f32 %v619
      %v876 = vcvt.s32.f32 %v620
      %v877 = vcvt.s32.f32 %v621
      %v878 = vcvt.s32.f32 %v622
      %v879 = vcvt.s32.f32 %v623
      %v880 = vcvt.s32.f32 %v624
      %v881 = vcvt.s32.f32 %v625
      %v882 = vcvt.s32.f32 %v626
      %v883 = vcvt.s32.f32 %v627
      %v884 = vcvt.s32.f32 %v628
      %v885 = vcvt.s32.f32 %v629
      %v886 = vcvt.s32.f32 %v630
      %v887 = vcvt.s32.f32 %v631
      %v888 = vcvt.s32.f32 %v632
      %v889 = vcvt.s32.f32 %v633
      %v890 = vcvt.s32.f32 %v634
      %v891 = vcvt.s32.f32 %v635
      %v892 = vcvt.s32.f32 %v636
      %v893 = vcvt.s32.f32 %v637
      %v894 = vcvt.s32.f32 %v638
      %v895 = vcvt.s32.f32 %v639
      %v896 = vcvt.s32.f32 %v640
      %v897 = vcvt.s32.f32 %v641
      %v898 = vcvt.s32.f32 %v642
      %v899 = vcvt.s32.f32 %v643
      %v900 = vcvt.s32.f32 %v644
      %v901 = vcvt.s32.f32 %v645
      %v902 = vcvt.s32.f32 %v646
      %v903 = vcvt.s32.f32 %v647
      %v904 = vcvt.s32.f32 %v648
      %v905 = vcvt.s32.f32 %v649
      %v906 = vcvt.s32.f32 %v650
      %v907 = vcvt.s32.f32 %v651
      %v908 = vcvt.s32.f32 %v652
      %v909 = vcvt.s32.f32 %v653
      %v910 = vcvt.s32.f32 %v654
      %v911 = vcvt.s32.f32 %v655
      %v912 = vcvt.s32.f32 %v656
      %v913 = vcvt.s32.f32 %v657
      %v914 = vcvt.s32.f32 %v658
      %v915 = vcvt.s32.f32 %v659
      %v916 = vcvt.s32.f32 %v660
      %v917 = vcvt.s32.f32 %v661
      %v918 = vcvt.s32.f32 %v662
      %v919 = vcvt.s32.f32 %v663
      %v920 = vcvt.s32.f32 %v664
      %v921 = vcvt.s32.f32 %v665
      %v922 = vcvt.s32.f32 %v666
      %v923 = vcvt.s32.f32 %v667
      %v924 = vcvt.s32.f32 %v668
      %v925 = vcvt.s32.f32 %v669
      %v926 = vcvt.s32.f32 %v670
      %v927 = vcvt.s32.f32 %v671
      %v928 = vcvt.s32.f32 %v672
      %v929 = vcvt.s32.f32 %v673
      %v930 = vcvt.s32.f32 %v674
      %v931 = vcvt.s32.f32 %v675
      %v932 = vcvt.s32.f32 %v676
      %v933 = vcvt.s32.f32 %v677
      %v934 = vcvt.s32.f32 %v678
      %v935 = vcvt.s32.f32 %v679
      %v936 = vcvt.s32.f32 %v680
      %v937 = vcvt.s32.f32 %v681
      %v938 = vcvt.s32.f32 %v682
      %v939 = vcvt.s32.f32 %v683
      %v940 = vcvt.s32.f32 %v684
      %v941 = vcvt.s32.f32 %v685
      %v942 = vcvt.s32.f32 %v686
      %v943 = vcvt.s32.f32 %v687
      %v944 = vcvt.s32.f32 %v688
      %v945 = vcvt.s32.f32 %v689
      %v946 = vcvt.s32.f32 %v690
      %v947 = vcvt.s32.f32 %v691
      %v948 = vcvt.s32.f32 %v692
      %v949 = vcvt.s32.f32 %v693
      %v950 = vcvt.s32.f32 %v694
      %v951 = vcvt.s32.f32 %v695
      %v952 = vcvt.s32.f32 %v696
      %v953 = vcvt.s32.f32 %v697
      %v954 = vcvt.s32.f32 %v698
      %v955 = vcvt.s32.f32 %v699
      %v956 = vcvt.s32.f32 %v700
      %v957 = vcvt.s32.f32 %v701
      %v958 = vcvt.s32.f32 %v702
      %v959 = vcvt.s32.f32 %v703
      %v960 = vcvt.s32.f32 %v704
      %v961 = vcvt.s32.f32 %v705
      %v962 = vcvt.s32.f32 %v706
      %v963 = vcvt.s32.f32 %v707
      %v964 = vcvt.s32.f32 %v708
      %v965 = vcvt.s32.f32 %v709
      %v966 = vcvt.s32.f32 %v710
      %v967 = vcvt.s32.f32 %v711
      %v968 = vcvt.s32.f32 %v712
      %v969 = vcvt.s32.f32 %v713
      %v970 = vcvt.s32.f32 %v714
      %v971 = vcvt.s32.f32 %v715
      %v972 = vcvt.s32.f32 %v716
      %v973 = vcvt.s32.f32 %v717
      %v974 = vcvt.s32.f32 %v718
      %v975 = vcvt.s32.f32 %v719
      %v976 = vcvt.s32.f32 %v720
      %v977 = vcvt.s32.f32 %v721
      %v978 = vcvt.s32.f32 %v722
      %v979 = vcvt.s32.f32 %v723
      %v980 = vcvt.s32.f32 %v724
      %v981 = vcvt.s32.f32 %v725
      %v982 = vcvt.s32.f32 %v726
      %v983 = vcvt.s32.f32 %v727
      %v984 = vcvt.s32.f32 %v728
      %v985 = vcvt.s32.f32 %v729
      %v986 = vcvt.s32.f32 %v730
      %v987 = vcvt.s32.f32 %v731
      %v988 = vcvt.s32.f32 %v732
      %v989 = vcvt.s32.f32 %v733
      %v990 = vcvt.s32.f32 %v734
      %v991 = vcvt.s32.f32 %v735
      %v992 = vcvt.s32.f32 %v736
      %v993 = vcvt.s32.f32 %v737
      %v994 = vcvt.s32.f32 %v738
      %v995 = vcvt.s32.f32 %v739
      %v996 = vcvt.s32.f32 %v740
      %v997 = vcvt.s32.f32 %v741
      %v998 = vcvt.s32.f32 %v742
      %v999 = vcvt.s32.f32 %v743
      %v1000 = vld [vmem:[%s1] sm:$0xff]
      %v1001 = vld [vmem:[%s1 + $0x8] sm:$0xff]
      %v1002 = vld [vmem:[%s1 + $0x10] sm:$0xff]
      %v1003 = vld [vmem:[%s1 + $0x18] sm:$0xff]
      %v1004 = vlaneseq
      %v1005 = vshrl.u32 %v1004, 7
      %v1006 = vsub.s32 1, %v1005
      %v1007 = vrot.slane %v147, %v1006
      %v1008 = vlaneseq
      %v1009 = vshrl.u32 %v1008, 7
      %v1010 = vsub.s32 1, %v1009
      %v1011 = vrot.slane %v148, %v1010
      %v1012 = vlaneseq
      %v1013 = vshrl.u32 %v1012, 7
      %v1014 = vsub.s32 1, %v1013
      %v1015 = vrot.slane %v149, %v1014
      %v1016 = vlaneseq
      %v1017 = vshrl.u32 %v1016, 7
      %v1018 = vsub.s32 1, %v1017
      %v1019 = vrot.slane %v150, %v1018
      %vm1020 = vcmp.eq.s32.totalorder %v152, %v1007
      %vm1021 = vcmp.eq.s32.totalorder %v152, %v1011
      %vm1022 = vcmp.eq.s32.totalorder %v152, %v1015
      %vm1023 = vcmp.eq.s32.totalorder %v152, %v1019
      %vm1024 = vcmp.eq.s32.totalorder %v153, %v1007
      %vm1025 = vcmp.eq.s32.totalorder %v153, %v1011
      %vm1026 = vcmp.eq.s32.totalorder %v153, %v1015
      %vm1027 = vcmp.eq.s32.totalorder %v153, %v1019
      %vm1028 = vcmp.eq.s32.totalorder %v154, %v1007
      %vm1029 = vcmp.eq.s32.totalorder %v154, %v1011
      %vm1030 = vcmp.eq.s32.totalorder %v154, %v1015
      %vm1031 = vcmp.eq.s32.totalorder %v154, %v1019
      %vm1032 = vcmp.eq.s32.totalorder %v155, %v1007
      %vm1033 = vcmp.eq.s32.totalorder %v155, %v1011
      %vm1034 = vcmp.eq.s32.totalorder %v155, %v1015
      %vm1035 = vcmp.eq.s32.totalorder %v155, %v1019
      %vm1036 = vcmp.eq.s32.totalorder %v156, %v1007
      %vm1037 = vcmp.eq.s32.totalorder %v156, %v1011
      %vm1038 = vcmp.eq.s32.totalorder %v156, %v1015
      %vm1039 = vcmp.eq.s32.totalorder %v156, %v1019
      %vm1040 = vcmp.eq.s32.totalorder %v157, %v1007
      %vm1041 = vcmp.eq.s32.totalorder %v157, %v1011
      %vm1042 = vcmp.eq.s32.totalorder %v157, %v1015
      %vm1043 = vcmp.eq.s32.totalorder %v157, %v1019
      %vm1044 = vcmp.eq.s32.totalorder %v158, %v1007
      %vm1045 = vcmp.eq.s32.totalorder %v158, %v1011
      %vm1046 = vcmp.eq.s32.totalorder %v158, %v1015
      %vm1047 = vcmp.eq.s32.totalorder %v158, %v1019
      %vm1048 = vcmp.eq.s32.totalorder %v159, %v1007
      %vm1049 = vcmp.eq.s32.totalorder %v159, %v1011
      %vm1050 = vcmp.eq.s32.totalorder %v159, %v1015
      %vm1051 = vcmp.eq.s32.totalorder %v159, %v1019
      %vm1052 = vcmp.eq.s32.totalorder %v160, %v1007
      %vm1053 = vcmp.eq.s32.totalorder %v160, %v1011
      %vm1054 = vcmp.eq.s32.totalorder %v160, %v1015
      %vm1055 = vcmp.eq.s32.totalorder %v160, %v1019
      %vm1056 = vcmp.eq.s32.totalorder %v161, %v1007
      %vm1057 = vcmp.eq.s32.totalorder %v161, %v1011
      %vm1058 = vcmp.eq.s32.totalorder %v161, %v1015
      %vm1059 = vcmp.eq.s32.totalorder %v161, %v1019
      %vm1060 = vcmp.eq.s32.totalorder %v162, %v1007
      %vm1061 = vcmp.eq.s32.totalorder %v162, %v1011
      %vm1062 = vcmp.eq.s32.totalorder %v162, %v1015
      %vm1063 = vcmp.eq.s32.totalorder %v162, %v1019
      %vm1064 = vcmp.eq.s32.totalorder %v163, %v1007
      %vm1065 = vcmp.eq.s32.totalorder %v163, %v1011
      %vm1066 = vcmp.eq.s32.totalorder %v163, %v1015
      %vm1067 = vcmp.eq.s32.totalorder %v163, %v1019
      %vm1068 = vcmp.eq.s32.totalorder %v164, %v1007
      %vm1069 = vcmp.eq.s32.totalorder %v164, %v1011
      %vm1070 = vcmp.eq.s32.totalorder %v164, %v1015
      %vm1071 = vcmp.eq.s32.totalorder %v164, %v1019
      %vm1072 = vcmp.eq.s32.totalorder %v165, %v1007
      %vm1073 = vcmp.eq.s32.totalorder %v165, %v1011
      %vm1074 = vcmp.eq.s32.totalorder %v165, %v1015
      %vm1075 = vcmp.eq.s32.totalorder %v165, %v1019
      %vm1076 = vcmp.eq.s32.totalorder %v166, %v1007
      %vm1077 = vcmp.eq.s32.totalorder %v166, %v1011
      %vm1078 = vcmp.eq.s32.totalorder %v166, %v1015
      %vm1079 = vcmp.eq.s32.totalorder %v166, %v1019
      %vm1080 = vcmp.eq.s32.totalorder %v167, %v1007
      %vm1081 = vcmp.eq.s32.totalorder %v167, %v1011
      %vm1082 = vcmp.eq.s32.totalorder %v167, %v1015
      %vm1083 = vcmp.eq.s32.totalorder %v167, %v1019
      %vm1084 = vcmp.eq.s32.totalorder %v168, %v1007
      %vm1085 = vcmp.eq.s32.totalorder %v168, %v1011
      %vm1086 = vcmp.eq.s32.totalorder %v168, %v1015
      %vm1087 = vcmp.eq.s32.totalorder %v168, %v1019
      %vm1088 = vcmp.eq.s32.totalorder %v169, %v1007
      %vm1089 = vcmp.eq.s32.totalorder %v169, %v1011
      %vm1090 = vcmp.eq.s32.totalorder %v169, %v1015
      %vm1091 = vcmp.eq.s32.totalorder %v169, %v1019
      %vm1092 = vcmp.eq.s32.totalorder %v170, %v1007
      %vm1093 = vcmp.eq.s32.totalorder %v170, %v1011
      %vm1094 = vcmp.eq.s32.totalorder %v170, %v1015
      %vm1095 = vcmp.eq.s32.totalorder %v170, %v1019
      %vm1096 = vcmp.eq.s32.totalorder %v171, %v1007
      %vm1097 = vcmp.eq.s32.totalorder %v171, %v1011
      %vm1098 = vcmp.eq.s32.totalorder %v171, %v1015
      %vm1099 = vcmp.eq.s32.totalorder %v171, %v1019
      %vm1100 = vcmp.eq.s32.totalorder %v172, %v1007
      %vm1101 = vcmp.eq.s32.totalorder %v172, %v1011
      %vm1102 = vcmp.eq.s32.totalorder %v172, %v1015
      %vm1103 = vcmp.eq.s32.totalorder %v172, %v1019
      %vm1104 = vcmp.eq.s32.totalorder %v173, %v1007
      %vm1105 = vcmp.eq.s32.totalorder %v173, %v1011
      %vm1106 = vcmp.eq.s32.totalorder %v173, %v1015
      %vm1107 = vcmp.eq.s32.totalorder %v173, %v1019
      %vm1108 = vcmp.eq.s32.totalorder %v174, %v1007
      %vm1109 = vcmp.eq.s32.totalorder %v174, %v1011
      %vm1110 = vcmp.eq.s32.totalorder %v174, %v1015
      %vm1111 = vcmp.eq.s32.totalorder %v174, %v1019
      %vm1112 = vcmp.eq.s32.totalorder %v175, %v1007
      %vm1113 = vcmp.eq.s32.totalorder %v175, %v1011
      %vm1114 = vcmp.eq.s32.totalorder %v175, %v1015
      %vm1115 = vcmp.eq.s32.totalorder %v175, %v1019
      %vm1116 = vcmp.eq.s32.totalorder %v176, %v1007
      %vm1117 = vcmp.eq.s32.totalorder %v176, %v1011
      %vm1118 = vcmp.eq.s32.totalorder %v176, %v1015
      %vm1119 = vcmp.eq.s32.totalorder %v176, %v1019
      %vm1120 = vcmp.eq.s32.totalorder %v177, %v1007
      %vm1121 = vcmp.eq.s32.totalorder %v177, %v1011
      %vm1122 = vcmp.eq.s32.totalorder %v177, %v1015
      %vm1123 = vcmp.eq.s32.totalorder %v177, %v1019
      %vm1124 = vcmp.eq.s32.totalorder %v178, %v1007
      %vm1125 = vcmp.eq.s32.totalorder %v178, %v1011
      %vm1126 = vcmp.eq.s32.totalorder %v178, %v1015
      %vm1127 = vcmp.eq.s32.totalorder %v178, %v1019
      %vm1128 = vcmp.eq.s32.totalorder %v179, %v1007
      %vm1129 = vcmp.eq.s32.totalorder %v179, %v1011
      %vm1130 = vcmp.eq.s32.totalorder %v179, %v1015
      %vm1131 = vcmp.eq.s32.totalorder %v179, %v1019
      %vm1132 = vcmp.eq.s32.totalorder %v180, %v1007
      %vm1133 = vcmp.eq.s32.totalorder %v180, %v1011
      %vm1134 = vcmp.eq.s32.totalorder %v180, %v1015
      %vm1135 = vcmp.eq.s32.totalorder %v180, %v1019
      %vm1136 = vcmp.eq.s32.totalorder %v181, %v1007
      %vm1137 = vcmp.eq.s32.totalorder %v181, %v1011
      %vm1138 = vcmp.eq.s32.totalorder %v181, %v1015
      %vm1139 = vcmp.eq.s32.totalorder %v181, %v1019
      %vm1140 = vcmp.eq.s32.totalorder %v182, %v1007
      %vm1141 = vcmp.eq.s32.totalorder %v182, %v1011
      %vm1142 = vcmp.eq.s32.totalorder %v182, %v1015
      %vm1143 = vcmp.eq.s32.totalorder %v182, %v1019
      %vm1144 = vcmp.eq.s32.totalorder %v183, %v1007
      %vm1145 = vcmp.eq.s32.totalorder %v183, %v1011
      %vm1146 = vcmp.eq.s32.totalorder %v183, %v1015
      %vm1147 = vcmp.eq.s32.totalorder %v183, %v1019
      %vm1148 = vcmp.eq.s32.totalorder %v184, %v1007
      %vm1149 = vcmp.eq.s32.totalorder %v184, %v1011
      %vm1150 = vcmp.eq.s32.totalorder %v184, %v1015
      %vm1151 = vcmp.eq.s32.totalorder %v184, %v1019
      %vm1152 = vcmp.eq.s32.totalorder %v185, %v1007
      %vm1153 = vcmp.eq.s32.totalorder %v185, %v1011
      %vm1154 = vcmp.eq.s32.totalorder %v185, %v1015
      %vm1155 = vcmp.eq.s32.totalorder %v185, %v1019
      %vm1156 = vcmp.eq.s32.totalorder %v186, %v1007
      %vm1157 = vcmp.eq.s32.totalorder %v186, %v1011
      %vm1158 = vcmp.eq.s32.totalorder %v186, %v1015
      %vm1159 = vcmp.eq.s32.totalorder %v186, %v1019
      %vm1160 = vcmp.eq.s32.totalorder %v187, %v1007
      %vm1161 = vcmp.eq.s32.totalorder %v187, %v1011
      %vm1162 = vcmp.eq.s32.totalorder %v187, %v1015
      %vm1163 = vcmp.eq.s32.totalorder %v187, %v1019
      %vm1164 = vcmp.eq.s32.totalorder %v188, %v1007
      %vm1165 = vcmp.eq.s32.totalorder %v188, %v1011
      %vm1166 = vcmp.eq.s32.totalorder %v188, %v1015
      %vm1167 = vcmp.eq.s32.totalorder %v188, %v1019
      %vm1168 = vcmp.eq.s32.totalorder %v189, %v1007
      %vm1169 = vcmp.eq.s32.totalorder %v189, %v1011
      %vm1170 = vcmp.eq.s32.totalorder %v189, %v1015
      %vm1171 = vcmp.eq.s32.totalorder %v189, %v1019
      %vm1172 = vcmp.eq.s32.totalorder %v190, %v1007
      %vm1173 = vcmp.eq.s32.totalorder %v190, %v1011
      %vm1174 = vcmp.eq.s32.totalorder %v190, %v1015
      %vm1175 = vcmp.eq.s32.totalorder %v190, %v1019
      %vm1176 = vcmp.eq.s32.totalorder %v191, %v1007
      %vm1177 = vcmp.eq.s32.totalorder %v191, %v1011
      %vm1178 = vcmp.eq.s32.totalorder %v191, %v1015
      %vm1179 = vcmp.eq.s32.totalorder %v191, %v1019
      %vm1180 = vcmp.eq.s32.totalorder %v192, %v1007
      %vm1181 = vcmp.eq.s32.totalorder %v192, %v1011
      %vm1182 = vcmp.eq.s32.totalorder %v192, %v1015
      %vm1183 = vcmp.eq.s32.totalorder %v192, %v1019
      %vm1184 = vcmp.eq.s32.totalorder %v193, %v1007
      %vm1185 = vcmp.eq.s32.totalorder %v193, %v1011
      %vm1186 = vcmp.eq.s32.totalorder %v193, %v1015
      %vm1187 = vcmp.eq.s32.totalorder %v193, %v1019
      %vm1188 = vcmp.eq.s32.totalorder %v194, %v1007
      %vm1189 = vcmp.eq.s32.totalorder %v194, %v1011
      %vm1190 = vcmp.eq.s32.totalorder %v194, %v1015
      %vm1191 = vcmp.eq.s32.totalorder %v194, %v1019
      %vm1192 = vcmp.eq.s32.totalorder %v195, %v1007
      %vm1193 = vcmp.eq.s32.totalorder %v195, %v1011
      %vm1194 = vcmp.eq.s32.totalorder %v195, %v1015
      %vm1195 = vcmp.eq.s32.totalorder %v195, %v1019
      %vm1196 = vcmp.eq.s32.totalorder %v196, %v1007
      %vm1197 = vcmp.eq.s32.totalorder %v196, %v1011
      %vm1198 = vcmp.eq.s32.totalorder %v196, %v1015
      %vm1199 = vcmp.eq.s32.totalorder %v196, %v1019
      %vm1200 = vcmp.eq.s32.totalorder %v197, %v1007
      %vm1201 = vcmp.eq.s32.totalorder %v197, %v1011
      %vm1202 = vcmp.eq.s32.totalorder %v197, %v1015
      %vm1203 = vcmp.eq.s32.totalorder %v197, %v1019
      %vm1204 = vcmp.eq.s32.totalorder %v198, %v1007
      %vm1205 = vcmp.eq.s32.totalorder %v198, %v1011
      %vm1206 = vcmp.eq.s32.totalorder %v198, %v1015
      %vm1207 = vcmp.eq.s32.totalorder %v198, %v1019
      %vm1208 = vcmp.eq.s32.totalorder %v199, %v1007
      %vm1209 = vcmp.eq.s32.totalorder %v199, %v1011
      %vm1210 = vcmp.eq.s32.totalorder %v199, %v1015
      %vm1211 = vcmp.eq.s32.totalorder %v199, %v1019
      %vm1212 = vcmp.eq.s32.totalorder %v200, %v1007
      %vm1213 = vcmp.eq.s32.totalorder %v200, %v1011
      %vm1214 = vcmp.eq.s32.totalorder %v200, %v1015
      %vm1215 = vcmp.eq.s32.totalorder %v200, %v1019
      %vm1216 = vcmp.eq.s32.totalorder %v201, %v1007
      %vm1217 = vcmp.eq.s32.totalorder %v201, %v1011
      %vm1218 = vcmp.eq.s32.totalorder %v201, %v1015
      %vm1219 = vcmp.eq.s32.totalorder %v201, %v1019
      %vm1220 = vcmp.eq.s32.totalorder %v202, %v1007
      %vm1221 = vcmp.eq.s32.totalorder %v202, %v1011
      %vm1222 = vcmp.eq.s32.totalorder %v202, %v1015
      %vm1223 = vcmp.eq.s32.totalorder %v202, %v1019
      %vm1224 = vcmp.eq.s32.totalorder %v203, %v1007
      %vm1225 = vcmp.eq.s32.totalorder %v203, %v1011
      %vm1226 = vcmp.eq.s32.totalorder %v203, %v1015
      %vm1227 = vcmp.eq.s32.totalorder %v203, %v1019
      %vm1228 = vcmp.eq.s32.totalorder %v204, %v1007
      %vm1229 = vcmp.eq.s32.totalorder %v204, %v1011
      %vm1230 = vcmp.eq.s32.totalorder %v204, %v1015
      %vm1231 = vcmp.eq.s32.totalorder %v204, %v1019
      %vm1232 = vcmp.eq.s32.totalorder %v205, %v1007
      %vm1233 = vcmp.eq.s32.totalorder %v205, %v1011
      %vm1234 = vcmp.eq.s32.totalorder %v205, %v1015
      %vm1235 = vcmp.eq.s32.totalorder %v205, %v1019
      %vm1236 = vcmp.eq.s32.totalorder %v206, %v1007
      %vm1237 = vcmp.eq.s32.totalorder %v206, %v1011
      %vm1238 = vcmp.eq.s32.totalorder %v206, %v1015
      %vm1239 = vcmp.eq.s32.totalorder %v206, %v1019
      %vm1240 = vcmp.eq.s32.totalorder %v207, %v1007
      %vm1241 = vcmp.eq.s32.totalorder %v207, %v1011
      %vm1242 = vcmp.eq.s32.totalorder %v207, %v1015
      %vm1243 = vcmp.eq.s32.totalorder %v207, %v1019
      %vm1244 = vcmp.eq.s32.totalorder %v208, %v1007
      %vm1245 = vcmp.eq.s32.totalorder %v208, %v1011
      %vm1246 = vcmp.eq.s32.totalorder %v208, %v1015
      %vm1247 = vcmp.eq.s32.totalorder %v208, %v1019
      %vm1248 = vcmp.eq.s32.totalorder %v209, %v1007
      %vm1249 = vcmp.eq.s32.totalorder %v209, %v1011
      %vm1250 = vcmp.eq.s32.totalorder %v209, %v1015
      %vm1251 = vcmp.eq.s32.totalorder %v209, %v1019
      %vm1252 = vcmp.eq.s32.totalorder %v210, %v1007
      %vm1253 = vcmp.eq.s32.totalorder %v210, %v1011
      %vm1254 = vcmp.eq.s32.totalorder %v210, %v1015
      %vm1255 = vcmp.eq.s32.totalorder %v210, %v1019
      %vm1256 = vcmp.eq.s32.totalorder %v211, %v1007
      %vm1257 = vcmp.eq.s32.totalorder %v211, %v1011
      %vm1258 = vcmp.eq.s32.totalorder %v211, %v1015
      %vm1259 = vcmp.eq.s32.totalorder %v211, %v1019
      %vm1260 = vcmp.eq.s32.totalorder %v212, %v1007
      %vm1261 = vcmp.eq.s32.totalorder %v212, %v1011
      %vm1262 = vcmp.eq.s32.totalorder %v212, %v1015
      %vm1263 = vcmp.eq.s32.totalorder %v212, %v1019
      %vm1264 = vcmp.eq.s32.totalorder %v213, %v1007
      %vm1265 = vcmp.eq.s32.totalorder %v213, %v1011
      %vm1266 = vcmp.eq.s32.totalorder %v213, %v1015
      %vm1267 = vcmp.eq.s32.totalorder %v213, %v1019
      %vm1268 = vcmp.eq.s32.totalorder %v214, %v1007
      %vm1269 = vcmp.eq.s32.totalorder %v214, %v1011
      %vm1270 = vcmp.eq.s32.totalorder %v214, %v1015
      %vm1271 = vcmp.eq.s32.totalorder %v214, %v1019
      %vm1272 = vcmp.eq.s32.totalorder %v215, %v1007
      %vm1273 = vcmp.eq.s32.totalorder %v215, %v1011
      %vm1274 = vcmp.eq.s32.totalorder %v215, %v1015
      %vm1275 = vcmp.eq.s32.totalorder %v215, %v1019
      %v1276 = vsel %vm1020, 1, 0
      %v1277 = vsel %vm1021, 1, 0
      %v1278 = vsel %vm1022, 1, 0
      %v1279 = vsel %vm1023, 1, 0
      %v1280 = vsel %vm1024, 1, 0
      %v1281 = vsel %vm1025, 1, 0
      %v1282 = vsel %vm1026, 1, 0
      %v1283 = vsel %vm1027, 1, 0
      %v1284 = vsel %vm1028, 1, 0
      %v1285 = vsel %vm1029, 1, 0
      %v1286 = vsel %vm1030, 1, 0
      %v1287 = vsel %vm1031, 1, 0
      %v1288 = vsel %vm1032, 1, 0
      %v1289 = vsel %vm1033, 1, 0
      %v1290 = vsel %vm1034, 1, 0
      %v1291 = vsel %vm1035, 1, 0
      %v1292 = vsel %vm1036, 1, 0
      %v1293 = vsel %vm1037, 1, 0
      %v1294 = vsel %vm1038, 1, 0
      %v1295 = vsel %vm1039, 1, 0
      %v1296 = vsel %vm1040, 1, 0
      %v1297 = vsel %vm1041, 1, 0
      %v1298 = vsel %vm1042, 1, 0
      %v1299 = vsel %vm1043, 1, 0
      %v1300 = vsel %vm1044, 1, 0
      %v1301 = vsel %vm1045, 1, 0
      %v1302 = vsel %vm1046, 1, 0
      %v1303 = vsel %vm1047, 1, 0
      %v1304 = vsel %vm1048, 1, 0
      %v1305 = vsel %vm1049, 1, 0
      %v1306 = vsel %vm1050, 1, 0
      %v1307 = vsel %vm1051, 1, 0
      %v1308 = vsel %vm1052, 1, 0
      %v1309 = vsel %vm1053, 1, 0
      %v1310 = vsel %vm1054, 1, 0
      %v1311 = vsel %vm1055, 1, 0
      %v1312 = vsel %vm1056, 1, 0
      %v1313 = vsel %vm1057, 1, 0
      %v1314 = vsel %vm1058, 1, 0
      %v1315 = vsel %vm1059, 1, 0
      %v1316 = vsel %vm1060, 1, 0
      %v1317 = vsel %vm1061, 1, 0
      %v1318 = vsel %vm1062, 1, 0
      %v1319 = vsel %vm1063, 1, 0
      %v1320 = vsel %vm1064, 1, 0
      %v1321 = vsel %vm1065, 1, 0
      %v1322 = vsel %vm1066, 1, 0
      %v1323 = vsel %vm1067, 1, 0
      %v1324 = vsel %vm1068, 1, 0
      %v1325 = vsel %vm1069, 1, 0
      %v1326 = vsel %vm1070, 1, 0
      %v1327 = vsel %vm1071, 1, 0
      %v1328 = vsel %vm1072, 1, 0
      %v1329 = vsel %vm1073, 1, 0
      %v1330 = vsel %vm1074, 1, 0
      %v1331 = vsel %vm1075, 1, 0
      %v1332 = vsel %vm1076, 1, 0
      %v1333 = vsel %vm1077, 1, 0
      %v1334 = vsel %vm1078, 1, 0
      %v1335 = vsel %vm1079, 1, 0
      %v1336 = vsel %vm1080, 1, 0
      %v1337 = vsel %vm1081, 1, 0
      %v1338 = vsel %vm1082, 1, 0
      %v1339 = vsel %vm1083, 1, 0
      %v1340 = vsel %vm1084, 1, 0
      %v1341 = vsel %vm1085, 1, 0
      %v1342 = vsel %vm1086, 1, 0
      %v1343 = vsel %vm1087, 1, 0
      %v1344 = vsel %vm1088, 1, 0
      %v1345 = vsel %vm1089, 1, 0
      %v1346 = vsel %vm1090, 1, 0
      %v1347 = vsel %vm1091, 1, 0
      %v1348 = vsel %vm1092, 1, 0
      %v1349 = vsel %vm1093, 1, 0
      %v1350 = vsel %vm1094, 1, 0
      %v1351 = vsel %vm1095, 1, 0
      %v1352 = vsel %vm1096, 1, 0
      %v1353 = vsel %vm1097, 1, 0
      %v1354 = vsel %vm1098, 1, 0
      %v1355 = vsel %vm1099, 1, 0
      %v1356 = vsel %vm1100, 1, 0
      %v1357 = vsel %vm1101, 1, 0
      %v1358 = vsel %vm1102, 1, 0
      %v1359 = vsel %vm1103, 1, 0
      %v1360 = vsel %vm1104, 1, 0
      %v1361 = vsel %vm1105, 1, 0
      %v1362 = vsel %vm1106, 1, 0
      %v1363 = vsel %vm1107, 1, 0
      %v1364 = vsel %vm1108, 1, 0
      %v1365 = vsel %vm1109, 1, 0
      %v1366 = vsel %vm1110, 1, 0
      %v1367 = vsel %vm1111, 1, 0
      %v1368 = vsel %vm1112, 1, 0
      %v1369 = vsel %vm1113, 1, 0
      %v1370 = vsel %vm1114, 1, 0
      %v1371 = vsel %vm1115, 1, 0
      %v1372 = vsel %vm1116, 1, 0
      %v1373 = vsel %vm1117, 1, 0
      %v1374 = vsel %vm1118, 1, 0
      %v1375 = vsel %vm1119, 1, 0
      %v1376 = vsel %vm1120, 1, 0
      %v1377 = vsel %vm1121, 1, 0
      %v1378 = vsel %vm1122, 1, 0
      %v1379 = vsel %vm1123, 1, 0
      %v1380 = vsel %vm1124, 1, 0
      %v1381 = vsel %vm1125, 1, 0
      %v1382 = vsel %vm1126, 1, 0
      %v1383 = vsel %vm1127, 1, 0
      %v1384 = vsel %vm1128, 1, 0
      %v1385 = vsel %vm1129, 1, 0
      %v1386 = vsel %vm1130, 1, 0
      %v1387 = vsel %vm1131, 1, 0
      %v1388 = vsel %vm1132, 1, 0
      %v1389 = vsel %vm1133, 1, 0
      %v1390 = vsel %vm1134, 1, 0
      %v1391 = vsel %vm1135, 1, 0
      %v1392 = vsel %vm1136, 1, 0
      %v1393 = vsel %vm1137, 1, 0
      %v1394 = vsel %vm1138, 1, 0
      %v1395 = vsel %vm1139, 1, 0
      %v1396 = vsel %vm1140, 1, 0
      %v1397 = vsel %vm1141, 1, 0
      %v1398 = vsel %vm1142, 1, 0
      %v1399 = vsel %vm1143, 1, 0
      %v1400 = vsel %vm1144, 1, 0
      %v1401 = vsel %vm1145, 1, 0
      %v1402 = vsel %vm1146, 1, 0
      %v1403 = vsel %vm1147, 1, 0
      %v1404 = vsel %vm1148, 1, 0
      %v1405 = vsel %vm1149, 1, 0
      %v1406 = vsel %vm1150, 1, 0
      %v1407 = vsel %vm1151, 1, 0
      %v1408 = vsel %vm1152, 1, 0
      %v1409 = vsel %vm1153, 1, 0
      %v1410 = vsel %vm1154, 1, 0
      %v1411 = vsel %vm1155, 1, 0
      %v1412 = vsel %vm1156, 1, 0
      %v1413 = vsel %vm1157, 1, 0
      %v1414 = vsel %vm1158, 1, 0
      %v1415 = vsel %vm1159, 1, 0
      %v1416 = vsel %vm1160, 1, 0
      %v1417 = vsel %vm1161, 1, 0
      %v1418 = vsel %vm1162, 1, 0
      %v1419 = vsel %vm1163, 1, 0
      %v1420 = vsel %vm1164, 1, 0
      %v1421 = vsel %vm1165, 1, 0
      %v1422 = vsel %vm1166, 1, 0
      %v1423 = vsel %vm1167, 1, 0
      %v1424 = vsel %vm1168, 1, 0
      %v1425 = vsel %vm1169, 1, 0
      %v1426 = vsel %vm1170, 1, 0
      %v1427 = vsel %vm1171, 1, 0
      %v1428 = vsel %vm1172, 1, 0
      %v1429 = vsel %vm1173, 1, 0
      %v1430 = vsel %vm1174, 1, 0
      %v1431 = vsel %vm1175, 1, 0
      %v1432 = vsel %vm1176, 1, 0
      %v1433 = vsel %vm1177, 1, 0
      %v1434 = vsel %vm1178, 1, 0
      %v1435 = vsel %vm1179, 1, 0
      %v1436 = vsel %vm1180, 1, 0
      %v1437 = vsel %vm1181, 1, 0
      %v1438 = vsel %vm1182, 1, 0
      %v1439 = vsel %vm1183, 1, 0
      %v1440 = vsel %vm1184, 1, 0
      %v1441 = vsel %vm1185, 1, 0
      %v1442 = vsel %vm1186, 1, 0
      %v1443 = vsel %vm1187, 1, 0
      %v1444 = vsel %vm1188, 1, 0
      %v1445 = vsel %vm1189, 1, 0
      %v1446 = vsel %vm1190, 1, 0
      %v1447 = vsel %vm1191, 1, 0
      %v1448 = vsel %vm1192, 1, 0
      %v1449 = vsel %vm1193, 1, 0
      %v1450 = vsel %vm1194, 1, 0
      %v1451 = vsel %vm1195, 1, 0
      %v1452 = vsel %vm1196, 1, 0
      %v1453 = vsel %vm1197, 1, 0
      %v1454 = vsel %vm1198, 1, 0
      %v1455 = vsel %vm1199, 1, 0
      %v1456 = vsel %vm1200, 1, 0
      %v1457 = vsel %vm1201, 1, 0
      %v1458 = vsel %vm1202, 1, 0
      %v1459 = vsel %vm1203, 1, 0
      %v1460 = vsel %vm1204, 1, 0
      %v1461 = vsel %vm1205, 1, 0
      %v1462 = vsel %vm1206, 1, 0
      %v1463 = vsel %vm1207, 1, 0
      %v1464 = vsel %vm1208, 1, 0
      %v1465 = vsel %vm1209, 1, 0
      %v1466 = vsel %vm1210, 1, 0
      %v1467 = vsel %vm1211, 1, 0
      %v1468 = vsel %vm1212, 1, 0
      %v1469 = vsel %vm1213, 1, 0
      %v1470 = vsel %vm1214, 1, 0
      %v1471 = vsel %vm1215, 1, 0
      %v1472 = vsel %vm1216, 1, 0
      %v1473 = vsel %vm1217, 1, 0
      %v1474 = vsel %vm1218, 1, 0
      %v1475 = vsel %vm1219, 1, 0
      %v1476 = vsel %vm1220, 1, 0
      %v1477 = vsel %vm1221, 1, 0
      %v1478 = vsel %vm1222, 1, 0
      %v1479 = vsel %vm1223, 1, 0
      %v1480 = vsel %vm1224, 1, 0
      %v1481 = vsel %vm1225, 1, 0
      %v1482 = vsel %vm1226, 1, 0
      %v1483 = vsel %vm1227, 1, 0
      %v1484 = vsel %vm1228, 1, 0
      %v1485 = vsel %vm1229, 1, 0
      %v1486 = vsel %vm1230, 1, 0
      %v1487 = vsel %vm1231, 1, 0
      %v1488 = vsel %vm1232, 1, 0
      %v1489 = vsel %vm1233, 1, 0
      %v1490 = vsel %vm1234, 1, 0
      %v1491 = vsel %vm1235, 1, 0
      %v1492 = vsel %vm1236, 1, 0
      %v1493 = vsel %vm1237, 1, 0
      %v1494 = vsel %vm1238, 1, 0
      %v1495 = vsel %vm1239, 1, 0
      %v1496 = vsel %vm1240, 1, 0
      %v1497 = vsel %vm1241, 1, 0
      %v1498 = vsel %vm1242, 1, 0
      %v1499 = vsel %vm1243, 1, 0
      %v1500 = vsel %vm1244, 1, 0
      %v1501 = vsel %vm1245, 1, 0
      %v1502 = vsel %vm1246, 1, 0
      %v1503 = vsel %vm1247, 1, 0
      %v1504 = vsel %vm1248, 1, 0
      %v1505 = vsel %vm1249, 1, 0
      %v1506 = vsel %vm1250, 1, 0
      %v1507 = vsel %vm1251, 1, 0
      %v1508 = vsel %vm1252, 1, 0
      %v1509 = vsel %vm1253, 1, 0
      %v1510 = vsel %vm1254, 1, 0
      %v1511 = vsel %vm1255, 1, 0
      %v1512 = vsel %vm1256, 1, 0
      %v1513 = vsel %vm1257, 1, 0
      %v1514 = vsel %vm1258, 1, 0
      %v1515 = vsel %vm1259, 1, 0
      %v1516 = vsel %vm1260, 1, 0
      %v1517 = vsel %vm1261, 1, 0
      %v1518 = vsel %vm1262, 1, 0
      %v1519 = vsel %vm1263, 1, 0
      %v1520 = vsel %vm1264, 1, 0
      %v1521 = vsel %vm1265, 1, 0
      %v1522 = vsel %vm1266, 1, 0
      %v1523 = vsel %vm1267, 1, 0
      %v1524 = vsel %vm1268, 1, 0
      %v1525 = vsel %vm1269, 1, 0
      %v1526 = vsel %vm1270, 1, 0
      %v1527 = vsel %vm1271, 1, 0
      %v1528 = vsel %vm1272, 1, 0
      %v1529 = vsel %vm1273, 1, 0
      %v1530 = vsel %vm1274, 1, 0
      %v1531 = vsel %vm1275, 1, 0
      %v1532 = vcvt.s32.f32 %v1276
      %v1533 = vcvt.s32.f32 %v1277
      %v1534 = vcvt.s32.f32 %v1278
      %v1535 = vcvt.s32.f32 %v1279
      %v1536 = vcvt.s32.f32 %v1280
      %v1537 = vcvt.s32.f32 %v1281
      %v1538 = vcvt.s32.f32 %v1282
      %v1539 = vcvt.s32.f32 %v1283
      %v1540 = vcvt.s32.f32 %v1284
      %v1541 = vcvt.s32.f32 %v1285
      %v1542 = vcvt.s32.f32 %v1286
      %v1543 = vcvt.s32.f32 %v1287
      %v1544 = vcvt.s32.f32 %v1288
      %v1545 = vcvt.s32.f32 %v1289
      %v1546 = vcvt.s32.f32 %v1290
      %v1547 = vcvt.s32.f32 %v1291
      %v1548 = vcvt.s32.f32 %v1292
      %v1549 = vcvt.s32.f32 %v1293
      %v1550 = vcvt.s32.f32 %v1294
      %v1551 = vcvt.s32.f32 %v1295
      %v1552 = vcvt.s32.f32 %v1296
      %v1553 = vcvt.s32.f32 %v1297
      %v1554 = vcvt.s32.f32 %v1298
      %v1555 = vcvt.s32.f32 %v1299
      %v1556 = vcvt.s32.f32 %v1300
      %v1557 = vcvt.s32.f32 %v1301
      %v1558 = vcvt.s32.f32 %v1302
      %v1559 = vcvt.s32.f32 %v1303
      %v1560 = vcvt.s32.f32 %v1304
      %v1561 = vcvt.s32.f32 %v1305
      %v1562 = vcvt.s32.f32 %v1306
      %v1563 = vcvt.s32.f32 %v1307
      %v1564 = vcvt.s32.f32 %v1308
      %v1565 = vcvt.s32.f32 %v1309
      %v1566 = vcvt.s32.f32 %v1310
      %v1567 = vcvt.s32.f32 %v1311
      %v1568 = vcvt.s32.f32 %v1312
      %v1569 = vcvt.s32.f32 %v1313
      %v1570 = vcvt.s32.f32 %v1314
      %v1571 = vcvt.s32.f32 %v1315
      %v1572 = vcvt.s32.f32 %v1316
      %v1573 = vcvt.s32.f32 %v1317
      %v1574 = vcvt.s32.f32 %v1318
      %v1575 = vcvt.s32.f32 %v1319
      %v1576 = vcvt.s32.f32 %v1320
      %v1577 = vcvt.s32.f32 %v1321
      %v1578 = vcvt.s32.f32 %v1322
      %v1579 = vcvt.s32.f32 %v1323
      %v1580 = vcvt.s32.f32 %v1324
      %v1581 = vcvt.s32.f32 %v1325
      %v1582 = vcvt.s32.f32 %v1326
      %v1583 = vcvt.s32.f32 %v1327
      %v1584 = vcvt.s32.f32 %v1328
      %v1585 = vcvt.s32.f32 %v1329
      %v1586 = vcvt.s32.f32 %v1330
      %v1587 = vcvt.s32.f32 %v1331
      %v1588 = vcvt.s32.f32 %v1332
      %v1589 = vcvt.s32.f32 %v1333
      %v1590 = vcvt.s32.f32 %v1334
      %v1591 = vcvt.s32.f32 %v1335
      %v1592 = vcvt.s32.f32 %v1336
      %v1593 = vcvt.s32.f32 %v1337
      %v1594 = vcvt.s32.f32 %v1338
      %v1595 = vcvt.s32.f32 %v1339
      %v1596 = vcvt.s32.f32 %v1340
      %v1597 = vcvt.s32.f32 %v1341
      %v1598 = vcvt.s32.f32 %v1342
      %v1599 = vcvt.s32.f32 %v1343
      %v1600 = vcvt.s32.f32 %v1344
      %v1601 = vcvt.s32.f32 %v1345
      %v1602 = vcvt.s32.f32 %v1346
      %v1603 = vcvt.s32.f32 %v1347
      %v1604 = vcvt.s32.f32 %v1348
      %v1605 = vcvt.s32.f32 %v1349
      %v1606 = vcvt.s32.f32 %v1350
      %v1607 = vcvt.s32.f32 %v1351
      %v1608 = vcvt.s32.f32 %v1352
      %v1609 = vcvt.s32.f32 %v1353
      %v1610 = vcvt.s32.f32 %v1354
      %v1611 = vcvt.s32.f32 %v1355
      %v1612 = vcvt.s32.f32 %v1356
      %v1613 = vcvt.s32.f32 %v1357
      %v1614 = vcvt.s32.f32 %v1358
      %v1615 = vcvt.s32.f32 %v1359
      %v1616 = vcvt.s32.f32 %v1360
      %v1617 = vcvt.s32.f32 %v1361
      %v1618 = vcvt.s32.f32 %v1362
      %v1619 = vcvt.s32.f32 %v1363
      %v1620 = vcvt.s32.f32 %v1364
      %v1621 = vcvt.s32.f32 %v1365
      %v1622 = vcvt.s32.f32 %v1366
      %v1623 = vcvt.s32.f32 %v1367
      %v1624 = vcvt.s32.f32 %v1368
      %v1625 = vcvt.s32.f32 %v1369
      %v1626 = vcvt.s32.f32 %v1370
      %v1627 = vcvt.s32.f32 %v1371
      %v1628 = vcvt.s32.f32 %v1372
      %v1629 = vcvt.s32.f32 %v1373
      %v1630 = vcvt.s32.f32 %v1374
      %v1631 = vcvt.s32.f32 %v1375
      %v1632 = vcvt.s32.f32 %v1376
      %v1633 = vcvt.s32.f32 %v1377
      %v1634 = vcvt.s32.f32 %v1378
      %v1635 = vcvt.s32.f32 %v1379
      %v1636 = vcvt.s32.f32 %v1380
      %v1637 = vcvt.s32.f32 %v1381
      %v1638 = vcvt.s32.f32 %v1382
      %v1639 = vcvt.s32.f32 %v1383
      %v1640 = vcvt.s32.f32 %v1384
      %v1641 = vcvt.s32.f32 %v1385
      %v1642 = vcvt.s32.f32 %v1386
      %v1643 = vcvt.s32.f32 %v1387
      %v1644 = vcvt.s32.f32 %v1388
      %v1645 = vcvt.s32.f32 %v1389
      %v1646 = vcvt.s32.f32 %v1390
      %v1647 = vcvt.s32.f32 %v1391
      %v1648 = vcvt.s32.f32 %v1392
      %v1649 = vcvt.s32.f32 %v1393
      %v1650 = vcvt.s32.f32 %v1394
      %v1651 = vcvt.s32.f32 %v1395
      %v1652 = vcvt.s32.f32 %v1396
      %v1653 = vcvt.s32.f32 %v1397
      %v1654 = vcvt.s32.f32 %v1398
      %v1655 = vcvt.s32.f32 %v1399
      %v1656 = vcvt.s32.f32 %v1400
      %v1657 = vcvt.s32.f32 %v1401
      %v1658 = vcvt.s32.f32 %v1402
      %v1659 = vcvt.s32.f32 %v1403
      %v1660 = vcvt.s32.f32 %v1404
      %v1661 = vcvt.s32.f32 %v1405
      %v1662 = vcvt.s32.f32 %v1406
      %v1663 = vcvt.s32.f32 %v1407
      %v1664 = vcvt.s32.f32 %v1408
      %v1665 = vcvt.s32.f32 %v1409
      %v1666 = vcvt.s32.f32 %v1410
      %v1667 = vcvt.s32.f32 %v1411
      %v1668 = vcvt.s32.f32 %v1412
      %v1669 = vcvt.s32.f32 %v1413
      %v1670 = vcvt.s32.f32 %v1414
      %v1671 = vcvt.s32.f32 %v1415
      %v1672 = vcvt.s32.f32 %v1416
      %v1673 = vcvt.s32.f32 %v1417
      %v1674 = vcvt.s32.f32 %v1418
      %v1675 = vcvt.s32.f32 %v1419
      %v1676 = vcvt.s32.f32 %v1420
      %v1677 = vcvt.s32.f32 %v1421
      %v1678 = vcvt.s32.f32 %v1422
      %v1679 = vcvt.s32.f32 %v1423
      %v1680 = vcvt.s32.f32 %v1424
      %v1681 = vcvt.s32.f32 %v1425
      %v1682 = vcvt.s32.f32 %v1426
      %v1683 = vcvt.s32.f32 %v1427
      %v1684 = vcvt.s32.f32 %v1428
      %v1685 = vcvt.s32.f32 %v1429
      %v1686 = vcvt.s32.f32 %v1430
      %v1687 = vcvt.s32.f32 %v1431
      %v1688 = vcvt.s32.f32 %v1432
      %v1689 = vcvt.s32.f32 %v1433
      %v1690 = vcvt.s32.f32 %v1434
      %v1691 = vcvt.s32.f32 %v1435
      %v1692 = vcvt.s32.f32 %v1436
      %v1693 = vcvt.s32.f32 %v1437
      %v1694 = vcvt.s32.f32 %v1438
      %v1695 = vcvt.s32.f32 %v1439
      %v1696 = vcvt.s32.f32 %v1440
      %v1697 = vcvt.s32.f32 %v1441
      %v1698 = vcvt.s32.f32 %v1442
      %v1699 = vcvt.s32.f32 %v1443
      %v1700 = vcvt.s32.f32 %v1444
      %v1701 = vcvt.s32.f32 %v1445
      %v1702 = vcvt.s32.f32 %v1446
      %v1703 = vcvt.s32.f32 %v1447
      %v1704 = vcvt.s32.f32 %v1448
      %v1705 = vcvt.s32.f32 %v1449
      %v1706 = vcvt.s32.f32 %v1450
      %v1707 = vcvt.s32.f32 %v1451
      %v1708 = vcvt.s32.f32 %v1452
      %v1709 = vcvt.s32.f32 %v1453
      %v1710 = vcvt.s32.f32 %v1454
      %v1711 = vcvt.s32.f32 %v1455
      %v1712 = vcvt.s32.f32 %v1456
      %v1713 = vcvt.s32.f32 %v1457
      %v1714 = vcvt.s32.f32 %v1458
      %v1715 = vcvt.s32.f32 %v1459
      %v1716 = vcvt.s32.f32 %v1460
      %v1717 = vcvt.s32.f32 %v1461
      %v1718 = vcvt.s32.f32 %v1462
      %v1719 = vcvt.s32.f32 %v1463
      %v1720 = vcvt.s32.f32 %v1464
      %v1721 = vcvt.s32.f32 %v1465
      %v1722 = vcvt.s32.f32 %v1466
      %v1723 = vcvt.s32.f32 %v1467
      %v1724 = vcvt.s32.f32 %v1468
      %v1725 = vcvt.s32.f32 %v1469
      %v1726 = vcvt.s32.f32 %v1470
      %v1727 = vcvt.s32.f32 %v1471
      %v1728 = vcvt.s32.f32 %v1472
      %v1729 = vcvt.s32.f32 %v1473
      %v1730 = vcvt.s32.f32 %v1474
      %v1731 = vcvt.s32.f32 %v1475
      %v1732 = vcvt.s32.f32 %v1476
      %v1733 = vcvt.s32.f32 %v1477
      %v1734 = vcvt.s32.f32 %v1478
      %v1735 = vcvt.s32.f32 %v1479
      %v1736 = vcvt.s32.f32 %v1480
      %v1737 = vcvt.s32.f32 %v1481
      %v1738 = vcvt.s32.f32 %v1482
      %v1739 = vcvt.s32.f32 %v1483
      %v1740 = vcvt.s32.f32 %v1484
      %v1741 = vcvt.s32.f32 %v1485
      %v1742 = vcvt.s32.f32 %v1486
      %v1743 = vcvt.s32.f32 %v1487
      %v1744 = vcvt.s32.f32 %v1488
      %v1745 = vcvt.s32.f32 %v1489
      %v1746 = vcvt.s32.f32 %v1490
      %v1747 = vcvt.s32.f32 %v1491
      %v1748 = vcvt.s32.f32 %v1492
      %v1749 = vcvt.s32.f32 %v1493
      %v1750 = vcvt.s32.f32 %v1494
      %v1751 = vcvt.s32.f32 %v1495
      %v1752 = vcvt.s32.f32 %v1496
      %v1753 = vcvt.s32.f32 %v1497
      %v1754 = vcvt.s32.f32 %v1498
      %v1755 = vcvt.s32.f32 %v1499
      %v1756 = vcvt.s32.f32 %v1500
      %v1757 = vcvt.s32.f32 %v1501
      %v1758 = vcvt.s32.f32 %v1502
      %v1759 = vcvt.s32.f32 %v1503
      %v1760 = vcvt.s32.f32 %v1504
      %v1761 = vcvt.s32.f32 %v1505
      %v1762 = vcvt.s32.f32 %v1506
      %v1763 = vcvt.s32.f32 %v1507
      %v1764 = vcvt.s32.f32 %v1508
      %v1765 = vcvt.s32.f32 %v1509
      %v1766 = vcvt.s32.f32 %v1510
      %v1767 = vcvt.s32.f32 %v1511
      %v1768 = vcvt.s32.f32 %v1512
      %v1769 = vcvt.s32.f32 %v1513
      %v1770 = vcvt.s32.f32 %v1514
      %v1771 = vcvt.s32.f32 %v1515
      %v1772 = vcvt.s32.f32 %v1516
      %v1773 = vcvt.s32.f32 %v1517
      %v1774 = vcvt.s32.f32 %v1518
      %v1775 = vcvt.s32.f32 %v1519
      %v1776 = vcvt.s32.f32 %v1520
      %v1777 = vcvt.s32.f32 %v1521
      %v1778 = vcvt.s32.f32 %v1522
      %v1779 = vcvt.s32.f32 %v1523
      %v1780 = vcvt.s32.f32 %v1524
      %v1781 = vcvt.s32.f32 %v1525
      %v1782 = vcvt.s32.f32 %v1526
      %v1783 = vcvt.s32.f32 %v1527
      %v1784 = vcvt.s32.f32 %v1528
      %v1785 = vcvt.s32.f32 %v1529
      %v1786 = vcvt.s32.f32 %v1530
      %v1787 = vcvt.s32.f32 %v1531
      %s1788 = scalar_lea.vmem %s1, 32
      %v1789 = vld [vmem:[%s1788] sm:$0xff]
      %v1790 = vld [vmem:[%s1788 + $0x8] sm:$0xff]
      %v1791 = vld [vmem:[%s1788 + $0x10] sm:$0xff]
      %v1792 = vld [vmem:[%s1788 + $0x18] sm:$0xff]
      %1793 = vmatprep.subr.mxu0 %v1593
      %1794 = vmatpush1.msra.mxu0 %v1592
      %1795 = vmatprep.subr.mxu0 %v1589
      %1796 = vmatpush1.msra.mxu0 %v1588
      %1797 = vmatprep.subr.mxu0 %v1585
      %1798 = vmatpush1.msra.mxu0 %v1584
      %1799 = vmatprep.subr.mxu0 %v1581
      %1800 = vmatpush1.msra.mxu0 %v1580
      %1801 = vmatprep.subr.mxu0 %v1577
      %1802 = vmatpush1.msra.mxu0 %v1576
      %1803 = vmatprep.subr.mxu0 %v1573
      %1804 = vmatpush1.msra.mxu0 %v1572
      %1805 = vmatprep.subr.mxu0 %v1569
      %1806 = vmatpush1.msra.mxu0 %v1568
      %1807 = vmatprep.subr.mxu0 %v1565
      %1808 = vmatpush1.msra.mxu0 %v1564
      %1809 = vmatprep.subr.mxu0 %v1561
      %1810 = vmatpush1.msra.mxu0 %v1560
      %1811 = vmatprep.subr.mxu0 %v1557
      %1812 = vmatpush1.msra.mxu0 %v1556
      %1813 = vmatprep.subr.mxu0 %v1553
      %1814 = vmatpush1.msra.mxu0 %v1552
      %1815 = vmatprep.subr.mxu0 %v1549
      %1816 = vmatpush1.msra.mxu0 %v1548
      %1817 = vmatprep.subr.mxu0 %v1545
      %1818 = vmatpush1.msra.mxu0 %v1544
      %1819 = vmatprep.subr.mxu0 %v1541
      %1820 = vmatpush1.msra.mxu0 %v1540
      %1821 = vmatprep.subr.mxu0 %v1537
      %1822 = vmatpush1.msra.mxu0 %v1536
      %1823 = vmatprep.subr.mxu0 %v1533
      %1824 = vmatpush1.msra.mxu0 %v1532
      %1825 = vmatprep.subr.mxu0 %v1657
      %1826 = vmatpush2.msra.mxu0 %v1656
      %1827 = vmatprep.subr.mxu0 %v1653
      %1828 = vmatpush2.msra.mxu0 %v1652
      %1829 = vmatprep.subr.mxu0 %v1649
      %1830 = vmatpush2.msra.mxu0 %v1648
      %1831 = vmatprep.subr.mxu0 %v1645
      %1832 = vmatpush2.msra.mxu0 %v1644
      %1833 = vmatprep.subr.mxu0 %v1641
      %1834 = vmatpush2.msra.mxu0 %v1640
      %1835 = vmatprep.subr.mxu0 %v1637
      %1836 = vmatpush2.msra.mxu0 %v1636
      %1837 = vmatprep.subr.mxu0 %v1633
      %1838 = vmatpush2.msra.mxu0 %v1632
      %1839 = vmatprep.subr.mxu0 %v1629
      %1840 = vmatpush2.msra.mxu0 %v1628
      %1841 = vmatprep.subr.mxu0 %v1625
      %1842 = vmatpush2.msra.mxu0 %v1624
      %1843 = vmatprep.subr.mxu0 %v1621
      %1844 = vmatpush2.msra.mxu0 %v1620
      %1845 = vmatprep.subr.mxu0 %v1617
      %1846 = vmatpush2.msra.mxu0 %v1616
      %1847 = vmatprep.subr.mxu0 %v1613
      %1848 = vmatpush2.msra.mxu0 %v1612
      %1849 = vmatprep.subr.mxu0 %v1609
      %1850 = vmatpush2.msra.mxu0 %v1608
      %1851 = vmatprep.subr.mxu0 %v1605
      %1852 = vmatpush2.msra.mxu0 %v1604
      %1853 = vmatprep.subr.mxu0 %v1601
      %1854 = vmatpush2.msra.mxu0 %v1600
      %1855 = vmatprep.subr.mxu0 %v1597
      %1856 = vmatpush2.msra.mxu0 %v1596
      %1857 = vmatprep.mubr.f32.mxu0 %v1790
      %1858 = vmatmul.mubr.f32.gmra.mxu0 %v1789
      %v1859 = vpop.f32.mrf.mxu0
      %v1860 = vadd.f32 0.0, %v1859
      %v1861 = vpop.f32.mrf.mxu0
      %v1862 = vadd.f32 0.0, %v1861
      %1863 = vdwg.mxu0
      %1864 = vmatprep.subr.mxu0 %v1721
      %1865 = vmatpush1.msra.mxu0 %v1720
      %1866 = vmatprep.subr.mxu0 %v1717
      %1867 = vmatpush1.msra.mxu0 %v1716
      %1868 = vmatprep.subr.mxu0 %v1713
      %1869 = vmatpush1.msra.mxu0 %v1712
      %1870 = vmatprep.subr.mxu0 %v1709
      %1871 = vmatpush1.msra.mxu0 %v1708
      %1872 = vmatprep.subr.mxu0 %v1705
      %1873 = vmatpush1.msra.mxu0 %v1704
      %1874 = vmatprep.subr.mxu0 %v1701
      %1875 = vmatpush1.msra.mxu0 %v1700
      %1876 = vmatprep.subr.mxu0 %v1697
      %1877 = vmatpush1.msra.mxu0 %v1696
      %1878 = vmatprep.subr.mxu0 %v1693
      %1879 = vmatpush1.msra.mxu0 %v1692
      %1880 = vmatprep.subr.mxu0 %v1689
      %1881 = vmatpush1.msra.mxu0 %v1688
      %1882 = vmatprep.subr.mxu0 %v1685
      %1883 = vmatpush1.msra.mxu0 %v1684
      %1884 = vmatprep.subr.mxu0 %v1681
      %1885 = vmatpush1.msra.mxu0 %v1680
      %1886 = vmatprep.subr.mxu0 %v1677
      %1887 = vmatpush1.msra.mxu0 %v1676
      %1888 = vmatprep.subr.mxu0 %v1673
      %1889 = vmatpush1.msra.mxu0 %v1672
      %1890 = vmatprep.subr.mxu0 %v1669
      %1891 = vmatpush1.msra.mxu0 %v1668
      %1892 = vmatprep.subr.mxu0 %v1665
      %1893 = vmatpush1.msra.mxu0 %v1664
      %1894 = vmatprep.subr.mxu0 %v1661
      %1895 = vmatpush1.msra.mxu0 %v1660
      %1896 = vmatprep.subr.mxu0 %v1785
      %1897 = vmatpush2.msra.mxu0 %v1784
      %1898 = vmatprep.subr.mxu0 %v1781
      %1899 = vmatpush2.msra.mxu0 %v1780
      %1900 = vmatprep.subr.mxu0 %v1777
      %1901 = vmatpush2.msra.mxu0 %v1776
      %1902 = vmatprep.subr.mxu0 %v1773
      %1903 = vmatpush2.msra.mxu0 %v1772
      %1904 = vmatprep.subr.mxu0 %v1769
      %1905 = vmatpush2.msra.mxu0 %v1768
      %1906 = vmatprep.subr.mxu0 %v1765
      %1907 = vmatpush2.msra.mxu0 %v1764
      %1908 = vmatprep.subr.mxu0 %v1761
      %1909 = vmatpush2.msra.mxu0 %v1760
      %1910 = vmatprep.subr.mxu0 %v1757
      %1911 = vmatpush2.msra.mxu0 %v1756
      %1912 = vmatprep.subr.mxu0 %v1753
      %1913 = vmatpush2.msra.mxu0 %v1752
      %1914 = vmatprep.subr.mxu0 %v1749
      %1915 = vmatpush2.msra.mxu0 %v1748
      %1916 = vmatprep.subr.mxu0 %v1745
      %1917 = vmatpush2.msra.mxu0 %v1744
      %1918 = vmatprep.subr.mxu0 %v1741
      %1919 = vmatpush2.msra.mxu0 %v1740
      %1920 = vmatprep.subr.mxu0 %v1737
      %1921 = vmatpush2.msra.mxu0 %v1736
      %1922 = vmatprep.subr.mxu0 %v1733
      %1923 = vmatpush2.msra.mxu0 %v1732
      %1924 = vmatprep.subr.mxu0 %v1729
      %1925 = vmatpush2.msra.mxu0 %v1728
      %1926 = vmatprep.subr.mxu0 %v1725
      %1927 = vmatpush2.msra.mxu0 %v1724
      %1928 = vmatprep.mubr.f32.mxu0 %v1792
      %1929 = vmatmul.mubr.f32.gmra.mxu0 %v1791
      %v1930 = vpop.f32.mrf.mxu0
      %v1931 = vadd.f32 %v1860, %v1930
      %v1932 = vpop.f32.mrf.mxu0
      %v1933 = vadd.f32 %v1862, %v1932
      %1934 = vdwg.mxu0
      %1935 = vmatprep.subr.mxu0 %v1595
      %1936 = vmatpush1.msra.mxu0 %v1594
      %1937 = vmatprep.subr.mxu0 %v1591
      %1938 = vmatpush1.msra.mxu0 %v1590
      %1939 = vmatprep.subr.mxu0 %v1587
      %1940 = vmatpush1.msra.mxu0 %v1586
      %1941 = vmatprep.subr.mxu0 %v1583
      %1942 = vmatpush1.msra.mxu0 %v1582
      %1943 = vmatprep.subr.mxu0 %v1579
      %1944 = vmatpush1.msra.mxu0 %v1578
      %1945 = vmatprep.subr.mxu0 %v1575
      %1946 = vmatpush1.msra.mxu0 %v1574
      %1947 = vmatprep.subr.mxu0 %v1571
      %1948 = vmatpush1.msra.mxu0 %v1570
      %1949 = vmatprep.subr.mxu0 %v1567
      %1950 = vmatpush1.msra.mxu0 %v1566
      %1951 = vmatprep.subr.mxu0 %v1563
      %1952 = vmatpush1.msra.mxu0 %v1562
      %1953 = vmatprep.subr.mxu0 %v1559
      %1954 = vmatpush1.msra.mxu0 %v1558
      %1955 = vmatprep.subr.mxu0 %v1555
      %1956 = vmatpush1.msra.mxu0 %v1554
      %1957 = vmatprep.subr.mxu0 %v1551
      %1958 = vmatpush1.msra.mxu0 %v1550
      %1959 = vmatprep.subr.mxu0 %v1547
      %1960 = vmatpush1.msra.mxu0 %v1546
      %1961 = vmatprep.subr.mxu0 %v1543
      %1962 = vmatpush1.msra.mxu0 %v1542
      %1963 = vmatprep.subr.mxu0 %v1539
      %1964 = vmatpush1.msra.mxu0 %v1538
      %1965 = vmatprep.subr.mxu0 %v1535
      %1966 = vmatpush1.msra.mxu0 %v1534
      %1967 = vmatprep.subr.mxu0 %v1659
      %1968 = vmatpush2.msra.mxu0 %v1658
      %1969 = vmatprep.subr.mxu0 %v1655
      %1970 = vmatpush2.msra.mxu0 %v1654
      %1971 = vmatprep.subr.mxu0 %v1651
      %1972 = vmatpush2.msra.mxu0 %v1650
      %1973 = vmatprep.subr.mxu0 %v1647
      %1974 = vmatpush2.msra.mxu0 %v1646
      %1975 = vmatprep.subr.mxu0 %v1643
      %1976 = vmatpush2.msra.mxu0 %v1642
      %1977 = vmatprep.subr.mxu0 %v1639
      %1978 = vmatpush2.msra.mxu0 %v1638
      %1979 = vmatprep.subr.mxu0 %v1635
      %1980 = vmatpush2.msra.mxu0 %v1634
      %1981 = vmatprep.subr.mxu0 %v1631
      %1982 = vmatpush2.msra.mxu0 %v1630
      %1983 = vmatprep.subr.mxu0 %v1627
      %1984 = vmatpush2.msra.mxu0 %v1626
      %1985 = vmatprep.subr.mxu0 %v1623
      %1986 = vmatpush2.msra.mxu0 %v1622
      %1987 = vmatprep.subr.mxu0 %v1619
      %1988 = vmatpush2.msra.mxu0 %v1618
      %1989 = vmatprep.subr.mxu0 %v1615
      %1990 = vmatpush2.msra.mxu0 %v1614
      %1991 = vmatprep.subr.mxu0 %v1611
      %1992 = vmatpush2.msra.mxu0 %v1610
      %1993 = vmatprep.subr.mxu0 %v1607
      %1994 = vmatpush2.msra.mxu0 %v1606
      %1995 = vmatprep.subr.mxu0 %v1603
      %1996 = vmatpush2.msra.mxu0 %v1602
      %1997 = vmatprep.subr.mxu0 %v1599
      %1998 = vmatpush2.msra.mxu0 %v1598
      %1999 = vmatprep.mubr.f32.mxu0 %v1790
      %2000 = vmatmul.mubr.f32.gmra.mxu0 %v1789
      %v2001 = vpop.f32.mrf.mxu0
      %v2002 = vadd.f32 0.0, %v2001
      %v2003 = vpop.f32.mrf.mxu0
      %v2004 = vadd.f32 0.0, %v2003
      %2005 = vdwg.mxu0
      %2006 = vmatprep.subr.mxu0 %v1723
      %2007 = vmatpush1.msra.mxu0 %v1722
      %2008 = vmatprep.subr.mxu0 %v1719
      %2009 = vmatpush1.msra.mxu0 %v1718
      %2010 = vmatprep.subr.mxu0 %v1715
      %2011 = vmatpush1.msra.mxu0 %v1714
      %2012 = vmatprep.subr.mxu0 %v1711
      %2013 = vmatpush1.msra.mxu0 %v1710
      %2014 = vmatprep.subr.mxu0 %v1707
      %2015 = vmatpush1.msra.mxu0 %v1706
      %2016 = vmatprep.subr.mxu0 %v1703
      %2017 = vmatpush1.msra.mxu0 %v1702
      %2018 = vmatprep.subr.mxu0 %v1699
      %2019 = vmatpush1.msra.mxu0 %v1698
      %2020 = vmatprep.subr.mxu0 %v1695
      %2021 = vmatpush1.msra.mxu0 %v1694
      %2022 = vmatprep.subr.mxu0 %v1691
      %2023 = vmatpush1.msra.mxu0 %v1690
      %2024 = vmatprep.subr.mxu0 %v1687
      %2025 = vmatpush1.msra.mxu0 %v1686
      %2026 = vmatprep.subr.mxu0 %v1683
      %2027 = vmatpush1.msra.mxu0 %v1682
      %2028 = vmatprep.subr.mxu0 %v1679
      %2029 = vmatpush1.msra.mxu0 %v1678
      %2030 = vmatprep.subr.mxu0 %v1675
      %2031 = vmatpush1.msra.mxu0 %v1674
      %2032 = vmatprep.subr.mxu0 %v1671
      %2033 = vmatpush1.msra.mxu0 %v1670
      %2034 = vmatprep.subr.mxu0 %v1667
      %2035 = vmatpush1.msra.mxu0 %v1666
      %2036 = vmatprep.subr.mxu0 %v1663
      %2037 = vmatpush1.msra.mxu0 %v1662
      %2038 = vmatprep.subr.mxu0 %v1787
      %2039 = vmatpush2.msra.mxu0 %v1786
      %2040 = vmatprep.subr.mxu0 %v1783
      %2041 = vmatpush2.msra.mxu0 %v1782
      %2042 = vmatprep.subr.mxu0 %v1779
      %2043 = vmatpush2.msra.mxu0 %v1778
      %2044 = vmatprep.subr.mxu0 %v1775
      %2045 = vmatpush2.msra.mxu0 %v1774
      %2046 = vmatprep.subr.mxu0 %v1771
      %2047 = vmatpush2.msra.mxu0 %v1770
      %2048 = vmatprep.subr.mxu0 %v1767
      %2049 = vmatpush2.msra.mxu0 %v1766
      %2050 = vmatprep.subr.mxu0 %v1763
      %2051 = vmatpush2.msra.mxu0 %v1762
      %2052 = vmatprep.subr.mxu0 %v1759
      %2053 = vmatpush2.msra.mxu0 %v1758
      %2054 = vmatprep.subr.mxu0 %v1755
      %2055 = vmatpush2.msra.mxu0 %v1754
      %2056 = vmatprep.subr.mxu0 %v1751
      %2057 = vmatpush2.msra.mxu0 %v1750
      %2058 = vmatprep.subr.mxu0 %v1747
      %2059 = vmatpush2.msra.mxu0 %v1746
      %2060 = vmatprep.subr.mxu0 %v1743
      %2061 = vmatpush2.msra.mxu0 %v1742
      %2062 = vmatprep.subr.mxu0 %v1739
      %2063 = vmatpush2.msra.mxu0 %v1738
      %2064 = vmatprep.subr.mxu0 %v1735
      %2065 = vmatpush2.msra.mxu0 %v1734
      %2066 = vmatprep.subr.mxu0 %v1731
      %2067 = vmatpush2.msra.mxu0 %v1730
      %2068 = vmatprep.subr.mxu0 %v1727
      %2069 = vmatpush2.msra.mxu0 %v1726
      %2070 = vmatprep.mubr.f32.mxu0 %v1792
      %2071 = vmatmul.mubr.f32.gmra.mxu0 %v1791
      %v2072 = vpop.f32.mrf.mxu0
      %v2073 = vadd.f32 %v2002, %v2072
      %v2074 = vpop.f32.mrf.mxu0
      %v2075 = vadd.f32 %v2004, %v2074
      %2076 = vdwg.mxu0
      %2077 = vmatprep.subr.mxu0 %v805
      %2078 = vmatpush1.msra.mxu0 %v804
      %2079 = vmatprep.subr.mxu0 %v801
      %2080 = vmatpush1.msra.mxu0 %v800
      %2081 = vmatprep.subr.mxu0 %v797
      %2082 = vmatpush1.msra.mxu0 %v796
      %2083 = vmatprep.subr.mxu0 %v793
      %2084 = vmatpush1.msra.mxu0 %v792
      %2085 = vmatprep.subr.mxu0 %v789
      %2086 = vmatpush1.msra.mxu0 %v788
      %2087 = vmatprep.subr.mxu0 %v785
      %2088 = vmatpush1.msra.mxu0 %v784
      %2089 = vmatprep.subr.mxu0 %v781
      %2090 = vmatpush1.msra.mxu0 %v780
      %2091 = vmatprep.subr.mxu0 %v777
      %2092 = vmatpush1.msra.mxu0 %v776
      %2093 = vmatprep.subr.mxu0 %v773
      %2094 = vmatpush1.msra.mxu0 %v772
      %2095 = vmatprep.subr.mxu0 %v769
      %2096 = vmatpush1.msra.mxu0 %v768
      %2097 = vmatprep.subr.mxu0 %v765
      %2098 = vmatpush1.msra.mxu0 %v764
      %2099 = vmatprep.subr.mxu0 %v761
      %2100 = vmatpush1.msra.mxu0 %v760
      %2101 = vmatprep.subr.mxu0 %v757
      %2102 = vmatpush1.msra.mxu0 %v756
      %2103 = vmatprep.subr.mxu0 %v753
      %2104 = vmatpush1.msra.mxu0 %v752
      %2105 = vmatprep.subr.mxu0 %v749
      %2106 = vmatpush1.msra.mxu0 %v748
      %2107 = vmatprep.subr.mxu0 %v745
      %2108 = vmatpush1.msra.mxu0 %v744
      %2109 = vmatprep.subr.mxu0 %v869
      %2110 = vmatpush2.msra.mxu0 %v868
      %2111 = vmatprep.subr.mxu0 %v865
      %2112 = vmatpush2.msra.mxu0 %v864
      %2113 = vmatprep.subr.mxu0 %v861
      %2114 = vmatpush2.msra.mxu0 %v860
      %2115 = vmatprep.subr.mxu0 %v857
      %2116 = vmatpush2.msra.mxu0 %v856
      %2117 = vmatprep.subr.mxu0 %v853
      %2118 = vmatpush2.msra.mxu0 %v852
      %2119 = vmatprep.subr.mxu0 %v849
      %2120 = vmatpush2.msra.mxu0 %v848
      %2121 = vmatprep.subr.mxu0 %v845
      %2122 = vmatpush2.msra.mxu0 %v844
      %2123 = vmatprep.subr.mxu0 %v841
      %2124 = vmatpush2.msra.mxu0 %v840
      %2125 = vmatprep.subr.mxu0 %v837
      %2126 = vmatpush2.msra.mxu0 %v836
      %2127 = vmatprep.subr.mxu0 %v833
      %2128 = vmatpush2.msra.mxu0 %v832
      %2129 = vmatprep.subr.mxu0 %v829
      %2130 = vmatpush2.msra.mxu0 %v828
      %2131 = vmatprep.subr.mxu0 %v825
      %2132 = vmatpush2.msra.mxu0 %v824
      %2133 = vmatprep.subr.mxu0 %v821
      %2134 = vmatpush2.msra.mxu0 %v820
      %2135 = vmatprep.subr.mxu0 %v817
      %2136 = vmatpush2.msra.mxu0 %v816
      %2137 = vmatprep.subr.mxu0 %v813
      %2138 = vmatpush2.msra.mxu0 %v812
      %2139 = vmatprep.subr.mxu0 %v809
      %2140 = vmatpush2.msra.mxu0 %v808
      %2141 = vmatprep.mubr.f32.mxu0 %v1001
      %2142 = vmatmul.mubr.f32.gmra.mxu0 %v1000
      %v2143 = vpop.f32.mrf.mxu0
      %v2144 = vadd.f32 %v1931, %v2143
      %v2145 = vpop.f32.mrf.mxu0
      %v2146 = vadd.f32 %v1933, %v2145
      %2147 = vdwg.mxu0
      %2148 = vmatprep.subr.mxu0 %v933
      %2149 = vmatpush1.msra.mxu0 %v932
      %2150 = vmatprep.subr.mxu0 %v929
      %2151 = vmatpush1.msra.mxu0 %v928
      %2152 = vmatprep.subr.mxu0 %v925
      %2153 = vmatpush1.msra.mxu0 %v924
      %2154 = vmatprep.subr.mxu0 %v921
      %2155 = vmatpush1.msra.mxu0 %v920
      %2156 = vmatprep.subr.mxu0 %v917
      %2157 = vmatpush1.msra.mxu0 %v916
      %2158 = vmatprep.subr.mxu0 %v913
      %2159 = vmatpush1.msra.mxu0 %v912
      %2160 = vmatprep.subr.mxu0 %v909
      %2161 = vmatpush1.msra.mxu0 %v908
      %2162 = vmatprep.subr.mxu0 %v905
      %2163 = vmatpush1.msra.mxu0 %v904
      %2164 = vmatprep.subr.mxu0 %v901
      %2165 = vmatpush1.msra.mxu0 %v900
      %2166 = vmatprep.subr.mxu0 %v897
      %2167 = vmatpush1.msra.mxu0 %v896
      %2168 = vmatprep.subr.mxu0 %v893
      %2169 = vmatpush1.msra.mxu0 %v892
      %2170 = vmatprep.subr.mxu0 %v889
      %2171 = vmatpush1.msra.mxu0 %v888
      %2172 = vmatprep.subr.mxu0 %v885
      %2173 = vmatpush1.msra.mxu0 %v884
      %2174 = vmatprep.subr.mxu0 %v881
      %2175 = vmatpush1.msra.mxu0 %v880
      %2176 = vmatprep.subr.mxu0 %v877
      %2177 = vmatpush1.msra.mxu0 %v876
      %2178 = vmatprep.subr.mxu0 %v873
      %2179 = vmatpush1.msra.mxu0 %v872
      %2180 = vmatprep.subr.mxu0 %v997
      %2181 = vmatpush2.msra.mxu0 %v996
      %2182 = vmatprep.subr.mxu0 %v993
      %2183 = vmatpush2.msra.mxu0 %v992
      %2184 = vmatprep.subr.mxu0 %v989
      %2185 = vmatpush2.msra.mxu0 %v988
      %2186 = vmatprep.subr.mxu0 %v985
      %2187 = vmatpush2.msra.mxu0 %v984
      %2188 = vmatprep.subr.mxu0 %v981
      %2189 = vmatpush2.msra.mxu0 %v980
      %2190 = vmatprep.subr.mxu0 %v977
      %2191 = vmatpush2.msra.mxu0 %v976
      %2192 = vmatprep.subr.mxu0 %v973
      %2193 = vmatpush2.msra.mxu0 %v972
      %2194 = vmatprep.subr.mxu0 %v969
      %2195 = vmatpush2.msra.mxu0 %v968
      %2196 = vmatprep.subr.mxu0 %v965
      %2197 = vmatpush2.msra.mxu0 %v964
      %2198 = vmatprep.subr.mxu0 %v961
      %2199 = vmatpush2.msra.mxu0 %v960
      %2200 = vmatprep.subr.mxu0 %v957
      %2201 = vmatpush2.msra.mxu0 %v956
      %2202 = vmatprep.subr.mxu0 %v953
      %2203 = vmatpush2.msra.mxu0 %v952
      %2204 = vmatprep.subr.mxu0 %v949
      %2205 = vmatpush2.msra.mxu0 %v948
      %2206 = vmatprep.subr.mxu0 %v945
      %2207 = vmatpush2.msra.mxu0 %v944
      %2208 = vmatprep.subr.mxu0 %v941
      %2209 = vmatpush2.msra.mxu0 %v940
      %2210 = vmatprep.subr.mxu0 %v937
      %2211 = vmatpush2.msra.mxu0 %v936
      %2212 = vmatprep.mubr.f32.mxu0 %v1003
      %2213 = vmatmul.mubr.f32.gmra.mxu0 %v1002
      %v2214 = vpop.f32.mrf.mxu0
      %v2215 = vadd.f32 %v2144, %v2214
      %v2216 = vpop.f32.mrf.mxu0
      %v2217 = vadd.f32 %v2146, %v2216
      %2218 = vdwg.mxu0
      %2219 = vmatprep.subr.mxu0 %v807
      %2220 = vmatpush1.msra.mxu0 %v806
      %2221 = vmatprep.subr.mxu0 %v803
      %2222 = vmatpush1.msra.mxu0 %v802
      %2223 = vmatprep.subr.mxu0 %v799
      %2224 = vmatpush1.msra.mxu0 %v798
      %2225 = vmatprep.subr.mxu0 %v795
      %2226 = vmatpush1.msra.mxu0 %v794
      %2227 = vmatprep.subr.mxu0 %v791
      %2228 = vmatpush1.msra.mxu0 %v790
      %2229 = vmatprep.subr.mxu0 %v787
      %2230 = vmatpush1.msra.mxu0 %v786
      %2231 = vmatprep.subr.mxu0 %v783
      %2232 = vmatpush1.msra.mxu0 %v782
      %2233 = vmatprep.subr.mxu0 %v779
      %2234 = vmatpush1.msra.mxu0 %v778
      %2235 = vmatprep.subr.mxu0 %v775
      %2236 = vmatpush1.msra.mxu0 %v774
      %2237 = vmatprep.subr.mxu0 %v771
      %2238 = vmatpush1.msra.mxu0 %v770
      %2239 = vmatprep.subr.mxu0 %v767
      %2240 = vmatpush1.msra.mxu0 %v766
      %2241 = vmatprep.subr.mxu0 %v763
      %2242 = vmatpush1.msra.mxu0 %v762
      %2243 = vmatprep.subr.mxu0 %v759
      %2244 = vmatpush1.msra.mxu0 %v758
      %2245 = vmatprep.subr.mxu0 %v755
      %2246 = vmatpush1.msra.mxu0 %v754
      %2247 = vmatprep.subr.mxu0 %v751
      %2248 = vmatpush1.msra.mxu0 %v750
      %2249 = vmatprep.subr.mxu0 %v747
      %2250 = vmatpush1.msra.mxu0 %v746
      %2251 = vmatprep.subr.mxu0 %v871
      %2252 = vmatpush2.msra.mxu0 %v870
      %2253 = vmatprep.subr.mxu0 %v867
      %2254 = vmatpush2.msra.mxu0 %v866
      %2255 = vmatprep.subr.mxu0 %v863
      %2256 = vmatpush2.msra.mxu0 %v862
      %2257 = vmatprep.subr.mxu0 %v859
      %2258 = vmatpush2.msra.mxu0 %v858
      %2259 = vmatprep.subr.mxu0 %v855
      %2260 = vmatpush2.msra.mxu0 %v854
      %2261 = vmatprep.subr.mxu0 %v851
      %2262 = vmatpush2.msra.mxu0 %v850
      %2263 = vmatprep.subr.mxu0 %v847
      %2264 = vmatpush2.msra.mxu0 %v846
      %2265 = vmatprep.subr.mxu0 %v843
      %2266 = vmatpush2.msra.mxu0 %v842
      %2267 = vmatprep.subr.mxu0 %v839
      %2268 = vmatpush2.msra.mxu0 %v838
      %2269 = vmatprep.subr.mxu0 %v835
      %2270 = vmatpush2.msra.mxu0 %v834
      %2271 = vmatprep.subr.mxu0 %v831
      %2272 = vmatpush2.msra.mxu0 %v830
      %2273 = vmatprep.subr.mxu0 %v827
      %2274 = vmatpush2.msra.mxu0 %v826
      %2275 = vmatprep.subr.mxu0 %v823
      %2276 = vmatpush2.msra.mxu0 %v822
      %2277 = vmatprep.subr.mxu0 %v819
      %2278 = vmatpush2.msra.mxu0 %v818
      %2279 = vmatprep.subr.mxu0 %v815
      %2280 = vmatpush2.msra.mxu0 %v814
      %2281 = vmatprep.subr.mxu0 %v811
      %2282 = vmatpush2.msra.mxu0 %v810
      %2283 = vmatprep.mubr.f32.mxu0 %v1001
      %2284 = vmatmul.mubr.f32.gmra.mxu0 %v1000
      %v2285 = vpop.f32.mrf.mxu0
      %v2286 = vadd.f32 %v2073, %v2285
      %v2287 = vpop.f32.mrf.mxu0
      %v2288 = vadd.f32 %v2075, %v2287
      %2289 = vdwg.mxu0
      %2290 = vmatprep.subr.mxu0 %v935
      %2291 = vmatpush1.msra.mxu0 %v934
      %2292 = vmatprep.subr.mxu0 %v931
      %2293 = vmatpush1.msra.mxu0 %v930
      %2294 = vmatprep.subr.mxu0 %v927
      %2295 = vmatpush1.msra.mxu0 %v926
      %2296 = vmatprep.subr.mxu0 %v923
      %2297 = vmatpush1.msra.mxu0 %v922
      %2298 = vmatprep.subr.mxu0 %v919
      %2299 = vmatpush1.msra.mxu0 %v918
      %2300 = vmatprep.subr.mxu0 %v915
      %2301 = vmatpush1.msra.mxu0 %v914
      %2302 = vmatprep.subr.mxu0 %v911
      %2303 = vmatpush1.msra.mxu0 %v910
      %2304 = vmatprep.subr.mxu0 %v907
      %2305 = vmatpush1.msra.mxu0 %v906
      %2306 = vmatprep.subr.mxu0 %v903
      %2307 = vmatpush1.msra.mxu0 %v902
      %2308 = vmatprep.subr.mxu0 %v899
      %2309 = vmatpush1.msra.mxu0 %v898
      %2310 = vmatprep.subr.mxu0 %v895
      %2311 = vmatpush1.msra.mxu0 %v894
      %2312 = vmatprep.subr.mxu0 %v891
      %2313 = vmatpush1.msra.mxu0 %v890
      %2314 = vmatprep.subr.mxu0 %v887
      %2315 = vmatpush1.msra.mxu0 %v886
      %2316 = vmatprep.subr.mxu0 %v883
      %2317 = vmatpush1.msra.mxu0 %v882
      %2318 = vmatprep.subr.mxu0 %v879
      %2319 = vmatpush1.msra.mxu0 %v878
      %2320 = vmatprep.subr.mxu0 %v875
      %2321 = vmatpush1.msra.mxu0 %v874
      %2322 = vmatprep.subr.mxu0 %v999
      %2323 = vmatpush2.msra.mxu0 %v998
      %2324 = vmatprep.subr.mxu0 %v995
      %2325 = vmatpush2.msra.mxu0 %v994
      %2326 = vmatprep.subr.mxu0 %v991
      %2327 = vmatpush2.msra.mxu0 %v990
      %2328 = vmatprep.subr.mxu0 %v987
      %2329 = vmatpush2.msra.mxu0 %v986
      %2330 = vmatprep.subr.mxu0 %v983
      %2331 = vmatpush2.msra.mxu0 %v982
      %2332 = vmatprep.subr.mxu0 %v979
      %2333 = vmatpush2.msra.mxu0 %v978
      %2334 = vmatprep.subr.mxu0 %v975
      %2335 = vmatpush2.msra.mxu0 %v974
      %2336 = vmatprep.subr.mxu0 %v971
      %2337 = vmatpush2.msra.mxu0 %v970
      %2338 = vmatprep.subr.mxu0 %v967
      %2339 = vmatpush2.msra.mxu0 %v966
      %2340 = vmatprep.subr.mxu0 %v963
      %2341 = vmatpush2.msra.mxu0 %v962
      %2342 = vmatprep.subr.mxu0 %v959
      %2343 = vmatpush2.msra.mxu0 %v958
      %2344 = vmatprep.subr.mxu0 %v955
      %2345 = vmatpush2.msra.mxu0 %v954
      %2346 = vmatprep.subr.mxu0 %v951
      %2347 = vmatpush2.msra.mxu0 %v950
      %2348 = vmatprep.subr.mxu0 %v947
      %2349 = vmatpush2.msra.mxu0 %v946
      %2350 = vmatprep.subr.mxu0 %v943
      %2351 = vmatpush2.msra.mxu0 %v942
      %2352 = vmatprep.subr.mxu0 %v939
      %2353 = vmatpush2.msra.mxu0 %v938
      %2354 = vmatprep.mubr.f32.mxu0 %v1003
      %2355 = vmatmul.mubr.f32.gmra.mxu0 %v1002
      %v2356 = vpop.f32.mrf.mxu0
      %v2357 = vadd.f32 %v2286, %v2356
      %v2358 = vpop.f32.mrf.mxu0
      %v2359 = vadd.f32 %v2288, %v2358
      %2360 = vdwg.mxu0
      %v2361 = vlaneseq
      %v2362 = vshrl.u32 %v2361, 7
      %v2363 = vsub.s32 2, %v2362
      %v2364 = vrot.slane %v147, %v2363
      %v2365 = vlaneseq
      %v2366 = vshrl.u32 %v2365, 7
      %v2367 = vsub.s32 2, %v2366
      %v2368 = vrot.slane %v148, %v2367
      %v2369 = vlaneseq
      %v2370 = vshrl.u32 %v2369, 7
      %v2371 = vsub.s32 2, %v2370
      %v2372 = vrot.slane %v149, %v2371
      %v2373 = vlaneseq
      %v2374 = vshrl.u32 %v2373, 7
      %v2375 = vsub.s32 2, %v2374
      %v2376 = vrot.slane %v150, %v2375
      %vm2377 = vcmp.eq.s32.totalorder %v152, %v2364
      %vm2378 = vcmp.eq.s32.totalorder %v152, %v2368
      %vm2379 = vcmp.eq.s32.totalorder %v152, %v2372
      %vm2380 = vcmp.eq.s32.totalorder %v152, %v2376
      %vm2381 = vcmp.eq.s32.totalorder %v153, %v2364
      %vm2382 = vcmp.eq.s32.totalorder %v153, %v2368
      %vm2383 = vcmp.eq.s32.totalorder %v153, %v2372
      %vm2384 = vcmp.eq.s32.totalorder %v153, %v2376
      %vm2385 = vcmp.eq.s32.totalorder %v154, %v2364
      %vm2386 = vcmp.eq.s32.totalorder %v154, %v2368
      %vm2387 = vcmp.eq.s32.totalorder %v154, %v2372
      %vm2388 = vcmp.eq.s32.totalorder %v154, %v2376
      %vm2389 = vcmp.eq.s32.totalorder %v155, %v2364
      %vm2390 = vcmp.eq.s32.totalorder %v155, %v2368
      %vm2391 = vcmp.eq.s32.totalorder %v155, %v2372
      %vm2392 = vcmp.eq.s32.totalorder %v155, %v2376
      %vm2393 = vcmp.eq.s32.totalorder %v156, %v2364
      %vm2394 = vcmp.eq.s32.totalorder %v156, %v2368
      %vm2395 = vcmp.eq.s32.totalorder %v156, %v2372
      %vm2396 = vcmp.eq.s32.totalorder %v156, %v2376
      %vm2397 = vcmp.eq.s32.totalorder %v157, %v2364
      %vm2398 = vcmp.eq.s32.totalorder %v157, %v2368
      %vm2399 = vcmp.eq.s32.totalorder %v157, %v2372
      %vm2400 = vcmp.eq.s32.totalorder %v157, %v2376
      %vm2401 = vcmp.eq.s32.totalorder %v158, %v2364
      %vm2402 = vcmp.eq.s32.totalorder %v158, %v2368
      %vm2403 = vcmp.eq.s32.totalorder %v158, %v2372
      %vm2404 = vcmp.eq.s32.totalorder %v158, %v2376
      %vm2405 = vcmp.eq.s32.totalorder %v159, %v2364
      %vm2406 = vcmp.eq.s32.totalorder %v159, %v2368
      %vm2407 = vcmp.eq.s32.totalorder %v159, %v2372
      %vm2408 = vcmp.eq.s32.totalorder %v159, %v2376
      %vm2409 = vcmp.eq.s32.totalorder %v160, %v2364
      %vm2410 = vcmp.eq.s32.totalorder %v160, %v2368
      %vm2411 = vcmp.eq.s32.totalorder %v160, %v2372
      %vm2412 = vcmp.eq.s32.totalorder %v160, %v2376
      %vm2413 = vcmp.eq.s32.totalorder %v161, %v2364
      %vm2414 = vcmp.eq.s32.totalorder %v161, %v2368
      %vm2415 = vcmp.eq.s32.totalorder %v161, %v2372
      %vm2416 = vcmp.eq.s32.totalorder %v161, %v2376
      %vm2417 = vcmp.eq.s32.totalorder %v162, %v2364
      %vm2418 = vcmp.eq.s32.totalorder %v162, %v2368
      %vm2419 = vcmp.eq.s32.totalorder %v162, %v2372
      %vm2420 = vcmp.eq.s32.totalorder %v162, %v2376
      %vm2421 = vcmp.eq.s32.totalorder %v163, %v2364
      %vm2422 = vcmp.eq.s32.totalorder %v163, %v2368
      %vm2423 = vcmp.eq.s32.totalorder %v163, %v2372
      %vm2424 = vcmp.eq.s32.totalorder %v163, %v2376
      %vm2425 = vcmp.eq.s32.totalorder %v164, %v2364
      %vm2426 = vcmp.eq.s32.totalorder %v164, %v2368
      %vm2427 = vcmp.eq.s32.totalorder %v164, %v2372
      %vm2428 = vcmp.eq.s32.totalorder %v164, %v2376
      %vm2429 = vcmp.eq.s32.totalorder %v165, %v2364
      %vm2430 = vcmp.eq.s32.totalorder %v165, %v2368
      %vm2431 = vcmp.eq.s32.totalorder %v165, %v2372
      %vm2432 = vcmp.eq.s32.totalorder %v165, %v2376
      %vm2433 = vcmp.eq.s32.totalorder %v166, %v2364
      %vm2434 = vcmp.eq.s32.totalorder %v166, %v2368
      %vm2435 = vcmp.eq.s32.totalorder %v166, %v2372
      %vm2436 = vcmp.eq.s32.totalorder %v166, %v2376
      %vm2437 = vcmp.eq.s32.totalorder %v167, %v2364
      %vm2438 = vcmp.eq.s32.totalorder %v167, %v2368
      %vm2439 = vcmp.eq.s32.totalorder %v167, %v2372
      %vm2440 = vcmp.eq.s32.totalorder %v167, %v2376
      %vm2441 = vcmp.eq.s32.totalorder %v168, %v2364
      %vm2442 = vcmp.eq.s32.totalorder %v168, %v2368
      %vm2443 = vcmp.eq.s32.totalorder %v168, %v2372
      %vm2444 = vcmp.eq.s32.totalorder %v168, %v2376
      %vm2445 = vcmp.eq.s32.totalorder %v169, %v2364
      %vm2446 = vcmp.eq.s32.totalorder %v169, %v2368
      %vm2447 = vcmp.eq.s32.totalorder %v169, %v2372
      %vm2448 = vcmp.eq.s32.totalorder %v169, %v2376
      %vm2449 = vcmp.eq.s32.totalorder %v170, %v2364
      %vm2450 = vcmp.eq.s32.totalorder %v170, %v2368
      %vm2451 = vcmp.eq.s32.totalorder %v170, %v2372
      %vm2452 = vcmp.eq.s32.totalorder %v170, %v2376
      %vm2453 = vcmp.eq.s32.totalorder %v171, %v2364
      %vm2454 = vcmp.eq.s32.totalorder %v171, %v2368
      %vm2455 = vcmp.eq.s32.totalorder %v171, %v2372
      %vm2456 = vcmp.eq.s32.totalorder %v171, %v2376
      %vm2457 = vcmp.eq.s32.totalorder %v172, %v2364
      %vm2458 = vcmp.eq.s32.totalorder %v172, %v2368
      %vm2459 = vcmp.eq.s32.totalorder %v172, %v2372
      %vm2460 = vcmp.eq.s32.totalorder %v172, %v2376
      %vm2461 = vcmp.eq.s32.totalorder %v173, %v2364
      %vm2462 = vcmp.eq.s32.totalorder %v173, %v2368
      %vm2463 = vcmp.eq.s32.totalorder %v173, %v2372
      %vm2464 = vcmp.eq.s32.totalorder %v173, %v2376
      %vm2465 = vcmp.eq.s32.totalorder %v174, %v2364
      %vm2466 = vcmp.eq.s32.totalorder %v174, %v2368
      %vm2467 = vcmp.eq.s32.totalorder %v174, %v2372
      %vm2468 = vcmp.eq.s32.totalorder %v174, %v2376
      %vm2469 = vcmp.eq.s32.totalorder %v175, %v2364
      %vm2470 = vcmp.eq.s32.totalorder %v175, %v2368
      %vm2471 = vcmp.eq.s32.totalorder %v175, %v2372
      %vm2472 = vcmp.eq.s32.totalorder %v175, %v2376
      %vm2473 = vcmp.eq.s32.totalorder %v176, %v2364
      %vm2474 = vcmp.eq.s32.totalorder %v176, %v2368
      %vm2475 = vcmp.eq.s32.totalorder %v176, %v2372
      %vm2476 = vcmp.eq.s32.totalorder %v176, %v2376
      %vm2477 = vcmp.eq.s32.totalorder %v177, %v2364
      %vm2478 = vcmp.eq.s32.totalorder %v177, %v2368
      %vm2479 = vcmp.eq.s32.totalorder %v177, %v2372
      %vm2480 = vcmp.eq.s32.totalorder %v177, %v2376
      %vm2481 = vcmp.eq.s32.totalorder %v178, %v2364
      %vm2482 = vcmp.eq.s32.totalorder %v178, %v2368
      %vm2483 = vcmp.eq.s32.totalorder %v178, %v2372
      %vm2484 = vcmp.eq.s32.totalorder %v178, %v2376
      %vm2485 = vcmp.eq.s32.totalorder %v179, %v2364
      %vm2486 = vcmp.eq.s32.totalorder %v179, %v2368
      %vm2487 = vcmp.eq.s32.totalorder %v179, %v2372
      %vm2488 = vcmp.eq.s32.totalorder %v179, %v2376
      %vm2489 = vcmp.eq.s32.totalorder %v180, %v2364
      %vm2490 = vcmp.eq.s32.totalorder %v180, %v2368
      %vm2491 = vcmp.eq.s32.totalorder %v180, %v2372
      %vm2492 = vcmp.eq.s32.totalorder %v180, %v2376
      %vm2493 = vcmp.eq.s32.totalorder %v181, %v2364
      %vm2494 = vcmp.eq.s32.totalorder %v181, %v2368
      %vm2495 = vcmp.eq.s32.totalorder %v181, %v2372
      %vm2496 = vcmp.eq.s32.totalorder %v181, %v2376
      %vm2497 = vcmp.eq.s32.totalorder %v182, %v2364
      %vm2498 = vcmp.eq.s32.totalorder %v182, %v2368
      %vm2499 = vcmp.eq.s32.totalorder %v182, %v2372
      %vm2500 = vcmp.eq.s32.totalorder %v182, %v2376
      %vm2501 = vcmp.eq.s32.totalorder %v183, %v2364
      %vm2502 = vcmp.eq.s32.totalorder %v183, %v2368
      %vm2503 = vcmp.eq.s32.totalorder %v183, %v2372
      %vm2504 = vcmp.eq.s32.totalorder %v183, %v2376
      %vm2505 = vcmp.eq.s32.totalorder %v184, %v2364
      %vm2506 = vcmp.eq.s32.totalorder %v184, %v2368
      %vm2507 = vcmp.eq.s32.totalorder %v184, %v2372
      %vm2508 = vcmp.eq.s32.totalorder %v184, %v2376
      %vm2509 = vcmp.eq.s32.totalorder %v185, %v2364
      %vm2510 = vcmp.eq.s32.totalorder %v185, %v2368
      %vm2511 = vcmp.eq.s32.totalorder %v185, %v2372
      %vm2512 = vcmp.eq.s32.totalorder %v185, %v2376
      %vm2513 = vcmp.eq.s32.totalorder %v186, %v2364
      %vm2514 = vcmp.eq.s32.totalorder %v186, %v2368
      %vm2515 = vcmp.eq.s32.totalorder %v186, %v2372
      %vm2516 = vcmp.eq.s32.totalorder %v186, %v2376
      %vm2517 = vcmp.eq.s32.totalorder %v187, %v2364
      %vm2518 = vcmp.eq.s32.totalorder %v187, %v2368
      %vm2519 = vcmp.eq.s32.totalorder %v187, %v2372
      %vm2520 = vcmp.eq.s32.totalorder %v187, %v2376
      %vm2521 = vcmp.eq.s32.totalorder %v188, %v2364
      %vm2522 = vcmp.eq.s32.totalorder %v188, %v2368
      %vm2523 = vcmp.eq.s32.totalorder %v188, %v2372
      %vm2524 = vcmp.eq.s32.totalorder %v188, %v2376
      %vm2525 = vcmp.eq.s32.totalorder %v189, %v2364
      %vm2526 = vcmp.eq.s32.totalorder %v189, %v2368
      %vm2527 = vcmp.eq.s32.totalorder %v189, %v2372
      %vm2528 = vcmp.eq.s32.totalorder %v189, %v2376
      %vm2529 = vcmp.eq.s32.totalorder %v190, %v2364
      %vm2530 = vcmp.eq.s32.totalorder %v190, %v2368
      %vm2531 = vcmp.eq.s32.totalorder %v190, %v2372
      %vm2532 = vcmp.eq.s32.totalorder %v190, %v2376
      %vm2533 = vcmp.eq.s32.totalorder %v191, %v2364
      %vm2534 = vcmp.eq.s32.totalorder %v191, %v2368
      %vm2535 = vcmp.eq.s32.totalorder %v191, %v2372
      %vm2536 = vcmp.eq.s32.totalorder %v191, %v2376
      %vm2537 = vcmp.eq.s32.totalorder %v192, %v2364
      %vm2538 = vcmp.eq.s32.totalorder %v192, %v2368
      %vm2539 = vcmp.eq.s32.totalorder %v192, %v2372
      %vm2540 = vcmp.eq.s32.totalorder %v192, %v2376
      %vm2541 = vcmp.eq.s32.totalorder %v193, %v2364
      %vm2542 = vcmp.eq.s32.totalorder %v193, %v2368
      %vm2543 = vcmp.eq.s32.totalorder %v193, %v2372
      %vm2544 = vcmp.eq.s32.totalorder %v193, %v2376
      %vm2545 = vcmp.eq.s32.totalorder %v194, %v2364
      %vm2546 = vcmp.eq.s32.totalorder %v194, %v2368
      %vm2547 = vcmp.eq.s32.totalorder %v194, %v2372
      %vm2548 = vcmp.eq.s32.totalorder %v194, %v2376
      %vm2549 = vcmp.eq.s32.totalorder %v195, %v2364
      %vm2550 = vcmp.eq.s32.totalorder %v195, %v2368
      %vm2551 = vcmp.eq.s32.totalorder %v195, %v2372
      %vm2552 = vcmp.eq.s32.totalorder %v195, %v2376
      %vm2553 = vcmp.eq.s32.totalorder %v196, %v2364
      %vm2554 = vcmp.eq.s32.totalorder %v196, %v2368
      %vm2555 = vcmp.eq.s32.totalorder %v196, %v2372
      %vm2556 = vcmp.eq.s32.totalorder %v196, %v2376
      %vm2557 = vcmp.eq.s32.totalorder %v197, %v2364
      %vm2558 = vcmp.eq.s32.totalorder %v197, %v2368
      %vm2559 = vcmp.eq.s32.totalorder %v197, %v2372
      %vm2560 = vcmp.eq.s32.totalorder %v197, %v2376
      %vm2561 = vcmp.eq.s32.totalorder %v198, %v2364
      %vm2562 = vcmp.eq.s32.totalorder %v198, %v2368
      %vm2563 = vcmp.eq.s32.totalorder %v198, %v2372
      %vm2564 = vcmp.eq.s32.totalorder %v198, %v2376
      %vm2565 = vcmp.eq.s32.totalorder %v199, %v2364
      %vm2566 = vcmp.eq.s32.totalorder %v199, %v2368
      %vm2567 = vcmp.eq.s32.totalorder %v199, %v2372
      %vm2568 = vcmp.eq.s32.totalorder %v199, %v2376
      %vm2569 = vcmp.eq.s32.totalorder %v200, %v2364
      %vm2570 = vcmp.eq.s32.totalorder %v200, %v2368
      %vm2571 = vcmp.eq.s32.totalorder %v200, %v2372
      %vm2572 = vcmp.eq.s32.totalorder %v200, %v2376
      %vm2573 = vcmp.eq.s32.totalorder %v201, %v2364
      %vm2574 = vcmp.eq.s32.totalorder %v201, %v2368
      %vm2575 = vcmp.eq.s32.totalorder %v201, %v2372
      %vm2576 = vcmp.eq.s32.totalorder %v201, %v2376
      %vm2577 = vcmp.eq.s32.totalorder %v202, %v2364
      %vm2578 = vcmp.eq.s32.totalorder %v202, %v2368
      %vm2579 = vcmp.eq.s32.totalorder %v202, %v2372
      %vm2580 = vcmp.eq.s32.totalorder %v202, %v2376
      %vm2581 = vcmp.eq.s32.totalorder %v203, %v2364
      %vm2582 = vcmp.eq.s32.totalorder %v203, %v2368
      %vm2583 = vcmp.eq.s32.totalorder %v203, %v2372
      %vm2584 = vcmp.eq.s32.totalorder %v203, %v2376
      %vm2585 = vcmp.eq.s32.totalorder %v204, %v2364
      %vm2586 = vcmp.eq.s32.totalorder %v204, %v2368
      %vm2587 = vcmp.eq.s32.totalorder %v204, %v2372
      %vm2588 = vcmp.eq.s32.totalorder %v204, %v2376
      %vm2589 = vcmp.eq.s32.totalorder %v205, %v2364
      %vm2590 = vcmp.eq.s32.totalorder %v205, %v2368
      %vm2591 = vcmp.eq.s32.totalorder %v205, %v2372
      %vm2592 = vcmp.eq.s32.totalorder %v205, %v2376
      %vm2593 = vcmp.eq.s32.totalorder %v206, %v2364
      %vm2594 = vcmp.eq.s32.totalorder %v206, %v2368
      %vm2595 = vcmp.eq.s32.totalorder %v206, %v2372
      %vm2596 = vcmp.eq.s32.totalorder %v206, %v2376
      %vm2597 = vcmp.eq.s32.totalorder %v207, %v2364
      %vm2598 = vcmp.eq.s32.totalorder %v207, %v2368
      %vm2599 = vcmp.eq.s32.totalorder %v207, %v2372
      %vm2600 = vcmp.eq.s32.totalorder %v207, %v2376
      %vm2601 = vcmp.eq.s32.totalorder %v208, %v2364
      %vm2602 = vcmp.eq.s32.totalorder %v208, %v2368
      %vm2603 = vcmp.eq.s32.totalorder %v208, %v2372
      %vm2604 = vcmp.eq.s32.totalorder %v208, %v2376
      %vm2605 = vcmp.eq.s32.totalorder %v209, %v2364
      %vm2606 = vcmp.eq.s32.totalorder %v209, %v2368
      %vm2607 = vcmp.eq.s32.totalorder %v209, %v2372
      %vm2608 = vcmp.eq.s32.totalorder %v209, %v2376
      %vm2609 = vcmp.eq.s32.totalorder %v210, %v2364
      %vm2610 = vcmp.eq.s32.totalorder %v210, %v2368
      %vm2611 = vcmp.eq.s32.totalorder %v210, %v2372
      %vm2612 = vcmp.eq.s32.totalorder %v210, %v2376
      %vm2613 = vcmp.eq.s32.totalorder %v211, %v2364
      %vm2614 = vcmp.eq.s32.totalorder %v211, %v2368
      %vm2615 = vcmp.eq.s32.totalorder %v211, %v2372
      %vm2616 = vcmp.eq.s32.totalorder %v211, %v2376
      %vm2617 = vcmp.eq.s32.totalorder %v212, %v2364
      %vm2618 = vcmp.eq.s32.totalorder %v212, %v2368
      %vm2619 = vcmp.eq.s32.totalorder %v212, %v2372
      %vm2620 = vcmp.eq.s32.totalorder %v212, %v2376
      %vm2621 = vcmp.eq.s32.totalorder %v213, %v2364
      %vm2622 = vcmp.eq.s32.totalorder %v213, %v2368
      %vm2623 = vcmp.eq.s32.totalorder %v213, %v2372
      %vm2624 = vcmp.eq.s32.totalorder %v213, %v2376
      %vm2625 = vcmp.eq.s32.totalorder %v214, %v2364
      %vm2626 = vcmp.eq.s32.totalorder %v214, %v2368
      %vm2627 = vcmp.eq.s32.totalorder %v214, %v2372
      %vm2628 = vcmp.eq.s32.totalorder %v214, %v2376
      %vm2629 = vcmp.eq.s32.totalorder %v215, %v2364
      %vm2630 = vcmp.eq.s32.totalorder %v215, %v2368
      %vm2631 = vcmp.eq.s32.totalorder %v215, %v2372
      %vm2632 = vcmp.eq.s32.totalorder %v215, %v2376
      %v2633 = vsel %vm2377, 1, 0
      %v2634 = vsel %vm2378, 1, 0
      %v2635 = vsel %vm2379, 1, 0
      %v2636 = vsel %vm2380, 1, 0
      %v2637 = vsel %vm2381, 1, 0
      %v2638 = vsel %vm2382, 1, 0
      %v2639 = vsel %vm2383, 1, 0
      %v2640 = vsel %vm2384, 1, 0
      %v2641 = vsel %vm2385, 1, 0
      %v2642 = vsel %vm2386, 1, 0
      %v2643 = vsel %vm2387, 1, 0
      %v2644 = vsel %vm2388, 1, 0
      %v2645 = vsel %vm2389, 1, 0
      %v2646 = vsel %vm2390, 1, 0
      %v2647 = vsel %vm2391, 1, 0
      %v2648 = vsel %vm2392, 1, 0
      %v2649 = vsel %vm2393, 1, 0
      %v2650 = vsel %vm2394, 1, 0
      %v2651 = vsel %vm2395, 1, 0
      %v2652 = vsel %vm2396, 1, 0
      %v2653 = vsel %vm2397, 1, 0
      %v2654 = vsel %vm2398, 1, 0
      %v2655 = vsel %vm2399, 1, 0
      %v2656 = vsel %vm2400, 1, 0
      %v2657 = vsel %vm2401, 1, 0
      %v2658 = vsel %vm2402, 1, 0
      %v2659 = vsel %vm2403, 1, 0
      %v2660 = vsel %vm2404, 1, 0
      %v2661 = vsel %vm2405, 1, 0
      %v2662 = vsel %vm2406, 1, 0
      %v2663 = vsel %vm2407, 1, 0
      %v2664 = vsel %vm2408, 1, 0
      %v2665 = vsel %vm2409, 1, 0
      %v2666 = vsel %vm2410, 1, 0
      %v2667 = vsel %vm2411, 1, 0
      %v2668 = vsel %vm2412, 1, 0
      %v2669 = vsel %vm2413, 1, 0
      %v2670 = vsel %vm2414, 1, 0
      %v2671 = vsel %vm2415, 1, 0
      %v2672 = vsel %vm2416, 1, 0
      %v2673 = vsel %vm2417, 1, 0
      %v2674 = vsel %vm2418, 1, 0
      %v2675 = vsel %vm2419, 1, 0
      %v2676 = vsel %vm2420, 1, 0
      %v2677 = vsel %vm2421, 1, 0
      %v2678 = vsel %vm2422, 1, 0
      %v2679 = vsel %vm2423, 1, 0
      %v2680 = vsel %vm2424, 1, 0
      %v2681 = vsel %vm2425, 1, 0
      %v2682 = vsel %vm2426, 1, 0
      %v2683 = vsel %vm2427, 1, 0
      %v2684 = vsel %vm2428, 1, 0
      %v2685 = vsel %vm2429, 1, 0
      %v2686 = vsel %vm2430, 1, 0
      %v2687 = vsel %vm2431, 1, 0
      %v2688 = vsel %vm2432, 1, 0
      %v2689 = vsel %vm2433, 1, 0
      %v2690 = vsel %vm2434, 1, 0
      %v2691 = vsel %vm2435, 1, 0
      %v2692 = vsel %vm2436, 1, 0
      %v2693 = vsel %vm2437, 1, 0
      %v2694 = vsel %vm2438, 1, 0
      %v2695 = vsel %vm2439, 1, 0
      %v2696 = vsel %vm2440, 1, 0
      %v2697 = vsel %vm2441, 1, 0
      %v2698 = vsel %vm2442, 1, 0
      %v2699 = vsel %vm2443, 1, 0
      %v2700 = vsel %vm2444, 1, 0
      %v2701 = vsel %vm2445, 1, 0
      %v2702 = vsel %vm2446, 1, 0
      %v2703 = vsel %vm2447, 1, 0
      %v2704 = vsel %vm2448, 1, 0
      %v2705 = vsel %vm2449, 1, 0
      %v2706 = vsel %vm2450, 1, 0
      %v2707 = vsel %vm2451, 1, 0
      %v2708 = vsel %vm2452, 1, 0
      %v2709 = vsel %vm2453, 1, 0
      %v2710 = vsel %vm2454, 1, 0
      %v2711 = vsel %vm2455, 1, 0
      %v2712 = vsel %vm2456, 1, 0
      %v2713 = vsel %vm2457, 1, 0
      %v2714 = vsel %vm2458, 1, 0
      %v2715 = vsel %vm2459, 1, 0
      %v2716 = vsel %vm2460, 1, 0
      %v2717 = vsel %vm2461, 1, 0
      %v2718 = vsel %vm2462, 1, 0
      %v2719 = vsel %vm2463, 1, 0
      %v2720 = vsel %vm2464, 1, 0
      %v2721 = vsel %vm2465, 1, 0
      %v2722 = vsel %vm2466, 1, 0
      %v2723 = vsel %vm2467, 1, 0
      %v2724 = vsel %vm2468, 1, 0
      %v2725 = vsel %vm2469, 1, 0
      %v2726 = vsel %vm2470, 1, 0
      %v2727 = vsel %vm2471, 1, 0
      %v2728 = vsel %vm2472, 1, 0
      %v2729 = vsel %vm2473, 1, 0
      %v2730 = vsel %vm2474, 1, 0
      %v2731 = vsel %vm2475, 1, 0
      %v2732 = vsel %vm2476, 1, 0
      %v2733 = vsel %vm2477, 1, 0
      %v2734 = vsel %vm2478, 1, 0
      %v2735 = vsel %vm2479, 1, 0
      %v2736 = vsel %vm2480, 1, 0
      %v2737 = vsel %vm2481, 1, 0
      %v2738 = vsel %vm2482, 1, 0
      %v2739 = vsel %vm2483, 1, 0
      %v2740 = vsel %vm2484, 1, 0
      %v2741 = vsel %vm2485, 1, 0
      %v2742 = vsel %vm2486, 1, 0
      %v2743 = vsel %vm2487, 1, 0
      %v2744 = vsel %vm2488, 1, 0
      %v2745 = vsel %vm2489, 1, 0
      %v2746 = vsel %vm2490, 1, 0
      %v2747 = vsel %vm2491, 1, 0
      %v2748 = vsel %vm2492, 1, 0
      %v2749 = vsel %vm2493, 1, 0
      %v2750 = vsel %vm2494, 1, 0
      %v2751 = vsel %vm2495, 1, 0
      %v2752 = vsel %vm2496, 1, 0
      %v2753 = vsel %vm2497, 1, 0
      %v2754 = vsel %vm2498, 1, 0
      %v2755 = vsel %vm2499, 1, 0
      %v2756 = vsel %vm2500, 1, 0
      %v2757 = vsel %vm2501, 1, 0
      %v2758 = vsel %vm2502, 1, 0
      %v2759 = vsel %vm2503, 1, 0
      %v2760 = vsel %vm2504, 1, 0
      %v2761 = vsel %vm2505, 1, 0
      %v2762 = vsel %vm2506, 1, 0
      %v2763 = vsel %vm2507, 1, 0
      %v2764 = vsel %vm2508, 1, 0
      %v2765 = vsel %vm2509, 1, 0
      %v2766 = vsel %vm2510, 1, 0
      %v2767 = vsel %vm2511, 1, 0
      %v2768 = vsel %vm2512, 1, 0
      %v2769 = vsel %vm2513, 1, 0
      %v2770 = vsel %vm2514, 1, 0
      %v2771 = vsel %vm2515, 1, 0
      %v2772 = vsel %vm2516, 1, 0
      %v2773 = vsel %vm2517, 1, 0
      %v2774 = vsel %vm2518, 1, 0
      %v2775 = vsel %vm2519, 1, 0
      %v2776 = vsel %vm2520, 1, 0
      %v2777 = vsel %vm2521, 1, 0
      %v2778 = vsel %vm2522, 1, 0
      %v2779 = vsel %vm2523, 1, 0
      %v2780 = vsel %vm2524, 1, 0
      %v2781 = vsel %vm2525, 1, 0
      %v2782 = vsel %vm2526, 1, 0
      %v2783 = vsel %vm2527, 1, 0
      %v2784 = vsel %vm2528, 1, 0
      %v2785 = vsel %vm2529, 1, 0
      %v2786 = vsel %vm2530, 1, 0
      %v2787 = vsel %vm2531, 1, 0
      %v2788 = vsel %vm2532, 1, 0
      %v2789 = vsel %vm2533, 1, 0
      %v2790 = vsel %vm2534, 1, 0
      %v2791 = vsel %vm2535, 1, 0
      %v2792 = vsel %vm2536, 1, 0
      %v2793 = vsel %vm2537, 1, 0
      %v2794 = vsel %vm2538, 1, 0
      %v2795 = vsel %vm2539, 1, 0
      %v2796 = vsel %vm2540, 1, 0
      %v2797 = vsel %vm2541, 1, 0
      %v2798 = vsel %vm2542, 1, 0
      %v2799 = vsel %vm2543, 1, 0
      %v2800 = vsel %vm2544, 1, 0
      %v2801 = vsel %vm2545, 1, 0
      %v2802 = vsel %vm2546, 1, 0
      %v2803 = vsel %vm2547, 1, 0
      %v2804 = vsel %vm2548, 1, 0
      %v2805 = vsel %vm2549, 1, 0
      %v2806 = vsel %vm2550, 1, 0
      %v2807 = vsel %vm2551, 1, 0
      %v2808 = vsel %vm2552, 1, 0
      %v2809 = vsel %vm2553, 1, 0
      %v2810 = vsel %vm2554, 1, 0
      %v2811 = vsel %vm2555, 1, 0
      %v2812 = vsel %vm2556, 1, 0
      %v2813 = vsel %vm2557, 1, 0
      %v2814 = vsel %vm2558, 1, 0
      %v2815 = vsel %vm2559, 1, 0
      %v2816 = vsel %vm2560, 1, 0
      %v2817 = vsel %vm2561, 1, 0
      %v2818 = vsel %vm2562, 1, 0
      %v2819 = vsel %vm2563, 1, 0
      %v2820 = vsel %vm2564, 1, 0
      %v2821 = vsel %vm2565, 1, 0
      %v2822 = vsel %vm2566, 1, 0
      %v2823 = vsel %vm2567, 1, 0
      %v2824 = vsel %vm2568, 1, 0
      %v2825 = vsel %vm2569, 1, 0
      %v2826 = vsel %vm2570, 1, 0
      %v2827 = vsel %vm2571, 1, 0
      %v2828 = vsel %vm2572, 1, 0
      %v2829 = vsel %vm2573, 1, 0
      %v2830 = vsel %vm2574, 1, 0
      %v2831 = vsel %vm2575, 1, 0
      %v2832 = vsel %vm2576, 1, 0
      %v2833 = vsel %vm2577, 1, 0
      %v2834 = vsel %vm2578, 1, 0
      %v2835 = vsel %vm2579, 1, 0
      %v2836 = vsel %vm2580, 1, 0
      %v2837 = vsel %vm2581, 1, 0
      %v2838 = vsel %vm2582, 1, 0
      %v2839 = vsel %vm2583, 1, 0
      %v2840 = vsel %vm2584, 1, 0
      %v2841 = vsel %vm2585, 1, 0
      %v2842 = vsel %vm2586, 1, 0
      %v2843 = vsel %vm2587, 1, 0
      %v2844 = vsel %vm2588, 1, 0
      %v2845 = vsel %vm2589, 1, 0
      %v2846 = vsel %vm2590, 1, 0
      %v2847 = vsel %vm2591, 1, 0
      %v2848 = vsel %vm2592, 1, 0
      %v2849 = vsel %vm2593, 1, 0
      %v2850 = vsel %vm2594, 1, 0
      %v2851 = vsel %vm2595, 1, 0
      %v2852 = vsel %vm2596, 1, 0
      %v2853 = vsel %vm2597, 1, 0
      %v2854 = vsel %vm2598, 1, 0
      %v2855 = vsel %vm2599, 1, 0
      %v2856 = vsel %vm2600, 1, 0
      %v2857 = vsel %vm2601, 1, 0
      %v2858 = vsel %vm2602, 1, 0
      %v2859 = vsel %vm2603, 1, 0
      %v2860 = vsel %vm2604, 1, 0
      %v2861 = vsel %vm2605, 1, 0
      %v2862 = vsel %vm2606, 1, 0
      %v2863 = vsel %vm2607, 1, 0
      %v2864 = vsel %vm2608, 1, 0
      %v2865 = vsel %vm2609, 1, 0
      %v2866 = vsel %vm2610, 1, 0
      %v2867 = vsel %vm2611, 1, 0
      %v2868 = vsel %vm2612, 1, 0
      %v2869 = vsel %vm2613, 1, 0
      %v2870 = vsel %vm2614, 1, 0
      %v2871 = vsel %vm2615, 1, 0
      %v2872 = vsel %vm2616, 1, 0
      %v2873 = vsel %vm2617, 1, 0
      %v2874 = vsel %vm2618, 1, 0
      %v2875 = vsel %vm2619, 1, 0
      %v2876 = vsel %vm2620, 1, 0
      %v2877 = vsel %vm2621, 1, 0
      %v2878 = vsel %vm2622, 1, 0
      %v2879 = vsel %vm2623, 1, 0
      %v2880 = vsel %vm2624, 1, 0
      %v2881 = vsel %vm2625, 1, 0
      %v2882 = vsel %vm2626, 1, 0
      %v2883 = vsel %vm2627, 1, 0
      %v2884 = vsel %vm2628, 1, 0
      %v2885 = vsel %vm2629, 1, 0
      %v2886 = vsel %vm2630, 1, 0
      %v2887 = vsel %vm2631, 1, 0
      %v2888 = vsel %vm2632, 1, 0
      %v2889 = vcvt.s32.f32 %v2633
      %v2890 = vcvt.s32.f32 %v2634
      %v2891 = vcvt.s32.f32 %v2635
      %v2892 = vcvt.s32.f32 %v2636
      %v2893 = vcvt.s32.f32 %v2637
      %v2894 = vcvt.s32.f32 %v2638
      %v2895 = vcvt.s32.f32 %v2639
      %v2896 = vcvt.s32.f32 %v2640
      %v2897 = vcvt.s32.f32 %v2641
      %v2898 = vcvt.s32.f32 %v2642
      %v2899 = vcvt.s32.f32 %v2643
      %v2900 = vcvt.s32.f32 %v2644
      %v2901 = vcvt.s32.f32 %v2645
      %v2902 = vcvt.s32.f32 %v2646
      %v2903 = vcvt.s32.f32 %v2647
      %v2904 = vcvt.s32.f32 %v2648
      %v2905 = vcvt.s32.f32 %v2649
      %v2906 = vcvt.s32.f32 %v2650
      %v2907 = vcvt.s32.f32 %v2651
      %v2908 = vcvt.s32.f32 %v2652
      %v2909 = vcvt.s32.f32 %v2653
      %v2910 = vcvt.s32.f32 %v2654
      %v2911 = vcvt.s32.f32 %v2655
      %v2912 = vcvt.s32.f32 %v2656
      %v2913 = vcvt.s32.f32 %v2657
      %v2914 = vcvt.s32.f32 %v2658
      %v2915 = vcvt.s32.f32 %v2659
      %v2916 = vcvt.s32.f32 %v2660
      %v2917 = vcvt.s32.f32 %v2661
      %v2918 = vcvt.s32.f32 %v2662
      %v2919 = vcvt.s32.f32 %v2663
      %v2920 = vcvt.s32.f32 %v2664
      %v2921 = vcvt.s32.f32 %v2665
      %v2922 = vcvt.s32.f32 %v2666
      %v2923 = vcvt.s32.f32 %v2667
      %v2924 = vcvt.s32.f32 %v2668
      %v2925 = vcvt.s32.f32 %v2669
      %v2926 = vcvt.s32.f32 %v2670
      %v2927 = vcvt.s32.f32 %v2671
      %v2928 = vcvt.s32.f32 %v2672
      %v2929 = vcvt.s32.f32 %v2673
      %v2930 = vcvt.s32.f32 %v2674
      %v2931 = vcvt.s32.f32 %v2675
      %v2932 = vcvt.s32.f32 %v2676
      %v2933 = vcvt.s32.f32 %v2677
      %v2934 = vcvt.s32.f32 %v2678
      %v2935 = vcvt.s32.f32 %v2679
      %v2936 = vcvt.s32.f32 %v2680
      %v2937 = vcvt.s32.f32 %v2681
      %v2938 = vcvt.s32.f32 %v2682
      %v2939 = vcvt.s32.f32 %v2683
      %v2940 = vcvt.s32.f32 %v2684
      %v2941 = vcvt.s32.f32 %v2685
      %v2942 = vcvt.s32.f32 %v2686
      %v2943 = vcvt.s32.f32 %v2687
      %v2944 = vcvt.s32.f32 %v2688
      %v2945 = vcvt.s32.f32 %v2689
      %v2946 = vcvt.s32.f32 %v2690
      %v2947 = vcvt.s32.f32 %v2691
      %v2948 = vcvt.s32.f32 %v2692
      %v2949 = vcvt.s32.f32 %v2693
      %v2950 = vcvt.s32.f32 %v2694
      %v2951 = vcvt.s32.f32 %v2695
      %v2952 = vcvt.s32.f32 %v2696
      %v2953 = vcvt.s32.f32 %v2697
      %v2954 = vcvt.s32.f32 %v2698
      %v2955 = vcvt.s32.f32 %v2699
      %v2956 = vcvt.s32.f32 %v2700
      %v2957 = vcvt.s32.f32 %v2701
      %v2958 = vcvt.s32.f32 %v2702
      %v2959 = vcvt.s32.f32 %v2703
      %v2960 = vcvt.s32.f32 %v2704
      %v2961 = vcvt.s32.f32 %v2705
      %v2962 = vcvt.s32.f32 %v2706
      %v2963 = vcvt.s32.f32 %v2707
      %v2964 = vcvt.s32.f32 %v2708
      %v2965 = vcvt.s32.f32 %v2709
      %v2966 = vcvt.s32.f32 %v2710
      %v2967 = vcvt.s32.f32 %v2711
      %v2968 = vcvt.s32.f32 %v2712
      %v2969 = vcvt.s32.f32 %v2713
      %v2970 = vcvt.s32.f32 %v2714
      %v2971 = vcvt.s32.f32 %v2715
      %v2972 = vcvt.s32.f32 %v2716
      %v2973 = vcvt.s32.f32 %v2717
      %v2974 = vcvt.s32.f32 %v2718
      %v2975 = vcvt.s32.f32 %v2719
      %v2976 = vcvt.s32.f32 %v2720
      %v2977 = vcvt.s32.f32 %v2721
      %v2978 = vcvt.s32.f32 %v2722
      %v2979 = vcvt.s32.f32 %v2723
      %v2980 = vcvt.s32.f32 %v2724
      %v2981 = vcvt.s32.f32 %v2725
      %v2982 = vcvt.s32.f32 %v2726
      %v2983 = vcvt.s32.f32 %v2727
      %v2984 = vcvt.s32.f32 %v2728
      %v2985 = vcvt.s32.f32 %v2729
      %v2986 = vcvt.s32.f32 %v2730
      %v2987 = vcvt.s32.f32 %v2731
      %v2988 = vcvt.s32.f32 %v2732
      %v2989 = vcvt.s32.f32 %v2733
      %v2990 = vcvt.s32.f32 %v2734
      %v2991 = vcvt.s32.f32 %v2735
      %v2992 = vcvt.s32.f32 %v2736
      %v2993 = vcvt.s32.f32 %v2737
      %v2994 = vcvt.s32.f32 %v2738
      %v2995 = vcvt.s32.f32 %v2739
      %v2996 = vcvt.s32.f32 %v2740
      %v2997 = vcvt.s32.f32 %v2741
      %v2998 = vcvt.s32.f32 %v2742
      %v2999 = vcvt.s32.f32 %v2743
      %v3000 = vcvt.s32.f32 %v2744
      %v3001 = vcvt.s32.f32 %v2745
      %v3002 = vcvt.s32.f32 %v2746
      %v3003 = vcvt.s32.f32 %v2747
      %v3004 = vcvt.s32.f32 %v2748
      %v3005 = vcvt.s32.f32 %v2749
      %v3006 = vcvt.s32.f32 %v2750
      %v3007 = vcvt.s32.f32 %v2751
      %v3008 = vcvt.s32.f32 %v2752
      %v3009 = vcvt.s32.f32 %v2753
      %v3010 = vcvt.s32.f32 %v2754
      %v3011 = vcvt.s32.f32 %v2755
      %v3012 = vcvt.s32.f32 %v2756
      %v3013 = vcvt.s32.f32 %v2757
      %v3014 = vcvt.s32.f32 %v2758
      %v3015 = vcvt.s32.f32 %v2759
      %v3016 = vcvt.s32.f32 %v2760
      %v3017 = vcvt.s32.f32 %v2761
      %v3018 = vcvt.s32.f32 %v2762
      %v3019 = vcvt.s32.f32 %v2763
      %v3020 = vcvt.s32.f32 %v2764
      %v3021 = vcvt.s32.f32 %v2765
      %v3022 = vcvt.s32.f32 %v2766
      %v3023 = vcvt.s32.f32 %v2767
      %v3024 = vcvt.s32.f32 %v2768
      %v3025 = vcvt.s32.f32 %v2769
      %v3026 = vcvt.s32.f32 %v2770
      %v3027 = vcvt.s32.f32 %v2771
      %v3028 = vcvt.s32.f32 %v2772
      %v3029 = vcvt.s32.f32 %v2773
      %v3030 = vcvt.s32.f32 %v2774
      %v3031 = vcvt.s32.f32 %v2775
      %v3032 = vcvt.s32.f32 %v2776
      %v3033 = vcvt.s32.f32 %v2777
      %v3034 = vcvt.s32.f32 %v2778
      %v3035 = vcvt.s32.f32 %v2779
      %v3036 = vcvt.s32.f32 %v2780
      %v3037 = vcvt.s32.f32 %v2781
      %v3038 = vcvt.s32.f32 %v2782
      %v3039 = vcvt.s32.f32 %v2783
      %v3040 = vcvt.s32.f32 %v2784
      %v3041 = vcvt.s32.f32 %v2785
      %v3042 = vcvt.s32.f32 %v2786
      %v3043 = vcvt.s32.f32 %v2787
      %v3044 = vcvt.s32.f32 %v2788
      %v3045 = vcvt.s32.f32 %v2789
      %v3046 = vcvt.s32.f32 %v2790
      %v3047 = vcvt.s32.f32 %v2791
      %v3048 = vcvt.s32.f32 %v2792
      %v3049 = vcvt.s32.f32 %v2793
      %v3050 = vcvt.s32.f32 %v2794
      %v3051 = vcvt.s32.f32 %v2795
      %v3052 = vcvt.s32.f32 %v2796
      %v3053 = vcvt.s32.f32 %v2797
      %v3054 = vcvt.s32.f32 %v2798
      %v3055 = vcvt.s32.f32 %v2799
      %v3056 = vcvt.s32.f32 %v2800
      %v3057 = vcvt.s32.f32 %v2801
      %v3058 = vcvt.s32.f32 %v2802
      %v3059 = vcvt.s32.f32 %v2803
      %v3060 = vcvt.s32.f32 %v2804
      %v3061 = vcvt.s32.f32 %v2805
      %v3062 = vcvt.s32.f32 %v2806
      %v3063 = vcvt.s32.f32 %v2807
      %v3064 = vcvt.s32.f32 %v2808
      %v3065 = vcvt.s32.f32 %v2809
      %v3066 = vcvt.s32.f32 %v2810
      %v3067 = vcvt.s32.f32 %v2811
      %v3068 = vcvt.s32.f32 %v2812
      %v3069 = vcvt.s32.f32 %v2813
      %v3070 = vcvt.s32.f32 %v2814
      %v3071 = vcvt.s32.f32 %v2815
      %v3072 = vcvt.s32.f32 %v2816
      %v3073 = vcvt.s32.f32 %v2817
      %v3074 = vcvt.s32.f32 %v2818
      %v3075 = vcvt.s32.f32 %v2819
      %v3076 = vcvt.s32.f32 %v2820
      %v3077 = vcvt.s32.f32 %v2821
      %v3078 = vcvt.s32.f32 %v2822
      %v3079 = vcvt.s32.f32 %v2823
      %v3080 = vcvt.s32.f32 %v2824
      %v3081 = vcvt.s32.f32 %v2825
      %v3082 = vcvt.s32.f32 %v2826
      %v3083 = vcvt.s32.f32 %v2827
      %v3084 = vcvt.s32.f32 %v2828
      %v3085 = vcvt.s32.f32 %v2829
      %v3086 = vcvt.s32.f32 %v2830
      %v3087 = vcvt.s32.f32 %v2831
      %v3088 = vcvt.s32.f32 %v2832
      %v3089 = vcvt.s32.f32 %v2833
      %v3090 = vcvt.s32.f32 %v2834
      %v3091 = vcvt.s32.f32 %v2835
      %v3092 = vcvt.s32.f32 %v2836
      %v3093 = vcvt.s32.f32 %v2837
      %v3094 = vcvt.s32.f32 %v2838
      %v3095 = vcvt.s32.f32 %v2839
      %v3096 = vcvt.s32.f32 %v2840
      %v3097 = vcvt.s32.f32 %v2841
      %v3098 = vcvt.s32.f32 %v2842
      %v3099 = vcvt.s32.f32 %v2843
      %v3100 = vcvt.s32.f32 %v2844
      %v3101 = vcvt.s32.f32 %v2845
      %v3102 = vcvt.s32.f32 %v2846
      %v3103 = vcvt.s32.f32 %v2847
      %v3104 = vcvt.s32.f32 %v2848
      %v3105 = vcvt.s32.f32 %v2849
      %v3106 = vcvt.s32.f32 %v2850
      %v3107 = vcvt.s32.f32 %v2851
      %v3108 = vcvt.s32.f32 %v2852
      %v3109 = vcvt.s32.f32 %v2853
      %v3110 = vcvt.s32.f32 %v2854
      %v3111 = vcvt.s32.f32 %v2855
      %v3112 = vcvt.s32.f32 %v2856
      %v3113 = vcvt.s32.f32 %v2857
      %v3114 = vcvt.s32.f32 %v2858
      %v3115 = vcvt.s32.f32 %v2859
      %v3116 = vcvt.s32.f32 %v2860
      %v3117 = vcvt.s32.f32 %v2861
      %v3118 = vcvt.s32.f32 %v2862
      %v3119 = vcvt.s32.f32 %v2863
      %v3120 = vcvt.s32.f32 %v2864
      %v3121 = vcvt.s32.f32 %v2865
      %v3122 = vcvt.s32.f32 %v2866
      %v3123 = vcvt.s32.f32 %v2867
      %v3124 = vcvt.s32.f32 %v2868
      %v3125 = vcvt.s32.f32 %v2869
      %v3126 = vcvt.s32.f32 %v2870
      %v3127 = vcvt.s32.f32 %v2871
      %v3128 = vcvt.s32.f32 %v2872
      %v3129 = vcvt.s32.f32 %v2873
      %v3130 = vcvt.s32.f32 %v2874
      %v3131 = vcvt.s32.f32 %v2875
      %v3132 = vcvt.s32.f32 %v2876
      %v3133 = vcvt.s32.f32 %v2877
      %v3134 = vcvt.s32.f32 %v2878
      %v3135 = vcvt.s32.f32 %v2879
      %v3136 = vcvt.s32.f32 %v2880
      %v3137 = vcvt.s32.f32 %v2881
      %v3138 = vcvt.s32.f32 %v2882
      %v3139 = vcvt.s32.f32 %v2883
      %v3140 = vcvt.s32.f32 %v2884
      %v3141 = vcvt.s32.f32 %v2885
      %v3142 = vcvt.s32.f32 %v2886
      %v3143 = vcvt.s32.f32 %v2887
      %v3144 = vcvt.s32.f32 %v2888
      %s3145 = scalar_lea.vmem %s1, 64
      %v3146 = vld [vmem:[%s3145] sm:$0xff]
      %v3147 = vld [vmem:[%s3145 + $0x8] sm:$0xff]
      %v3148 = vld [vmem:[%s3145 + $0x10] sm:$0xff]
      %v3149 = vld [vmem:[%s3145 + $0x18] sm:$0xff]
      %3150 = vmatprep.subr.mxu0 %v2950
      %3151 = vmatpush1.msra.mxu0 %v2949
      %3152 = vmatprep.subr.mxu0 %v2946
      %3153 = vmatpush1.msra.mxu0 %v2945
      %3154 = vmatprep.subr.mxu0 %v2942
      %3155 = vmatpush1.msra.mxu0 %v2941
      %3156 = vmatprep.subr.mxu0 %v2938
      %3157 = vmatpush1.msra.mxu0 %v2937
      %3158 = vmatprep.subr.mxu0 %v2934
      %3159 = vmatpush1.msra.mxu0 %v2933
      %3160 = vmatprep.subr.mxu0 %v2930
      %3161 = vmatpush1.msra.mxu0 %v2929
      %3162 = vmatprep.subr.mxu0 %v2926
      %3163 = vmatpush1.msra.mxu0 %v2925
      %3164 = vmatprep.subr.mxu0 %v2922
      %3165 = vmatpush1.msra.mxu0 %v2921
      %3166 = vmatprep.subr.mxu0 %v2918
      %3167 = vmatpush1.msra.mxu0 %v2917
      %3168 = vmatprep.subr.mxu0 %v2914
      %3169 = vmatpush1.msra.mxu0 %v2913
      %3170 = vmatprep.subr.mxu0 %v2910
      %3171 = vmatpush1.msra.mxu0 %v2909
      %3172 = vmatprep.subr.mxu0 %v2906
      %3173 = vmatpush1.msra.mxu0 %v2905
      %3174 = vmatprep.subr.mxu0 %v2902
      %3175 = vmatpush1.msra.mxu0 %v2901
      %3176 = vmatprep.subr.mxu0 %v2898
      %3177 = vmatpush1.msra.mxu0 %v2897
      %3178 = vmatprep.subr.mxu0 %v2894
      %3179 = vmatpush1.msra.mxu0 %v2893
      %3180 = vmatprep.subr.mxu0 %v2890
      %3181 = vmatpush1.msra.mxu0 %v2889
      %3182 = vmatprep.subr.mxu0 %v3014
      %3183 = vmatpush2.msra.mxu0 %v3013
      %3184 = vmatprep.subr.mxu0 %v3010
      %3185 = vmatpush2.msra.mxu0 %v3009
      %3186 = vmatprep.subr.mxu0 %v3006
      %3187 = vmatpush2.msra.mxu0 %v3005
      %3188 = vmatprep.subr.mxu0 %v3002
      %3189 = vmatpush2.msra.mxu0 %v3001
      %3190 = vmatprep.subr.mxu0 %v2998
      %3191 = vmatpush2.msra.mxu0 %v2997
      %3192 = vmatprep.subr.mxu0 %v2994
      %3193 = vmatpush2.msra.mxu0 %v2993
      %3194 = vmatprep.subr.mxu0 %v2990
      %3195 = vmatpush2.msra.mxu0 %v2989
      %3196 = vmatprep.subr.mxu0 %v2986
      %3197 = vmatpush2.msra.mxu0 %v2985
      %3198 = vmatprep.subr.mxu0 %v2982
      %3199 = vmatpush2.msra.mxu0 %v2981
      %3200 = vmatprep.subr.mxu0 %v2978
      %3201 = vmatpush2.msra.mxu0 %v2977
      %3202 = vmatprep.subr.mxu0 %v2974
      %3203 = vmatpush2.msra.mxu0 %v2973
      %3204 = vmatprep.subr.mxu0 %v2970
      %3205 = vmatpush2.msra.mxu0 %v2969
      %3206 = vmatprep.subr.mxu0 %v2966
      %3207 = vmatpush2.msra.mxu0 %v2965
      %3208 = vmatprep.subr.mxu0 %v2962
      %3209 = vmatpush2.msra.mxu0 %v2961
      %3210 = vmatprep.subr.mxu0 %v2958
      %3211 = vmatpush2.msra.mxu0 %v2957
      %3212 = vmatprep.subr.mxu0 %v2954
      %3213 = vmatpush2.msra.mxu0 %v2953
      %3214 = vmatprep.mubr.f32.mxu0 %v3147
      %3215 = vmatmul.mubr.f32.gmra.mxu0 %v3146
      %v3216 = vpop.f32.mrf.mxu0
      %v3217 = vadd.f32 0.0, %v3216
      %v3218 = vpop.f32.mrf.mxu0
      %v3219 = vadd.f32 0.0, %v3218
      %3220 = vdwg.mxu0
      %3221 = vmatprep.subr.mxu0 %v3078
      %3222 = vmatpush1.msra.mxu0 %v3077
      %3223 = vmatprep.subr.mxu0 %v3074
      %3224 = vmatpush1.msra.mxu0 %v3073
      %3225 = vmatprep.subr.mxu0 %v3070
      %3226 = vmatpush1.msra.mxu0 %v3069
      %3227 = vmatprep.subr.mxu0 %v3066
      %3228 = vmatpush1.msra.mxu0 %v3065
      %3229 = vmatprep.subr.mxu0 %v3062
      %3230 = vmatpush1.msra.mxu0 %v3061
      %3231 = vmatprep.subr.mxu0 %v3058
      %3232 = vmatpush1.msra.mxu0 %v3057
      %3233 = vmatprep.subr.mxu0 %v3054
      %3234 = vmatpush1.msra.mxu0 %v3053
      %3235 = vmatprep.subr.mxu0 %v3050
      %3236 = vmatpush1.msra.mxu0 %v3049
      %3237 = vmatprep.subr.mxu0 %v3046
      %3238 = vmatpush1.msra.mxu0 %v3045
      %3239 = vmatprep.subr.mxu0 %v3042
      %3240 = vmatpush1.msra.mxu0 %v3041
      %3241 = vmatprep.subr.mxu0 %v3038
      %3242 = vmatpush1.msra.mxu0 %v3037
      %3243 = vmatprep.subr.mxu0 %v3034
      %3244 = vmatpush1.msra.mxu0 %v3033
      %3245 = vmatprep.subr.mxu0 %v3030
      %3246 = vmatpush1.msra.mxu0 %v3029
      %3247 = vmatprep.subr.mxu0 %v3026
      %3248 = vmatpush1.msra.mxu0 %v3025
      %3249 = vmatprep.subr.mxu0 %v3022
      %3250 = vmatpush1.msra.mxu0 %v3021
      %3251 = vmatprep.subr.mxu0 %v3018
      %3252 = vmatpush1.msra.mxu0 %v3017
      %3253 = vmatprep.subr.mxu0 %v3142
      %3254 = vmatpush2.msra.mxu0 %v3141
      %3255 = vmatprep.subr.mxu0 %v3138
      %3256 = vmatpush2.msra.mxu0 %v3137
      %3257 = vmatprep.subr.mxu0 %v3134
      %3258 = vmatpush2.msra.mxu0 %v3133
      %3259 = vmatprep.subr.mxu0 %v3130
      %3260 = vmatpush2.msra.mxu0 %v3129
      %3261 = vmatprep.subr.mxu0 %v3126
      %3262 = vmatpush2.msra.mxu0 %v3125
      %3263 = vmatprep.subr.mxu0 %v3122
      %3264 = vmatpush2.msra.mxu0 %v3121
      %3265 = vmatprep.subr.mxu0 %v3118
      %3266 = vmatpush2.msra.mxu0 %v3117
      %3267 = vmatprep.subr.mxu0 %v3114
      %3268 = vmatpush2.msra.mxu0 %v3113
      %3269 = vmatprep.subr.mxu0 %v3110
      %3270 = vmatpush2.msra.mxu0 %v3109
      %3271 = vmatprep.subr.mxu0 %v3106
      %3272 = vmatpush2.msra.mxu0 %v3105
      %3273 = vmatprep.subr.mxu0 %v3102
      %3274 = vmatpush2.msra.mxu0 %v3101
      %3275 = vmatprep.subr.mxu0 %v3098
      %3276 = vmatpush2.msra.mxu0 %v3097
      %3277 = vmatprep.subr.mxu0 %v3094
      %3278 = vmatpush2.msra.mxu0 %v3093
      %3279 = vmatprep.subr.mxu0 %v3090
      %3280 = vmatpush2.msra.mxu0 %v3089
      %3281 = vmatprep.subr.mxu0 %v3086
      %3282 = vmatpush2.msra.mxu0 %v3085
      %3283 = vmatprep.subr.mxu0 %v3082
      %3284 = vmatpush2.msra.mxu0 %v3081
      %3285 = vmatprep.mubr.f32.mxu0 %v3149
      %3286 = vmatmul.mubr.f32.gmra.mxu0 %v3148
      %v3287 = vpop.f32.mrf.mxu0
      %v3288 = vadd.f32 %v3217, %v3287
      %v3289 = vpop.f32.mrf.mxu0
      %v3290 = vadd.f32 %v3219, %v3289
      %3291 = vdwg.mxu0
      %3292 = vmatprep.subr.mxu0 %v2952
      %3293 = vmatpush1.msra.mxu0 %v2951
      %3294 = vmatprep.subr.mxu0 %v2948
      %3295 = vmatpush1.msra.mxu0 %v2947
      %3296 = vmatprep.subr.mxu0 %v2944
      %3297 = vmatpush1.msra.mxu0 %v2943
      %3298 = vmatprep.subr.mxu0 %v2940
      %3299 = vmatpush1.msra.mxu0 %v2939
      %3300 = vmatprep.subr.mxu0 %v2936
      %3301 = vmatpush1.msra.mxu0 %v2935
      %3302 = vmatprep.subr.mxu0 %v2932
      %3303 = vmatpush1.msra.mxu0 %v2931
      %3304 = vmatprep.subr.mxu0 %v2928
      %3305 = vmatpush1.msra.mxu0 %v2927
      %3306 = vmatprep.subr.mxu0 %v2924
      %3307 = vmatpush1.msra.mxu0 %v2923
      %3308 = vmatprep.subr.mxu0 %v2920
      %3309 = vmatpush1.msra.mxu0 %v2919
      %3310 = vmatprep.subr.mxu0 %v2916
      %3311 = vmatpush1.msra.mxu0 %v2915
      %3312 = vmatprep.subr.mxu0 %v2912
      %3313 = vmatpush1.msra.mxu0 %v2911
      %3314 = vmatprep.subr.mxu0 %v2908
      %3315 = vmatpush1.msra.mxu0 %v2907
      %3316 = vmatprep.subr.mxu0 %v2904
      %3317 = vmatpush1.msra.mxu0 %v2903
      %3318 = vmatprep.subr.mxu0 %v2900
      %3319 = vmatpush1.msra.mxu0 %v2899
      %3320 = vmatprep.subr.mxu0 %v2896
      %3321 = vmatpush1.msra.mxu0 %v2895
      %3322 = vmatprep.subr.mxu0 %v2892
      %3323 = vmatpush1.msra.mxu0 %v2891
      %3324 = vmatprep.subr.mxu0 %v3016
      %3325 = vmatpush2.msra.mxu0 %v3015
      %3326 = vmatprep.subr.mxu0 %v3012
      %3327 = vmatpush2.msra.mxu0 %v3011
      %3328 = vmatprep.subr.mxu0 %v3008
      %3329 = vmatpush2.msra.mxu0 %v3007
      %3330 = vmatprep.subr.mxu0 %v3004
      %3331 = vmatpush2.msra.mxu0 %v3003
      %3332 = vmatprep.subr.mxu0 %v3000
      %3333 = vmatpush2.msra.mxu0 %v2999
      %3334 = vmatprep.subr.mxu0 %v2996
      %3335 = vmatpush2.msra.mxu0 %v2995
      %3336 = vmatprep.subr.mxu0 %v2992
      %3337 = vmatpush2.msra.mxu0 %v2991
      %3338 = vmatprep.subr.mxu0 %v2988
      %3339 = vmatpush2.msra.mxu0 %v2987
      %3340 = vmatprep.subr.mxu0 %v2984
      %3341 = vmatpush2.msra.mxu0 %v2983
      %3342 = vmatprep.subr.mxu0 %v2980
      %3343 = vmatpush2.msra.mxu0 %v2979
      %3344 = vmatprep.subr.mxu0 %v2976
      %3345 = vmatpush2.msra.mxu0 %v2975
      %3346 = vmatprep.subr.mxu0 %v2972
      %3347 = vmatpush2.msra.mxu0 %v2971
      %3348 = vmatprep.subr.mxu0 %v2968
      %3349 = vmatpush2.msra.mxu0 %v2967
      %3350 = vmatprep.subr.mxu0 %v2964
      %3351 = vmatpush2.msra.mxu0 %v2963
      %3352 = vmatprep.subr.mxu0 %v2960
      %3353 = vmatpush2.msra.mxu0 %v2959
      %3354 = vmatprep.subr.mxu0 %v2956
      %3355 = vmatpush2.msra.mxu0 %v2955
      %3356 = vmatprep.mubr.f32.mxu0 %v3147
      %3357 = vmatmul.mubr.f32.gmra.mxu0 %v3146
      %v3358 = vpop.f32.mrf.mxu0
      %v3359 = vadd.f32 0.0, %v3358
      %v3360 = vpop.f32.mrf.mxu0
      %v3361 = vadd.f32 0.0, %v3360
      %3362 = vdwg.mxu0
      %3363 = vmatprep.subr.mxu0 %v3080
      %3364 = vmatpush1.msra.mxu0 %v3079
      %3365 = vmatprep.subr.mxu0 %v3076
      %3366 = vmatpush1.msra.mxu0 %v3075
      %3367 = vmatprep.subr.mxu0 %v3072
      %3368 = vmatpush1.msra.mxu0 %v3071
      %3369 = vmatprep.subr.mxu0 %v3068
      %3370 = vmatpush1.msra.mxu0 %v3067
      %3371 = vmatprep.subr.mxu0 %v3064
      %3372 = vmatpush1.msra.mxu0 %v3063
      %3373 = vmatprep.subr.mxu0 %v3060
      %3374 = vmatpush1.msra.mxu0 %v3059
      %3375 = vmatprep.subr.mxu0 %v3056
      %3376 = vmatpush1.msra.mxu0 %v3055
      %3377 = vmatprep.subr.mxu0 %v3052
      %3378 = vmatpush1.msra.mxu0 %v3051
      %3379 = vmatprep.subr.mxu0 %v3048
      %3380 = vmatpush1.msra.mxu0 %v3047
      %3381 = vmatprep.subr.mxu0 %v3044
      %3382 = vmatpush1.msra.mxu0 %v3043
      %3383 = vmatprep.subr.mxu0 %v3040
      %3384 = vmatpush1.msra.mxu0 %v3039
      %3385 = vmatprep.subr.mxu0 %v3036
      %3386 = vmatpush1.msra.mxu0 %v3035
      %3387 = vmatprep.subr.mxu0 %v3032
      %3388 = vmatpush1.msra.mxu0 %v3031
      %3389 = vmatprep.subr.mxu0 %v3028
      %3390 = vmatpush1.msra.mxu0 %v3027
      %3391 = vmatprep.subr.mxu0 %v3024
      %3392 = vmatpush1.msra.mxu0 %v3023
      %3393 = vmatprep.subr.mxu0 %v3020
      %3394 = vmatpush1.msra.mxu0 %v3019
      %3395 = vmatprep.subr.mxu0 %v3144
      %3396 = vmatpush2.msra.mxu0 %v3143
      %3397 = vmatprep.subr.mxu0 %v3140
      %3398 = vmatpush2.msra.mxu0 %v3139
      %3399 = vmatprep.subr.mxu0 %v3136
      %3400 = vmatpush2.msra.mxu0 %v3135
      %3401 = vmatprep.subr.mxu0 %v3132
      %3402 = vmatpush2.msra.mxu0 %v3131
      %3403 = vmatprep.subr.mxu0 %v3128
      %3404 = vmatpush2.msra.mxu0 %v3127
      %3405 = vmatprep.subr.mxu0 %v3124
      %3406 = vmatpush2.msra.mxu0 %v3123
      %3407 = vmatprep.subr.mxu0 %v3120
      %3408 = vmatpush2.msra.mxu0 %v3119
      %3409 = vmatprep.subr.mxu0 %v3116
      %3410 = vmatpush2.msra.mxu0 %v3115
      %3411 = vmatprep.subr.mxu0 %v3112
      %3412 = vmatpush2.msra.mxu0 %v3111
      %3413 = vmatprep.subr.mxu0 %v3108
      %3414 = vmatpush2.msra.mxu0 %v3107
      %3415 = vmatprep.subr.mxu0 %v3104
      %3416 = vmatpush2.msra.mxu0 %v3103
      %3417 = vmatprep.subr.mxu0 %v3100
      %3418 = vmatpush2.msra.mxu0 %v3099
      %3419 = vmatprep.subr.mxu0 %v3096
      %3420 = vmatpush2.msra.mxu0 %v3095
      %3421 = vmatprep.subr.mxu0 %v3092
      %3422 = vmatpush2.msra.mxu0 %v3091
      %3423 = vmatprep.subr.mxu0 %v3088
      %3424 = vmatpush2.msra.mxu0 %v3087
      %3425 = vmatprep.subr.mxu0 %v3084
      %3426 = vmatpush2.msra.mxu0 %v3083
      %3427 = vmatprep.mubr.f32.mxu0 %v3149
      %3428 = vmatmul.mubr.f32.gmra.mxu0 %v3148
      %v3429 = vpop.f32.mrf.mxu0
      %v3430 = vadd.f32 %v3359, %v3429
      %v3431 = vpop.f32.mrf.mxu0
      %v3432 = vadd.f32 %v3361, %v3431
      %3433 = vdwg.mxu0
      %v3434 = vadd.f32 %v2215, %v3288
      %v3435 = vadd.f32 %v2217, %v3290
      %v3436 = vadd.f32 %v2357, %v3430
      %v3437 = vadd.f32 %v2359, %v3432
      %v3438 = vlaneseq
      %v3439 = vshrl.u32 %v3438, 7
      %v3440 = vsub.s32 3, %v3439
      %v3441 = vrot.slane %v147, %v3440
      %v3442 = vlaneseq
      %v3443 = vshrl.u32 %v3442, 7
      %v3444 = vsub.s32 3, %v3443
      %v3445 = vrot.slane %v148, %v3444
      %v3446 = vlaneseq
      %v3447 = vshrl.u32 %v3446, 7
      %v3448 = vsub.s32 3, %v3447
      %v3449 = vrot.slane %v149, %v3448
      %v3450 = vlaneseq
      %v3451 = vshrl.u32 %v3450, 7
      %v3452 = vsub.s32 3, %v3451
      %v3453 = vrot.slane %v150, %v3452
      %vm3454 = vcmp.eq.s32.totalorder %v152, %v3441
      %vm3455 = vcmp.eq.s32.totalorder %v152, %v3445
      %vm3456 = vcmp.eq.s32.totalorder %v152, %v3449
      %vm3457 = vcmp.eq.s32.totalorder %v152, %v3453
      %vm3458 = vcmp.eq.s32.totalorder %v153, %v3441
      %vm3459 = vcmp.eq.s32.totalorder %v153, %v3445
      %vm3460 = vcmp.eq.s32.totalorder %v153, %v3449
      %vm3461 = vcmp.eq.s32.totalorder %v153, %v3453
      %vm3462 = vcmp.eq.s32.totalorder %v154, %v3441
      %vm3463 = vcmp.eq.s32.totalorder %v154, %v3445
      %vm3464 = vcmp.eq.s32.totalorder %v154, %v3449
      %vm3465 = vcmp.eq.s32.totalorder %v154, %v3453
      %vm3466 = vcmp.eq.s32.totalorder %v155, %v3441
      %vm3467 = vcmp.eq.s32.totalorder %v155, %v3445
      %vm3468 = vcmp.eq.s32.totalorder %v155, %v3449
      %vm3469 = vcmp.eq.s32.totalorder %v155, %v3453
      %vm3470 = vcmp.eq.s32.totalorder %v156, %v3441
      %vm3471 = vcmp.eq.s32.totalorder %v156, %v3445
      %vm3472 = vcmp.eq.s32.totalorder %v156, %v3449
      %vm3473 = vcmp.eq.s32.totalorder %v156, %v3453
      %vm3474 = vcmp.eq.s32.totalorder %v157, %v3441
      %vm3475 = vcmp.eq.s32.totalorder %v157, %v3445
      %vm3476 = vcmp.eq.s32.totalorder %v157, %v3449
      %vm3477 = vcmp.eq.s32.totalorder %v157, %v3453
      %vm3478 = vcmp.eq.s32.totalorder %v158, %v3441
      %vm3479 = vcmp.eq.s32.totalorder %v158, %v3445
      %vm3480 = vcmp.eq.s32.totalorder %v158, %v3449
      %vm3481 = vcmp.eq.s32.totalorder %v158, %v3453
      %vm3482 = vcmp.eq.s32.totalorder %v159, %v3441
      %vm3483 = vcmp.eq.s32.totalorder %v159, %v3445
      %vm3484 = vcmp.eq.s32.totalorder %v159, %v3449
      %vm3485 = vcmp.eq.s32.totalorder %v159, %v3453
      %vm3486 = vcmp.eq.s32.totalorder %v160, %v3441
      %vm3487 = vcmp.eq.s32.totalorder %v160, %v3445
      %vm3488 = vcmp.eq.s32.totalorder %v160, %v3449
      %vm3489 = vcmp.eq.s32.totalorder %v160, %v3453
      %vm3490 = vcmp.eq.s32.totalorder %v161, %v3441
      %vm3491 = vcmp.eq.s32.totalorder %v161, %v3445
      %vm3492 = vcmp.eq.s32.totalorder %v161, %v3449
      %vm3493 = vcmp.eq.s32.totalorder %v161, %v3453
      %vm3494 = vcmp.eq.s32.totalorder %v162, %v3441
      %vm3495 = vcmp.eq.s32.totalorder %v162, %v3445
      %vm3496 = vcmp.eq.s32.totalorder %v162, %v3449
      %vm3497 = vcmp.eq.s32.totalorder %v162, %v3453
      %vm3498 = vcmp.eq.s32.totalorder %v163, %v3441
      %vm3499 = vcmp.eq.s32.totalorder %v163, %v3445
      %vm3500 = vcmp.eq.s32.totalorder %v163, %v3449
      %vm3501 = vcmp.eq.s32.totalorder %v163, %v3453
      %vm3502 = vcmp.eq.s32.totalorder %v164, %v3441
      %vm3503 = vcmp.eq.s32.totalorder %v164, %v3445
      %vm3504 = vcmp.eq.s32.totalorder %v164, %v3449
      %vm3505 = vcmp.eq.s32.totalorder %v164, %v3453
      %vm3506 = vcmp.eq.s32.totalorder %v165, %v3441
      %vm3507 = vcmp.eq.s32.totalorder %v165, %v3445
      %vm3508 = vcmp.eq.s32.totalorder %v165, %v3449
      %vm3509 = vcmp.eq.s32.totalorder %v165, %v3453
      %vm3510 = vcmp.eq.s32.totalorder %v166, %v3441
      %vm3511 = vcmp.eq.s32.totalorder %v166, %v3445
      %vm3512 = vcmp.eq.s32.totalorder %v166, %v3449
      %vm3513 = vcmp.eq.s32.totalorder %v166, %v3453
      %vm3514 = vcmp.eq.s32.totalorder %v167, %v3441
      %vm3515 = vcmp.eq.s32.totalorder %v167, %v3445
      %vm3516 = vcmp.eq.s32.totalorder %v167, %v3449
      %vm3517 = vcmp.eq.s32.totalorder %v167, %v3453
      %vm3518 = vcmp.eq.s32.totalorder %v168, %v3441
      %vm3519 = vcmp.eq.s32.totalorder %v168, %v3445
      %vm3520 = vcmp.eq.s32.totalorder %v168, %v3449
      %vm3521 = vcmp.eq.s32.totalorder %v168, %v3453
      %vm3522 = vcmp.eq.s32.totalorder %v169, %v3441
      %vm3523 = vcmp.eq.s32.totalorder %v169, %v3445
      %vm3524 = vcmp.eq.s32.totalorder %v169, %v3449
      %vm3525 = vcmp.eq.s32.totalorder %v169, %v3453
      %vm3526 = vcmp.eq.s32.totalorder %v170, %v3441
      %vm3527 = vcmp.eq.s32.totalorder %v170, %v3445
      %vm3528 = vcmp.eq.s32.totalorder %v170, %v3449
      %vm3529 = vcmp.eq.s32.totalorder %v170, %v3453
      %vm3530 = vcmp.eq.s32.totalorder %v171, %v3441
      %vm3531 = vcmp.eq.s32.totalorder %v171, %v3445
      %vm3532 = vcmp.eq.s32.totalorder %v171, %v3449
      %vm3533 = vcmp.eq.s32.totalorder %v171, %v3453
      %vm3534 = vcmp.eq.s32.totalorder %v172, %v3441
      %vm3535 = vcmp.eq.s32.totalorder %v172, %v3445
      %vm3536 = vcmp.eq.s32.totalorder %v172, %v3449
      %vm3537 = vcmp.eq.s32.totalorder %v172, %v3453
      %vm3538 = vcmp.eq.s32.totalorder %v173, %v3441
      %vm3539 = vcmp.eq.s32.totalorder %v173, %v3445
      %vm3540 = vcmp.eq.s32.totalorder %v173, %v3449
      %vm3541 = vcmp.eq.s32.totalorder %v173, %v3453
      %vm3542 = vcmp.eq.s32.totalorder %v174, %v3441
      %vm3543 = vcmp.eq.s32.totalorder %v174, %v3445
      %vm3544 = vcmp.eq.s32.totalorder %v174, %v3449
      %vm3545 = vcmp.eq.s32.totalorder %v174, %v3453
      %vm3546 = vcmp.eq.s32.totalorder %v175, %v3441
      %vm3547 = vcmp.eq.s32.totalorder %v175, %v3445
      %vm3548 = vcmp.eq.s32.totalorder %v175, %v3449
      %vm3549 = vcmp.eq.s32.totalorder %v175, %v3453
      %vm3550 = vcmp.eq.s32.totalorder %v176, %v3441
      %vm3551 = vcmp.eq.s32.totalorder %v176, %v3445
      %vm3552 = vcmp.eq.s32.totalorder %v176, %v3449
      %vm3553 = vcmp.eq.s32.totalorder %v176, %v3453
      %vm3554 = vcmp.eq.s32.totalorder %v177, %v3441
      %vm3555 = vcmp.eq.s32.totalorder %v177, %v3445
      %vm3556 = vcmp.eq.s32.totalorder %v177, %v3449
      %vm3557 = vcmp.eq.s32.totalorder %v177, %v3453
      %vm3558 = vcmp.eq.s32.totalorder %v178, %v3441
      %vm3559 = vcmp.eq.s32.totalorder %v178, %v3445
      %vm3560 = vcmp.eq.s32.totalorder %v178, %v3449
      %vm3561 = vcmp.eq.s32.totalorder %v178, %v3453
      %vm3562 = vcmp.eq.s32.totalorder %v179, %v3441
      %vm3563 = vcmp.eq.s32.totalorder %v179, %v3445
      %vm3564 = vcmp.eq.s32.totalorder %v179, %v3449
      %vm3565 = vcmp.eq.s32.totalorder %v179, %v3453
      %vm3566 = vcmp.eq.s32.totalorder %v180, %v3441
      %vm3567 = vcmp.eq.s32.totalorder %v180, %v3445
      %vm3568 = vcmp.eq.s32.totalorder %v180, %v3449
      %vm3569 = vcmp.eq.s32.totalorder %v180, %v3453
      %vm3570 = vcmp.eq.s32.totalorder %v181, %v3441
      %vm3571 = vcmp.eq.s32.totalorder %v181, %v3445
      %vm3572 = vcmp.eq.s32.totalorder %v181, %v3449
      %vm3573 = vcmp.eq.s32.totalorder %v181, %v3453
      %vm3574 = vcmp.eq.s32.totalorder %v182, %v3441
      %vm3575 = vcmp.eq.s32.totalorder %v182, %v3445
      %vm3576 = vcmp.eq.s32.totalorder %v182, %v3449
      %vm3577 = vcmp.eq.s32.totalorder %v182, %v3453
      %vm3578 = vcmp.eq.s32.totalorder %v183, %v3441
      %vm3579 = vcmp.eq.s32.totalorder %v183, %v3445
      %vm3580 = vcmp.eq.s32.totalorder %v183, %v3449
      %vm3581 = vcmp.eq.s32.totalorder %v183, %v3453
      %vm3582 = vcmp.eq.s32.totalorder %v184, %v3441
      %vm3583 = vcmp.eq.s32.totalorder %v184, %v3445
      %vm3584 = vcmp.eq.s32.totalorder %v184, %v3449
      %vm3585 = vcmp.eq.s32.totalorder %v184, %v3453
      %vm3586 = vcmp.eq.s32.totalorder %v185, %v3441
      %vm3587 = vcmp.eq.s32.totalorder %v185, %v3445
      %vm3588 = vcmp.eq.s32.totalorder %v185, %v3449
      %vm3589 = vcmp.eq.s32.totalorder %v185, %v3453
      %vm3590 = vcmp.eq.s32.totalorder %v186, %v3441
      %vm3591 = vcmp.eq.s32.totalorder %v186, %v3445
      %vm3592 = vcmp.eq.s32.totalorder %v186, %v3449
      %vm3593 = vcmp.eq.s32.totalorder %v186, %v3453
      %vm3594 = vcmp.eq.s32.totalorder %v187, %v3441
      %vm3595 = vcmp.eq.s32.totalorder %v187, %v3445
      %vm3596 = vcmp.eq.s32.totalorder %v187, %v3449
      %vm3597 = vcmp.eq.s32.totalorder %v187, %v3453
      %vm3598 = vcmp.eq.s32.totalorder %v188, %v3441
      %vm3599 = vcmp.eq.s32.totalorder %v188, %v3445
      %vm3600 = vcmp.eq.s32.totalorder %v188, %v3449
      %vm3601 = vcmp.eq.s32.totalorder %v188, %v3453
      %vm3602 = vcmp.eq.s32.totalorder %v189, %v3441
      %vm3603 = vcmp.eq.s32.totalorder %v189, %v3445
      %vm3604 = vcmp.eq.s32.totalorder %v189, %v3449
      %vm3605 = vcmp.eq.s32.totalorder %v189, %v3453
      %vm3606 = vcmp.eq.s32.totalorder %v190, %v3441
      %vm3607 = vcmp.eq.s32.totalorder %v190, %v3445
      %vm3608 = vcmp.eq.s32.totalorder %v190, %v3449
      %vm3609 = vcmp.eq.s32.totalorder %v190, %v3453
      %vm3610 = vcmp.eq.s32.totalorder %v191, %v3441
      %vm3611 = vcmp.eq.s32.totalorder %v191, %v3445
      %vm3612 = vcmp.eq.s32.totalorder %v191, %v3449
      %vm3613 = vcmp.eq.s32.totalorder %v191, %v3453
      %vm3614 = vcmp.eq.s32.totalorder %v192, %v3441
      %vm3615 = vcmp.eq.s32.totalorder %v192, %v3445
      %vm3616 = vcmp.eq.s32.totalorder %v192, %v3449
      %vm3617 = vcmp.eq.s32.totalorder %v192, %v3453
      %vm3618 = vcmp.eq.s32.totalorder %v193, %v3441
      %vm3619 = vcmp.eq.s32.totalorder %v193, %v3445
      %vm3620 = vcmp.eq.s32.totalorder %v193, %v3449
      %vm3621 = vcmp.eq.s32.totalorder %v193, %v3453
      %vm3622 = vcmp.eq.s32.totalorder %v194, %v3441
      %vm3623 = vcmp.eq.s32.totalorder %v194, %v3445
      %vm3624 = vcmp.eq.s32.totalorder %v194, %v3449
      %vm3625 = vcmp.eq.s32.totalorder %v194, %v3453
      %vm3626 = vcmp.eq.s32.totalorder %v195, %v3441
      %vm3627 = vcmp.eq.s32.totalorder %v195, %v3445
      %vm3628 = vcmp.eq.s32.totalorder %v195, %v3449
      %vm3629 = vcmp.eq.s32.totalorder %v195, %v3453
      %vm3630 = vcmp.eq.s32.totalorder %v196, %v3441
      %vm3631 = vcmp.eq.s32.totalorder %v196, %v3445
      %vm3632 = vcmp.eq.s32.totalorder %v196, %v3449
      %vm3633 = vcmp.eq.s32.totalorder %v196, %v3453
      %vm3634 = vcmp.eq.s32.totalorder %v197, %v3441
      %vm3635 = vcmp.eq.s32.totalorder %v197, %v3445
      %vm3636 = vcmp.eq.s32.totalorder %v197, %v3449
      %vm3637 = vcmp.eq.s32.totalorder %v197, %v3453
      %vm3638 = vcmp.eq.s32.totalorder %v198, %v3441
      %vm3639 = vcmp.eq.s32.totalorder %v198, %v3445
      %vm3640 = vcmp.eq.s32.totalorder %v198, %v3449
      %vm3641 = vcmp.eq.s32.totalorder %v198, %v3453
      %vm3642 = vcmp.eq.s32.totalorder %v199, %v3441
      %vm3643 = vcmp.eq.s32.totalorder %v199, %v3445
      %vm3644 = vcmp.eq.s32.totalorder %v199, %v3449
      %vm3645 = vcmp.eq.s32.totalorder %v199, %v3453
      %vm3646 = vcmp.eq.s32.totalorder %v200, %v3441
      %vm3647 = vcmp.eq.s32.totalorder %v200, %v3445
      %vm3648 = vcmp.eq.s32.totalorder %v200, %v3449
      %vm3649 = vcmp.eq.s32.totalorder %v200, %v3453
      %vm3650 = vcmp.eq.s32.totalorder %v201, %v3441
      %vm3651 = vcmp.eq.s32.totalorder %v201, %v3445
      %vm3652 = vcmp.eq.s32.totalorder %v201, %v3449
      %vm3653 = vcmp.eq.s32.totalorder %v201, %v3453
      %vm3654 = vcmp.eq.s32.totalorder %v202, %v3441
      %vm3655 = vcmp.eq.s32.totalorder %v202, %v3445
      %vm3656 = vcmp.eq.s32.totalorder %v202, %v3449
      %vm3657 = vcmp.eq.s32.totalorder %v202, %v3453
      %vm3658 = vcmp.eq.s32.totalorder %v203, %v3441
      %vm3659 = vcmp.eq.s32.totalorder %v203, %v3445
      %vm3660 = vcmp.eq.s32.totalorder %v203, %v3449
      %vm3661 = vcmp.eq.s32.totalorder %v203, %v3453
      %vm3662 = vcmp.eq.s32.totalorder %v204, %v3441
      %vm3663 = vcmp.eq.s32.totalorder %v204, %v3445
      %vm3664 = vcmp.eq.s32.totalorder %v204, %v3449
      %vm3665 = vcmp.eq.s32.totalorder %v204, %v3453
      %vm3666 = vcmp.eq.s32.totalorder %v205, %v3441
      %vm3667 = vcmp.eq.s32.totalorder %v205, %v3445
      %vm3668 = vcmp.eq.s32.totalorder %v205, %v3449
      %vm3669 = vcmp.eq.s32.totalorder %v205, %v3453
      %vm3670 = vcmp.eq.s32.totalorder %v206, %v3441
      %vm3671 = vcmp.eq.s32.totalorder %v206, %v3445
      %vm3672 = vcmp.eq.s32.totalorder %v206, %v3449
      %vm3673 = vcmp.eq.s32.totalorder %v206, %v3453
      %vm3674 = vcmp.eq.s32.totalorder %v207, %v3441
      %vm3675 = vcmp.eq.s32.totalorder %v207, %v3445
      %vm3676 = vcmp.eq.s32.totalorder %v207, %v3449
      %vm3677 = vcmp.eq.s32.totalorder %v207, %v3453
      %vm3678 = vcmp.eq.s32.totalorder %v208, %v3441
      %vm3679 = vcmp.eq.s32.totalorder %v208, %v3445
      %vm3680 = vcmp.eq.s32.totalorder %v208, %v3449
      %vm3681 = vcmp.eq.s32.totalorder %v208, %v3453
      %vm3682 = vcmp.eq.s32.totalorder %v209, %v3441
      %vm3683 = vcmp.eq.s32.totalorder %v209, %v3445
      %vm3684 = vcmp.eq.s32.totalorder %v209, %v3449
      %vm3685 = vcmp.eq.s32.totalorder %v209, %v3453
      %vm3686 = vcmp.eq.s32.totalorder %v210, %v3441
      %vm3687 = vcmp.eq.s32.totalorder %v210, %v3445
      %vm3688 = vcmp.eq.s32.totalorder %v210, %v3449
      %vm3689 = vcmp.eq.s32.totalorder %v210, %v3453
      %vm3690 = vcmp.eq.s32.totalorder %v211, %v3441
      %vm3691 = vcmp.eq.s32.totalorder %v211, %v3445
      %vm3692 = vcmp.eq.s32.totalorder %v211, %v3449
      %vm3693 = vcmp.eq.s32.totalorder %v211, %v3453
      %vm3694 = vcmp.eq.s32.totalorder %v212, %v3441
      %vm3695 = vcmp.eq.s32.totalorder %v212, %v3445
      %vm3696 = vcmp.eq.s32.totalorder %v212, %v3449
      %vm3697 = vcmp.eq.s32.totalorder %v212, %v3453
      %vm3698 = vcmp.eq.s32.totalorder %v213, %v3441
      %vm3699 = vcmp.eq.s32.totalorder %v213, %v3445
      %vm3700 = vcmp.eq.s32.totalorder %v213, %v3449
      %vm3701 = vcmp.eq.s32.totalorder %v213, %v3453
      %vm3702 = vcmp.eq.s32.totalorder %v214, %v3441
      %vm3703 = vcmp.eq.s32.totalorder %v214, %v3445
      %vm3704 = vcmp.eq.s32.totalorder %v214, %v3449
      %vm3705 = vcmp.eq.s32.totalorder %v214, %v3453
      %vm3706 = vcmp.eq.s32.totalorder %v215, %v3441
      %vm3707 = vcmp.eq.s32.totalorder %v215, %v3445
      %vm3708 = vcmp.eq.s32.totalorder %v215, %v3449
      %vm3709 = vcmp.eq.s32.totalorder %v215, %v3453
      %v3710 = vsel %vm3454, 1, 0
      %v3711 = vsel %vm3455, 1, 0
      %v3712 = vsel %vm3456, 1, 0
      %v3713 = vsel %vm3457, 1, 0
      %v3714 = vsel %vm3458, 1, 0
      %v3715 = vsel %vm3459, 1, 0
      %v3716 = vsel %vm3460, 1, 0
      %v3717 = vsel %vm3461, 1, 0
      %v3718 = vsel %vm3462, 1, 0
      %v3719 = vsel %vm3463, 1, 0
      %v3720 = vsel %vm3464, 1, 0
      %v3721 = vsel %vm3465, 1, 0
      %v3722 = vsel %vm3466, 1, 0
      %v3723 = vsel %vm3467, 1, 0
      %v3724 = vsel %vm3468, 1, 0
      %v3725 = vsel %vm3469, 1, 0
      %v3726 = vsel %vm3470, 1, 0
      %v3727 = vsel %vm3471, 1, 0
      %v3728 = vsel %vm3472, 1, 0
      %v3729 = vsel %vm3473, 1, 0
      %v3730 = vsel %vm3474, 1, 0
      %v3731 = vsel %vm3475, 1, 0
      %v3732 = vsel %vm3476, 1, 0
      %v3733 = vsel %vm3477, 1, 0
      %v3734 = vsel %vm3478, 1, 0
      %v3735 = vsel %vm3479, 1, 0
      %v3736 = vsel %vm3480, 1, 0
      %v3737 = vsel %vm3481, 1, 0
      %v3738 = vsel %vm3482, 1, 0
      %v3739 = vsel %vm3483, 1, 0
      %v3740 = vsel %vm3484, 1, 0
      %v3741 = vsel %vm3485, 1, 0
      %v3742 = vsel %vm3486, 1, 0
      %v3743 = vsel %vm3487, 1, 0
      %v3744 = vsel %vm3488, 1, 0
      %v3745 = vsel %vm3489, 1, 0
      %v3746 = vsel %vm3490, 1, 0
      %v3747 = vsel %vm3491, 1, 0
      %v3748 = vsel %vm3492, 1, 0
      %v3749 = vsel %vm3493, 1, 0
      %v3750 = vsel %vm3494, 1, 0
      %v3751 = vsel %vm3495, 1, 0
      %v3752 = vsel %vm3496, 1, 0
      %v3753 = vsel %vm3497, 1, 0
      %v3754 = vsel %vm3498, 1, 0
      %v3755 = vsel %vm3499, 1, 0
      %v3756 = vsel %vm3500, 1, 0
      %v3757 = vsel %vm3501, 1, 0
      %v3758 = vsel %vm3502, 1, 0
      %v3759 = vsel %vm3503, 1, 0
      %v3760 = vsel %vm3504, 1, 0
      %v3761 = vsel %vm3505, 1, 0
      %v3762 = vsel %vm3506, 1, 0
      %v3763 = vsel %vm3507, 1, 0
      %v3764 = vsel %vm3508, 1, 0
      %v3765 = vsel %vm3509, 1, 0
      %v3766 = vsel %vm3510, 1, 0
      %v3767 = vsel %vm3511, 1, 0
      %v3768 = vsel %vm3512, 1, 0
      %v3769 = vsel %vm3513, 1, 0
      %v3770 = vsel %vm3514, 1, 0
      %v3771 = vsel %vm3515, 1, 0
      %v3772 = vsel %vm3516, 1, 0
      %v3773 = vsel %vm3517, 1, 0
      %v3774 = vsel %vm3518, 1, 0
      %v3775 = vsel %vm3519, 1, 0
      %v3776 = vsel %vm3520, 1, 0
      %v3777 = vsel %vm3521, 1, 0
      %v3778 = vsel %vm3522, 1, 0
      %v3779 = vsel %vm3523, 1, 0
      %v3780 = vsel %vm3524, 1, 0
      %v3781 = vsel %vm3525, 1, 0
      %v3782 = vsel %vm3526, 1, 0
      %v3783 = vsel %vm3527, 1, 0
      %v3784 = vsel %vm3528, 1, 0
      %v3785 = vsel %vm3529, 1, 0
      %v3786 = vsel %vm3530, 1, 0
      %v3787 = vsel %vm3531, 1, 0
      %v3788 = vsel %vm3532, 1, 0
      %v3789 = vsel %vm3533, 1, 0
      %v3790 = vsel %vm3534, 1, 0
      %v3791 = vsel %vm3535, 1, 0
      %v3792 = vsel %vm3536, 1, 0
      %v3793 = vsel %vm3537, 1, 0
      %v3794 = vsel %vm3538, 1, 0
      %v3795 = vsel %vm3539, 1, 0
      %v3796 = vsel %vm3540, 1, 0
      %v3797 = vsel %vm3541, 1, 0
      %v3798 = vsel %vm3542, 1, 0
      %v3799 = vsel %vm3543, 1, 0
      %v3800 = vsel %vm3544, 1, 0
      %v3801 = vsel %vm3545, 1, 0
      %v3802 = vsel %vm3546, 1, 0
      %v3803 = vsel %vm3547, 1, 0
      %v3804 = vsel %vm3548, 1, 0
      %v3805 = vsel %vm3549, 1, 0
      %v3806 = vsel %vm3550, 1, 0
      %v3807 = vsel %vm3551, 1, 0
      %v3808 = vsel %vm3552, 1, 0
      %v3809 = vsel %vm3553, 1, 0
      %v3810 = vsel %vm3554, 1, 0
      %v3811 = vsel %vm3555, 1, 0
      %v3812 = vsel %vm3556, 1, 0
      %v3813 = vsel %vm3557, 1, 0
      %v3814 = vsel %vm3558, 1, 0
      %v3815 = vsel %vm3559, 1, 0
      %v3816 = vsel %vm3560, 1, 0
      %v3817 = vsel %vm3561, 1, 0
      %v3818 = vsel %vm3562, 1, 0
      %v3819 = vsel %vm3563, 1, 0
      %v3820 = vsel %vm3564, 1, 0
      %v3821 = vsel %vm3565, 1, 0
      %v3822 = vsel %vm3566, 1, 0
      %v3823 = vsel %vm3567, 1, 0
      %v3824 = vsel %vm3568, 1, 0
      %v3825 = vsel %vm3569, 1, 0
      %v3826 = vsel %vm3570, 1, 0
      %v3827 = vsel %vm3571, 1, 0
      %v3828 = vsel %vm3572, 1, 0
      %v3829 = vsel %vm3573, 1, 0
      %v3830 = vsel %vm3574, 1, 0
      %v3831 = vsel %vm3575, 1, 0
      %v3832 = vsel %vm3576, 1, 0
      %v3833 = vsel %vm3577, 1, 0
      %v3834 = vsel %vm3578, 1, 0
      %v3835 = vsel %vm3579, 1, 0
      %v3836 = vsel %vm3580, 1, 0
      %v3837 = vsel %vm3581, 1, 0
      %v3838 = vsel %vm3582, 1, 0
      %v3839 = vsel %vm3583, 1, 0
      %v3840 = vsel %vm3584, 1, 0
      %v3841 = vsel %vm3585, 1, 0
      %v3842 = vsel %vm3586, 1, 0
      %v3843 = vsel %vm3587, 1, 0
      %v3844 = vsel %vm3588, 1, 0
      %v3845 = vsel %vm3589, 1, 0
      %v3846 = vsel %vm3590, 1, 0
      %v3847 = vsel %vm3591, 1, 0
      %v3848 = vsel %vm3592, 1, 0
      %v3849 = vsel %vm3593, 1, 0
      %v3850 = vsel %vm3594, 1, 0
      %v3851 = vsel %vm3595, 1, 0
      %v3852 = vsel %vm3596, 1, 0
      %v3853 = vsel %vm3597, 1, 0
      %v3854 = vsel %vm3598, 1, 0
      %v3855 = vsel %vm3599, 1, 0
      %v3856 = vsel %vm3600, 1, 0
      %v3857 = vsel %vm3601, 1, 0
      %v3858 = vsel %vm3602, 1, 0
      %v3859 = vsel %vm3603, 1, 0
      %v3860 = vsel %vm3604, 1, 0
      %v3861 = vsel %vm3605, 1, 0
      %v3862 = vsel %vm3606, 1, 0
      %v3863 = vsel %vm3607, 1, 0
      %v3864 = vsel %vm3608, 1, 0
      %v3865 = vsel %vm3609, 1, 0
      %v3866 = vsel %vm3610, 1, 0
      %v3867 = vsel %vm3611, 1, 0
      %v3868 = vsel %vm3612, 1, 0
      %v3869 = vsel %vm3613, 1, 0
      %v3870 = vsel %vm3614, 1, 0
      %v3871 = vsel %vm3615, 1, 0
      %v3872 = vsel %vm3616, 1, 0
      %v3873 = vsel %vm3617, 1, 0
      %v3874 = vsel %vm3618, 1, 0
      %v3875 = vsel %vm3619, 1, 0
      %v3876 = vsel %vm3620, 1, 0
      %v3877 = vsel %vm3621, 1, 0
      %v3878 = vsel %vm3622, 1, 0
      %v3879 = vsel %vm3623, 1, 0
      %v3880 = vsel %vm3624, 1, 0
      %v3881 = vsel %vm3625, 1, 0
      %v3882 = vsel %vm3626, 1, 0
      %v3883 = vsel %vm3627, 1, 0
      %v3884 = vsel %vm3628, 1, 0
      %v3885 = vsel %vm3629, 1, 0
      %v3886 = vsel %vm3630, 1, 0
      %v3887 = vsel %vm3631, 1, 0
      %v3888 = vsel %vm3632, 1, 0
      %v3889 = vsel %vm3633, 1, 0
      %v3890 = vsel %vm3634, 1, 0
      %v3891 = vsel %vm3635, 1, 0
      %v3892 = vsel %vm3636, 1, 0
      %v3893 = vsel %vm3637, 1, 0
      %v3894 = vsel %vm3638, 1, 0
      %v3895 = vsel %vm3639, 1, 0
      %v3896 = vsel %vm3640, 1, 0
      %v3897 = vsel %vm3641, 1, 0
      %v3898 = vsel %vm3642, 1, 0
      %v3899 = vsel %vm3643, 1, 0
      %v3900 = vsel %vm3644, 1, 0
      %v3901 = vsel %vm3645, 1, 0
      %v3902 = vsel %vm3646, 1, 0
      %v3903 = vsel %vm3647, 1, 0
      %v3904 = vsel %vm3648, 1, 0
      %v3905 = vsel %vm3649, 1, 0
      %v3906 = vsel %vm3650, 1, 0
      %v3907 = vsel %vm3651, 1, 0
      %v3908 = vsel %vm3652, 1, 0
      %v3909 = vsel %vm3653, 1, 0
      %v3910 = vsel %vm3654, 1, 0
      %v3911 = vsel %vm3655, 1, 0
      %v3912 = vsel %vm3656, 1, 0
      %v3913 = vsel %vm3657, 1, 0
      %v3914 = vsel %vm3658, 1, 0
      %v3915 = vsel %vm3659, 1, 0
      %v3916 = vsel %vm3660, 1, 0
      %v3917 = vsel %vm3661, 1, 0
      %v3918 = vsel %vm3662, 1, 0
      %v3919 = vsel %vm3663, 1, 0
      %v3920 = vsel %vm3664, 1, 0
      %v3921 = vsel %vm3665, 1, 0
      %v3922 = vsel %vm3666, 1, 0
      %v3923 = vsel %vm3667, 1, 0
      %v3924 = vsel %vm3668, 1, 0
      %v3925 = vsel %vm3669, 1, 0
      %v3926 = vsel %vm3670, 1, 0
      %v3927 = vsel %vm3671, 1, 0
      %v3928 = vsel %vm3672, 1, 0
      %v3929 = vsel %vm3673, 1, 0
      %v3930 = vsel %vm3674, 1, 0
      %v3931 = vsel %vm3675, 1, 0
      %v3932 = vsel %vm3676, 1, 0
      %v3933 = vsel %vm3677, 1, 0
      %v3934 = vsel %vm3678, 1, 0
      %v3935 = vsel %vm3679, 1, 0
      %v3936 = vsel %vm3680, 1, 0
      %v3937 = vsel %vm3681, 1, 0
      %v3938 = vsel %vm3682, 1, 0
      %v3939 = vsel %vm3683, 1, 0
      %v3940 = vsel %vm3684, 1, 0
      %v3941 = vsel %vm3685, 1, 0
      %v3942 = vsel %vm3686, 1, 0
      %v3943 = vsel %vm3687, 1, 0
      %v3944 = vsel %vm3688, 1, 0
      %v3945 = vsel %vm3689, 1, 0
      %v3946 = vsel %vm3690, 1, 0
      %v3947 = vsel %vm3691, 1, 0
      %v3948 = vsel %vm3692, 1, 0
      %v3949 = vsel %vm3693, 1, 0
      %v3950 = vsel %vm3694, 1, 0
      %v3951 = vsel %vm3695, 1, 0
      %v3952 = vsel %vm3696, 1, 0
      %v3953 = vsel %vm3697, 1, 0
      %v3954 = vsel %vm3698, 1, 0
      %v3955 = vsel %vm3699, 1, 0
      %v3956 = vsel %vm3700, 1, 0
      %v3957 = vsel %vm3701, 1, 0
      %v3958 = vsel %vm3702, 1, 0
      %v3959 = vsel %vm3703, 1, 0
      %v3960 = vsel %vm3704, 1, 0
      %v3961 = vsel %vm3705, 1, 0
      %v3962 = vsel %vm3706, 1, 0
      %v3963 = vsel %vm3707, 1, 0
      %v3964 = vsel %vm3708, 1, 0
      %v3965 = vsel %vm3709, 1, 0
      %v3966 = vcvt.s32.f32 %v3710
      %v3967 = vcvt.s32.f32 %v3711
      %v3968 = vcvt.s32.f32 %v3712
      %v3969 = vcvt.s32.f32 %v3713
      %v3970 = vcvt.s32.f32 %v3714
      %v3971 = vcvt.s32.f32 %v3715
      %v3972 = vcvt.s32.f32 %v3716
      %v3973 = vcvt.s32.f32 %v3717
      %v3974 = vcvt.s32.f32 %v3718
      %v3975 = vcvt.s32.f32 %v3719
      %v3976 = vcvt.s32.f32 %v3720
      %v3977 = vcvt.s32.f32 %v3721
      %v3978 = vcvt.s32.f32 %v3722
      %v3979 = vcvt.s32.f32 %v3723
      %v3980 = vcvt.s32.f32 %v3724
      %v3981 = vcvt.s32.f32 %v3725
      %v3982 = vcvt.s32.f32 %v3726
      %v3983 = vcvt.s32.f32 %v3727
      %v3984 = vcvt.s32.f32 %v3728
      %v3985 = vcvt.s32.f32 %v3729
      %v3986 = vcvt.s32.f32 %v3730
      %v3987 = vcvt.s32.f32 %v3731
      %v3988 = vcvt.s32.f32 %v3732
      %v3989 = vcvt.s32.f32 %v3733
      %v3990 = vcvt.s32.f32 %v3734
      %v3991 = vcvt.s32.f32 %v3735
      %v3992 = vcvt.s32.f32 %v3736
      %v3993 = vcvt.s32.f32 %v3737
      %v3994 = vcvt.s32.f32 %v3738
      %v3995 = vcvt.s32.f32 %v3739
      %v3996 = vcvt.s32.f32 %v3740
      %v3997 = vcvt.s32.f32 %v3741
      %v3998 = vcvt.s32.f32 %v3742
      %v3999 = vcvt.s32.f32 %v3743
      %v4000 = vcvt.s32.f32 %v3744
      %v4001 = vcvt.s32.f32 %v3745
      %v4002 = vcvt.s32.f32 %v3746
      %v4003 = vcvt.s32.f32 %v3747
      %v4004 = vcvt.s32.f32 %v3748
      %v4005 = vcvt.s32.f32 %v3749
      %v4006 = vcvt.s32.f32 %v3750
      %v4007 = vcvt.s32.f32 %v3751
      %v4008 = vcvt.s32.f32 %v3752
      %v4009 = vcvt.s32.f32 %v3753
      %v4010 = vcvt.s32.f32 %v3754
      %v4011 = vcvt.s32.f32 %v3755
      %v4012 = vcvt.s32.f32 %v3756
      %v4013 = vcvt.s32.f32 %v3757
      %v4014 = vcvt.s32.f32 %v3758
      %v4015 = vcvt.s32.f32 %v3759
      %v4016 = vcvt.s32.f32 %v3760
      %v4017 = vcvt.s32.f32 %v3761
      %v4018 = vcvt.s32.f32 %v3762
      %v4019 = vcvt.s32.f32 %v3763
      %v4020 = vcvt.s32.f32 %v3764
      %v4021 = vcvt.s32.f32 %v3765
      %v4022 = vcvt.s32.f32 %v3766
      %v4023 = vcvt.s32.f32 %v3767
      %v4024 = vcvt.s32.f32 %v3768
      %v4025 = vcvt.s32.f32 %v3769
      %v4026 = vcvt.s32.f32 %v3770
      %v4027 = vcvt.s32.f32 %v3771
      %v4028 = vcvt.s32.f32 %v3772
      %v4029 = vcvt.s32.f32 %v3773
      %v4030 = vcvt.s32.f32 %v3774
      %v4031 = vcvt.s32.f32 %v3775
      %v4032 = vcvt.s32.f32 %v3776
      %v4033 = vcvt.s32.f32 %v3777
      %v4034 = vcvt.s32.f32 %v3778
      %v4035 = vcvt.s32.f32 %v3779
      %v4036 = vcvt.s32.f32 %v3780
      %v4037 = vcvt.s32.f32 %v3781
      %v4038 = vcvt.s32.f32 %v3782
      %v4039 = vcvt.s32.f32 %v3783
      %v4040 = vcvt.s32.f32 %v3784
      %v4041 = vcvt.s32.f32 %v3785
      %v4042 = vcvt.s32.f32 %v3786
      %v4043 = vcvt.s32.f32 %v3787
      %v4044 = vcvt.s32.f32 %v3788
      %v4045 = vcvt.s32.f32 %v3789
      %v4046 = vcvt.s32.f32 %v3790
      %v4047 = vcvt.s32.f32 %v3791
      %v4048 = vcvt.s32.f32 %v3792
      %v4049 = vcvt.s32.f32 %v3793
      %v4050 = vcvt.s32.f32 %v3794
      %v4051 = vcvt.s32.f32 %v3795
      %v4052 = vcvt.s32.f32 %v3796
      %v4053 = vcvt.s32.f32 %v3797
      %v4054 = vcvt.s32.f32 %v3798
      %v4055 = vcvt.s32.f32 %v3799
      %v4056 = vcvt.s32.f32 %v3800
      %v4057 = vcvt.s32.f32 %v3801
      %v4058 = vcvt.s32.f32 %v3802
      %v4059 = vcvt.s32.f32 %v3803
      %v4060 = vcvt.s32.f32 %v3804
      %v4061 = vcvt.s32.f32 %v3805
      %v4062 = vcvt.s32.f32 %v3806
      %v4063 = vcvt.s32.f32 %v3807
      %v4064 = vcvt.s32.f32 %v3808
      %v4065 = vcvt.s32.f32 %v3809
      %v4066 = vcvt.s32.f32 %v3810
      %v4067 = vcvt.s32.f32 %v3811
      %v4068 = vcvt.s32.f32 %v3812
      %v4069 = vcvt.s32.f32 %v3813
      %v4070 = vcvt.s32.f32 %v3814
      %v4071 = vcvt.s32.f32 %v3815
      %v4072 = vcvt.s32.f32 %v3816
      %v4073 = vcvt.s32.f32 %v3817
      %v4074 = vcvt.s32.f32 %v3818
      %v4075 = vcvt.s32.f32 %v3819
      %v4076 = vcvt.s32.f32 %v3820
      %v4077 = vcvt.s32.f32 %v3821
      %v4078 = vcvt.s32.f32 %v3822
      %v4079 = vcvt.s32.f32 %v3823
      %v4080 = vcvt.s32.f32 %v3824
      %v4081 = vcvt.s32.f32 %v3825
      %v4082 = vcvt.s32.f32 %v3826
      %v4083 = vcvt.s32.f32 %v3827
      %v4084 = vcvt.s32.f32 %v3828
      %v4085 = vcvt.s32.f32 %v3829
      %v4086 = vcvt.s32.f32 %v3830
      %v4087 = vcvt.s32.f32 %v3831
      %v4088 = vcvt.s32.f32 %v3832
      %v4089 = vcvt.s32.f32 %v3833
      %v4090 = vcvt.s32.f32 %v3834
      %v4091 = vcvt.s32.f32 %v3835
      %v4092 = vcvt.s32.f32 %v3836
      %v4093 = vcvt.s32.f32 %v3837
      %v4094 = vcvt.s32.f32 %v3838
      %v4095 = vcvt.s32.f32 %v3839
      %v4096 = vcvt.s32.f32 %v3840
      %v4097 = vcvt.s32.f32 %v3841
      %v4098 = vcvt.s32.f32 %v3842
      %v4099 = vcvt.s32.f32 %v3843
      %v4100 = vcvt.s32.f32 %v3844
      %v4101 = vcvt.s32.f32 %v3845
      %v4102 = vcvt.s32.f32 %v3846
      %v4103 = vcvt.s32.f32 %v3847
      %v4104 = vcvt.s32.f32 %v3848
      %v4105 = vcvt.s32.f32 %v3849
      %v4106 = vcvt.s32.f32 %v3850
      %v4107 = vcvt.s32.f32 %v3851
      %v4108 = vcvt.s32.f32 %v3852
      %v4109 = vcvt.s32.f32 %v3853
      %v4110 = vcvt.s32.f32 %v3854
      %v4111 = vcvt.s32.f32 %v3855
      %v4112 = vcvt.s32.f32 %v3856
      %v4113 = vcvt.s32.f32 %v3857
      %v4114 = vcvt.s32.f32 %v3858
      %v4115 = vcvt.s32.f32 %v3859
      %v4116 = vcvt.s32.f32 %v3860
      %v4117 = vcvt.s32.f32 %v3861
      %v4118 = vcvt.s32.f32 %v3862
      %v4119 = vcvt.s32.f32 %v3863
      %v4120 = vcvt.s32.f32 %v3864
      %v4121 = vcvt.s32.f32 %v3865
      %v4122 = vcvt.s32.f32 %v3866
      %v4123 = vcvt.s32.f32 %v3867
      %v4124 = vcvt.s32.f32 %v3868
      %v4125 = vcvt.s32.f32 %v3869
      %v4126 = vcvt.s32.f32 %v3870
      %v4127 = vcvt.s32.f32 %v3871
      %v4128 = vcvt.s32.f32 %v3872
      %v4129 = vcvt.s32.f32 %v3873
      %v4130 = vcvt.s32.f32 %v3874
      %v4131 = vcvt.s32.f32 %v3875
      %v4132 = vcvt.s32.f32 %v3876
      %v4133 = vcvt.s32.f32 %v3877
      %v4134 = vcvt.s32.f32 %v3878
      %v4135 = vcvt.s32.f32 %v3879
      %v4136 = vcvt.s32.f32 %v3880
      %v4137 = vcvt.s32.f32 %v3881
      %v4138 = vcvt.s32.f32 %v3882
      %v4139 = vcvt.s32.f32 %v3883
      %v4140 = vcvt.s32.f32 %v3884
      %v4141 = vcvt.s32.f32 %v3885
      %v4142 = vcvt.s32.f32 %v3886
      %v4143 = vcvt.s32.f32 %v3887
      %v4144 = vcvt.s32.f32 %v3888
      %v4145 = vcvt.s32.f32 %v3889
      %v4146 = vcvt.s32.f32 %v3890
      %v4147 = vcvt.s32.f32 %v3891
      %v4148 = vcvt.s32.f32 %v3892
      %v4149 = vcvt.s32.f32 %v3893
      %v4150 = vcvt.s32.f32 %v3894
      %v4151 = vcvt.s32.f32 %v3895
      %v4152 = vcvt.s32.f32 %v3896
      %v4153 = vcvt.s32.f32 %v3897
      %v4154 = vcvt.s32.f32 %v3898
      %v4155 = vcvt.s32.f32 %v3899
      %v4156 = vcvt.s32.f32 %v3900
      %v4157 = vcvt.s32.f32 %v3901
      %v4158 = vcvt.s32.f32 %v3902
      %v4159 = vcvt.s32.f32 %v3903
      %v4160 = vcvt.s32.f32 %v3904
      %v4161 = vcvt.s32.f32 %v3905
      %v4162 = vcvt.s32.f32 %v3906
      %v4163 = vcvt.s32.f32 %v3907
      %v4164 = vcvt.s32.f32 %v3908
      %v4165 = vcvt.s32.f32 %v3909
      %v4166 = vcvt.s32.f32 %v3910
      %v4167 = vcvt.s32.f32 %v3911
      %v4168 = vcvt.s32.f32 %v3912
      %v4169 = vcvt.s32.f32 %v3913
      %v4170 = vcvt.s32.f32 %v3914
      %v4171 = vcvt.s32.f32 %v3915
      %v4172 = vcvt.s32.f32 %v3916
      %v4173 = vcvt.s32.f32 %v3917
      %v4174 = vcvt.s32.f32 %v3918
      %v4175 = vcvt.s32.f32 %v3919
      %v4176 = vcvt.s32.f32 %v3920
      %v4177 = vcvt.s32.f32 %v3921
      %v4178 = vcvt.s32.f32 %v3922
      %v4179 = vcvt.s32.f32 %v3923
      %v4180 = vcvt.s32.f32 %v3924
      %v4181 = vcvt.s32.f32 %v3925
      %v4182 = vcvt.s32.f32 %v3926
      %v4183 = vcvt.s32.f32 %v3927
      %v4184 = vcvt.s32.f32 %v3928
      %v4185 = vcvt.s32.f32 %v3929
      %v4186 = vcvt.s32.f32 %v3930
      %v4187 = vcvt.s32.f32 %v3931
      %v4188 = vcvt.s32.f32 %v3932
      %v4189 = vcvt.s32.f32 %v3933
      %v4190 = vcvt.s32.f32 %v3934
      %v4191 = vcvt.s32.f32 %v3935
      %v4192 = vcvt.s32.f32 %v3936
      %v4193 = vcvt.s32.f32 %v3937
      %v4194 = vcvt.s32.f32 %v3938
      %v4195 = vcvt.s32.f32 %v3939
      %v4196 = vcvt.s32.f32 %v3940
      %v4197 = vcvt.s32.f32 %v3941
      %v4198 = vcvt.s32.f32 %v3942
      %v4199 = vcvt.s32.f32 %v3943
      %v4200 = vcvt.s32.f32 %v3944
      %v4201 = vcvt.s32.f32 %v3945
      %v4202 = vcvt.s32.f32 %v3946
      %v4203 = vcvt.s32.f32 %v3947
      %v4204 = vcvt.s32.f32 %v3948
      %v4205 = vcvt.s32.f32 %v3949
      %v4206 = vcvt.s32.f32 %v3950
      %v4207 = vcvt.s32.f32 %v3951
      %v4208 = vcvt.s32.f32 %v3952
      %v4209 = vcvt.s32.f32 %v3953
      %v4210 = vcvt.s32.f32 %v3954
      %v4211 = vcvt.s32.f32 %v3955
      %v4212 = vcvt.s32.f32 %v3956
      %v4213 = vcvt.s32.f32 %v3957
      %v4214 = vcvt.s32.f32 %v3958
      %v4215 = vcvt.s32.f32 %v3959
      %v4216 = vcvt.s32.f32 %v3960
      %v4217 = vcvt.s32.f32 %v3961
      %v4218 = vcvt.s32.f32 %v3962
      %v4219 = vcvt.s32.f32 %v3963
      %v4220 = vcvt.s32.f32 %v3964
      %v4221 = vcvt.s32.f32 %v3965
      %s4222 = scalar_lea.vmem %s1, 96
      %v4223 = vld [vmem:[%s4222] sm:$0xff]
      %v4224 = vld [vmem:[%s4222 + $0x8] sm:$0xff]
      %v4225 = vld [vmem:[%s4222 + $0x10] sm:$0xff]
      %v4226 = vld [vmem:[%s4222 + $0x18] sm:$0xff]
      %4227 = vmatprep.subr.mxu0 %v4027
      %4228 = vmatpush1.msra.mxu0 %v4026
      %4229 = vmatprep.subr.mxu0 %v4023
      %4230 = vmatpush1.msra.mxu0 %v4022
      %4231 = vmatprep.subr.mxu0 %v4019
      %4232 = vmatpush1.msra.mxu0 %v4018
      %4233 = vmatprep.subr.mxu0 %v4015
      %4234 = vmatpush1.msra.mxu0 %v4014
      %4235 = vmatprep.subr.mxu0 %v4011
      %4236 = vmatpush1.msra.mxu0 %v4010
      %4237 = vmatprep.subr.mxu0 %v4007
      %4238 = vmatpush1.msra.mxu0 %v4006
      %4239 = vmatprep.subr.mxu0 %v4003
      %4240 = vmatpush1.msra.mxu0 %v4002
      %4241 = vmatprep.subr.mxu0 %v3999
      %4242 = vmatpush1.msra.mxu0 %v3998
      %4243 = vmatprep.subr.mxu0 %v3995
      %4244 = vmatpush1.msra.mxu0 %v3994
      %4245 = vmatprep.subr.mxu0 %v3991
      %4246 = vmatpush1.msra.mxu0 %v3990
      %4247 = vmatprep.subr.mxu0 %v3987
      %4248 = vmatpush1.msra.mxu0 %v3986
      %4249 = vmatprep.subr.mxu0 %v3983
      %4250 = vmatpush1.msra.mxu0 %v3982
      %4251 = vmatprep.subr.mxu0 %v3979
      %4252 = vmatpush1.msra.mxu0 %v3978
      %4253 = vmatprep.subr.mxu0 %v3975
      %4254 = vmatpush1.msra.mxu0 %v3974
      %4255 = vmatprep.subr.mxu0 %v3971
      %4256 = vmatpush1.msra.mxu0 %v3970
      %4257 = vmatprep.subr.mxu0 %v3967
      %4258 = vmatpush1.msra.mxu0 %v3966
      %4259 = vmatprep.subr.mxu0 %v4091
      %4260 = vmatpush2.msra.mxu0 %v4090
      %4261 = vmatprep.subr.mxu0 %v4087
      %4262 = vmatpush2.msra.mxu0 %v4086
      %4263 = vmatprep.subr.mxu0 %v4083
      %4264 = vmatpush2.msra.mxu0 %v4082
      %4265 = vmatprep.subr.mxu0 %v4079
      %4266 = vmatpush2.msra.mxu0 %v4078
      %4267 = vmatprep.subr.mxu0 %v4075
      %4268 = vmatpush2.msra.mxu0 %v4074
      %4269 = vmatprep.subr.mxu0 %v4071
      %4270 = vmatpush2.msra.mxu0 %v4070
      %4271 = vmatprep.subr.mxu0 %v4067
      %4272 = vmatpush2.msra.mxu0 %v4066
      %4273 = vmatprep.subr.mxu0 %v4063
      %4274 = vmatpush2.msra.mxu0 %v4062
      %4275 = vmatprep.subr.mxu0 %v4059
      %4276 = vmatpush2.msra.mxu0 %v4058
      %4277 = vmatprep.subr.mxu0 %v4055
      %4278 = vmatpush2.msra.mxu0 %v4054
      %4279 = vmatprep.subr.mxu0 %v4051
      %4280 = vmatpush2.msra.mxu0 %v4050
      %4281 = vmatprep.subr.mxu0 %v4047
      %4282 = vmatpush2.msra.mxu0 %v4046
      %4283 = vmatprep.subr.mxu0 %v4043
      %4284 = vmatpush2.msra.mxu0 %v4042
      %4285 = vmatprep.subr.mxu0 %v4039
      %4286 = vmatpush2.msra.mxu0 %v4038
      %4287 = vmatprep.subr.mxu0 %v4035
      %4288 = vmatpush2.msra.mxu0 %v4034
      %4289 = vmatprep.subr.mxu0 %v4031
      %4290 = vmatpush2.msra.mxu0 %v4030
      %4291 = vmatprep.mubr.f32.mxu0 %v4224
      %4292 = vmatmul.mubr.f32.gmra.mxu0 %v4223
      %v4293 = vpop.f32.mrf.mxu0
      %v4294 = vadd.f32 0.0, %v4293
      %v4295 = vpop.f32.mrf.mxu0
      %v4296 = vadd.f32 0.0, %v4295
      %4297 = vdwg.mxu0
      %4298 = vmatprep.subr.mxu0 %v4155
      %4299 = vmatpush1.msra.mxu0 %v4154
      %4300 = vmatprep.subr.mxu0 %v4151
      %4301 = vmatpush1.msra.mxu0 %v4150
      %4302 = vmatprep.subr.mxu0 %v4147
      %4303 = vmatpush1.msra.mxu0 %v4146
      %4304 = vmatprep.subr.mxu0 %v4143
      %4305 = vmatpush1.msra.mxu0 %v4142
      %4306 = vmatprep.subr.mxu0 %v4139
      %4307 = vmatpush1.msra.mxu0 %v4138
      %4308 = vmatprep.subr.mxu0 %v4135
      %4309 = vmatpush1.msra.mxu0 %v4134
      %4310 = vmatprep.subr.mxu0 %v4131
      %4311 = vmatpush1.msra.mxu0 %v4130
      %4312 = vmatprep.subr.mxu0 %v4127
      %4313 = vmatpush1.msra.mxu0 %v4126
      %4314 = vmatprep.subr.mxu0 %v4123
      %4315 = vmatpush1.msra.mxu0 %v4122
      %4316 = vmatprep.subr.mxu0 %v4119
      %4317 = vmatpush1.msra.mxu0 %v4118
      %4318 = vmatprep.subr.mxu0 %v4115
      %4319 = vmatpush1.msra.mxu0 %v4114
      %4320 = vmatprep.subr.mxu0 %v4111
      %4321 = vmatpush1.msra.mxu0 %v4110
      %4322 = vmatprep.subr.mxu0 %v4107
      %4323 = vmatpush1.msra.mxu0 %v4106
      %4324 = vmatprep.subr.mxu0 %v4103
      %4325 = vmatpush1.msra.mxu0 %v4102
      %4326 = vmatprep.subr.mxu0 %v4099
      %4327 = vmatpush1.msra.mxu0 %v4098
      %4328 = vmatprep.subr.mxu0 %v4095
      %4329 = vmatpush1.msra.mxu0 %v4094
      %4330 = vmatprep.subr.mxu0 %v4219
      %4331 = vmatpush2.msra.mxu0 %v4218
      %4332 = vmatprep.subr.mxu0 %v4215
      %4333 = vmatpush2.msra.mxu0 %v4214
      %4334 = vmatprep.subr.mxu0 %v4211
      %4335 = vmatpush2.msra.mxu0 %v4210
      %4336 = vmatprep.subr.mxu0 %v4207
      %4337 = vmatpush2.msra.mxu0 %v4206
      %4338 = vmatprep.subr.mxu0 %v4203
      %4339 = vmatpush2.msra.mxu0 %v4202
      %4340 = vmatprep.subr.mxu0 %v4199
      %4341 = vmatpush2.msra.mxu0 %v4198
      %4342 = vmatprep.subr.mxu0 %v4195
      %4343 = vmatpush2.msra.mxu0 %v4194
      %4344 = vmatprep.subr.mxu0 %v4191
      %4345 = vmatpush2.msra.mxu0 %v4190
      %4346 = vmatprep.subr.mxu0 %v4187
      %4347 = vmatpush2.msra.mxu0 %v4186
      %4348 = vmatprep.subr.mxu0 %v4183
      %4349 = vmatpush2.msra.mxu0 %v4182
      %4350 = vmatprep.subr.mxu0 %v4179
      %4351 = vmatpush2.msra.mxu0 %v4178
      %4352 = vmatprep.subr.mxu0 %v4175
      %4353 = vmatpush2.msra.mxu0 %v4174
      %4354 = vmatprep.subr.mxu0 %v4171
      %4355 = vmatpush2.msra.mxu0 %v4170
      %4356 = vmatprep.subr.mxu0 %v4167
      %4357 = vmatpush2.msra.mxu0 %v4166
      %4358 = vmatprep.subr.mxu0 %v4163
      %4359 = vmatpush2.msra.mxu0 %v4162
      %4360 = vmatprep.subr.mxu0 %v4159
      %4361 = vmatpush2.msra.mxu0 %v4158
      %4362 = vmatprep.mubr.f32.mxu0 %v4226
      %4363 = vmatmul.mubr.f32.gmra.mxu0 %v4225
      %v4364 = vpop.f32.mrf.mxu0
      %v4365 = vadd.f32 %v4294, %v4364
      %v4366 = vpop.f32.mrf.mxu0
      %v4367 = vadd.f32 %v4296, %v4366
      %4368 = vdwg.mxu0
      %4369 = vmatprep.subr.mxu0 %v4029
      %4370 = vmatpush1.msra.mxu0 %v4028
      %4371 = vmatprep.subr.mxu0 %v4025
      %4372 = vmatpush1.msra.mxu0 %v4024
      %4373 = vmatprep.subr.mxu0 %v4021
      %4374 = vmatpush1.msra.mxu0 %v4020
      %4375 = vmatprep.subr.mxu0 %v4017
      %4376 = vmatpush1.msra.mxu0 %v4016
      %4377 = vmatprep.subr.mxu0 %v4013
      %4378 = vmatpush1.msra.mxu0 %v4012
      %4379 = vmatprep.subr.mxu0 %v4009
      %4380 = vmatpush1.msra.mxu0 %v4008
      %4381 = vmatprep.subr.mxu0 %v4005
      %4382 = vmatpush1.msra.mxu0 %v4004
      %4383 = vmatprep.subr.mxu0 %v4001
      %4384 = vmatpush1.msra.mxu0 %v4000
      %4385 = vmatprep.subr.mxu0 %v3997
      %4386 = vmatpush1.msra.mxu0 %v3996
      %4387 = vmatprep.subr.mxu0 %v3993
      %4388 = vmatpush1.msra.mxu0 %v3992
      %4389 = vmatprep.subr.mxu0 %v3989
      %4390 = vmatpush1.msra.mxu0 %v3988
      %4391 = vmatprep.subr.mxu0 %v3985
      %4392 = vmatpush1.msra.mxu0 %v3984
      %4393 = vmatprep.subr.mxu0 %v3981
      %4394 = vmatpush1.msra.mxu0 %v3980
      %4395 = vmatprep.subr.mxu0 %v3977
      %4396 = vmatpush1.msra.mxu0 %v3976
      %4397 = vmatprep.subr.mxu0 %v3973
      %4398 = vmatpush1.msra.mxu0 %v3972
      %4399 = vmatprep.subr.mxu0 %v3969
      %4400 = vmatpush1.msra.mxu0 %v3968
      %4401 = vmatprep.subr.mxu0 %v4093
      %4402 = vmatpush2.msra.mxu0 %v4092
      %4403 = vmatprep.subr.mxu0 %v4089
      %4404 = vmatpush2.msra.mxu0 %v4088
      %4405 = vmatprep.subr.mxu0 %v4085
      %4406 = vmatpush2.msra.mxu0 %v4084
      %4407 = vmatprep.subr.mxu0 %v4081
      %4408 = vmatpush2.msra.mxu0 %v4080
      %4409 = vmatprep.subr.mxu0 %v4077
      %4410 = vmatpush2.msra.mxu0 %v4076
      %4411 = vmatprep.subr.mxu0 %v4073
      %4412 = vmatpush2.msra.mxu0 %v4072
      %4413 = vmatprep.subr.mxu0 %v4069
      %4414 = vmatpush2.msra.mxu0 %v4068
      %4415 = vmatprep.subr.mxu0 %v4065
      %4416 = vmatpush2.msra.mxu0 %v4064
      %4417 = vmatprep.subr.mxu0 %v4061
      %4418 = vmatpush2.msra.mxu0 %v4060
      %4419 = vmatprep.subr.mxu0 %v4057
      %4420 = vmatpush2.msra.mxu0 %v4056
      %4421 = vmatprep.subr.mxu0 %v4053
      %4422 = vmatpush2.msra.mxu0 %v4052
      %4423 = vmatprep.subr.mxu0 %v4049
      %4424 = vmatpush2.msra.mxu0 %v4048
      %4425 = vmatprep.subr.mxu0 %v4045
      %4426 = vmatpush2.msra.mxu0 %v4044
      %4427 = vmatprep.subr.mxu0 %v4041
      %4428 = vmatpush2.msra.mxu0 %v4040
      %4429 = vmatprep.subr.mxu0 %v4037
      %4430 = vmatpush2.msra.mxu0 %v4036
      %4431 = vmatprep.subr.mxu0 %v4033
      %4432 = vmatpush2.msra.mxu0 %v4032
      %4433 = vmatprep.mubr.f32.mxu0 %v4224
      %4434 = vmatmul.mubr.f32.gmra.mxu0 %v4223
      %v4435 = vpop.f32.mrf.mxu0
      %v4436 = vadd.f32 0.0, %v4435
      %v4437 = vpop.f32.mrf.mxu0
      %v4438 = vadd.f32 0.0, %v4437
      %4439 = vdwg.mxu0
      %4440 = vmatprep.subr.mxu0 %v4157
      %4441 = vmatpush1.msra.mxu0 %v4156
      %4442 = vmatprep.subr.mxu0 %v4153
      %4443 = vmatpush1.msra.mxu0 %v4152
      %4444 = vmatprep.subr.mxu0 %v4149
      %4445 = vmatpush1.msra.mxu0 %v4148
      %4446 = vmatprep.subr.mxu0 %v4145
      %4447 = vmatpush1.msra.mxu0 %v4144
      %4448 = vmatprep.subr.mxu0 %v4141
      %4449 = vmatpush1.msra.mxu0 %v4140
      %4450 = vmatprep.subr.mxu0 %v4137
      %4451 = vmatpush1.msra.mxu0 %v4136
      %4452 = vmatprep.subr.mxu0 %v4133
      %4453 = vmatpush1.msra.mxu0 %v4132
      %4454 = vmatprep.subr.mxu0 %v4129
      %4455 = vmatpush1.msra.mxu0 %v4128
      %4456 = vmatprep.subr.mxu0 %v4125
      %4457 = vmatpush1.msra.mxu0 %v4124
      %4458 = vmatprep.subr.mxu0 %v4121
      %4459 = vmatpush1.msra.mxu0 %v4120
      %4460 = vmatprep.subr.mxu0 %v4117
      %4461 = vmatpush1.msra.mxu0 %v4116
      %4462 = vmatprep.subr.mxu0 %v4113
      %4463 = vmatpush1.msra.mxu0 %v4112
      %4464 = vmatprep.subr.mxu0 %v4109
      %4465 = vmatpush1.msra.mxu0 %v4108
      %4466 = vmatprep.subr.mxu0 %v4105
      %4467 = vmatpush1.msra.mxu0 %v4104
      %4468 = vmatprep.subr.mxu0 %v4101
      %4469 = vmatpush1.msra.mxu0 %v4100
      %4470 = vmatprep.subr.mxu0 %v4097
      %4471 = vmatpush1.msra.mxu0 %v4096
      %4472 = vmatprep.subr.mxu0 %v4221
      %4473 = vmatpush2.msra.mxu0 %v4220
      %4474 = vmatprep.subr.mxu0 %v4217
      %4475 = vmatpush2.msra.mxu0 %v4216
      %4476 = vmatprep.subr.mxu0 %v4213
      %4477 = vmatpush2.msra.mxu0 %v4212
      %4478 = vmatprep.subr.mxu0 %v4209
      %4479 = vmatpush2.msra.mxu0 %v4208
      %4480 = vmatprep.subr.mxu0 %v4205
      %4481 = vmatpush2.msra.mxu0 %v4204
      %4482 = vmatprep.subr.mxu0 %v4201
      %4483 = vmatpush2.msra.mxu0 %v4200
      %4484 = vmatprep.subr.mxu0 %v4197
      %4485 = vmatpush2.msra.mxu0 %v4196
      %4486 = vmatprep.subr.mxu0 %v4193
      %4487 = vmatpush2.msra.mxu0 %v4192
      %4488 = vmatprep.subr.mxu0 %v4189
      %4489 = vmatpush2.msra.mxu0 %v4188
      %4490 = vmatprep.subr.mxu0 %v4185
      %4491 = vmatpush2.msra.mxu0 %v4184
      %4492 = vmatprep.subr.mxu0 %v4181
      %4493 = vmatpush2.msra.mxu0 %v4180
      %4494 = vmatprep.subr.mxu0 %v4177
      %4495 = vmatpush2.msra.mxu0 %v4176
      %4496 = vmatprep.subr.mxu0 %v4173
      %4497 = vmatpush2.msra.mxu0 %v4172
      %4498 = vmatprep.subr.mxu0 %v4169
      %4499 = vmatpush2.msra.mxu0 %v4168
      %4500 = vmatprep.subr.mxu0 %v4165
      %4501 = vmatpush2.msra.mxu0 %v4164
      %4502 = vmatprep.subr.mxu0 %v4161
      %4503 = vmatpush2.msra.mxu0 %v4160
      %4504 = vmatprep.mubr.f32.mxu0 %v4226
      %4505 = vmatmul.mubr.f32.gmra.mxu0 %v4225
      %v4506 = vpop.f32.mrf.mxu0
      %v4507 = vadd.f32 %v4436, %v4506
      %v4508 = vpop.f32.mrf.mxu0
      %v4509 = vadd.f32 %v4438, %v4508
      %4510 = vdwg.mxu0
      %v4511 = vadd.f32 %v3434, %v4365
      %v4512 = vadd.f32 %v3435, %v4367
      %v4513 = vadd.f32 %v3436, %v4507
      %v4514 = vadd.f32 %v3437, %v4509
      %v4515 = vlaneseq
      %v4516 = vshrl.u32 %v4515, 7
      %v4517 = vsub.s32 4, %v4516
      %v4518 = vrot.slane %v147, %v4517
      %v4519 = vlaneseq
      %v4520 = vshrl.u32 %v4519, 7
      %v4521 = vsub.s32 4, %v4520
      %v4522 = vrot.slane %v148, %v4521
      %v4523 = vlaneseq
      %v4524 = vshrl.u32 %v4523, 7
      %v4525 = vsub.s32 4, %v4524
      %v4526 = vrot.slane %v149, %v4525
      %v4527 = vlaneseq
      %v4528 = vshrl.u32 %v4527, 7
      %v4529 = vsub.s32 4, %v4528
      %v4530 = vrot.slane %v150, %v4529
      %vm4531 = vcmp.eq.s32.totalorder %v152, %v4518
      %vm4532 = vcmp.eq.s32.totalorder %v152, %v4522
      %vm4533 = vcmp.eq.s32.totalorder %v152, %v4526
      %vm4534 = vcmp.eq.s32.totalorder %v152, %v4530
      %vm4535 = vcmp.eq.s32.totalorder %v153, %v4518
      %vm4536 = vcmp.eq.s32.totalorder %v153, %v4522
      %vm4537 = vcmp.eq.s32.totalorder %v153, %v4526
      %vm4538 = vcmp.eq.s32.totalorder %v153, %v4530
      %vm4539 = vcmp.eq.s32.totalorder %v154, %v4518
      %vm4540 = vcmp.eq.s32.totalorder %v154, %v4522
      %vm4541 = vcmp.eq.s32.totalorder %v154, %v4526
      %vm4542 = vcmp.eq.s32.totalorder %v154, %v4530
      %vm4543 = vcmp.eq.s32.totalorder %v155, %v4518
      %vm4544 = vcmp.eq.s32.totalorder %v155, %v4522
      %vm4545 = vcmp.eq.s32.totalorder %v155, %v4526
      %vm4546 = vcmp.eq.s32.totalorder %v155, %v4530
      %vm4547 = vcmp.eq.s32.totalorder %v156, %v4518
      %vm4548 = vcmp.eq.s32.totalorder %v156, %v4522
      %vm4549 = vcmp.eq.s32.totalorder %v156, %v4526
      %vm4550 = vcmp.eq.s32.totalorder %v156, %v4530
      %vm4551 = vcmp.eq.s32.totalorder %v157, %v4518
      %vm4552 = vcmp.eq.s32.totalorder %v157, %v4522
      %vm4553 = vcmp.eq.s32.totalorder %v157, %v4526
      %vm4554 = vcmp.eq.s32.totalorder %v157, %v4530
      %vm4555 = vcmp.eq.s32.totalorder %v158, %v4518
      %vm4556 = vcmp.eq.s32.totalorder %v158, %v4522
      %vm4557 = vcmp.eq.s32.totalorder %v158, %v4526
      %vm4558 = vcmp.eq.s32.totalorder %v158, %v4530
      %vm4559 = vcmp.eq.s32.totalorder %v159, %v4518
      %vm4560 = vcmp.eq.s32.totalorder %v159, %v4522
      %vm4561 = vcmp.eq.s32.totalorder %v159, %v4526
      %vm4562 = vcmp.eq.s32.totalorder %v159, %v4530
      %vm4563 = vcmp.eq.s32.totalorder %v160, %v4518
      %vm4564 = vcmp.eq.s32.totalorder %v160, %v4522
      %vm4565 = vcmp.eq.s32.totalorder %v160, %v4526
      %vm4566 = vcmp.eq.s32.totalorder %v160, %v4530
      %vm4567 = vcmp.eq.s32.totalorder %v161, %v4518
      %vm4568 = vcmp.eq.s32.totalorder %v161, %v4522
      %vm4569 = vcmp.eq.s32.totalorder %v161, %v4526
      %vm4570 = vcmp.eq.s32.totalorder %v161, %v4530
      %vm4571 = vcmp.eq.s32.totalorder %v162, %v4518
      %vm4572 = vcmp.eq.s32.totalorder %v162, %v4522
      %vm4573 = vcmp.eq.s32.totalorder %v162, %v4526
      %vm4574 = vcmp.eq.s32.totalorder %v162, %v4530
      %vm4575 = vcmp.eq.s32.totalorder %v163, %v4518
      %vm4576 = vcmp.eq.s32.totalorder %v163, %v4522
      %vm4577 = vcmp.eq.s32.totalorder %v163, %v4526
      %vm4578 = vcmp.eq.s32.totalorder %v163, %v4530
      %vm4579 = vcmp.eq.s32.totalorder %v164, %v4518
      %vm4580 = vcmp.eq.s32.totalorder %v164, %v4522
      %vm4581 = vcmp.eq.s32.totalorder %v164, %v4526
      %vm4582 = vcmp.eq.s32.totalorder %v164, %v4530
      %vm4583 = vcmp.eq.s32.totalorder %v165, %v4518
      %vm4584 = vcmp.eq.s32.totalorder %v165, %v4522
      %vm4585 = vcmp.eq.s32.totalorder %v165, %v4526
      %vm4586 = vcmp.eq.s32.totalorder %v165, %v4530
      %vm4587 = vcmp.eq.s32.totalorder %v166, %v4518
      %vm4588 = vcmp.eq.s32.totalorder %v166, %v4522
      %vm4589 = vcmp.eq.s32.totalorder %v166, %v4526
      %vm4590 = vcmp.eq.s32.totalorder %v166, %v4530
      %vm4591 = vcmp.eq.s32.totalorder %v167, %v4518
      %vm4592 = vcmp.eq.s32.totalorder %v167, %v4522
      %vm4593 = vcmp.eq.s32.totalorder %v167, %v4526
      %vm4594 = vcmp.eq.s32.totalorder %v167, %v4530
      %vm4595 = vcmp.eq.s32.totalorder %v168, %v4518
      %vm4596 = vcmp.eq.s32.totalorder %v168, %v4522
      %vm4597 = vcmp.eq.s32.totalorder %v168, %v4526
      %vm4598 = vcmp.eq.s32.totalorder %v168, %v4530
      %vm4599 = vcmp.eq.s32.totalorder %v169, %v4518
      %vm4600 = vcmp.eq.s32.totalorder %v169, %v4522
      %vm4601 = vcmp.eq.s32.totalorder %v169, %v4526
      %vm4602 = vcmp.eq.s32.totalorder %v169, %v4530
      %vm4603 = vcmp.eq.s32.totalorder %v170, %v4518
      %vm4604 = vcmp.eq.s32.totalorder %v170, %v4522
      %vm4605 = vcmp.eq.s32.totalorder %v170, %v4526
      %vm4606 = vcmp.eq.s32.totalorder %v170, %v4530
      %vm4607 = vcmp.eq.s32.totalorder %v171, %v4518
      %vm4608 = vcmp.eq.s32.totalorder %v171, %v4522
      %vm4609 = vcmp.eq.s32.totalorder %v171, %v4526
      %vm4610 = vcmp.eq.s32.totalorder %v171, %v4530
      %vm4611 = vcmp.eq.s32.totalorder %v172, %v4518
      %vm4612 = vcmp.eq.s32.totalorder %v172, %v4522
      %vm4613 = vcmp.eq.s32.totalorder %v172, %v4526
      %vm4614 = vcmp.eq.s32.totalorder %v172, %v4530
      %vm4615 = vcmp.eq.s32.totalorder %v173, %v4518
      %vm4616 = vcmp.eq.s32.totalorder %v173, %v4522
      %vm4617 = vcmp.eq.s32.totalorder %v173, %v4526
      %vm4618 = vcmp.eq.s32.totalorder %v173, %v4530
      %vm4619 = vcmp.eq.s32.totalorder %v174, %v4518
      %vm4620 = vcmp.eq.s32.totalorder %v174, %v4522
      %vm4621 = vcmp.eq.s32.totalorder %v174, %v4526
      %vm4622 = vcmp.eq.s32.totalorder %v174, %v4530
      %vm4623 = vcmp.eq.s32.totalorder %v175, %v4518
      %vm4624 = vcmp.eq.s32.totalorder %v175, %v4522
      %vm4625 = vcmp.eq.s32.totalorder %v175, %v4526
      %vm4626 = vcmp.eq.s32.totalorder %v175, %v4530
      %vm4627 = vcmp.eq.s32.totalorder %v176, %v4518
      %vm4628 = vcmp.eq.s32.totalorder %v176, %v4522
      %vm4629 = vcmp.eq.s32.totalorder %v176, %v4526
      %vm4630 = vcmp.eq.s32.totalorder %v176, %v4530
      %vm4631 = vcmp.eq.s32.totalorder %v177, %v4518
      %vm4632 = vcmp.eq.s32.totalorder %v177, %v4522
      %vm4633 = vcmp.eq.s32.totalorder %v177, %v4526
      %vm4634 = vcmp.eq.s32.totalorder %v177, %v4530
      %vm4635 = vcmp.eq.s32.totalorder %v178, %v4518
      %vm4636 = vcmp.eq.s32.totalorder %v178, %v4522
      %vm4637 = vcmp.eq.s32.totalorder %v178, %v4526
      %vm4638 = vcmp.eq.s32.totalorder %v178, %v4530
      %vm4639 = vcmp.eq.s32.totalorder %v179, %v4518
      %vm4640 = vcmp.eq.s32.totalorder %v179, %v4522
      %vm4641 = vcmp.eq.s32.totalorder %v179, %v4526
      %vm4642 = vcmp.eq.s32.totalorder %v179, %v4530
      %vm4643 = vcmp.eq.s32.totalorder %v180, %v4518
      %vm4644 = vcmp.eq.s32.totalorder %v180, %v4522
      %vm4645 = vcmp.eq.s32.totalorder %v180, %v4526
      %vm4646 = vcmp.eq.s32.totalorder %v180, %v4530
      %vm4647 = vcmp.eq.s32.totalorder %v181, %v4518
      %vm4648 = vcmp.eq.s32.totalorder %v181, %v4522
      %vm4649 = vcmp.eq.s32.totalorder %v181, %v4526
      %vm4650 = vcmp.eq.s32.totalorder %v181, %v4530
      %vm4651 = vcmp.eq.s32.totalorder %v182, %v4518
      %vm4652 = vcmp.eq.s32.totalorder %v182, %v4522
      %vm4653 = vcmp.eq.s32.totalorder %v182, %v4526
      %vm4654 = vcmp.eq.s32.totalorder %v182, %v4530
      %vm4655 = vcmp.eq.s32.totalorder %v183, %v4518
      %vm4656 = vcmp.eq.s32.totalorder %v183, %v4522
      %vm4657 = vcmp.eq.s32.totalorder %v183, %v4526
      %vm4658 = vcmp.eq.s32.totalorder %v183, %v4530
      %vm4659 = vcmp.eq.s32.totalorder %v184, %v4518
      %vm4660 = vcmp.eq.s32.totalorder %v184, %v4522
      %vm4661 = vcmp.eq.s32.totalorder %v184, %v4526
      %vm4662 = vcmp.eq.s32.totalorder %v184, %v4530
      %vm4663 = vcmp.eq.s32.totalorder %v185, %v4518
      %vm4664 = vcmp.eq.s32.totalorder %v185, %v4522
      %vm4665 = vcmp.eq.s32.totalorder %v185, %v4526
      %vm4666 = vcmp.eq.s32.totalorder %v185, %v4530
      %vm4667 = vcmp.eq.s32.totalorder %v186, %v4518
      %vm4668 = vcmp.eq.s32.totalorder %v186, %v4522
      %vm4669 = vcmp.eq.s32.totalorder %v186, %v4526
      %vm4670 = vcmp.eq.s32.totalorder %v186, %v4530
      %vm4671 = vcmp.eq.s32.totalorder %v187, %v4518
      %vm4672 = vcmp.eq.s32.totalorder %v187, %v4522
      %vm4673 = vcmp.eq.s32.totalorder %v187, %v4526
      %vm4674 = vcmp.eq.s32.totalorder %v187, %v4530
      %vm4675 = vcmp.eq.s32.totalorder %v188, %v4518
      %vm4676 = vcmp.eq.s32.totalorder %v188, %v4522
      %vm4677 = vcmp.eq.s32.totalorder %v188, %v4526
      %vm4678 = vcmp.eq.s32.totalorder %v188, %v4530
      %vm4679 = vcmp.eq.s32.totalorder %v189, %v4518
      %vm4680 = vcmp.eq.s32.totalorder %v189, %v4522
      %vm4681 = vcmp.eq.s32.totalorder %v189, %v4526
      %vm4682 = vcmp.eq.s32.totalorder %v189, %v4530
      %vm4683 = vcmp.eq.s32.totalorder %v190, %v4518
      %vm4684 = vcmp.eq.s32.totalorder %v190, %v4522
      %vm4685 = vcmp.eq.s32.totalorder %v190, %v4526
      %vm4686 = vcmp.eq.s32.totalorder %v190, %v4530
      %vm4687 = vcmp.eq.s32.totalorder %v191, %v4518
      %vm4688 = vcmp.eq.s32.totalorder %v191, %v4522
      %vm4689 = vcmp.eq.s32.totalorder %v191, %v4526
      %vm4690 = vcmp.eq.s32.totalorder %v191, %v4530
      %vm4691 = vcmp.eq.s32.totalorder %v192, %v4518
      %vm4692 = vcmp.eq.s32.totalorder %v192, %v4522
      %vm4693 = vcmp.eq.s32.totalorder %v192, %v4526
      %vm4694 = vcmp.eq.s32.totalorder %v192, %v4530
      %vm4695 = vcmp.eq.s32.totalorder %v193, %v4518
      %vm4696 = vcmp.eq.s32.totalorder %v193, %v4522
      %vm4697 = vcmp.eq.s32.totalorder %v193, %v4526
      %vm4698 = vcmp.eq.s32.totalorder %v193, %v4530
      %vm4699 = vcmp.eq.s32.totalorder %v194, %v4518
      %vm4700 = vcmp.eq.s32.totalorder %v194, %v4522
      %vm4701 = vcmp.eq.s32.totalorder %v194, %v4526
      %vm4702 = vcmp.eq.s32.totalorder %v194, %v4530
      %vm4703 = vcmp.eq.s32.totalorder %v195, %v4518
      %vm4704 = vcmp.eq.s32.totalorder %v195, %v4522
      %vm4705 = vcmp.eq.s32.totalorder %v195, %v4526
      %vm4706 = vcmp.eq.s32.totalorder %v195, %v4530
      %vm4707 = vcmp.eq.s32.totalorder %v196, %v4518
      %vm4708 = vcmp.eq.s32.totalorder %v196, %v4522
      %vm4709 = vcmp.eq.s32.totalorder %v196, %v4526
      %vm4710 = vcmp.eq.s32.totalorder %v196, %v4530
      %vm4711 = vcmp.eq.s32.totalorder %v197, %v4518
      %vm4712 = vcmp.eq.s32.totalorder %v197, %v4522
      %vm4713 = vcmp.eq.s32.totalorder %v197, %v4526
      %vm4714 = vcmp.eq.s32.totalorder %v197, %v4530
      %vm4715 = vcmp.eq.s32.totalorder %v198, %v4518
      %vm4716 = vcmp.eq.s32.totalorder %v198, %v4522
      %vm4717 = vcmp.eq.s32.totalorder %v198, %v4526
      %vm4718 = vcmp.eq.s32.totalorder %v198, %v4530
      %vm4719 = vcmp.eq.s32.totalorder %v199, %v4518
      %vm4720 = vcmp.eq.s32.totalorder %v199, %v4522
      %vm4721 = vcmp.eq.s32.totalorder %v199, %v4526
      %vm4722 = vcmp.eq.s32.totalorder %v199, %v4530
      %vm4723 = vcmp.eq.s32.totalorder %v200, %v4518
      %vm4724 = vcmp.eq.s32.totalorder %v200, %v4522
      %vm4725 = vcmp.eq.s32.totalorder %v200, %v4526
      %vm4726 = vcmp.eq.s32.totalorder %v200, %v4530
      %vm4727 = vcmp.eq.s32.totalorder %v201, %v4518
      %vm4728 = vcmp.eq.s32.totalorder %v201, %v4522
      %vm4729 = vcmp.eq.s32.totalorder %v201, %v4526
      %vm4730 = vcmp.eq.s32.totalorder %v201, %v4530
      %vm4731 = vcmp.eq.s32.totalorder %v202, %v4518
      %vm4732 = vcmp.eq.s32.totalorder %v202, %v4522
      %vm4733 = vcmp.eq.s32.totalorder %v202, %v4526
      %vm4734 = vcmp.eq.s32.totalorder %v202, %v4530
      %vm4735 = vcmp.eq.s32.totalorder %v203, %v4518
      %vm4736 = vcmp.eq.s32.totalorder %v203, %v4522
      %vm4737 = vcmp.eq.s32.totalorder %v203, %v4526
      %vm4738 = vcmp.eq.s32.totalorder %v203, %v4530
      %vm4739 = vcmp.eq.s32.totalorder %v204, %v4518
      %vm4740 = vcmp.eq.s32.totalorder %v204, %v4522
      %vm4741 = vcmp.eq.s32.totalorder %v204, %v4526
      %vm4742 = vcmp.eq.s32.totalorder %v204, %v4530
      %vm4743 = vcmp.eq.s32.totalorder %v205, %v4518
      %vm4744 = vcmp.eq.s32.totalorder %v205, %v4522
      %vm4745 = vcmp.eq.s32.totalorder %v205, %v4526
      %vm4746 = vcmp.eq.s32.totalorder %v205, %v4530
      %vm4747 = vcmp.eq.s32.totalorder %v206, %v4518
      %vm4748 = vcmp.eq.s32.totalorder %v206, %v4522
      %vm4749 = vcmp.eq.s32.totalorder %v206, %v4526
      %vm4750 = vcmp.eq.s32.totalorder %v206, %v4530
      %vm4751 = vcmp.eq.s32.totalorder %v207, %v4518
      %vm4752 = vcmp.eq.s32.totalorder %v207, %v4522
      %vm4753 = vcmp.eq.s32.totalorder %v207, %v4526
      %vm4754 = vcmp.eq.s32.totalorder %v207, %v4530
      %vm4755 = vcmp.eq.s32.totalorder %v208, %v4518
      %vm4756 = vcmp.eq.s32.totalorder %v208, %v4522
      %vm4757 = vcmp.eq.s32.totalorder %v208, %v4526
      %vm4758 = vcmp.eq.s32.totalorder %v208, %v4530
      %vm4759 = vcmp.eq.s32.totalorder %v209, %v4518
      %vm4760 = vcmp.eq.s32.totalorder %v209, %v4522
      %vm4761 = vcmp.eq.s32.totalorder %v209, %v4526
      %vm4762 = vcmp.eq.s32.totalorder %v209, %v4530
      %vm4763 = vcmp.eq.s32.totalorder %v210, %v4518
      %vm4764 = vcmp.eq.s32.totalorder %v210, %v4522
      %vm4765 = vcmp.eq.s32.totalorder %v210, %v4526
      %vm4766 = vcmp.eq.s32.totalorder %v210, %v4530
      %vm4767 = vcmp.eq.s32.totalorder %v211, %v4518
      %vm4768 = vcmp.eq.s32.totalorder %v211, %v4522
      %vm4769 = vcmp.eq.s32.totalorder %v211, %v4526
      %vm4770 = vcmp.eq.s32.totalorder %v211, %v4530
      %vm4771 = vcmp.eq.s32.totalorder %v212, %v4518
      %vm4772 = vcmp.eq.s32.totalorder %v212, %v4522
      %vm4773 = vcmp.eq.s32.totalorder %v212, %v4526
      %vm4774 = vcmp.eq.s32.totalorder %v212, %v4530
      %vm4775 = vcmp.eq.s32.totalorder %v213, %v4518
      %vm4776 = vcmp.eq.s32.totalorder %v213, %v4522
      %vm4777 = vcmp.eq.s32.totalorder %v213, %v4526
      %vm4778 = vcmp.eq.s32.totalorder %v213, %v4530
      %vm4779 = vcmp.eq.s32.totalorder %v214, %v4518
      %vm4780 = vcmp.eq.s32.totalorder %v214, %v4522
      %vm4781 = vcmp.eq.s32.totalorder %v214, %v4526
      %vm4782 = vcmp.eq.s32.totalorder %v214, %v4530
      %vm4783 = vcmp.eq.s32.totalorder %v215, %v4518
      %vm4784 = vcmp.eq.s32.totalorder %v215, %v4522
      %vm4785 = vcmp.eq.s32.totalorder %v215, %v4526
      %vm4786 = vcmp.eq.s32.totalorder %v215, %v4530
      %v4787 = vsel %vm4531, 1, 0
      %v4788 = vsel %vm4532, 1, 0
      %v4789 = vsel %vm4533, 1, 0
      %v4790 = vsel %vm4534, 1, 0
      %v4791 = vsel %vm4535, 1, 0
      %v4792 = vsel %vm4536, 1, 0
      %v4793 = vsel %vm4537, 1, 0
      %v4794 = vsel %vm4538, 1, 0
      %v4795 = vsel %vm4539, 1, 0
      %v4796 = vsel %vm4540, 1, 0
      %v4797 = vsel %vm4541, 1, 0
      %v4798 = vsel %vm4542, 1, 0
      %v4799 = vsel %vm4543, 1, 0
      %v4800 = vsel %vm4544, 1, 0
      %v4801 = vsel %vm4545, 1, 0
      %v4802 = vsel %vm4546, 1, 0
      %v4803 = vsel %vm4547, 1, 0
      %v4804 = vsel %vm4548, 1, 0
      %v4805 = vsel %vm4549, 1, 0
      %v4806 = vsel %vm4550, 1, 0
      %v4807 = vsel %vm4551, 1, 0
      %v4808 = vsel %vm4552, 1, 0
      %v4809 = vsel %vm4553, 1, 0
      %v4810 = vsel %vm4554, 1, 0
      %v4811 = vsel %vm4555, 1, 0
      %v4812 = vsel %vm4556, 1, 0
      %v4813 = vsel %vm4557, 1, 0
      %v4814 = vsel %vm4558, 1, 0
      %v4815 = vsel %vm4559, 1, 0
      %v4816 = vsel %vm4560, 1, 0
      %v4817 = vsel %vm4561, 1, 0
      %v4818 = vsel %vm4562, 1, 0
      %v4819 = vsel %vm4563, 1, 0
      %v4820 = vsel %vm4564, 1, 0
      %v4821 = vsel %vm4565, 1, 0
      %v4822 = vsel %vm4566, 1, 0
      %v4823 = vsel %vm4567, 1, 0
      %v4824 = vsel %vm4568, 1, 0
      %v4825 = vsel %vm4569, 1, 0
      %v4826 = vsel %vm4570, 1, 0
      %v4827 = vsel %vm4571, 1, 0
      %v4828 = vsel %vm4572, 1, 0
      %v4829 = vsel %vm4573, 1, 0
      %v4830 = vsel %vm4574, 1, 0
      %v4831 = vsel %vm4575, 1, 0
      %v4832 = vsel %vm4576, 1, 0
      %v4833 = vsel %vm4577, 1, 0
      %v4834 = vsel %vm4578, 1, 0
      %v4835 = vsel %vm4579, 1, 0
      %v4836 = vsel %vm4580, 1, 0
      %v4837 = vsel %vm4581, 1, 0
      %v4838 = vsel %vm4582, 1, 0
      %v4839 = vsel %vm4583, 1, 0
      %v4840 = vsel %vm4584, 1, 0
      %v4841 = vsel %vm4585, 1, 0
      %v4842 = vsel %vm4586, 1, 0
      %v4843 = vsel %vm4587, 1, 0
      %v4844 = vsel %vm4588, 1, 0
      %v4845 = vsel %vm4589, 1, 0
      %v4846 = vsel %vm4590, 1, 0
      %v4847 = vsel %vm4591, 1, 0
      %v4848 = vsel %vm4592, 1, 0
      %v4849 = vsel %vm4593, 1, 0
      %v4850 = vsel %vm4594, 1, 0
      %v4851 = vsel %vm4595, 1, 0
      %v4852 = vsel %vm4596, 1, 0
      %v4853 = vsel %vm4597, 1, 0
      %v4854 = vsel %vm4598, 1, 0
      %v4855 = vsel %vm4599, 1, 0
      %v4856 = vsel %vm4600, 1, 0
      %v4857 = vsel %vm4601, 1, 0
      %v4858 = vsel %vm4602, 1, 0
      %v4859 = vsel %vm4603, 1, 0
      %v4860 = vsel %vm4604, 1, 0
      %v4861 = vsel %vm4605, 1, 0
      %v4862 = vsel %vm4606, 1, 0
      %v4863 = vsel %vm4607, 1, 0
      %v4864 = vsel %vm4608, 1, 0
      %v4865 = vsel %vm4609, 1, 0
      %v4866 = vsel %vm4610, 1, 0
      %v4867 = vsel %vm4611, 1, 0
      %v4868 = vsel %vm4612, 1, 0
      %v4869 = vsel %vm4613, 1, 0
      %v4870 = vsel %vm4614, 1, 0
      %v4871 = vsel %vm4615, 1, 0
      %v4872 = vsel %vm4616, 1, 0
      %v4873 = vsel %vm4617, 1, 0
      %v4874 = vsel %vm4618, 1, 0
      %v4875 = vsel %vm4619, 1, 0
      %v4876 = vsel %vm4620, 1, 0
      %v4877 = vsel %vm4621, 1, 0
      %v4878 = vsel %vm4622, 1, 0
      %v4879 = vsel %vm4623, 1, 0
      %v4880 = vsel %vm4624, 1, 0
      %v4881 = vsel %vm4625, 1, 0
      %v4882 = vsel %vm4626, 1, 0
      %v4883 = vsel %vm4627, 1, 0
      %v4884 = vsel %vm4628, 1, 0
      %v4885 = vsel %vm4629, 1, 0
      %v4886 = vsel %vm4630, 1, 0
      %v4887 = vsel %vm4631, 1, 0
      %v4888 = vsel %vm4632, 1, 0
      %v4889 = vsel %vm4633, 1, 0
      %v4890 = vsel %vm4634, 1, 0
      %v4891 = vsel %vm4635, 1, 0
      %v4892 = vsel %vm4636, 1, 0
      %v4893 = vsel %vm4637, 1, 0
      %v4894 = vsel %vm4638, 1, 0
      %v4895 = vsel %vm4639, 1, 0
      %v4896 = vsel %vm4640, 1, 0
      %v4897 = vsel %vm4641, 1, 0
      %v4898 = vsel %vm4642, 1, 0
      %v4899 = vsel %vm4643, 1, 0
      %v4900 = vsel %vm4644, 1, 0
      %v4901 = vsel %vm4645, 1, 0
      %v4902 = vsel %vm4646, 1, 0
      %v4903 = vsel %vm4647, 1, 0
      %v4904 = vsel %vm4648, 1, 0
      %v4905 = vsel %vm4649, 1, 0
      %v4906 = vsel %vm4650, 1, 0
      %v4907 = vsel %vm4651, 1, 0
      %v4908 = vsel %vm4652, 1, 0
      %v4909 = vsel %vm4653, 1, 0
      %v4910 = vsel %vm4654, 1, 0
      %v4911 = vsel %vm4655, 1, 0
      %v4912 = vsel %vm4656, 1, 0
      %v4913 = vsel %vm4657, 1, 0
      %v4914 = vsel %vm4658, 1, 0
      %v4915 = vsel %vm4659, 1, 0
      %v4916 = vsel %vm4660, 1, 0
      %v4917 = vsel %vm4661, 1, 0
      %v4918 = vsel %vm4662, 1, 0
      %v4919 = vsel %vm4663, 1, 0
      %v4920 = vsel %vm4664, 1, 0
      %v4921 = vsel %vm4665, 1, 0
      %v4922 = vsel %vm4666, 1, 0
      %v4923 = vsel %vm4667, 1, 0
      %v4924 = vsel %vm4668, 1, 0
      %v4925 = vsel %vm4669, 1, 0
      %v4926 = vsel %vm4670, 1, 0
      %v4927 = vsel %vm4671, 1, 0
      %v4928 = vsel %vm4672, 1, 0
      %v4929 = vsel %vm4673, 1, 0
      %v4930 = vsel %vm4674, 1, 0
      %v4931 = vsel %vm4675, 1, 0
      %v4932 = vsel %vm4676, 1, 0
      %v4933 = vsel %vm4677, 1, 0
      %v4934 = vsel %vm4678, 1, 0
      %v4935 = vsel %vm4679, 1, 0
      %v4936 = vsel %vm4680, 1, 0
      %v4937 = vsel %vm4681, 1, 0
      %v4938 = vsel %vm4682, 1, 0
      %v4939 = vsel %vm4683, 1, 0
      %v4940 = vsel %vm4684, 1, 0
      %v4941 = vsel %vm4685, 1, 0
      %v4942 = vsel %vm4686, 1, 0
      %v4943 = vsel %vm4687, 1, 0
      %v4944 = vsel %vm4688, 1, 0
      %v4945 = vsel %vm4689, 1, 0
      %v4946 = vsel %vm4690, 1, 0
      %v4947 = vsel %vm4691, 1, 0
      %v4948 = vsel %vm4692, 1, 0
      %v4949 = vsel %vm4693, 1, 0
      %v4950 = vsel %vm4694, 1, 0
      %v4951 = vsel %vm4695, 1, 0
      %v4952 = vsel %vm4696, 1, 0
      %v4953 = vsel %vm4697, 1, 0
      %v4954 = vsel %vm4698, 1, 0
      %v4955 = vsel %vm4699, 1, 0
      %v4956 = vsel %vm4700, 1, 0
      %v4957 = vsel %vm4701, 1, 0
      %v4958 = vsel %vm4702, 1, 0
      %v4959 = vsel %vm4703, 1, 0
      %v4960 = vsel %vm4704, 1, 0
      %v4961 = vsel %vm4705, 1, 0
      %v4962 = vsel %vm4706, 1, 0
      %v4963 = vsel %vm4707, 1, 0
      %v4964 = vsel %vm4708, 1, 0
      %v4965 = vsel %vm4709, 1, 0
      %v4966 = vsel %vm4710, 1, 0
      %v4967 = vsel %vm4711, 1, 0
      %v4968 = vsel %vm4712, 1, 0
      %v4969 = vsel %vm4713, 1, 0
      %v4970 = vsel %vm4714, 1, 0
      %v4971 = vsel %vm4715, 1, 0
      %v4972 = vsel %vm4716, 1, 0
      %v4973 = vsel %vm4717, 1, 0
      %v4974 = vsel %vm4718, 1, 0
      %v4975 = vsel %vm4719, 1, 0
      %v4976 = vsel %vm4720, 1, 0
      %v4977 = vsel %vm4721, 1, 0
      %v4978 = vsel %vm4722, 1, 0
      %v4979 = vsel %vm4723, 1, 0
      %v4980 = vsel %vm4724, 1, 0
      %v4981 = vsel %vm4725, 1, 0
      %v4982 = vsel %vm4726, 1, 0
      %v4983 = vsel %vm4727, 1, 0
      %v4984 = vsel %vm4728, 1, 0
      %v4985 = vsel %vm4729, 1, 0
      %v4986 = vsel %vm4730, 1, 0
      %v4987 = vsel %vm4731, 1, 0
      %v4988 = vsel %vm4732, 1, 0
      %v4989 = vsel %vm4733, 1, 0
      %v4990 = vsel %vm4734, 1, 0
      %v4991 = vsel %vm4735, 1, 0
      %v4992 = vsel %vm4736, 1, 0
      %v4993 = vsel %vm4737, 1, 0
      %v4994 = vsel %vm4738, 1, 0
      %v4995 = vsel %vm4739, 1, 0
      %v4996 = vsel %vm4740, 1, 0
      %v4997 = vsel %vm4741, 1, 0
      %v4998 = vsel %vm4742, 1, 0
      %v4999 = vsel %vm4743, 1, 0
      %v5000 = vsel %vm4744, 1, 0
      %v5001 = vsel %vm4745, 1, 0
      %v5002 = vsel %vm4746, 1, 0
      %v5003 = vsel %vm4747, 1, 0
      %v5004 = vsel %vm4748, 1, 0
      %v5005 = vsel %vm4749, 1, 0
      %v5006 = vsel %vm4750, 1, 0
      %v5007 = vsel %vm4751, 1, 0
      %v5008 = vsel %vm4752, 1, 0
      %v5009 = vsel %vm4753, 1, 0
      %v5010 = vsel %vm4754, 1, 0
      %v5011 = vsel %vm4755, 1, 0
      %v5012 = vsel %vm4756, 1, 0
      %v5013 = vsel %vm4757, 1, 0
      %v5014 = vsel %vm4758, 1, 0
      %v5015 = vsel %vm4759, 1, 0
      %v5016 = vsel %vm4760, 1, 0
      %v5017 = vsel %vm4761, 1, 0
      %v5018 = vsel %vm4762, 1, 0
      %v5019 = vsel %vm4763, 1, 0
      %v5020 = vsel %vm4764, 1, 0
      %v5021 = vsel %vm4765, 1, 0
      %v5022 = vsel %vm4766, 1, 0
      %v5023 = vsel %vm4767, 1, 0
      %v5024 = vsel %vm4768, 1, 0
      %v5025 = vsel %vm4769, 1, 0
      %v5026 = vsel %vm4770, 1, 0
      %v5027 = vsel %vm4771, 1, 0
      %v5028 = vsel %vm4772, 1, 0
      %v5029 = vsel %vm4773, 1, 0
      %v5030 = vsel %vm4774, 1, 0
      %v5031 = vsel %vm4775, 1, 0
      %v5032 = vsel %vm4776, 1, 0
      %v5033 = vsel %vm4777, 1, 0
      %v5034 = vsel %vm4778, 1, 0
      %v5035 = vsel %vm4779, 1, 0
      %v5036 = vsel %vm4780, 1, 0
      %v5037 = vsel %vm4781, 1, 0
      %v5038 = vsel %vm4782, 1, 0
      %v5039 = vsel %vm4783, 1, 0
      %v5040 = vsel %vm4784, 1, 0
      %v5041 = vsel %vm4785, 1, 0
      %v5042 = vsel %vm4786, 1, 0
      %v5043 = vcvt.s32.f32 %v4787
      %v5044 = vcvt.s32.f32 %v4788
      %v5045 = vcvt.s32.f32 %v4789
      %v5046 = vcvt.s32.f32 %v4790
      %v5047 = vcvt.s32.f32 %v4791
      %v5048 = vcvt.s32.f32 %v4792
      %v5049 = vcvt.s32.f32 %v4793
      %v5050 = vcvt.s32.f32 %v4794
      %v5051 = vcvt.s32.f32 %v4795
      %v5052 = vcvt.s32.f32 %v4796
      %v5053 = vcvt.s32.f32 %v4797
      %v5054 = vcvt.s32.f32 %v4798
      %v5055 = vcvt.s32.f32 %v4799
      %v5056 = vcvt.s32.f32 %v4800
      %v5057 = vcvt.s32.f32 %v4801
      %v5058 = vcvt.s32.f32 %v4802
      %v5059 = vcvt.s32.f32 %v4803
      %v5060 = vcvt.s32.f32 %v4804
      %v5061 = vcvt.s32.f32 %v4805
      %v5062 = vcvt.s32.f32 %v4806
      %v5063 = vcvt.s32.f32 %v4807
      %v5064 = vcvt.s32.f32 %v4808
      %v5065 = vcvt.s32.f32 %v4809
      %v5066 = vcvt.s32.f32 %v4810
      %v5067 = vcvt.s32.f32 %v4811
      %v5068 = vcvt.s32.f32 %v4812
      %v5069 = vcvt.s32.f32 %v4813
      %v5070 = vcvt.s32.f32 %v4814
      %v5071 = vcvt.s32.f32 %v4815
      %v5072 = vcvt.s32.f32 %v4816
      %v5073 = vcvt.s32.f32 %v4817
      %v5074 = vcvt.s32.f32 %v4818
      %v5075 = vcvt.s32.f32 %v4819
      %v5076 = vcvt.s32.f32 %v4820
      %v5077 = vcvt.s32.f32 %v4821
      %v5078 = vcvt.s32.f32 %v4822
      %v5079 = vcvt.s32.f32 %v4823
      %v5080 = vcvt.s32.f32 %v4824
      %v5081 = vcvt.s32.f32 %v4825
      %v5082 = vcvt.s32.f32 %v4826
      %v5083 = vcvt.s32.f32 %v4827
      %v5084 = vcvt.s32.f32 %v4828
      %v5085 = vcvt.s32.f32 %v4829
      %v5086 = vcvt.s32.f32 %v4830
      %v5087 = vcvt.s32.f32 %v4831
      %v5088 = vcvt.s32.f32 %v4832
      %v5089 = vcvt.s32.f32 %v4833
      %v5090 = vcvt.s32.f32 %v4834
      %v5091 = vcvt.s32.f32 %v4835
      %v5092 = vcvt.s32.f32 %v4836
      %v5093 = vcvt.s32.f32 %v4837
      %v5094 = vcvt.s32.f32 %v4838
      %v5095 = vcvt.s32.f32 %v4839
      %v5096 = vcvt.s32.f32 %v4840
      %v5097 = vcvt.s32.f32 %v4841
      %v5098 = vcvt.s32.f32 %v4842
      %v5099 = vcvt.s32.f32 %v4843
      %v5100 = vcvt.s32.f32 %v4844
      %v5101 = vcvt.s32.f32 %v4845
      %v5102 = vcvt.s32.f32 %v4846
      %v5103 = vcvt.s32.f32 %v4847
      %v5104 = vcvt.s32.f32 %v4848
      %v5105 = vcvt.s32.f32 %v4849
      %v5106 = vcvt.s32.f32 %v4850
      %v5107 = vcvt.s32.f32 %v4851
      %v5108 = vcvt.s32.f32 %v4852
      %v5109 = vcvt.s32.f32 %v4853
      %v5110 = vcvt.s32.f32 %v4854
      %v5111 = vcvt.s32.f32 %v4855
      %v5112 = vcvt.s32.f32 %v4856
      %v5113 = vcvt.s32.f32 %v4857
      %v5114 = vcvt.s32.f32 %v4858
      %v5115 = vcvt.s32.f32 %v4859
      %v5116 = vcvt.s32.f32 %v4860
      %v5117 = vcvt.s32.f32 %v4861
      %v5118 = vcvt.s32.f32 %v4862
      %v5119 = vcvt.s32.f32 %v4863
      %v5120 = vcvt.s32.f32 %v4864
      %v5121 = vcvt.s32.f32 %v4865
      %v5122 = vcvt.s32.f32 %v4866
      %v5123 = vcvt.s32.f32 %v4867
      %v5124 = vcvt.s32.f32 %v4868
      %v5125 = vcvt.s32.f32 %v4869
      %v5126 = vcvt.s32.f32 %v4870
      %v5127 = vcvt.s32.f32 %v4871
      %v5128 = vcvt.s32.f32 %v4872
      %v5129 = vcvt.s32.f32 %v4873
      %v5130 = vcvt.s32.f32 %v4874
      %v5131 = vcvt.s32.f32 %v4875
      %v5132 = vcvt.s32.f32 %v4876
      %v5133 = vcvt.s32.f32 %v4877
      %v5134 = vcvt.s32.f32 %v4878
      %v5135 = vcvt.s32.f32 %v4879
      %v5136 = vcvt.s32.f32 %v4880
      %v5137 = vcvt.s32.f32 %v4881
      %v5138 = vcvt.s32.f32 %v4882
      %v5139 = vcvt.s32.f32 %v4883
      %v5140 = vcvt.s32.f32 %v4884
      %v5141 = vcvt.s32.f32 %v4885
      %v5142 = vcvt.s32.f32 %v4886
      %v5143 = vcvt.s32.f32 %v4887
      %v5144 = vcvt.s32.f32 %v4888
      %v5145 = vcvt.s32.f32 %v4889
      %v5146 = vcvt.s32.f32 %v4890
      %v5147 = vcvt.s32.f32 %v4891
      %v5148 = vcvt.s32.f32 %v4892
      %v5149 = vcvt.s32.f32 %v4893
      %v5150 = vcvt.s32.f32 %v4894
      %v5151 = vcvt.s32.f32 %v4895
      %v5152 = vcvt.s32.f32 %v4896
      %v5153 = vcvt.s32.f32 %v4897
      %v5154 = vcvt.s32.f32 %v4898
      %v5155 = vcvt.s32.f32 %v4899
      %v5156 = vcvt.s32.f32 %v4900
      %v5157 = vcvt.s32.f32 %v4901
      %v5158 = vcvt.s32.f32 %v4902
      %v5159 = vcvt.s32.f32 %v4903
      %v5160 = vcvt.s32.f32 %v4904
      %v5161 = vcvt.s32.f32 %v4905
      %v5162 = vcvt.s32.f32 %v4906
      %v5163 = vcvt.s32.f32 %v4907
      %v5164 = vcvt.s32.f32 %v4908
      %v5165 = vcvt.s32.f32 %v4909
      %v5166 = vcvt.s32.f32 %v4910
      %v5167 = vcvt.s32.f32 %v4911
      %v5168 = vcvt.s32.f32 %v4912
      %v5169 = vcvt.s32.f32 %v4913
      %v5170 = vcvt.s32.f32 %v4914
      %v5171 = vcvt.s32.f32 %v4915
      %v5172 = vcvt.s32.f32 %v4916
      %v5173 = vcvt.s32.f32 %v4917
      %v5174 = vcvt.s32.f32 %v4918
      %v5175 = vcvt.s32.f32 %v4919
      %v5176 = vcvt.s32.f32 %v4920
      %v5177 = vcvt.s32.f32 %v4921
      %v5178 = vcvt.s32.f32 %v4922
      %v5179 = vcvt.s32.f32 %v4923
      %v5180 = vcvt.s32.f32 %v4924
      %v5181 = vcvt.s32.f32 %v4925
      %v5182 = vcvt.s32.f32 %v4926
      %v5183 = vcvt.s32.f32 %v4927
      %v5184 = vcvt.s32.f32 %v4928
      %v5185 = vcvt.s32.f32 %v4929
      %v5186 = vcvt.s32.f32 %v4930
      %v5187 = vcvt.s32.f32 %v4931
      %v5188 = vcvt.s32.f32 %v4932
      %v5189 = vcvt.s32.f32 %v4933
      %v5190 = vcvt.s32.f32 %v4934
      %v5191 = vcvt.s32.f32 %v4935
      %v5192 = vcvt.s32.f32 %v4936
      %v5193 = vcvt.s32.f32 %v4937
      %v5194 = vcvt.s32.f32 %v4938
      %v5195 = vcvt.s32.f32 %v4939
      %v5196 = vcvt.s32.f32 %v4940
      %v5197 = vcvt.s32.f32 %v4941
      %v5198 = vcvt.s32.f32 %v4942
      %v5199 = vcvt.s32.f32 %v4943
      %v5200 = vcvt.s32.f32 %v4944
      %v5201 = vcvt.s32.f32 %v4945
      %v5202 = vcvt.s32.f32 %v4946
      %v5203 = vcvt.s32.f32 %v4947
      %v5204 = vcvt.s32.f32 %v4948
      %v5205 = vcvt.s32.f32 %v4949
      %v5206 = vcvt.s32.f32 %v4950
      %v5207 = vcvt.s32.f32 %v4951
      %v5208 = vcvt.s32.f32 %v4952
      %v5209 = vcvt.s32.f32 %v4953
      %v5210 = vcvt.s32.f32 %v4954
      %v5211 = vcvt.s32.f32 %v4955
      %v5212 = vcvt.s32.f32 %v4956
      %v5213 = vcvt.s32.f32 %v4957
      %v5214 = vcvt.s32.f32 %v4958
      %v5215 = vcvt.s32.f32 %v4959
      %v5216 = vcvt.s32.f32 %v4960
      %v5217 = vcvt.s32.f32 %v4961
      %v5218 = vcvt.s32.f32 %v4962
      %v5219 = vcvt.s32.f32 %v4963
      %v5220 = vcvt.s32.f32 %v4964
      %v5221 = vcvt.s32.f32 %v4965
      %v5222 = vcvt.s32.f32 %v4966
      %v5223 = vcvt.s32.f32 %v4967
      %v5224 = vcvt.s32.f32 %v4968
      %v5225 = vcvt.s32.f32 %v4969
      %v5226 = vcvt.s32.f32 %v4970
      %v5227 = vcvt.s32.f32 %v4971
      %v5228 = vcvt.s32.f32 %v4972
      %v5229 = vcvt.s32.f32 %v4973
      %v5230 = vcvt.s32.f32 %v4974
      %v5231 = vcvt.s32.f32 %v4975
      %v5232 = vcvt.s32.f32 %v4976
      %v5233 = vcvt.s32.f32 %v4977
      %v5234 = vcvt.s32.f32 %v4978
      %v5235 = vcvt.s32.f32 %v4979
      %v5236 = vcvt.s32.f32 %v4980
      %v5237 = vcvt.s32.f32 %v4981
      %v5238 = vcvt.s32.f32 %v4982
      %v5239 = vcvt.s32.f32 %v4983
      %v5240 = vcvt.s32.f32 %v4984
      %v5241 = vcvt.s32.f32 %v4985
      %v5242 = vcvt.s32.f32 %v4986
      %v5243 = vcvt.s32.f32 %v4987
      %v5244 = vcvt.s32.f32 %v4988
      %v5245 = vcvt.s32.f32 %v4989
      %v5246 = vcvt.s32.f32 %v4990
      %v5247 = vcvt.s32.f32 %v4991
      %v5248 = vcvt.s32.f32 %v4992
      %v5249 = vcvt.s32.f32 %v4993
      %v5250 = vcvt.s32.f32 %v4994
      %v5251 = vcvt.s32.f32 %v4995
      %v5252 = vcvt.s32.f32 %v4996
      %v5253 = vcvt.s32.f32 %v4997
      %v5254 = vcvt.s32.f32 %v4998
      %v5255 = vcvt.s32.f32 %v4999
      %v5256 = vcvt.s32.f32 %v5000
      %v5257 = vcvt.s32.f32 %v5001
      %v5258 = vcvt.s32.f32 %v5002
      %v5259 = vcvt.s32.f32 %v5003
      %v5260 = vcvt.s32.f32 %v5004
      %v5261 = vcvt.s32.f32 %v5005
      %v5262 = vcvt.s32.f32 %v5006
      %v5263 = vcvt.s32.f32 %v5007
      %v5264 = vcvt.s32.f32 %v5008
      %v5265 = vcvt.s32.f32 %v5009
      %v5266 = vcvt.s32.f32 %v5010
      %v5267 = vcvt.s32.f32 %v5011
      %v5268 = vcvt.s32.f32 %v5012
      %v5269 = vcvt.s32.f32 %v5013
      %v5270 = vcvt.s32.f32 %v5014
      %v5271 = vcvt.s32.f32 %v5015
      %v5272 = vcvt.s32.f32 %v5016
      %v5273 = vcvt.s32.f32 %v5017
      %v5274 = vcvt.s32.f32 %v5018
      %v5275 = vcvt.s32.f32 %v5019
      %v5276 = vcvt.s32.f32 %v5020
      %v5277 = vcvt.s32.f32 %v5021
      %v5278 = vcvt.s32.f32 %v5022
      %v5279 = vcvt.s32.f32 %v5023
      %v5280 = vcvt.s32.f32 %v5024
      %v5281 = vcvt.s32.f32 %v5025
      %v5282 = vcvt.s32.f32 %v5026
      %v5283 = vcvt.s32.f32 %v5027
      %v5284 = vcvt.s32.f32 %v5028
      %v5285 = vcvt.s32.f32 %v5029
      %v5286 = vcvt.s32.f32 %v5030
      %v5287 = vcvt.s32.f32 %v5031
      %v5288 = vcvt.s32.f32 %v5032
      %v5289 = vcvt.s32.f32 %v5033
      %v5290 = vcvt.s32.f32 %v5034
      %v5291 = vcvt.s32.f32 %v5035
      %v5292 = vcvt.s32.f32 %v5036
      %v5293 = vcvt.s32.f32 %v5037
      %v5294 = vcvt.s32.f32 %v5038
      %v5295 = vcvt.s32.f32 %v5039
      %v5296 = vcvt.s32.f32 %v5040
      %v5297 = vcvt.s32.f32 %v5041
      %v5298 = vcvt.s32.f32 %v5042
      %s5299 = scalar_lea.vmem %s1, 128
      %v5300 = vld [vmem:[%s5299] sm:$0xff]
      %v5301 = vld [vmem:[%s5299 + $0x8] sm:$0xff]
      %v5302 = vld [vmem:[%s5299 + $0x10] sm:$0xff]
      %v5303 = vld [vmem:[%s5299 + $0x18] sm:$0xff]
      %5304 = vmatprep.subr.mxu0 %v5104
      %5305 = vmatpush1.msra.mxu0 %v5103
      %5306 = vmatprep.subr.mxu0 %v5100
      %5307 = vmatpush1.msra.mxu0 %v5099
      %5308 = vmatprep.subr.mxu0 %v5096
      %5309 = vmatpush1.msra.mxu0 %v5095
      %5310 = vmatprep.subr.mxu0 %v5092
      %5311 = vmatpush1.msra.mxu0 %v5091
      %5312 = vmatprep.subr.mxu0 %v5088
      %5313 = vmatpush1.msra.mxu0 %v5087
      %5314 = vmatprep.subr.mxu0 %v5084
      %5315 = vmatpush1.msra.mxu0 %v5083
      %5316 = vmatprep.subr.mxu0 %v5080
      %5317 = vmatpush1.msra.mxu0 %v5079
      %5318 = vmatprep.subr.mxu0 %v5076
      %5319 = vmatpush1.msra.mxu0 %v5075
      %5320 = vmatprep.subr.mxu0 %v5072
      %5321 = vmatpush1.msra.mxu0 %v5071
      %5322 = vmatprep.subr.mxu0 %v5068
      %5323 = vmatpush1.msra.mxu0 %v5067
      %5324 = vmatprep.subr.mxu0 %v5064
      %5325 = vmatpush1.msra.mxu0 %v5063
      %5326 = vmatprep.subr.mxu0 %v5060
      %5327 = vmatpush1.msra.mxu0 %v5059
      %5328 = vmatprep.subr.mxu0 %v5056
      %5329 = vmatpush1.msra.mxu0 %v5055
      %5330 = vmatprep.subr.mxu0 %v5052
      %5331 = vmatpush1.msra.mxu0 %v5051
      %5332 = vmatprep.subr.mxu0 %v5048
      %5333 = vmatpush1.msra.mxu0 %v5047
      %5334 = vmatprep.subr.mxu0 %v5044
      %5335 = vmatpush1.msra.mxu0 %v5043
      %5336 = vmatprep.subr.mxu0 %v5168
      %5337 = vmatpush2.msra.mxu0 %v5167
      %5338 = vmatprep.subr.mxu0 %v5164
      %5339 = vmatpush2.msra.mxu0 %v5163
      %5340 = vmatprep.subr.mxu0 %v5160
      %5341 = vmatpush2.msra.mxu0 %v5159
      %5342 = vmatprep.subr.mxu0 %v5156
      %5343 = vmatpush2.msra.mxu0 %v5155
      %5344 = vmatprep.subr.mxu0 %v5152
      %5345 = vmatpush2.msra.mxu0 %v5151
      %5346 = vmatprep.subr.mxu0 %v5148
      %5347 = vmatpush2.msra.mxu0 %v5147
      %5348 = vmatprep.subr.mxu0 %v5144
      %5349 = vmatpush2.msra.mxu0 %v5143
      %5350 = vmatprep.subr.mxu0 %v5140
      %5351 = vmatpush2.msra.mxu0 %v5139
      %5352 = vmatprep.subr.mxu0 %v5136
      %5353 = vmatpush2.msra.mxu0 %v5135
      %5354 = vmatprep.subr.mxu0 %v5132
      %5355 = vmatpush2.msra.mxu0 %v5131
      %5356 = vmatprep.subr.mxu0 %v5128
      %5357 = vmatpush2.msra.mxu0 %v5127
      %5358 = vmatprep.subr.mxu0 %v5124
      %5359 = vmatpush2.msra.mxu0 %v5123
      %5360 = vmatprep.subr.mxu0 %v5120
      %5361 = vmatpush2.msra.mxu0 %v5119
      %5362 = vmatprep.subr.mxu0 %v5116
      %5363 = vmatpush2.msra.mxu0 %v5115
      %5364 = vmatprep.subr.mxu0 %v5112
      %5365 = vmatpush2.msra.mxu0 %v5111
      %5366 = vmatprep.subr.mxu0 %v5108
      %5367 = vmatpush2.msra.mxu0 %v5107
      %5368 = vmatprep.mubr.f32.mxu0 %v5301
      %5369 = vmatmul.mubr.f32.gmra.mxu0 %v5300
      %v5370 = vpop.f32.mrf.mxu0
      %v5371 = vadd.f32 0.0, %v5370
      %v5372 = vpop.f32.mrf.mxu0
      %v5373 = vadd.f32 0.0, %v5372
      %5374 = vdwg.mxu0
      %5375 = vmatprep.subr.mxu0 %v5232
      %5376 = vmatpush1.msra.mxu0 %v5231
      %5377 = vmatprep.subr.mxu0 %v5228
      %5378 = vmatpush1.msra.mxu0 %v5227
      %5379 = vmatprep.subr.mxu0 %v5224
      %5380 = vmatpush1.msra.mxu0 %v5223
      %5381 = vmatprep.subr.mxu0 %v5220
      %5382 = vmatpush1.msra.mxu0 %v5219
      %5383 = vmatprep.subr.mxu0 %v5216
      %5384 = vmatpush1.msra.mxu0 %v5215
      %5385 = vmatprep.subr.mxu0 %v5212
      %5386 = vmatpush1.msra.mxu0 %v5211
      %5387 = vmatprep.subr.mxu0 %v5208
      %5388 = vmatpush1.msra.mxu0 %v5207
      %5389 = vmatprep.subr.mxu0 %v5204
      %5390 = vmatpush1.msra.mxu0 %v5203
      %5391 = vmatprep.subr.mxu0 %v5200
      %5392 = vmatpush1.msra.mxu0 %v5199
      %5393 = vmatprep.subr.mxu0 %v5196
      %5394 = vmatpush1.msra.mxu0 %v5195
      %5395 = vmatprep.subr.mxu0 %v5192
      %5396 = vmatpush1.msra.mxu0 %v5191
      %5397 = vmatprep.subr.mxu0 %v5188
      %5398 = vmatpush1.msra.mxu0 %v5187
      %5399 = vmatprep.subr.mxu0 %v5184
      %5400 = vmatpush1.msra.mxu0 %v5183
      %5401 = vmatprep.subr.mxu0 %v5180
      %5402 = vmatpush1.msra.mxu0 %v5179
      %5403 = vmatprep.subr.mxu0 %v5176
      %5404 = vmatpush1.msra.mxu0 %v5175
      %5405 = vmatprep.subr.mxu0 %v5172
      %5406 = vmatpush1.msra.mxu0 %v5171
      %5407 = vmatprep.subr.mxu0 %v5296
      %5408 = vmatpush2.msra.mxu0 %v5295
      %5409 = vmatprep.subr.mxu0 %v5292
      %5410 = vmatpush2.msra.mxu0 %v5291
      %5411 = vmatprep.subr.mxu0 %v5288
      %5412 = vmatpush2.msra.mxu0 %v5287
      %5413 = vmatprep.subr.mxu0 %v5284
      %5414 = vmatpush2.msra.mxu0 %v5283
      %5415 = vmatprep.subr.mxu0 %v5280
      %5416 = vmatpush2.msra.mxu0 %v5279
      %5417 = vmatprep.subr.mxu0 %v5276
      %5418 = vmatpush2.msra.mxu0 %v5275
      %5419 = vmatprep.subr.mxu0 %v5272
      %5420 = vmatpush2.msra.mxu0 %v5271
      %5421 = vmatprep.subr.mxu0 %v5268
      %5422 = vmatpush2.msra.mxu0 %v5267
      %5423 = vmatprep.subr.mxu0 %v5264
      %5424 = vmatpush2.msra.mxu0 %v5263
      %5425 = vmatprep.subr.mxu0 %v5260
      %5426 = vmatpush2.msra.mxu0 %v5259
      %5427 = vmatprep.subr.mxu0 %v5256
      %5428 = vmatpush2.msra.mxu0 %v5255
      %5429 = vmatprep.subr.mxu0 %v5252
      %5430 = vmatpush2.msra.mxu0 %v5251
      %5431 = vmatprep.subr.mxu0 %v5248
      %5432 = vmatpush2.msra.mxu0 %v5247
      %5433 = vmatprep.subr.mxu0 %v5244
      %5434 = vmatpush2.msra.mxu0 %v5243
      %5435 = vmatprep.subr.mxu0 %v5240
      %5436 = vmatpush2.msra.mxu0 %v5239
      %5437 = vmatprep.subr.mxu0 %v5236
      %5438 = vmatpush2.msra.mxu0 %v5235
      %5439 = vmatprep.mubr.f32.mxu0 %v5303
      %5440 = vmatmul.mubr.f32.gmra.mxu0 %v5302
      %v5441 = vpop.f32.mrf.mxu0
      %v5442 = vadd.f32 %v5371, %v5441
      %v5443 = vpop.f32.mrf.mxu0
      %v5444 = vadd.f32 %v5373, %v5443
      %5445 = vdwg.mxu0
      %5446 = vmatprep.subr.mxu0 %v5106
      %5447 = vmatpush1.msra.mxu0 %v5105
      %5448 = vmatprep.subr.mxu0 %v5102
      %5449 = vmatpush1.msra.mxu0 %v5101
      %5450 = vmatprep.subr.mxu0 %v5098
      %5451 = vmatpush1.msra.mxu0 %v5097
      %5452 = vmatprep.subr.mxu0 %v5094
      %5453 = vmatpush1.msra.mxu0 %v5093
      %5454 = vmatprep.subr.mxu0 %v5090
      %5455 = vmatpush1.msra.mxu0 %v5089
      %5456 = vmatprep.subr.mxu0 %v5086
      %5457 = vmatpush1.msra.mxu0 %v5085
      %5458 = vmatprep.subr.mxu0 %v5082
      %5459 = vmatpush1.msra.mxu0 %v5081
      %5460 = vmatprep.subr.mxu0 %v5078
      %5461 = vmatpush1.msra.mxu0 %v5077
      %5462 = vmatprep.subr.mxu0 %v5074
      %5463 = vmatpush1.msra.mxu0 %v5073
      %5464 = vmatprep.subr.mxu0 %v5070
      %5465 = vmatpush1.msra.mxu0 %v5069
      %5466 = vmatprep.subr.mxu0 %v5066
      %5467 = vmatpush1.msra.mxu0 %v5065
      %5468 = vmatprep.subr.mxu0 %v5062
      %5469 = vmatpush1.msra.mxu0 %v5061
      %5470 = vmatprep.subr.mxu0 %v5058
      %5471 = vmatpush1.msra.mxu0 %v5057
      %5472 = vmatprep.subr.mxu0 %v5054
      %5473 = vmatpush1.msra.mxu0 %v5053
      %5474 = vmatprep.subr.mxu0 %v5050
      %5475 = vmatpush1.msra.mxu0 %v5049
      %5476 = vmatprep.subr.mxu0 %v5046
      %5477 = vmatpush1.msra.mxu0 %v5045
      %5478 = vmatprep.subr.mxu0 %v5170
      %5479 = vmatpush2.msra.mxu0 %v5169
      %5480 = vmatprep.subr.mxu0 %v5166
      %5481 = vmatpush2.msra.mxu0 %v5165
      %5482 = vmatprep.subr.mxu0 %v5162
      %5483 = vmatpush2.msra.mxu0 %v5161
      %5484 = vmatprep.subr.mxu0 %v5158
      %5485 = vmatpush2.msra.mxu0 %v5157
      %5486 = vmatprep.subr.mxu0 %v5154
      %5487 = vmatpush2.msra.mxu0 %v5153
      %5488 = vmatprep.subr.mxu0 %v5150
      %5489 = vmatpush2.msra.mxu0 %v5149
      %5490 = vmatprep.subr.mxu0 %v5146
      %5491 = vmatpush2.msra.mxu0 %v5145
      %5492 = vmatprep.subr.mxu0 %v5142
      %5493 = vmatpush2.msra.mxu0 %v5141
      %5494 = vmatprep.subr.mxu0 %v5138
      %5495 = vmatpush2.msra.mxu0 %v5137
      %5496 = vmatprep.subr.mxu0 %v5134
      %5497 = vmatpush2.msra.mxu0 %v5133
      %5498 = vmatprep.subr.mxu0 %v5130
      %5499 = vmatpush2.msra.mxu0 %v5129
      %5500 = vmatprep.subr.mxu0 %v5126
      %5501 = vmatpush2.msra.mxu0 %v5125
      %5502 = vmatprep.subr.mxu0 %v5122
      %5503 = vmatpush2.msra.mxu0 %v5121
      %5504 = vmatprep.subr.mxu0 %v5118
      %5505 = vmatpush2.msra.mxu0 %v5117
      %5506 = vmatprep.subr.mxu0 %v5114
      %5507 = vmatpush2.msra.mxu0 %v5113
      %5508 = vmatprep.subr.mxu0 %v5110
      %5509 = vmatpush2.msra.mxu0 %v5109
      %5510 = vmatprep.mubr.f32.mxu0 %v5301
      %5511 = vmatmul.mubr.f32.gmra.mxu0 %v5300
      %v5512 = vpop.f32.mrf.mxu0
      %v5513 = vadd.f32 0.0, %v5512
      %v5514 = vpop.f32.mrf.mxu0
      %v5515 = vadd.f32 0.0, %v5514
      %5516 = vdwg.mxu0
      %5517 = vmatprep.subr.mxu0 %v5234
      %5518 = vmatpush1.msra.mxu0 %v5233
      %5519 = vmatprep.subr.mxu0 %v5230
      %5520 = vmatpush1.msra.mxu0 %v5229
      %5521 = vmatprep.subr.mxu0 %v5226
      %5522 = vmatpush1.msra.mxu0 %v5225
      %5523 = vmatprep.subr.mxu0 %v5222
      %5524 = vmatpush1.msra.mxu0 %v5221
      %5525 = vmatprep.subr.mxu0 %v5218
      %5526 = vmatpush1.msra.mxu0 %v5217
      %5527 = vmatprep.subr.mxu0 %v5214
      %5528 = vmatpush1.msra.mxu0 %v5213
      %5529 = vmatprep.subr.mxu0 %v5210
      %5530 = vmatpush1.msra.mxu0 %v5209
      %5531 = vmatprep.subr.mxu0 %v5206
      %5532 = vmatpush1.msra.mxu0 %v5205
      %5533 = vmatprep.subr.mxu0 %v5202
      %5534 = vmatpush1.msra.mxu0 %v5201
      %5535 = vmatprep.subr.mxu0 %v5198
      %5536 = vmatpush1.msra.mxu0 %v5197
      %5537 = vmatprep.subr.mxu0 %v5194
      %5538 = vmatpush1.msra.mxu0 %v5193
      %5539 = vmatprep.subr.mxu0 %v5190
      %5540 = vmatpush1.msra.mxu0 %v5189
      %5541 = vmatprep.subr.mxu0 %v5186
      %5542 = vmatpush1.msra.mxu0 %v5185
      %5543 = vmatprep.subr.mxu0 %v5182
      %5544 = vmatpush1.msra.mxu0 %v5181
      %5545 = vmatprep.subr.mxu0 %v5178
      %5546 = vmatpush1.msra.mxu0 %v5177
      %5547 = vmatprep.subr.mxu0 %v5174
      %5548 = vmatpush1.msra.mxu0 %v5173
      %5549 = vmatprep.subr.mxu0 %v5298
      %5550 = vmatpush2.msra.mxu0 %v5297
      %5551 = vmatprep.subr.mxu0 %v5294
      %5552 = vmatpush2.msra.mxu0 %v5293
      %5553 = vmatprep.subr.mxu0 %v5290
      %5554 = vmatpush2.msra.mxu0 %v5289
      %5555 = vmatprep.subr.mxu0 %v5286
      %5556 = vmatpush2.msra.mxu0 %v5285
      %5557 = vmatprep.subr.mxu0 %v5282
      %5558 = vmatpush2.msra.mxu0 %v5281
      %5559 = vmatprep.subr.mxu0 %v5278
      %5560 = vmatpush2.msra.mxu0 %v5277
      %5561 = vmatprep.subr.mxu0 %v5274
      %5562 = vmatpush2.msra.mxu0 %v5273
      %5563 = vmatprep.subr.mxu0 %v5270
      %5564 = vmatpush2.msra.mxu0 %v5269
      %5565 = vmatprep.subr.mxu0 %v5266
      %5566 = vmatpush2.msra.mxu0 %v5265
      %5567 = vmatprep.subr.mxu0 %v5262
      %5568 = vmatpush2.msra.mxu0 %v5261
      %5569 = vmatprep.subr.mxu0 %v5258
      %5570 = vmatpush2.msra.mxu0 %v5257
      %5571 = vmatprep.subr.mxu0 %v5254
      %5572 = vmatpush2.msra.mxu0 %v5253
      %5573 = vmatprep.subr.mxu0 %v5250
      %5574 = vmatpush2.msra.mxu0 %v5249
      %5575 = vmatprep.subr.mxu0 %v5246
      %5576 = vmatpush2.msra.mxu0 %v5245
      %5577 = vmatprep.subr.mxu0 %v5242
      %5578 = vmatpush2.msra.mxu0 %v5241
      %5579 = vmatprep.subr.mxu0 %v5238
      %5580 = vmatpush2.msra.mxu0 %v5237
      %5581 = vmatprep.mubr.f32.mxu0 %v5303
      %5582 = vmatmul.mubr.f32.gmra.mxu0 %v5302
      %v5583 = vpop.f32.mrf.mxu0
      %v5584 = vadd.f32 %v5513, %v5583
      %v5585 = vpop.f32.mrf.mxu0
      %v5586 = vadd.f32 %v5515, %v5585
      %5587 = vdwg.mxu0
      %v5588 = vadd.f32 %v4511, %v5442
      %v5589 = vadd.f32 %v4512, %v5444
      %v5590 = vadd.f32 %v4513, %v5584
      %v5591 = vadd.f32 %v4514, %v5586
      %v5592 = vlaneseq
      %v5593 = vshrl.u32 %v5592, 7
      %v5594 = vsub.s32 5, %v5593
      %v5595 = vrot.slane %v147, %v5594
      %v5596 = vlaneseq
      %v5597 = vshrl.u32 %v5596, 7
      %v5598 = vsub.s32 5, %v5597
      %v5599 = vrot.slane %v148, %v5598
      %v5600 = vlaneseq
      %v5601 = vshrl.u32 %v5600, 7
      %v5602 = vsub.s32 5, %v5601
      %v5603 = vrot.slane %v149, %v5602
      %v5604 = vlaneseq
      %v5605 = vshrl.u32 %v5604, 7
      %v5606 = vsub.s32 5, %v5605
      %v5607 = vrot.slane %v150, %v5606
      %vm5608 = vcmp.eq.s32.totalorder %v152, %v5595
      %vm5609 = vcmp.eq.s32.totalorder %v152, %v5599
      %vm5610 = vcmp.eq.s32.totalorder %v152, %v5603
      %vm5611 = vcmp.eq.s32.totalorder %v152, %v5607
      %vm5612 = vcmp.eq.s32.totalorder %v153, %v5595
      %vm5613 = vcmp.eq.s32.totalorder %v153, %v5599
      %vm5614 = vcmp.eq.s32.totalorder %v153, %v5603
      %vm5615 = vcmp.eq.s32.totalorder %v153, %v5607
      %vm5616 = vcmp.eq.s32.totalorder %v154, %v5595
      %vm5617 = vcmp.eq.s32.totalorder %v154, %v5599
      %vm5618 = vcmp.eq.s32.totalorder %v154, %v5603
      %vm5619 = vcmp.eq.s32.totalorder %v154, %v5607
      %vm5620 = vcmp.eq.s32.totalorder %v155, %v5595
      %vm5621 = vcmp.eq.s32.totalorder %v155, %v5599
      %vm5622 = vcmp.eq.s32.totalorder %v155, %v5603
      %vm5623 = vcmp.eq.s32.totalorder %v155, %v5607
      %vm5624 = vcmp.eq.s32.totalorder %v156, %v5595
      %vm5625 = vcmp.eq.s32.totalorder %v156, %v5599
      %vm5626 = vcmp.eq.s32.totalorder %v156, %v5603
      %vm5627 = vcmp.eq.s32.totalorder %v156, %v5607
      %vm5628 = vcmp.eq.s32.totalorder %v157, %v5595
      %vm5629 = vcmp.eq.s32.totalorder %v157, %v5599
      %vm5630 = vcmp.eq.s32.totalorder %v157, %v5603
      %vm5631 = vcmp.eq.s32.totalorder %v157, %v5607
      %vm5632 = vcmp.eq.s32.totalorder %v158, %v5595
      %vm5633 = vcmp.eq.s32.totalorder %v158, %v5599
      %vm5634 = vcmp.eq.s32.totalorder %v158, %v5603
      %vm5635 = vcmp.eq.s32.totalorder %v158, %v5607
      %vm5636 = vcmp.eq.s32.totalorder %v159, %v5595
      %vm5637 = vcmp.eq.s32.totalorder %v159, %v5599
      %vm5638 = vcmp.eq.s32.totalorder %v159, %v5603
      %vm5639 = vcmp.eq.s32.totalorder %v159, %v5607
      %vm5640 = vcmp.eq.s32.totalorder %v160, %v5595
      %vm5641 = vcmp.eq.s32.totalorder %v160, %v5599
      %vm5642 = vcmp.eq.s32.totalorder %v160, %v5603
      %vm5643 = vcmp.eq.s32.totalorder %v160, %v5607
      %vm5644 = vcmp.eq.s32.totalorder %v161, %v5595
      %vm5645 = vcmp.eq.s32.totalorder %v161, %v5599
      %vm5646 = vcmp.eq.s32.totalorder %v161, %v5603
      %vm5647 = vcmp.eq.s32.totalorder %v161, %v5607
      %vm5648 = vcmp.eq.s32.totalorder %v162, %v5595
      %vm5649 = vcmp.eq.s32.totalorder %v162, %v5599
      %vm5650 = vcmp.eq.s32.totalorder %v162, %v5603
      %vm5651 = vcmp.eq.s32.totalorder %v162, %v5607
      %vm5652 = vcmp.eq.s32.totalorder %v163, %v5595
      %vm5653 = vcmp.eq.s32.totalorder %v163, %v5599
      %vm5654 = vcmp.eq.s32.totalorder %v163, %v5603
      %vm5655 = vcmp.eq.s32.totalorder %v163, %v5607
      %vm5656 = vcmp.eq.s32.totalorder %v164, %v5595
      %vm5657 = vcmp.eq.s32.totalorder %v164, %v5599
      %vm5658 = vcmp.eq.s32.totalorder %v164, %v5603
      %vm5659 = vcmp.eq.s32.totalorder %v164, %v5607
      %vm5660 = vcmp.eq.s32.totalorder %v165, %v5595
      %vm5661 = vcmp.eq.s32.totalorder %v165, %v5599
      %vm5662 = vcmp.eq.s32.totalorder %v165, %v5603
      %vm5663 = vcmp.eq.s32.totalorder %v165, %v5607
      %vm5664 = vcmp.eq.s32.totalorder %v166, %v5595
      %vm5665 = vcmp.eq.s32.totalorder %v166, %v5599
      %vm5666 = vcmp.eq.s32.totalorder %v166, %v5603
      %vm5667 = vcmp.eq.s32.totalorder %v166, %v5607
      %vm5668 = vcmp.eq.s32.totalorder %v167, %v5595
      %vm5669 = vcmp.eq.s32.totalorder %v167, %v5599
      %vm5670 = vcmp.eq.s32.totalorder %v167, %v5603
      %vm5671 = vcmp.eq.s32.totalorder %v167, %v5607
      %vm5672 = vcmp.eq.s32.totalorder %v168, %v5595
      %vm5673 = vcmp.eq.s32.totalorder %v168, %v5599
      %vm5674 = vcmp.eq.s32.totalorder %v168, %v5603
      %vm5675 = vcmp.eq.s32.totalorder %v168, %v5607
      %vm5676 = vcmp.eq.s32.totalorder %v169, %v5595
      %vm5677 = vcmp.eq.s32.totalorder %v169, %v5599
      %vm5678 = vcmp.eq.s32.totalorder %v169, %v5603
      %vm5679 = vcmp.eq.s32.totalorder %v169, %v5607
      %vm5680 = vcmp.eq.s32.totalorder %v170, %v5595
      %vm5681 = vcmp.eq.s32.totalorder %v170, %v5599
      %vm5682 = vcmp.eq.s32.totalorder %v170, %v5603
      %vm5683 = vcmp.eq.s32.totalorder %v170, %v5607
      %vm5684 = vcmp.eq.s32.totalorder %v171, %v5595
      %vm5685 = vcmp.eq.s32.totalorder %v171, %v5599
      %vm5686 = vcmp.eq.s32.totalorder %v171, %v5603
      %vm5687 = vcmp.eq.s32.totalorder %v171, %v5607
      %vm5688 = vcmp.eq.s32.totalorder %v172, %v5595
      %vm5689 = vcmp.eq.s32.totalorder %v172, %v5599
      %vm5690 = vcmp.eq.s32.totalorder %v172, %v5603
      %vm5691 = vcmp.eq.s32.totalorder %v172, %v5607
      %vm5692 = vcmp.eq.s32.totalorder %v173, %v5595
      %vm5693 = vcmp.eq.s32.totalorder %v173, %v5599
      %vm5694 = vcmp.eq.s32.totalorder %v173, %v5603
      %vm5695 = vcmp.eq.s32.totalorder %v173, %v5607
      %vm5696 = vcmp.eq.s32.totalorder %v174, %v5595
      %vm5697 = vcmp.eq.s32.totalorder %v174, %v5599
      %vm5698 = vcmp.eq.s32.totalorder %v174, %v5603
      %vm5699 = vcmp.eq.s32.totalorder %v174, %v5607
      %vm5700 = vcmp.eq.s32.totalorder %v175, %v5595
      %vm5701 = vcmp.eq.s32.totalorder %v175, %v5599
      %vm5702 = vcmp.eq.s32.totalorder %v175, %v5603
      %vm5703 = vcmp.eq.s32.totalorder %v175, %v5607
      %vm5704 = vcmp.eq.s32.totalorder %v176, %v5595
      %vm5705 = vcmp.eq.s32.totalorder %v176, %v5599
      %vm5706 = vcmp.eq.s32.totalorder %v176, %v5603
      %vm5707 = vcmp.eq.s32.totalorder %v176, %v5607
      %vm5708 = vcmp.eq.s32.totalorder %v177, %v5595
      %vm5709 = vcmp.eq.s32.totalorder %v177, %v5599
      %vm5710 = vcmp.eq.s32.totalorder %v177, %v5603
      %vm5711 = vcmp.eq.s32.totalorder %v177, %v5607
      %vm5712 = vcmp.eq.s32.totalorder %v178, %v5595
      %vm5713 = vcmp.eq.s32.totalorder %v178, %v5599
      %vm5714 = vcmp.eq.s32.totalorder %v178, %v5603
      %vm5715 = vcmp.eq.s32.totalorder %v178, %v5607
      %vm5716 = vcmp.eq.s32.totalorder %v179, %v5595
      %vm5717 = vcmp.eq.s32.totalorder %v179, %v5599
      %vm5718 = vcmp.eq.s32.totalorder %v179, %v5603
      %vm5719 = vcmp.eq.s32.totalorder %v179, %v5607
      %vm5720 = vcmp.eq.s32.totalorder %v180, %v5595
      %vm5721 = vcmp.eq.s32.totalorder %v180, %v5599
      %vm5722 = vcmp.eq.s32.totalorder %v180, %v5603
      %vm5723 = vcmp.eq.s32.totalorder %v180, %v5607
      %vm5724 = vcmp.eq.s32.totalorder %v181, %v5595
      %vm5725 = vcmp.eq.s32.totalorder %v181, %v5599
      %vm5726 = vcmp.eq.s32.totalorder %v181, %v5603
      %vm5727 = vcmp.eq.s32.totalorder %v181, %v5607
      %vm5728 = vcmp.eq.s32.totalorder %v182, %v5595
      %vm5729 = vcmp.eq.s32.totalorder %v182, %v5599
      %vm5730 = vcmp.eq.s32.totalorder %v182, %v5603
      %vm5731 = vcmp.eq.s32.totalorder %v182, %v5607
      %vm5732 = vcmp.eq.s32.totalorder %v183, %v5595
      %vm5733 = vcmp.eq.s32.totalorder %v183, %v5599
      %vm5734 = vcmp.eq.s32.totalorder %v183, %v5603
      %vm5735 = vcmp.eq.s32.totalorder %v183, %v5607
      %vm5736 = vcmp.eq.s32.totalorder %v184, %v5595
      %vm5737 = vcmp.eq.s32.totalorder %v184, %v5599
      %vm5738 = vcmp.eq.s32.totalorder %v184, %v5603
      %vm5739 = vcmp.eq.s32.totalorder %v184, %v5607
      %vm5740 = vcmp.eq.s32.totalorder %v185, %v5595
      %vm5741 = vcmp.eq.s32.totalorder %v185, %v5599
      %vm5742 = vcmp.eq.s32.totalorder %v185, %v5603
      %vm5743 = vcmp.eq.s32.totalorder %v185, %v5607
      %vm5744 = vcmp.eq.s32.totalorder %v186, %v5595
      %vm5745 = vcmp.eq.s32.totalorder %v186, %v5599
      %vm5746 = vcmp.eq.s32.totalorder %v186, %v5603
      %vm5747 = vcmp.eq.s32.totalorder %v186, %v5607
      %vm5748 = vcmp.eq.s32.totalorder %v187, %v5595
      %vm5749 = vcmp.eq.s32.totalorder %v187, %v5599
      %vm5750 = vcmp.eq.s32.totalorder %v187, %v5603
      %vm5751 = vcmp.eq.s32.totalorder %v187, %v5607
      %vm5752 = vcmp.eq.s32.totalorder %v188, %v5595
      %vm5753 = vcmp.eq.s32.totalorder %v188, %v5599
      %vm5754 = vcmp.eq.s32.totalorder %v188, %v5603
      %vm5755 = vcmp.eq.s32.totalorder %v188, %v5607
      %vm5756 = vcmp.eq.s32.totalorder %v189, %v5595
      %vm5757 = vcmp.eq.s32.totalorder %v189, %v5599
      %vm5758 = vcmp.eq.s32.totalorder %v189, %v5603
      %vm5759 = vcmp.eq.s32.totalorder %v189, %v5607
      %vm5760 = vcmp.eq.s32.totalorder %v190, %v5595
      %vm5761 = vcmp.eq.s32.totalorder %v190, %v5599
      %vm5762 = vcmp.eq.s32.totalorder %v190, %v5603
      %vm5763 = vcmp.eq.s32.totalorder %v190, %v5607
      %vm5764 = vcmp.eq.s32.totalorder %v191, %v5595
      %vm5765 = vcmp.eq.s32.totalorder %v191, %v5599
      %vm5766 = vcmp.eq.s32.totalorder %v191, %v5603
      %vm5767 = vcmp.eq.s32.totalorder %v191, %v5607
      %vm5768 = vcmp.eq.s32.totalorder %v192, %v5595
      %vm5769 = vcmp.eq.s32.totalorder %v192, %v5599
      %vm5770 = vcmp.eq.s32.totalorder %v192, %v5603
      %vm5771 = vcmp.eq.s32.totalorder %v192, %v5607
      %vm5772 = vcmp.eq.s32.totalorder %v193, %v5595
      %vm5773 = vcmp.eq.s32.totalorder %v193, %v5599
      %vm5774 = vcmp.eq.s32.totalorder %v193, %v5603
      %vm5775 = vcmp.eq.s32.totalorder %v193, %v5607
      %vm5776 = vcmp.eq.s32.totalorder %v194, %v5595
      %vm5777 = vcmp.eq.s32.totalorder %v194, %v5599
      %vm5778 = vcmp.eq.s32.totalorder %v194, %v5603
      %vm5779 = vcmp.eq.s32.totalorder %v194, %v5607
      %vm5780 = vcmp.eq.s32.totalorder %v195, %v5595
      %vm5781 = vcmp.eq.s32.totalorder %v195, %v5599
      %vm5782 = vcmp.eq.s32.totalorder %v195, %v5603
      %vm5783 = vcmp.eq.s32.totalorder %v195, %v5607
      %vm5784 = vcmp.eq.s32.totalorder %v196, %v5595
      %vm5785 = vcmp.eq.s32.totalorder %v196, %v5599
      %vm5786 = vcmp.eq.s32.totalorder %v196, %v5603
      %vm5787 = vcmp.eq.s32.totalorder %v196, %v5607
      %vm5788 = vcmp.eq.s32.totalorder %v197, %v5595
      %vm5789 = vcmp.eq.s32.totalorder %v197, %v5599
      %vm5790 = vcmp.eq.s32.totalorder %v197, %v5603
      %vm5791 = vcmp.eq.s32.totalorder %v197, %v5607
      %vm5792 = vcmp.eq.s32.totalorder %v198, %v5595
      %vm5793 = vcmp.eq.s32.totalorder %v198, %v5599
      %vm5794 = vcmp.eq.s32.totalorder %v198, %v5603
      %vm5795 = vcmp.eq.s32.totalorder %v198, %v5607
      %vm5796 = vcmp.eq.s32.totalorder %v199, %v5595
      %vm5797 = vcmp.eq.s32.totalorder %v199, %v5599
      %vm5798 = vcmp.eq.s32.totalorder %v199, %v5603
      %vm5799 = vcmp.eq.s32.totalorder %v199, %v5607
      %vm5800 = vcmp.eq.s32.totalorder %v200, %v5595
      %vm5801 = vcmp.eq.s32.totalorder %v200, %v5599
      %vm5802 = vcmp.eq.s32.totalorder %v200, %v5603
      %vm5803 = vcmp.eq.s32.totalorder %v200, %v5607
      %vm5804 = vcmp.eq.s32.totalorder %v201, %v5595
      %vm5805 = vcmp.eq.s32.totalorder %v201, %v5599
      %vm5806 = vcmp.eq.s32.totalorder %v201, %v5603
      %vm5807 = vcmp.eq.s32.totalorder %v201, %v5607
      %vm5808 = vcmp.eq.s32.totalorder %v202, %v5595
      %vm5809 = vcmp.eq.s32.totalorder %v202, %v5599
      %vm5810 = vcmp.eq.s32.totalorder %v202, %v5603
      %vm5811 = vcmp.eq.s32.totalorder %v202, %v5607
      %vm5812 = vcmp.eq.s32.totalorder %v203, %v5595
      %vm5813 = vcmp.eq.s32.totalorder %v203, %v5599
      %vm5814 = vcmp.eq.s32.totalorder %v203, %v5603
      %vm5815 = vcmp.eq.s32.totalorder %v203, %v5607
      %vm5816 = vcmp.eq.s32.totalorder %v204, %v5595
      %vm5817 = vcmp.eq.s32.totalorder %v204, %v5599
      %vm5818 = vcmp.eq.s32.totalorder %v204, %v5603
      %vm5819 = vcmp.eq.s32.totalorder %v204, %v5607
      %vm5820 = vcmp.eq.s32.totalorder %v205, %v5595
      %vm5821 = vcmp.eq.s32.totalorder %v205, %v5599
      %vm5822 = vcmp.eq.s32.totalorder %v205, %v5603
      %vm5823 = vcmp.eq.s32.totalorder %v205, %v5607
      %vm5824 = vcmp.eq.s32.totalorder %v206, %v5595
      %vm5825 = vcmp.eq.s32.totalorder %v206, %v5599
      %vm5826 = vcmp.eq.s32.totalorder %v206, %v5603
      %vm5827 = vcmp.eq.s32.totalorder %v206, %v5607
      %vm5828 = vcmp.eq.s32.totalorder %v207, %v5595
      %vm5829 = vcmp.eq.s32.totalorder %v207, %v5599
      %vm5830 = vcmp.eq.s32.totalorder %v207, %v5603
      %vm5831 = vcmp.eq.s32.totalorder %v207, %v5607
      %vm5832 = vcmp.eq.s32.totalorder %v208, %v5595
      %vm5833 = vcmp.eq.s32.totalorder %v208, %v5599
      %vm5834 = vcmp.eq.s32.totalorder %v208, %v5603
      %vm5835 = vcmp.eq.s32.totalorder %v208, %v5607
      %vm5836 = vcmp.eq.s32.totalorder %v209, %v5595
      %vm5837 = vcmp.eq.s32.totalorder %v209, %v5599
      %vm5838 = vcmp.eq.s32.totalorder %v209, %v5603
      %vm5839 = vcmp.eq.s32.totalorder %v209, %v5607
      %vm5840 = vcmp.eq.s32.totalorder %v210, %v5595
      %vm5841 = vcmp.eq.s32.totalorder %v210, %v5599
      %vm5842 = vcmp.eq.s32.totalorder %v210, %v5603
      %vm5843 = vcmp.eq.s32.totalorder %v210, %v5607
      %vm5844 = vcmp.eq.s32.totalorder %v211, %v5595
      %vm5845 = vcmp.eq.s32.totalorder %v211, %v5599
      %vm5846 = vcmp.eq.s32.totalorder %v211, %v5603
      %vm5847 = vcmp.eq.s32.totalorder %v211, %v5607
      %vm5848 = vcmp.eq.s32.totalorder %v212, %v5595
      %vm5849 = vcmp.eq.s32.totalorder %v212, %v5599
      %vm5850 = vcmp.eq.s32.totalorder %v212, %v5603
      %vm5851 = vcmp.eq.s32.totalorder %v212, %v5607
      %vm5852 = vcmp.eq.s32.totalorder %v213, %v5595
      %vm5853 = vcmp.eq.s32.totalorder %v213, %v5599
      %vm5854 = vcmp.eq.s32.totalorder %v213, %v5603
      %vm5855 = vcmp.eq.s32.totalorder %v213, %v5607
      %vm5856 = vcmp.eq.s32.totalorder %v214, %v5595
      %vm5857 = vcmp.eq.s32.totalorder %v214, %v5599
      %vm5858 = vcmp.eq.s32.totalorder %v214, %v5603
      %vm5859 = vcmp.eq.s32.totalorder %v214, %v5607
      %vm5860 = vcmp.eq.s32.totalorder %v215, %v5595
      %vm5861 = vcmp.eq.s32.totalorder %v215, %v5599
      %vm5862 = vcmp.eq.s32.totalorder %v215, %v5603
      %vm5863 = vcmp.eq.s32.totalorder %v215, %v5607
      %v5864 = vsel %vm5608, 1, 0
      %v5865 = vsel %vm5609, 1, 0
      %v5866 = vsel %vm5610, 1, 0
      %v5867 = vsel %vm5611, 1, 0
      %v5868 = vsel %vm5612, 1, 0
      %v5869 = vsel %vm5613, 1, 0
      %v5870 = vsel %vm5614, 1, 0
      %v5871 = vsel %vm5615, 1, 0
      %v5872 = vsel %vm5616, 1, 0
      %v5873 = vsel %vm5617, 1, 0
      %v5874 = vsel %vm5618, 1, 0
      %v5875 = vsel %vm5619, 1, 0
      %v5876 = vsel %vm5620, 1, 0
      %v5877 = vsel %vm5621, 1, 0
      %v5878 = vsel %vm5622, 1, 0
      %v5879 = vsel %vm5623, 1, 0
      %v5880 = vsel %vm5624, 1, 0
      %v5881 = vsel %vm5625, 1, 0
      %v5882 = vsel %vm5626, 1, 0
      %v5883 = vsel %vm5627, 1, 0
      %v5884 = vsel %vm5628, 1, 0
      %v5885 = vsel %vm5629, 1, 0
      %v5886 = vsel %vm5630, 1, 0
      %v5887 = vsel %vm5631, 1, 0
      %v5888 = vsel %vm5632, 1, 0
      %v5889 = vsel %vm5633, 1, 0
      %v5890 = vsel %vm5634, 1, 0
      %v5891 = vsel %vm5635, 1, 0
      %v5892 = vsel %vm5636, 1, 0
      %v5893 = vsel %vm5637, 1, 0
      %v5894 = vsel %vm5638, 1, 0
      %v5895 = vsel %vm5639, 1, 0
      %v5896 = vsel %vm5640, 1, 0
      %v5897 = vsel %vm5641, 1, 0
      %v5898 = vsel %vm5642, 1, 0
      %v5899 = vsel %vm5643, 1, 0
      %v5900 = vsel %vm5644, 1, 0
      %v5901 = vsel %vm5645, 1, 0
      %v5902 = vsel %vm5646, 1, 0
      %v5903 = vsel %vm5647, 1, 0
      %v5904 = vsel %vm5648, 1, 0
      %v5905 = vsel %vm5649, 1, 0
      %v5906 = vsel %vm5650, 1, 0
      %v5907 = vsel %vm5651, 1, 0
      %v5908 = vsel %vm5652, 1, 0
      %v5909 = vsel %vm5653, 1, 0
      %v5910 = vsel %vm5654, 1, 0
      %v5911 = vsel %vm5655, 1, 0
      %v5912 = vsel %vm5656, 1, 0
      %v5913 = vsel %vm5657, 1, 0
      %v5914 = vsel %vm5658, 1, 0
      %v5915 = vsel %vm5659, 1, 0
      %v5916 = vsel %vm5660, 1, 0
      %v5917 = vsel %vm5661, 1, 0
      %v5918 = vsel %vm5662, 1, 0
      %v5919 = vsel %vm5663, 1, 0
      %v5920 = vsel %vm5664, 1, 0
      %v5921 = vsel %vm5665, 1, 0
      %v5922 = vsel %vm5666, 1, 0
      %v5923 = vsel %vm5667, 1, 0
      %v5924 = vsel %vm5668, 1, 0
      %v5925 = vsel %vm5669, 1, 0
      %v5926 = vsel %vm5670, 1, 0
      %v5927 = vsel %vm5671, 1, 0
      %v5928 = vsel %vm5672, 1, 0
      %v5929 = vsel %vm5673, 1, 0
      %v5930 = vsel %vm5674, 1, 0
      %v5931 = vsel %vm5675, 1, 0
      %v5932 = vsel %vm5676, 1, 0
      %v5933 = vsel %vm5677, 1, 0
      %v5934 = vsel %vm5678, 1, 0
      %v5935 = vsel %vm5679, 1, 0
      %v5936 = vsel %vm5680, 1, 0
      %v5937 = vsel %vm5681, 1, 0
      %v5938 = vsel %vm5682, 1, 0
      %v5939 = vsel %vm5683, 1, 0
      %v5940 = vsel %vm5684, 1, 0
      %v5941 = vsel %vm5685, 1, 0
      %v5942 = vsel %vm5686, 1, 0
      %v5943 = vsel %vm5687, 1, 0
      %v5944 = vsel %vm5688, 1, 0
      %v5945 = vsel %vm5689, 1, 0
      %v5946 = vsel %vm5690, 1, 0
      %v5947 = vsel %vm5691, 1, 0
      %v5948 = vsel %vm5692, 1, 0
      %v5949 = vsel %vm5693, 1, 0
      %v5950 = vsel %vm5694, 1, 0
      %v5951 = vsel %vm5695, 1, 0
      %v5952 = vsel %vm5696, 1, 0
      %v5953 = vsel %vm5697, 1, 0
      %v5954 = vsel %vm5698, 1, 0
      %v5955 = vsel %vm5699, 1, 0
      %v5956 = vsel %vm5700, 1, 0
      %v5957 = vsel %vm5701, 1, 0
      %v5958 = vsel %vm5702, 1, 0
      %v5959 = vsel %vm5703, 1, 0
      %v5960 = vsel %vm5704, 1, 0
      %v5961 = vsel %vm5705, 1, 0
      %v5962 = vsel %vm5706, 1, 0
      %v5963 = vsel %vm5707, 1, 0
      %v5964 = vsel %vm5708, 1, 0
      %v5965 = vsel %vm5709, 1, 0
      %v5966 = vsel %vm5710, 1, 0
      %v5967 = vsel %vm5711, 1, 0
      %v5968 = vsel %vm5712, 1, 0
      %v5969 = vsel %vm5713, 1, 0
      %v5970 = vsel %vm5714, 1, 0
      %v5971 = vsel %vm5715, 1, 0
      %v5972 = vsel %vm5716, 1, 0
      %v5973 = vsel %vm5717, 1, 0
      %v5974 = vsel %vm5718, 1, 0
      %v5975 = vsel %vm5719, 1, 0
      %v5976 = vsel %vm5720, 1, 0
      %v5977 = vsel %vm5721, 1, 0
      %v5978 = vsel %vm5722, 1, 0
      %v5979 = vsel %vm5723, 1, 0
      %v5980 = vsel %vm5724, 1, 0
      %v5981 = vsel %vm5725, 1, 0
      %v5982 = vsel %vm5726, 1, 0
      %v5983 = vsel %vm5727, 1, 0
      %v5984 = vsel %vm5728, 1, 0
      %v5985 = vsel %vm5729, 1, 0
      %v5986 = vsel %vm5730, 1, 0
      %v5987 = vsel %vm5731, 1, 0
      %v5988 = vsel %vm5732, 1, 0
      %v5989 = vsel %vm5733, 1, 0
      %v5990 = vsel %vm5734, 1, 0
      %v5991 = vsel %vm5735, 1, 0
      %v5992 = vsel %vm5736, 1, 0
      %v5993 = vsel %vm5737, 1, 0
      %v5994 = vsel %vm5738, 1, 0
      %v5995 = vsel %vm5739, 1, 0
      %v5996 = vsel %vm5740, 1, 0
      %v5997 = vsel %vm5741, 1, 0
      %v5998 = vsel %vm5742, 1, 0
      %v5999 = vsel %vm5743, 1, 0
      %v6000 = vsel %vm5744, 1, 0
      %v6001 = vsel %vm5745, 1, 0
      %v6002 = vsel %vm5746, 1, 0
      %v6003 = vsel %vm5747, 1, 0
      %v6004 = vsel %vm5748, 1, 0
      %v6005 = vsel %vm5749, 1, 0
      %v6006 = vsel %vm5750, 1, 0
      %v6007 = vsel %vm5751, 1, 0
      %v6008 = vsel %vm5752, 1, 0
      %v6009 = vsel %vm5753, 1, 0
      %v6010 = vsel %vm5754, 1, 0
      %v6011 = vsel %vm5755, 1, 0
      %v6012 = vsel %vm5756, 1, 0
      %v6013 = vsel %vm5757, 1, 0
      %v6014 = vsel %vm5758, 1, 0
      %v6015 = vsel %vm5759, 1, 0
      %v6016 = vsel %vm5760, 1, 0
      %v6017 = vsel %vm5761, 1, 0
      %v6018 = vsel %vm5762, 1, 0
      %v6019 = vsel %vm5763, 1, 0
      %v6020 = vsel %vm5764, 1, 0
      %v6021 = vsel %vm5765, 1, 0
      %v6022 = vsel %vm5766, 1, 0
      %v6023 = vsel %vm5767, 1, 0
      %v6024 = vsel %vm5768, 1, 0
      %v6025 = vsel %vm5769, 1, 0
      %v6026 = vsel %vm5770, 1, 0
      %v6027 = vsel %vm5771, 1, 0
      %v6028 = vsel %vm5772, 1, 0
      %v6029 = vsel %vm5773, 1, 0
      %v6030 = vsel %vm5774, 1, 0
      %v6031 = vsel %vm5775, 1, 0
      %v6032 = vsel %vm5776, 1, 0
      %v6033 = vsel %vm5777, 1, 0
      %v6034 = vsel %vm5778, 1, 0
      %v6035 = vsel %vm5779, 1, 0
      %v6036 = vsel %vm5780, 1, 0
      %v6037 = vsel %vm5781, 1, 0
      %v6038 = vsel %vm5782, 1, 0
      %v6039 = vsel %vm5783, 1, 0
      %v6040 = vsel %vm5784, 1, 0
      %v6041 = vsel %vm5785, 1, 0
      %v6042 = vsel %vm5786, 1, 0
      %v6043 = vsel %vm5787, 1, 0
      %v6044 = vsel %vm5788, 1, 0
      %v6045 = vsel %vm5789, 1, 0
      %v6046 = vsel %vm5790, 1, 0
      %v6047 = vsel %vm5791, 1, 0
      %v6048 = vsel %vm5792, 1, 0
      %v6049 = vsel %vm5793, 1, 0
      %v6050 = vsel %vm5794, 1, 0
      %v6051 = vsel %vm5795, 1, 0
      %v6052 = vsel %vm5796, 1, 0
      %v6053 = vsel %vm5797, 1, 0
      %v6054 = vsel %vm5798, 1, 0
      %v6055 = vsel %vm5799, 1, 0
      %v6056 = vsel %vm5800, 1, 0
      %v6057 = vsel %vm5801, 1, 0
      %v6058 = vsel %vm5802, 1, 0
      %v6059 = vsel %vm5803, 1, 0
      %v6060 = vsel %vm5804, 1, 0
      %v6061 = vsel %vm5805, 1, 0
      %v6062 = vsel %vm5806, 1, 0
      %v6063 = vsel %vm5807, 1, 0
      %v6064 = vsel %vm5808, 1, 0
      %v6065 = vsel %vm5809, 1, 0
      %v6066 = vsel %vm5810, 1, 0
      %v6067 = vsel %vm5811, 1, 0
      %v6068 = vsel %vm5812, 1, 0
      %v6069 = vsel %vm5813, 1, 0
      %v6070 = vsel %vm5814, 1, 0
      %v6071 = vsel %vm5815, 1, 0
      %v6072 = vsel %vm5816, 1, 0
      %v6073 = vsel %vm5817, 1, 0
      %v6074 = vsel %vm5818, 1, 0
      %v6075 = vsel %vm5819, 1, 0
      %v6076 = vsel %vm5820, 1, 0
      %v6077 = vsel %vm5821, 1, 0
      %v6078 = vsel %vm5822, 1, 0
      %v6079 = vsel %vm5823, 1, 0
      %v6080 = vsel %vm5824, 1, 0
      %v6081 = vsel %vm5825, 1, 0
      %v6082 = vsel %vm5826, 1, 0
      %v6083 = vsel %vm5827, 1, 0
      %v6084 = vsel %vm5828, 1, 0
      %v6085 = vsel %vm5829, 1, 0
      %v6086 = vsel %vm5830, 1, 0
      %v6087 = vsel %vm5831, 1, 0
      %v6088 = vsel %vm5832, 1, 0
      %v6089 = vsel %vm5833, 1, 0
      %v6090 = vsel %vm5834, 1, 0
      %v6091 = vsel %vm5835, 1, 0
      %v6092 = vsel %vm5836, 1, 0
      %v6093 = vsel %vm5837, 1, 0
      %v6094 = vsel %vm5838, 1, 0
      %v6095 = vsel %vm5839, 1, 0
      %v6096 = vsel %vm5840, 1, 0
      %v6097 = vsel %vm5841, 1, 0
      %v6098 = vsel %vm5842, 1, 0
      %v6099 = vsel %vm5843, 1, 0
      %v6100 = vsel %vm5844, 1, 0
      %v6101 = vsel %vm5845, 1, 0
      %v6102 = vsel %vm5846, 1, 0
      %v6103 = vsel %vm5847, 1, 0
      %v6104 = vsel %vm5848, 1, 0
      %v6105 = vsel %vm5849, 1, 0
      %v6106 = vsel %vm5850, 1, 0
      %v6107 = vsel %vm5851, 1, 0
      %v6108 = vsel %vm5852, 1, 0
      %v6109 = vsel %vm5853, 1, 0
      %v6110 = vsel %vm5854, 1, 0
      %v6111 = vsel %vm5855, 1, 0
      %v6112 = vsel %vm5856, 1, 0
      %v6113 = vsel %vm5857, 1, 0
      %v6114 = vsel %vm5858, 1, 0
      %v6115 = vsel %vm5859, 1, 0
      %v6116 = vsel %vm5860, 1, 0
      %v6117 = vsel %vm5861, 1, 0
      %v6118 = vsel %vm5862, 1, 0
      %v6119 = vsel %vm5863, 1, 0
      %v6120 = vcvt.s32.f32 %v5864
      %v6121 = vcvt.s32.f32 %v5865
      %v6122 = vcvt.s32.f32 %v5866
      %v6123 = vcvt.s32.f32 %v5867
      %v6124 = vcvt.s32.f32 %v5868
      %v6125 = vcvt.s32.f32 %v5869
      %v6126 = vcvt.s32.f32 %v5870
      %v6127 = vcvt.s32.f32 %v5871
      %v6128 = vcvt.s32.f32 %v5872
      %v6129 = vcvt.s32.f32 %v5873
      %v6130 = vcvt.s32.f32 %v5874
      %v6131 = vcvt.s32.f32 %v5875
      %v6132 = vcvt.s32.f32 %v5876
      %v6133 = vcvt.s32.f32 %v5877
      %v6134 = vcvt.s32.f32 %v5878
      %v6135 = vcvt.s32.f32 %v5879
      %v6136 = vcvt.s32.f32 %v5880
      %v6137 = vcvt.s32.f32 %v5881
      %v6138 = vcvt.s32.f32 %v5882
      %v6139 = vcvt.s32.f32 %v5883
      %v6140 = vcvt.s32.f32 %v5884
      %v6141 = vcvt.s32.f32 %v5885
      %v6142 = vcvt.s32.f32 %v5886
      %v6143 = vcvt.s32.f32 %v5887
      %v6144 = vcvt.s32.f32 %v5888
      %v6145 = vcvt.s32.f32 %v5889
      %v6146 = vcvt.s32.f32 %v5890
      %v6147 = vcvt.s32.f32 %v5891
      %v6148 = vcvt.s32.f32 %v5892
      %v6149 = vcvt.s32.f32 %v5893
      %v6150 = vcvt.s32.f32 %v5894
      %v6151 = vcvt.s32.f32 %v5895
      %v6152 = vcvt.s32.f32 %v5896
      %v6153 = vcvt.s32.f32 %v5897
      %v6154 = vcvt.s32.f32 %v5898
      %v6155 = vcvt.s32.f32 %v5899
      %v6156 = vcvt.s32.f32 %v5900
      %v6157 = vcvt.s32.f32 %v5901
      %v6158 = vcvt.s32.f32 %v5902
      %v6159 = vcvt.s32.f32 %v5903
      %v6160 = vcvt.s32.f32 %v5904
      %v6161 = vcvt.s32.f32 %v5905
      %v6162 = vcvt.s32.f32 %v5906
      %v6163 = vcvt.s32.f32 %v5907
      %v6164 = vcvt.s32.f32 %v5908
      %v6165 = vcvt.s32.f32 %v5909
      %v6166 = vcvt.s32.f32 %v5910
      %v6167 = vcvt.s32.f32 %v5911
      %v6168 = vcvt.s32.f32 %v5912
      %v6169 = vcvt.s32.f32 %v5913
      %v6170 = vcvt.s32.f32 %v5914
      %v6171 = vcvt.s32.f32 %v5915
      %v6172 = vcvt.s32.f32 %v5916
      %v6173 = vcvt.s32.f32 %v5917
      %v6174 = vcvt.s32.f32 %v5918
      %v6175 = vcvt.s32.f32 %v5919
      %v6176 = vcvt.s32.f32 %v5920
      %v6177 = vcvt.s32.f32 %v5921
      %v6178 = vcvt.s32.f32 %v5922
      %v6179 = vcvt.s32.f32 %v5923
      %v6180 = vcvt.s32.f32 %v5924
      %v6181 = vcvt.s32.f32 %v5925
      %v6182 = vcvt.s32.f32 %v5926
      %v6183 = vcvt.s32.f32 %v5927
      %v6184 = vcvt.s32.f32 %v5928
      %v6185 = vcvt.s32.f32 %v5929
      %v6186 = vcvt.s32.f32 %v5930
      %v6187 = vcvt.s32.f32 %v5931
      %v6188 = vcvt.s32.f32 %v5932
      %v6189 = vcvt.s32.f32 %v5933
      %v6190 = vcvt.s32.f32 %v5934
      %v6191 = vcvt.s32.f32 %v5935
      %v6192 = vcvt.s32.f32 %v5936
      %v6193 = vcvt.s32.f32 %v5937
      %v6194 = vcvt.s32.f32 %v5938
      %v6195 = vcvt.s32.f32 %v5939
      %v6196 = vcvt.s32.f32 %v5940
      %v6197 = vcvt.s32.f32 %v5941
      %v6198 = vcvt.s32.f32 %v5942
      %v6199 = vcvt.s32.f32 %v5943
      %v6200 = vcvt.s32.f32 %v5944
      %v6201 = vcvt.s32.f32 %v5945
      %v6202 = vcvt.s32.f32 %v5946
      %v6203 = vcvt.s32.f32 %v5947
      %v6204 = vcvt.s32.f32 %v5948
      %v6205 = vcvt.s32.f32 %v5949
      %v6206 = vcvt.s32.f32 %v5950
      %v6207 = vcvt.s32.f32 %v5951
      %v6208 = vcvt.s32.f32 %v5952
      %v6209 = vcvt.s32.f32 %v5953
      %v6210 = vcvt.s32.f32 %v5954
      %v6211 = vcvt.s32.f32 %v5955
      %v6212 = vcvt.s32.f32 %v5956
      %v6213 = vcvt.s32.f32 %v5957
      %v6214 = vcvt.s32.f32 %v5958
      %v6215 = vcvt.s32.f32 %v5959
      %v6216 = vcvt.s32.f32 %v5960
      %v6217 = vcvt.s32.f32 %v5961
      %v6218 = vcvt.s32.f32 %v5962
      %v6219 = vcvt.s32.f32 %v5963
      %v6220 = vcvt.s32.f32 %v5964
      %v6221 = vcvt.s32.f32 %v5965
      %v6222 = vcvt.s32.f32 %v5966
      %v6223 = vcvt.s32.f32 %v5967
      %v6224 = vcvt.s32.f32 %v5968
      %v6225 = vcvt.s32.f32 %v5969
      %v6226 = vcvt.s32.f32 %v5970
      %v6227 = vcvt.s32.f32 %v5971
      %v6228 = vcvt.s32.f32 %v5972
      %v6229 = vcvt.s32.f32 %v5973
      %v6230 = vcvt.s32.f32 %v5974
      %v6231 = vcvt.s32.f32 %v5975
      %v6232 = vcvt.s32.f32 %v5976
      %v6233 = vcvt.s32.f32 %v5977
      %v6234 = vcvt.s32.f32 %v5978
      %v6235 = vcvt.s32.f32 %v5979
      %v6236 = vcvt.s32.f32 %v5980
      %v6237 = vcvt.s32.f32 %v5981
      %v6238 = vcvt.s32.f32 %v5982
      %v6239 = vcvt.s32.f32 %v5983
      %v6240 = vcvt.s32.f32 %v5984
      %v6241 = vcvt.s32.f32 %v5985
      %v6242 = vcvt.s32.f32 %v5986
      %v6243 = vcvt.s32.f32 %v5987
      %v6244 = vcvt.s32.f32 %v5988
      %v6245 = vcvt.s32.f32 %v5989
      %v6246 = vcvt.s32.f32 %v5990
      %v6247 = vcvt.s32.f32 %v5991
      %v6248 = vcvt.s32.f32 %v5992
      %v6249 = vcvt.s32.f32 %v5993
      %v6250 = vcvt.s32.f32 %v5994
      %v6251 = vcvt.s32.f32 %v5995
      %v6252 = vcvt.s32.f32 %v5996
      %v6253 = vcvt.s32.f32 %v5997
      %v6254 = vcvt.s32.f32 %v5998
      %v6255 = vcvt.s32.f32 %v5999
      %v6256 = vcvt.s32.f32 %v6000
      %v6257 = vcvt.s32.f32 %v6001
      %v6258 = vcvt.s32.f32 %v6002
      %v6259 = vcvt.s32.f32 %v6003
      %v6260 = vcvt.s32.f32 %v6004
      %v6261 = vcvt.s32.f32 %v6005
      %v6262 = vcvt.s32.f32 %v6006
      %v6263 = vcvt.s32.f32 %v6007
      %v6264 = vcvt.s32.f32 %v6008
      %v6265 = vcvt.s32.f32 %v6009
      %v6266 = vcvt.s32.f32 %v6010
      %v6267 = vcvt.s32.f32 %v6011
      %v6268 = vcvt.s32.f32 %v6012
      %v6269 = vcvt.s32.f32 %v6013
      %v6270 = vcvt.s32.f32 %v6014
      %v6271 = vcvt.s32.f32 %v6015
      %v6272 = vcvt.s32.f32 %v6016
      %v6273 = vcvt.s32.f32 %v6017
      %v6274 = vcvt.s32.f32 %v6018
      %v6275 = vcvt.s32.f32 %v6019
      %v6276 = vcvt.s32.f32 %v6020
      %v6277 = vcvt.s32.f32 %v6021
      %v6278 = vcvt.s32.f32 %v6022
      %v6279 = vcvt.s32.f32 %v6023
      %v6280 = vcvt.s32.f32 %v6024
      %v6281 = vcvt.s32.f32 %v6025
      %v6282 = vcvt.s32.f32 %v6026
      %v6283 = vcvt.s32.f32 %v6027
      %v6284 = vcvt.s32.f32 %v6028
      %v6285 = vcvt.s32.f32 %v6029
      %v6286 = vcvt.s32.f32 %v6030
      %v6287 = vcvt.s32.f32 %v6031
      %v6288 = vcvt.s32.f32 %v6032
      %v6289 = vcvt.s32.f32 %v6033
      %v6290 = vcvt.s32.f32 %v6034
      %v6291 = vcvt.s32.f32 %v6035
      %v6292 = vcvt.s32.f32 %v6036
      %v6293 = vcvt.s32.f32 %v6037
      %v6294 = vcvt.s32.f32 %v6038
      %v6295 = vcvt.s32.f32 %v6039
      %v6296 = vcvt.s32.f32 %v6040
      %v6297 = vcvt.s32.f32 %v6041
      %v6298 = vcvt.s32.f32 %v6042
      %v6299 = vcvt.s32.f32 %v6043
      %v6300 = vcvt.s32.f32 %v6044
      %v6301 = vcvt.s32.f32 %v6045
      %v6302 = vcvt.s32.f32 %v6046
      %v6303 = vcvt.s32.f32 %v6047
      %v6304 = vcvt.s32.f32 %v6048
      %v6305 = vcvt.s32.f32 %v6049
      %v6306 = vcvt.s32.f32 %v6050
      %v6307 = vcvt.s32.f32 %v6051
      %v6308 = vcvt.s32.f32 %v6052
      %v6309 = vcvt.s32.f32 %v6053
      %v6310 = vcvt.s32.f32 %v6054
      %v6311 = vcvt.s32.f32 %v6055
      %v6312 = vcvt.s32.f32 %v6056
      %v6313 = vcvt.s32.f32 %v6057
      %v6314 = vcvt.s32.f32 %v6058
      %v6315 = vcvt.s32.f32 %v6059
      %v6316 = vcvt.s32.f32 %v6060
      %v6317 = vcvt.s32.f32 %v6061
      %v6318 = vcvt.s32.f32 %v6062
      %v6319 = vcvt.s32.f32 %v6063
      %v6320 = vcvt.s32.f32 %v6064
      %v6321 = vcvt.s32.f32 %v6065
      %v6322 = vcvt.s32.f32 %v6066
      %v6323 = vcvt.s32.f32 %v6067
      %v6324 = vcvt.s32.f32 %v6068
      %v6325 = vcvt.s32.f32 %v6069
      %v6326 = vcvt.s32.f32 %v6070
      %v6327 = vcvt.s32.f32 %v6071
      %v6328 = vcvt.s32.f32 %v6072
      %v6329 = vcvt.s32.f32 %v6073
      %v6330 = vcvt.s32.f32 %v6074
      %v6331 = vcvt.s32.f32 %v6075
      %v6332 = vcvt.s32.f32 %v6076
      %v6333 = vcvt.s32.f32 %v6077
      %v6334 = vcvt.s32.f32 %v6078
      %v6335 = vcvt.s32.f32 %v6079
      %v6336 = vcvt.s32.f32 %v6080
      %v6337 = vcvt.s32.f32 %v6081
      %v6338 = vcvt.s32.f32 %v6082
      %v6339 = vcvt.s32.f32 %v6083
      %v6340 = vcvt.s32.f32 %v6084
      %v6341 = vcvt.s32.f32 %v6085
      %v6342 = vcvt.s32.f32 %v6086
      %v6343 = vcvt.s32.f32 %v6087
      %v6344 = vcvt.s32.f32 %v6088
      %v6345 = vcvt.s32.f32 %v6089
      %v6346 = vcvt.s32.f32 %v6090
      %v6347 = vcvt.s32.f32 %v6091
      %v6348 = vcvt.s32.f32 %v6092
      %v6349 = vcvt.s32.f32 %v6093
      %v6350 = vcvt.s32.f32 %v6094
      %v6351 = vcvt.s32.f32 %v6095
      %v6352 = vcvt.s32.f32 %v6096
      %v6353 = vcvt.s32.f32 %v6097
      %v6354 = vcvt.s32.f32 %v6098
      %v6355 = vcvt.s32.f32 %v6099
      %v6356 = vcvt.s32.f32 %v6100
      %v6357 = vcvt.s32.f32 %v6101
      %v6358 = vcvt.s32.f32 %v6102
      %v6359 = vcvt.s32.f32 %v6103
      %v6360 = vcvt.s32.f32 %v6104
      %v6361 = vcvt.s32.f32 %v6105
      %v6362 = vcvt.s32.f32 %v6106
      %v6363 = vcvt.s32.f32 %v6107
      %v6364 = vcvt.s32.f32 %v6108
      %v6365 = vcvt.s32.f32 %v6109
      %v6366 = vcvt.s32.f32 %v6110
      %v6367 = vcvt.s32.f32 %v6111
      %v6368 = vcvt.s32.f32 %v6112
      %v6369 = vcvt.s32.f32 %v6113
      %v6370 = vcvt.s32.f32 %v6114
      %v6371 = vcvt.s32.f32 %v6115
      %v6372 = vcvt.s32.f32 %v6116
      %v6373 = vcvt.s32.f32 %v6117
      %v6374 = vcvt.s32.f32 %v6118
      %v6375 = vcvt.s32.f32 %v6119
      %s6376 = scalar_lea.vmem %s1, 160
      %v6377 = vld [vmem:[%s6376] sm:$0xff]
      %v6378 = vld [vmem:[%s6376 + $0x8] sm:$0xff]
      %v6379 = vld [vmem:[%s6376 + $0x10] sm:$0xff]
      %v6380 = vld [vmem:[%s6376 + $0x18] sm:$0xff]
      %6381 = vmatprep.subr.mxu0 %v6181
      %6382 = vmatpush1.msra.mxu0 %v6180
      %6383 = vmatprep.subr.mxu0 %v6177
      %6384 = vmatpush1.msra.mxu0 %v6176
      %6385 = vmatprep.subr.mxu0 %v6173
      %6386 = vmatpush1.msra.mxu0 %v6172
      %6387 = vmatprep.subr.mxu0 %v6169
      %6388 = vmatpush1.msra.mxu0 %v6168
      %6389 = vmatprep.subr.mxu0 %v6165
      %6390 = vmatpush1.msra.mxu0 %v6164
      %6391 = vmatprep.subr.mxu0 %v6161
      %6392 = vmatpush1.msra.mxu0 %v6160
      %6393 = vmatprep.subr.mxu0 %v6157
      %6394 = vmatpush1.msra.mxu0 %v6156
      %6395 = vmatprep.subr.mxu0 %v6153
      %6396 = vmatpush1.msra.mxu0 %v6152
      %6397 = vmatprep.subr.mxu0 %v6149
      %6398 = vmatpush1.msra.mxu0 %v6148
      %6399 = vmatprep.subr.mxu0 %v6145
      %6400 = vmatpush1.msra.mxu0 %v6144
      %6401 = vmatprep.subr.mxu0 %v6141
      %6402 = vmatpush1.msra.mxu0 %v6140
      %6403 = vmatprep.subr.mxu0 %v6137
      %6404 = vmatpush1.msra.mxu0 %v6136
      %6405 = vmatprep.subr.mxu0 %v6133
      %6406 = vmatpush1.msra.mxu0 %v6132
      %6407 = vmatprep.subr.mxu0 %v6129
      %6408 = vmatpush1.msra.mxu0 %v6128
      %6409 = vmatprep.subr.mxu0 %v6125
      %6410 = vmatpush1.msra.mxu0 %v6124
      %6411 = vmatprep.subr.mxu0 %v6121
      %6412 = vmatpush1.msra.mxu0 %v6120
      %6413 = vmatprep.subr.mxu0 %v6245
      %6414 = vmatpush2.msra.mxu0 %v6244
      %6415 = vmatprep.subr.mxu0 %v6241
      %6416 = vmatpush2.msra.mxu0 %v6240
      %6417 = vmatprep.subr.mxu0 %v6237
      %6418 = vmatpush2.msra.mxu0 %v6236
      %6419 = vmatprep.subr.mxu0 %v6233
      %6420 = vmatpush2.msra.mxu0 %v6232
      %6421 = vmatprep.subr.mxu0 %v6229
      %6422 = vmatpush2.msra.mxu0 %v6228
      %6423 = vmatprep.subr.mxu0 %v6225
      %6424 = vmatpush2.msra.mxu0 %v6224
      %6425 = vmatprep.subr.mxu0 %v6221
      %6426 = vmatpush2.msra.mxu0 %v6220
      %6427 = vmatprep.subr.mxu0 %v6217
      %6428 = vmatpush2.msra.mxu0 %v6216
      %6429 = vmatprep.subr.mxu0 %v6213
      %6430 = vmatpush2.msra.mxu0 %v6212
      %6431 = vmatprep.subr.mxu0 %v6209
      %6432 = vmatpush2.msra.mxu0 %v6208
      %6433 = vmatprep.subr.mxu0 %v6205
      %6434 = vmatpush2.msra.mxu0 %v6204
      %6435 = vmatprep.subr.mxu0 %v6201
      %6436 = vmatpush2.msra.mxu0 %v6200
      %6437 = vmatprep.subr.mxu0 %v6197
      %6438 = vmatpush2.msra.mxu0 %v6196
      %6439 = vmatprep.subr.mxu0 %v6193
      %6440 = vmatpush2.msra.mxu0 %v6192
      %6441 = vmatprep.subr.mxu0 %v6189
      %6442 = vmatpush2.msra.mxu0 %v6188
      %6443 = vmatprep.subr.mxu0 %v6185
      %6444 = vmatpush2.msra.mxu0 %v6184
      %6445 = vmatprep.mubr.f32.mxu0 %v6378
      %6446 = vmatmul.mubr.f32.gmra.mxu0 %v6377
      %v6447 = vpop.f32.mrf.mxu0
      %v6448 = vadd.f32 0.0, %v6447
      %v6449 = vpop.f32.mrf.mxu0
      %v6450 = vadd.f32 0.0, %v6449
      %6451 = vdwg.mxu0
      %6452 = vmatprep.subr.mxu0 %v6309
      %6453 = vmatpush1.msra.mxu0 %v6308
      %6454 = vmatprep.subr.mxu0 %v6305
      %6455 = vmatpush1.msra.mxu0 %v6304
      %6456 = vmatprep.subr.mxu0 %v6301
      %6457 = vmatpush1.msra.mxu0 %v6300
      %6458 = vmatprep.subr.mxu0 %v6297
      %6459 = vmatpush1.msra.mxu0 %v6296
      %6460 = vmatprep.subr.mxu0 %v6293
      %6461 = vmatpush1.msra.mxu0 %v6292
      %6462 = vmatprep.subr.mxu0 %v6289
      %6463 = vmatpush1.msra.mxu0 %v6288
      %6464 = vmatprep.subr.mxu0 %v6285
      %6465 = vmatpush1.msra.mxu0 %v6284
      %6466 = vmatprep.subr.mxu0 %v6281
      %6467 = vmatpush1.msra.mxu0 %v6280
      %6468 = vmatprep.subr.mxu0 %v6277
      %6469 = vmatpush1.msra.mxu0 %v6276
      %6470 = vmatprep.subr.mxu0 %v6273
      %6471 = vmatpush1.msra.mxu0 %v6272
      %6472 = vmatprep.subr.mxu0 %v6269
      %6473 = vmatpush1.msra.mxu0 %v6268
      %6474 = vmatprep.subr.mxu0 %v6265
      %6475 = vmatpush1.msra.mxu0 %v6264
      %6476 = vmatprep.subr.mxu0 %v6261
      %6477 = vmatpush1.msra.mxu0 %v6260
      %6478 = vmatprep.subr.mxu0 %v6257
      %6479 = vmatpush1.msra.mxu0 %v6256
      %6480 = vmatprep.subr.mxu0 %v6253
      %6481 = vmatpush1.msra.mxu0 %v6252
      %6482 = vmatprep.subr.mxu0 %v6249
      %6483 = vmatpush1.msra.mxu0 %v6248
      %6484 = vmatprep.subr.mxu0 %v6373
      %6485 = vmatpush2.msra.mxu0 %v6372
      %6486 = vmatprep.subr.mxu0 %v6369
      %6487 = vmatpush2.msra.mxu0 %v6368
      %6488 = vmatprep.subr.mxu0 %v6365
      %6489 = vmatpush2.msra.mxu0 %v6364
      %6490 = vmatprep.subr.mxu0 %v6361
      %6491 = vmatpush2.msra.mxu0 %v6360
      %6492 = vmatprep.subr.mxu0 %v6357
      %6493 = vmatpush2.msra.mxu0 %v6356
      %6494 = vmatprep.subr.mxu0 %v6353
      %6495 = vmatpush2.msra.mxu0 %v6352
      %6496 = vmatprep.subr.mxu0 %v6349
      %6497 = vmatpush2.msra.mxu0 %v6348
      %6498 = vmatprep.subr.mxu0 %v6345
      %6499 = vmatpush2.msra.mxu0 %v6344
      %6500 = vmatprep.subr.mxu0 %v6341
      %6501 = vmatpush2.msra.mxu0 %v6340
      %6502 = vmatprep.subr.mxu0 %v6337
      %6503 = vmatpush2.msra.mxu0 %v6336
      %6504 = vmatprep.subr.mxu0 %v6333
      %6505 = vmatpush2.msra.mxu0 %v6332
      %6506 = vmatprep.subr.mxu0 %v6329
      %6507 = vmatpush2.msra.mxu0 %v6328
      %6508 = vmatprep.subr.mxu0 %v6325
      %6509 = vmatpush2.msra.mxu0 %v6324
      %6510 = vmatprep.subr.mxu0 %v6321
      %6511 = vmatpush2.msra.mxu0 %v6320
      %6512 = vmatprep.subr.mxu0 %v6317
      %6513 = vmatpush2.msra.mxu0 %v6316
      %6514 = vmatprep.subr.mxu0 %v6313
      %6515 = vmatpush2.msra.mxu0 %v6312
      %6516 = vmatprep.mubr.f32.mxu0 %v6380
      %6517 = vmatmul.mubr.f32.gmra.mxu0 %v6379
      %v6518 = vpop.f32.mrf.mxu0
      %v6519 = vadd.f32 %v6448, %v6518
      %v6520 = vpop.f32.mrf.mxu0
      %v6521 = vadd.f32 %v6450, %v6520
      %6522 = vdwg.mxu0
      %6523 = vmatprep.subr.mxu0 %v6183
      %6524 = vmatpush1.msra.mxu0 %v6182
      %6525 = vmatprep.subr.mxu0 %v6179
      %6526 = vmatpush1.msra.mxu0 %v6178
      %6527 = vmatprep.subr.mxu0 %v6175
      %6528 = vmatpush1.msra.mxu0 %v6174
      %6529 = vmatprep.subr.mxu0 %v6171
      %6530 = vmatpush1.msra.mxu0 %v6170
      %6531 = vmatprep.subr.mxu0 %v6167
      %6532 = vmatpush1.msra.mxu0 %v6166
      %6533 = vmatprep.subr.mxu0 %v6163
      %6534 = vmatpush1.msra.mxu0 %v6162
      %6535 = vmatprep.subr.mxu0 %v6159
      %6536 = vmatpush1.msra.mxu0 %v6158
      %6537 = vmatprep.subr.mxu0 %v6155
      %6538 = vmatpush1.msra.mxu0 %v6154
      %6539 = vmatprep.subr.mxu0 %v6151
      %6540 = vmatpush1.msra.mxu0 %v6150
      %6541 = vmatprep.subr.mxu0 %v6147
      %6542 = vmatpush1.msra.mxu0 %v6146
      %6543 = vmatprep.subr.mxu0 %v6143
      %6544 = vmatpush1.msra.mxu0 %v6142
      %6545 = vmatprep.subr.mxu0 %v6139
      %6546 = vmatpush1.msra.mxu0 %v6138
      %6547 = vmatprep.subr.mxu0 %v6135
      %6548 = vmatpush1.msra.mxu0 %v6134
      %6549 = vmatprep.subr.mxu0 %v6131
      %6550 = vmatpush1.msra.mxu0 %v6130
      %6551 = vmatprep.subr.mxu0 %v6127
      %6552 = vmatpush1.msra.mxu0 %v6126
      %6553 = vmatprep.subr.mxu0 %v6123
      %6554 = vmatpush1.msra.mxu0 %v6122
      %6555 = vmatprep.subr.mxu0 %v6247
      %6556 = vmatpush2.msra.mxu0 %v6246
      %6557 = vmatprep.subr.mxu0 %v6243
      %6558 = vmatpush2.msra.mxu0 %v6242
      %6559 = vmatprep.subr.mxu0 %v6239
      %6560 = vmatpush2.msra.mxu0 %v6238
      %6561 = vmatprep.subr.mxu0 %v6235
      %6562 = vmatpush2.msra.mxu0 %v6234
      %6563 = vmatprep.subr.mxu0 %v6231
      %6564 = vmatpush2.msra.mxu0 %v6230
      %6565 = vmatprep.subr.mxu0 %v6227
      %6566 = vmatpush2.msra.mxu0 %v6226
      %6567 = vmatprep.subr.mxu0 %v6223
      %6568 = vmatpush2.msra.mxu0 %v6222
      %6569 = vmatprep.subr.mxu0 %v6219
      %6570 = vmatpush2.msra.mxu0 %v6218
      %6571 = vmatprep.subr.mxu0 %v6215
      %6572 = vmatpush2.msra.mxu0 %v6214
      %6573 = vmatprep.subr.mxu0 %v6211
      %6574 = vmatpush2.msra.mxu0 %v6210
      %6575 = vmatprep.subr.mxu0 %v6207
      %6576 = vmatpush2.msra.mxu0 %v6206
      %6577 = vmatprep.subr.mxu0 %v6203
      %6578 = vmatpush2.msra.mxu0 %v6202
      %6579 = vmatprep.subr.mxu0 %v6199
      %6580 = vmatpush2.msra.mxu0 %v6198
      %6581 = vmatprep.subr.mxu0 %v6195
      %6582 = vmatpush2.msra.mxu0 %v6194
      %6583 = vmatprep.subr.mxu0 %v6191
      %6584 = vmatpush2.msra.mxu0 %v6190
      %6585 = vmatprep.subr.mxu0 %v6187
      %6586 = vmatpush2.msra.mxu0 %v6186
      %6587 = vmatprep.mubr.f32.mxu0 %v6378
      %6588 = vmatmul.mubr.f32.gmra.mxu0 %v6377
      %v6589 = vpop.f32.mrf.mxu0
      %v6590 = vadd.f32 0.0, %v6589
      %v6591 = vpop.f32.mrf.mxu0
      %v6592 = vadd.f32 0.0, %v6591
      %6593 = vdwg.mxu0
      %6594 = vmatprep.subr.mxu0 %v6311
      %6595 = vmatpush1.msra.mxu0 %v6310
      %6596 = vmatprep.subr.mxu0 %v6307
      %6597 = vmatpush1.msra.mxu0 %v6306
      %6598 = vmatprep.subr.mxu0 %v6303
      %6599 = vmatpush1.msra.mxu0 %v6302
      %6600 = vmatprep.subr.mxu0 %v6299
      %6601 = vmatpush1.msra.mxu0 %v6298
      %6602 = vmatprep.subr.mxu0 %v6295
      %6603 = vmatpush1.msra.mxu0 %v6294
      %6604 = vmatprep.subr.mxu0 %v6291
      %6605 = vmatpush1.msra.mxu0 %v6290
      %6606 = vmatprep.subr.mxu0 %v6287
      %6607 = vmatpush1.msra.mxu0 %v6286
      %6608 = vmatprep.subr.mxu0 %v6283
      %6609 = vmatpush1.msra.mxu0 %v6282
      %6610 = vmatprep.subr.mxu0 %v6279
      %6611 = vmatpush1.msra.mxu0 %v6278
      %6612 = vmatprep.subr.mxu0 %v6275
      %6613 = vmatpush1.msra.mxu0 %v6274
      %6614 = vmatprep.subr.mxu0 %v6271
      %6615 = vmatpush1.msra.mxu0 %v6270
      %6616 = vmatprep.subr.mxu0 %v6267
      %6617 = vmatpush1.msra.mxu0 %v6266
      %6618 = vmatprep.subr.mxu0 %v6263
      %6619 = vmatpush1.msra.mxu0 %v6262
      %6620 = vmatprep.subr.mxu0 %v6259
      %6621 = vmatpush1.msra.mxu0 %v6258
      %6622 = vmatprep.subr.mxu0 %v6255
      %6623 = vmatpush1.msra.mxu0 %v6254
      %6624 = vmatprep.subr.mxu0 %v6251
      %6625 = vmatpush1.msra.mxu0 %v6250
      %6626 = vmatprep.subr.mxu0 %v6375
      %6627 = vmatpush2.msra.mxu0 %v6374
      %6628 = vmatprep.subr.mxu0 %v6371
      %6629 = vmatpush2.msra.mxu0 %v6370
      %6630 = vmatprep.subr.mxu0 %v6367
      %6631 = vmatpush2.msra.mxu0 %v6366
      %6632 = vmatprep.subr.mxu0 %v6363
      %6633 = vmatpush2.msra.mxu0 %v6362
      %6634 = vmatprep.subr.mxu0 %v6359
      %6635 = vmatpush2.msra.mxu0 %v6358
      %6636 = vmatprep.subr.mxu0 %v6355
      %6637 = vmatpush2.msra.mxu0 %v6354
      %6638 = vmatprep.subr.mxu0 %v6351
      %6639 = vmatpush2.msra.mxu0 %v6350
      %6640 = vmatprep.subr.mxu0 %v6347
      %6641 = vmatpush2.msra.mxu0 %v6346
      %6642 = vmatprep.subr.mxu0 %v6343
      %6643 = vmatpush2.msra.mxu0 %v6342
      %6644 = vmatprep.subr.mxu0 %v6339
      %6645 = vmatpush2.msra.mxu0 %v6338
      %6646 = vmatprep.subr.mxu0 %v6335
      %6647 = vmatpush2.msra.mxu0 %v6334
      %6648 = vmatprep.subr.mxu0 %v6331
      %6649 = vmatpush2.msra.mxu0 %v6330
      %6650 = vmatprep.subr.mxu0 %v6327
      %6651 = vmatpush2.msra.mxu0 %v6326
      %6652 = vmatprep.subr.mxu0 %v6323
      %6653 = vmatpush2.msra.mxu0 %v6322
      %6654 = vmatprep.subr.mxu0 %v6319
      %6655 = vmatpush2.msra.mxu0 %v6318
      %6656 = vmatprep.subr.mxu0 %v6315
      %6657 = vmatpush2.msra.mxu0 %v6314
      %6658 = vmatprep.mubr.f32.mxu0 %v6380
      %6659 = vmatmul.mubr.f32.gmra.mxu0 %v6379
      %v6660 = vpop.f32.mrf.mxu0
      %v6661 = vadd.f32 %v6590, %v6660
      %v6662 = vpop.f32.mrf.mxu0
      %v6663 = vadd.f32 %v6592, %v6662
      %6664 = vdwg.mxu0
      %v6665 = vadd.f32 %v5588, %v6519
      %v6666 = vadd.f32 %v5589, %v6521
      %v6667 = vadd.f32 %v5590, %v6661
      %v6668 = vadd.f32 %v5591, %v6663
      %v6669 = vlaneseq
      %v6670 = vshrl.u32 %v6669, 7
      %v6671 = vsub.s32 6, %v6670
      %v6672 = vrot.slane %v147, %v6671
      %v6673 = vlaneseq
      %v6674 = vshrl.u32 %v6673, 7
      %v6675 = vsub.s32 6, %v6674
      %v6676 = vrot.slane %v148, %v6675
      %v6677 = vlaneseq
      %v6678 = vshrl.u32 %v6677, 7
      %v6679 = vsub.s32 6, %v6678
      %v6680 = vrot.slane %v149, %v6679
      %v6681 = vlaneseq
      %v6682 = vshrl.u32 %v6681, 7
      %v6683 = vsub.s32 6, %v6682
      %v6684 = vrot.slane %v150, %v6683
      %vm6685 = vcmp.eq.s32.totalorder %v152, %v6672
      %vm6686 = vcmp.eq.s32.totalorder %v152, %v6676
      %vm6687 = vcmp.eq.s32.totalorder %v152, %v6680
      %vm6688 = vcmp.eq.s32.totalorder %v152, %v6684
      %vm6689 = vcmp.eq.s32.totalorder %v153, %v6672
      %vm6690 = vcmp.eq.s32.totalorder %v153, %v6676
      %vm6691 = vcmp.eq.s32.totalorder %v153, %v6680
      %vm6692 = vcmp.eq.s32.totalorder %v153, %v6684
      %vm6693 = vcmp.eq.s32.totalorder %v154, %v6672
      %vm6694 = vcmp.eq.s32.totalorder %v154, %v6676
      %vm6695 = vcmp.eq.s32.totalorder %v154, %v6680
      %vm6696 = vcmp.eq.s32.totalorder %v154, %v6684
      %vm6697 = vcmp.eq.s32.totalorder %v155, %v6672
      %vm6698 = vcmp.eq.s32.totalorder %v155, %v6676
      %vm6699 = vcmp.eq.s32.totalorder %v155, %v6680
      %vm6700 = vcmp.eq.s32.totalorder %v155, %v6684
      %vm6701 = vcmp.eq.s32.totalorder %v156, %v6672
      %vm6702 = vcmp.eq.s32.totalorder %v156, %v6676
      %vm6703 = vcmp.eq.s32.totalorder %v156, %v6680
      %vm6704 = vcmp.eq.s32.totalorder %v156, %v6684
      %vm6705 = vcmp.eq.s32.totalorder %v157, %v6672
      %vm6706 = vcmp.eq.s32.totalorder %v157, %v6676
      %vm6707 = vcmp.eq.s32.totalorder %v157, %v6680
      %vm6708 = vcmp.eq.s32.totalorder %v157, %v6684
      %vm6709 = vcmp.eq.s32.totalorder %v158, %v6672
      %vm6710 = vcmp.eq.s32.totalorder %v158, %v6676
      %vm6711 = vcmp.eq.s32.totalorder %v158, %v6680
      %vm6712 = vcmp.eq.s32.totalorder %v158, %v6684
      %vm6713 = vcmp.eq.s32.totalorder %v159, %v6672
      %vm6714 = vcmp.eq.s32.totalorder %v159, %v6676
      %vm6715 = vcmp.eq.s32.totalorder %v159, %v6680
      %vm6716 = vcmp.eq.s32.totalorder %v159, %v6684
      %vm6717 = vcmp.eq.s32.totalorder %v160, %v6672
      %vm6718 = vcmp.eq.s32.totalorder %v160, %v6676
      %vm6719 = vcmp.eq.s32.totalorder %v160, %v6680
      %vm6720 = vcmp.eq.s32.totalorder %v160, %v6684
      %vm6721 = vcmp.eq.s32.totalorder %v161, %v6672
      %vm6722 = vcmp.eq.s32.totalorder %v161, %v6676
      %vm6723 = vcmp.eq.s32.totalorder %v161, %v6680
      %vm6724 = vcmp.eq.s32.totalorder %v161, %v6684
      %vm6725 = vcmp.eq.s32.totalorder %v162, %v6672
      %vm6726 = vcmp.eq.s32.totalorder %v162, %v6676
      %vm6727 = vcmp.eq.s32.totalorder %v162, %v6680
      %vm6728 = vcmp.eq.s32.totalorder %v162, %v6684
      %vm6729 = vcmp.eq.s32.totalorder %v163, %v6672
      %vm6730 = vcmp.eq.s32.totalorder %v163, %v6676
      %vm6731 = vcmp.eq.s32.totalorder %v163, %v6680
      %vm6732 = vcmp.eq.s32.totalorder %v163, %v6684
      %vm6733 = vcmp.eq.s32.totalorder %v164, %v6672
      %vm6734 = vcmp.eq.s32.totalorder %v164, %v6676
      %vm6735 = vcmp.eq.s32.totalorder %v164, %v6680
      %vm6736 = vcmp.eq.s32.totalorder %v164, %v6684
      %vm6737 = vcmp.eq.s32.totalorder %v165, %v6672
      %vm6738 = vcmp.eq.s32.totalorder %v165, %v6676
      %vm6739 = vcmp.eq.s32.totalorder %v165, %v6680
      %vm6740 = vcmp.eq.s32.totalorder %v165, %v6684
      %vm6741 = vcmp.eq.s32.totalorder %v166, %v6672
      %vm6742 = vcmp.eq.s32.totalorder %v166, %v6676
      %vm6743 = vcmp.eq.s32.totalorder %v166, %v6680
      %vm6744 = vcmp.eq.s32.totalorder %v166, %v6684
      %vm6745 = vcmp.eq.s32.totalorder %v167, %v6672
      %vm6746 = vcmp.eq.s32.totalorder %v167, %v6676
      %vm6747 = vcmp.eq.s32.totalorder %v167, %v6680
      %vm6748 = vcmp.eq.s32.totalorder %v167, %v6684
      %vm6749 = vcmp.eq.s32.totalorder %v168, %v6672
      %vm6750 = vcmp.eq.s32.totalorder %v168, %v6676
      %vm6751 = vcmp.eq.s32.totalorder %v168, %v6680
      %vm6752 = vcmp.eq.s32.totalorder %v168, %v6684
      %vm6753 = vcmp.eq.s32.totalorder %v169, %v6672
      %vm6754 = vcmp.eq.s32.totalorder %v169, %v6676
      %vm6755 = vcmp.eq.s32.totalorder %v169, %v6680
      %vm6756 = vcmp.eq.s32.totalorder %v169, %v6684
      %vm6757 = vcmp.eq.s32.totalorder %v170, %v6672
      %vm6758 = vcmp.eq.s32.totalorder %v170, %v6676
      %vm6759 = vcmp.eq.s32.totalorder %v170, %v6680
      %vm6760 = vcmp.eq.s32.totalorder %v170, %v6684
      %vm6761 = vcmp.eq.s32.totalorder %v171, %v6672
      %vm6762 = vcmp.eq.s32.totalorder %v171, %v6676
      %vm6763 = vcmp.eq.s32.totalorder %v171, %v6680
      %vm6764 = vcmp.eq.s32.totalorder %v171, %v6684
      %vm6765 = vcmp.eq.s32.totalorder %v172, %v6672
      %vm6766 = vcmp.eq.s32.totalorder %v172, %v6676
      %vm6767 = vcmp.eq.s32.totalorder %v172, %v6680
      %vm6768 = vcmp.eq.s32.totalorder %v172, %v6684
      %vm6769 = vcmp.eq.s32.totalorder %v173, %v6672
      %vm6770 = vcmp.eq.s32.totalorder %v173, %v6676
      %vm6771 = vcmp.eq.s32.totalorder %v173, %v6680
      %vm6772 = vcmp.eq.s32.totalorder %v173, %v6684
      %vm6773 = vcmp.eq.s32.totalorder %v174, %v6672
      %vm6774 = vcmp.eq.s32.totalorder %v174, %v6676
      %vm6775 = vcmp.eq.s32.totalorder %v174, %v6680
      %vm6776 = vcmp.eq.s32.totalorder %v174, %v6684
      %vm6777 = vcmp.eq.s32.totalorder %v175, %v6672
      %vm6778 = vcmp.eq.s32.totalorder %v175, %v6676
      %vm6779 = vcmp.eq.s32.totalorder %v175, %v6680
      %vm6780 = vcmp.eq.s32.totalorder %v175, %v6684
      %vm6781 = vcmp.eq.s32.totalorder %v176, %v6672
      %vm6782 = vcmp.eq.s32.totalorder %v176, %v6676
      %vm6783 = vcmp.eq.s32.totalorder %v176, %v6680
      %vm6784 = vcmp.eq.s32.totalorder %v176, %v6684
      %vm6785 = vcmp.eq.s32.totalorder %v177, %v6672
      %vm6786 = vcmp.eq.s32.totalorder %v177, %v6676
      %vm6787 = vcmp.eq.s32.totalorder %v177, %v6680
      %vm6788 = vcmp.eq.s32.totalorder %v177, %v6684
      %vm6789 = vcmp.eq.s32.totalorder %v178, %v6672
      %vm6790 = vcmp.eq.s32.totalorder %v178, %v6676
      %vm6791 = vcmp.eq.s32.totalorder %v178, %v6680
      %vm6792 = vcmp.eq.s32.totalorder %v178, %v6684
      %vm6793 = vcmp.eq.s32.totalorder %v179, %v6672
      %vm6794 = vcmp.eq.s32.totalorder %v179, %v6676
      %vm6795 = vcmp.eq.s32.totalorder %v179, %v6680
      %vm6796 = vcmp.eq.s32.totalorder %v179, %v6684
      %vm6797 = vcmp.eq.s32.totalorder %v180, %v6672
      %vm6798 = vcmp.eq.s32.totalorder %v180, %v6676
      %vm6799 = vcmp.eq.s32.totalorder %v180, %v6680
      %vm6800 = vcmp.eq.s32.totalorder %v180, %v6684
      %vm6801 = vcmp.eq.s32.totalorder %v181, %v6672
      %vm6802 = vcmp.eq.s32.totalorder %v181, %v6676
      %vm6803 = vcmp.eq.s32.totalorder %v181, %v6680
      %vm6804 = vcmp.eq.s32.totalorder %v181, %v6684
      %vm6805 = vcmp.eq.s32.totalorder %v182, %v6672
      %vm6806 = vcmp.eq.s32.totalorder %v182, %v6676
      %vm6807 = vcmp.eq.s32.totalorder %v182, %v6680
      %vm6808 = vcmp.eq.s32.totalorder %v182, %v6684
      %vm6809 = vcmp.eq.s32.totalorder %v183, %v6672
      %vm6810 = vcmp.eq.s32.totalorder %v183, %v6676
      %vm6811 = vcmp.eq.s32.totalorder %v183, %v6680
      %vm6812 = vcmp.eq.s32.totalorder %v183, %v6684
      %vm6813 = vcmp.eq.s32.totalorder %v184, %v6672
      %vm6814 = vcmp.eq.s32.totalorder %v184, %v6676
      %vm6815 = vcmp.eq.s32.totalorder %v184, %v6680
      %vm6816 = vcmp.eq.s32.totalorder %v184, %v6684
      %vm6817 = vcmp.eq.s32.totalorder %v185, %v6672
      %vm6818 = vcmp.eq.s32.totalorder %v185, %v6676
      %vm6819 = vcmp.eq.s32.totalorder %v185, %v6680
      %vm6820 = vcmp.eq.s32.totalorder %v185, %v6684
      %vm6821 = vcmp.eq.s32.totalorder %v186, %v6672
      %vm6822 = vcmp.eq.s32.totalorder %v186, %v6676
      %vm6823 = vcmp.eq.s32.totalorder %v186, %v6680
      %vm6824 = vcmp.eq.s32.totalorder %v186, %v6684
      %vm6825 = vcmp.eq.s32.totalorder %v187, %v6672
      %vm6826 = vcmp.eq.s32.totalorder %v187, %v6676
      %vm6827 = vcmp.eq.s32.totalorder %v187, %v6680
      %vm6828 = vcmp.eq.s32.totalorder %v187, %v6684
      %vm6829 = vcmp.eq.s32.totalorder %v188, %v6672
      %vm6830 = vcmp.eq.s32.totalorder %v188, %v6676
      %vm6831 = vcmp.eq.s32.totalorder %v188, %v6680
      %vm6832 = vcmp.eq.s32.totalorder %v188, %v6684
      %vm6833 = vcmp.eq.s32.totalorder %v189, %v6672
      %vm6834 = vcmp.eq.s32.totalorder %v189, %v6676
      %vm6835 = vcmp.eq.s32.totalorder %v189, %v6680
      %vm6836 = vcmp.eq.s32.totalorder %v189, %v6684
      %vm6837 = vcmp.eq.s32.totalorder %v190, %v6672
      %vm6838 = vcmp.eq.s32.totalorder %v190, %v6676
      %vm6839 = vcmp.eq.s32.totalorder %v190, %v6680
      %vm6840 = vcmp.eq.s32.totalorder %v190, %v6684
      %vm6841 = vcmp.eq.s32.totalorder %v191, %v6672
      %vm6842 = vcmp.eq.s32.totalorder %v191, %v6676
      %vm6843 = vcmp.eq.s32.totalorder %v191, %v6680
      %vm6844 = vcmp.eq.s32.totalorder %v191, %v6684
      %vm6845 = vcmp.eq.s32.totalorder %v192, %v6672
      %vm6846 = vcmp.eq.s32.totalorder %v192, %v6676
      %vm6847 = vcmp.eq.s32.totalorder %v192, %v6680
      %vm6848 = vcmp.eq.s32.totalorder %v192, %v6684
      %vm6849 = vcmp.eq.s32.totalorder %v193, %v6672
      %vm6850 = vcmp.eq.s32.totalorder %v193, %v6676
      %vm6851 = vcmp.eq.s32.totalorder %v193, %v6680
      %vm6852 = vcmp.eq.s32.totalorder %v193, %v6684
      %vm6853 = vcmp.eq.s32.totalorder %v194, %v6672
      %vm6854 = vcmp.eq.s32.totalorder %v194, %v6676
      %vm6855 = vcmp.eq.s32.totalorder %v194, %v6680
      %vm6856 = vcmp.eq.s32.totalorder %v194, %v6684
      %vm6857 = vcmp.eq.s32.totalorder %v195, %v6672
      %vm6858 = vcmp.eq.s32.totalorder %v195, %v6676
      %vm6859 = vcmp.eq.s32.totalorder %v195, %v6680
      %vm6860 = vcmp.eq.s32.totalorder %v195, %v6684
      %vm6861 = vcmp.eq.s32.totalorder %v196, %v6672
      %vm6862 = vcmp.eq.s32.totalorder %v196, %v6676
      %vm6863 = vcmp.eq.s32.totalorder %v196, %v6680
      %vm6864 = vcmp.eq.s32.totalorder %v196, %v6684
      %vm6865 = vcmp.eq.s32.totalorder %v197, %v6672
      %vm6866 = vcmp.eq.s32.totalorder %v197, %v6676
      %vm6867 = vcmp.eq.s32.totalorder %v197, %v6680
      %vm6868 = vcmp.eq.s32.totalorder %v197, %v6684
      %vm6869 = vcmp.eq.s32.totalorder %v198, %v6672
      %vm6870 = vcmp.eq.s32.totalorder %v198, %v6676
      %vm6871 = vcmp.eq.s32.totalorder %v198, %v6680
      %vm6872 = vcmp.eq.s32.totalorder %v198, %v6684
      %vm6873 = vcmp.eq.s32.totalorder %v199, %v6672
      %vm6874 = vcmp.eq.s32.totalorder %v199, %v6676
      %vm6875 = vcmp.eq.s32.totalorder %v199, %v6680
      %vm6876 = vcmp.eq.s32.totalorder %v199, %v6684
      %vm6877 = vcmp.eq.s32.totalorder %v200, %v6672
      %vm6878 = vcmp.eq.s32.totalorder %v200, %v6676
      %vm6879 = vcmp.eq.s32.totalorder %v200, %v6680
      %vm6880 = vcmp.eq.s32.totalorder %v200, %v6684
      %vm6881 = vcmp.eq.s32.totalorder %v201, %v6672
      %vm6882 = vcmp.eq.s32.totalorder %v201, %v6676
      %vm6883 = vcmp.eq.s32.totalorder %v201, %v6680
      %vm6884 = vcmp.eq.s32.totalorder %v201, %v6684
      %vm6885 = vcmp.eq.s32.totalorder %v202, %v6672
      %vm6886 = vcmp.eq.s32.totalorder %v202, %v6676
      %vm6887 = vcmp.eq.s32.totalorder %v202, %v6680
      %vm6888 = vcmp.eq.s32.totalorder %v202, %v6684
      %vm6889 = vcmp.eq.s32.totalorder %v203, %v6672
      %vm6890 = vcmp.eq.s32.totalorder %v203, %v6676
      %vm6891 = vcmp.eq.s32.totalorder %v203, %v6680
      %vm6892 = vcmp.eq.s32.totalorder %v203, %v6684
      %vm6893 = vcmp.eq.s32.totalorder %v204, %v6672
      %vm6894 = vcmp.eq.s32.totalorder %v204, %v6676
      %vm6895 = vcmp.eq.s32.totalorder %v204, %v6680
      %vm6896 = vcmp.eq.s32.totalorder %v204, %v6684
      %vm6897 = vcmp.eq.s32.totalorder %v205, %v6672
      %vm6898 = vcmp.eq.s32.totalorder %v205, %v6676
      %vm6899 = vcmp.eq.s32.totalorder %v205, %v6680
      %vm6900 = vcmp.eq.s32.totalorder %v205, %v6684
      %vm6901 = vcmp.eq.s32.totalorder %v206, %v6672
      %vm6902 = vcmp.eq.s32.totalorder %v206, %v6676
      %vm6903 = vcmp.eq.s32.totalorder %v206, %v6680
      %vm6904 = vcmp.eq.s32.totalorder %v206, %v6684
      %vm6905 = vcmp.eq.s32.totalorder %v207, %v6672
      %vm6906 = vcmp.eq.s32.totalorder %v207, %v6676
      %vm6907 = vcmp.eq.s32.totalorder %v207, %v6680
      %vm6908 = vcmp.eq.s32.totalorder %v207, %v6684
      %vm6909 = vcmp.eq.s32.totalorder %v208, %v6672
      %vm6910 = vcmp.eq.s32.totalorder %v208, %v6676
      %vm6911 = vcmp.eq.s32.totalorder %v208, %v6680
      %vm6912 = vcmp.eq.s32.totalorder %v208, %v6684
      %vm6913 = vcmp.eq.s32.totalorder %v209, %v6672
      %vm6914 = vcmp.eq.s32.totalorder %v209, %v6676
      %vm6915 = vcmp.eq.s32.totalorder %v209, %v6680
      %vm6916 = vcmp.eq.s32.totalorder %v209, %v6684
      %vm6917 = vcmp.eq.s32.totalorder %v210, %v6672
      %vm6918 = vcmp.eq.s32.totalorder %v210, %v6676
      %vm6919 = vcmp.eq.s32.totalorder %v210, %v6680
      %vm6920 = vcmp.eq.s32.totalorder %v210, %v6684
      %vm6921 = vcmp.eq.s32.totalorder %v211, %v6672
      %vm6922 = vcmp.eq.s32.totalorder %v211, %v6676
      %vm6923 = vcmp.eq.s32.totalorder %v211, %v6680
      %vm6924 = vcmp.eq.s32.totalorder %v211, %v6684
      %vm6925 = vcmp.eq.s32.totalorder %v212, %v6672
      %vm6926 = vcmp.eq.s32.totalorder %v212, %v6676
      %vm6927 = vcmp.eq.s32.totalorder %v212, %v6680
      %vm6928 = vcmp.eq.s32.totalorder %v212, %v6684
      %vm6929 = vcmp.eq.s32.totalorder %v213, %v6672
      %vm6930 = vcmp.eq.s32.totalorder %v213, %v6676
      %vm6931 = vcmp.eq.s32.totalorder %v213, %v6680
      %vm6932 = vcmp.eq.s32.totalorder %v213, %v6684
      %vm6933 = vcmp.eq.s32.totalorder %v214, %v6672
      %vm6934 = vcmp.eq.s32.totalorder %v214, %v6676
      %vm6935 = vcmp.eq.s32.totalorder %v214, %v6680
      %vm6936 = vcmp.eq.s32.totalorder %v214, %v6684
      %vm6937 = vcmp.eq.s32.totalorder %v215, %v6672
      %vm6938 = vcmp.eq.s32.totalorder %v215, %v6676
      %vm6939 = vcmp.eq.s32.totalorder %v215, %v6680
      %vm6940 = vcmp.eq.s32.totalorder %v215, %v6684
      %v6941 = vsel %vm6685, 1, 0
      %v6942 = vsel %vm6686, 1, 0
      %v6943 = vsel %vm6687, 1, 0
      %v6944 = vsel %vm6688, 1, 0
      %v6945 = vsel %vm6689, 1, 0
      %v6946 = vsel %vm6690, 1, 0
      %v6947 = vsel %vm6691, 1, 0
      %v6948 = vsel %vm6692, 1, 0
      %v6949 = vsel %vm6693, 1, 0
      %v6950 = vsel %vm6694, 1, 0
      %v6951 = vsel %vm6695, 1, 0
      %v6952 = vsel %vm6696, 1, 0
      %v6953 = vsel %vm6697, 1, 0
      %v6954 = vsel %vm6698, 1, 0
      %v6955 = vsel %vm6699, 1, 0
      %v6956 = vsel %vm6700, 1, 0
      %v6957 = vsel %vm6701, 1, 0
      %v6958 = vsel %vm6702, 1, 0
      %v6959 = vsel %vm6703, 1, 0
      %v6960 = vsel %vm6704, 1, 0
      %v6961 = vsel %vm6705, 1, 0
      %v6962 = vsel %vm6706, 1, 0
      %v6963 = vsel %vm6707, 1, 0
      %v6964 = vsel %vm6708, 1, 0
      %v6965 = vsel %vm6709, 1, 0
      %v6966 = vsel %vm6710, 1, 0
      %v6967 = vsel %vm6711, 1, 0
      %v6968 = vsel %vm6712, 1, 0
      %v6969 = vsel %vm6713, 1, 0
      %v6970 = vsel %vm6714, 1, 0
      %v6971 = vsel %vm6715, 1, 0
      %v6972 = vsel %vm6716, 1, 0
      %v6973 = vsel %vm6717, 1, 0
      %v6974 = vsel %vm6718, 1, 0
      %v6975 = vsel %vm6719, 1, 0
      %v6976 = vsel %vm6720, 1, 0
      %v6977 = vsel %vm6721, 1, 0
      %v6978 = vsel %vm6722, 1, 0
      %v6979 = vsel %vm6723, 1, 0
      %v6980 = vsel %vm6724, 1, 0
      %v6981 = vsel %vm6725, 1, 0
      %v6982 = vsel %vm6726, 1, 0
      %v6983 = vsel %vm6727, 1, 0
      %v6984 = vsel %vm6728, 1, 0
      %v6985 = vsel %vm6729, 1, 0
      %v6986 = vsel %vm6730, 1, 0
      %v6987 = vsel %vm6731, 1, 0
      %v6988 = vsel %vm6732, 1, 0
      %v6989 = vsel %vm6733, 1, 0
      %v6990 = vsel %vm6734, 1, 0
      %v6991 = vsel %vm6735, 1, 0
      %v6992 = vsel %vm6736, 1, 0
      %v6993 = vsel %vm6737, 1, 0
      %v6994 = vsel %vm6738, 1, 0
      %v6995 = vsel %vm6739, 1, 0
      %v6996 = vsel %vm6740, 1, 0
      %v6997 = vsel %vm6741, 1, 0
      %v6998 = vsel %vm6742, 1, 0
      %v6999 = vsel %vm6743, 1, 0
      %v7000 = vsel %vm6744, 1, 0
      %v7001 = vsel %vm6745, 1, 0
      %v7002 = vsel %vm6746, 1, 0
      %v7003 = vsel %vm6747, 1, 0
      %v7004 = vsel %vm6748, 1, 0
      %v7005 = vsel %vm6749, 1, 0
      %v7006 = vsel %vm6750, 1, 0
      %v7007 = vsel %vm6751, 1, 0
      %v7008 = vsel %vm6752, 1, 0
      %v7009 = vsel %vm6753, 1, 0
      %v7010 = vsel %vm6754, 1, 0
      %v7011 = vsel %vm6755, 1, 0
      %v7012 = vsel %vm6756, 1, 0
      %v7013 = vsel %vm6757, 1, 0
      %v7014 = vsel %vm6758, 1, 0
      %v7015 = vsel %vm6759, 1, 0
      %v7016 = vsel %vm6760, 1, 0
      %v7017 = vsel %vm6761, 1, 0
      %v7018 = vsel %vm6762, 1, 0
      %v7019 = vsel %vm6763, 1, 0
      %v7020 = vsel %vm6764, 1, 0
      %v7021 = vsel %vm6765, 1, 0
      %v7022 = vsel %vm6766, 1, 0
      %v7023 = vsel %vm6767, 1, 0
      %v7024 = vsel %vm6768, 1, 0
      %v7025 = vsel %vm6769, 1, 0
      %v7026 = vsel %vm6770, 1, 0
      %v7027 = vsel %vm6771, 1, 0
      %v7028 = vsel %vm6772, 1, 0
      %v7029 = vsel %vm6773, 1, 0
      %v7030 = vsel %vm6774, 1, 0
      %v7031 = vsel %vm6775, 1, 0
      %v7032 = vsel %vm6776, 1, 0
      %v7033 = vsel %vm6777, 1, 0
      %v7034 = vsel %vm6778, 1, 0
      %v7035 = vsel %vm6779, 1, 0
      %v7036 = vsel %vm6780, 1, 0
      %v7037 = vsel %vm6781, 1, 0
      %v7038 = vsel %vm6782, 1, 0
      %v7039 = vsel %vm6783, 1, 0
      %v7040 = vsel %vm6784, 1, 0
      %v7041 = vsel %vm6785, 1, 0
      %v7042 = vsel %vm6786, 1, 0
      %v7043 = vsel %vm6787, 1, 0
      %v7044 = vsel %vm6788, 1, 0
      %v7045 = vsel %vm6789, 1, 0
      %v7046 = vsel %vm6790, 1, 0
      %v7047 = vsel %vm6791, 1, 0
      %v7048 = vsel %vm6792, 1, 0
      %v7049 = vsel %vm6793, 1, 0
      %v7050 = vsel %vm6794, 1, 0
      %v7051 = vsel %vm6795, 1, 0
      %v7052 = vsel %vm6796, 1, 0
      %v7053 = vsel %vm6797, 1, 0
      %v7054 = vsel %vm6798, 1, 0
      %v7055 = vsel %vm6799, 1, 0
      %v7056 = vsel %vm6800, 1, 0
      %v7057 = vsel %vm6801, 1, 0
      %v7058 = vsel %vm6802, 1, 0
      %v7059 = vsel %vm6803, 1, 0
      %v7060 = vsel %vm6804, 1, 0
      %v7061 = vsel %vm6805, 1, 0
      %v7062 = vsel %vm6806, 1, 0
      %v7063 = vsel %vm6807, 1, 0
      %v7064 = vsel %vm6808, 1, 0
      %v7065 = vsel %vm6809, 1, 0
      %v7066 = vsel %vm6810, 1, 0
      %v7067 = vsel %vm6811, 1, 0
      %v7068 = vsel %vm6812, 1, 0
      %v7069 = vsel %vm6813, 1, 0
      %v7070 = vsel %vm6814, 1, 0
      %v7071 = vsel %vm6815, 1, 0
      %v7072 = vsel %vm6816, 1, 0
      %v7073 = vsel %vm6817, 1, 0
      %v7074 = vsel %vm6818, 1, 0
      %v7075 = vsel %vm6819, 1, 0
      %v7076 = vsel %vm6820, 1, 0
      %v7077 = vsel %vm6821, 1, 0
      %v7078 = vsel %vm6822, 1, 0
      %v7079 = vsel %vm6823, 1, 0
      %v7080 = vsel %vm6824, 1, 0
      %v7081 = vsel %vm6825, 1, 0
      %v7082 = vsel %vm6826, 1, 0
      %v7083 = vsel %vm6827, 1, 0
      %v7084 = vsel %vm6828, 1, 0
      %v7085 = vsel %vm6829, 1, 0
      %v7086 = vsel %vm6830, 1, 0
      %v7087 = vsel %vm6831, 1, 0
      %v7088 = vsel %vm6832, 1, 0
      %v7089 = vsel %vm6833, 1, 0
      %v7090 = vsel %vm6834, 1, 0
      %v7091 = vsel %vm6835, 1, 0
      %v7092 = vsel %vm6836, 1, 0
      %v7093 = vsel %vm6837, 1, 0
      %v7094 = vsel %vm6838, 1, 0
      %v7095 = vsel %vm6839, 1, 0
      %v7096 = vsel %vm6840, 1, 0
      %v7097 = vsel %vm6841, 1, 0
      %v7098 = vsel %vm6842, 1, 0
      %v7099 = vsel %vm6843, 1, 0
      %v7100 = vsel %vm6844, 1, 0
      %v7101 = vsel %vm6845, 1, 0
      %v7102 = vsel %vm6846, 1, 0
      %v7103 = vsel %vm6847, 1, 0
      %v7104 = vsel %vm6848, 1, 0
      %v7105 = vsel %vm6849, 1, 0
      %v7106 = vsel %vm6850, 1, 0
      %v7107 = vsel %vm6851, 1, 0
      %v7108 = vsel %vm6852, 1, 0
      %v7109 = vsel %vm6853, 1, 0
      %v7110 = vsel %vm6854, 1, 0
      %v7111 = vsel %vm6855, 1, 0
      %v7112 = vsel %vm6856, 1, 0
      %v7113 = vsel %vm6857, 1, 0
      %v7114 = vsel %vm6858, 1, 0
      %v7115 = vsel %vm6859, 1, 0
      %v7116 = vsel %vm6860, 1, 0
      %v7117 = vsel %vm6861, 1, 0
      %v7118 = vsel %vm6862, 1, 0
      %v7119 = vsel %vm6863, 1, 0
      %v7120 = vsel %vm6864, 1, 0
      %v7121 = vsel %vm6865, 1, 0
      %v7122 = vsel %vm6866, 1, 0
      %v7123 = vsel %vm6867, 1, 0
      %v7124 = vsel %vm6868, 1, 0
      %v7125 = vsel %vm6869, 1, 0
      %v7126 = vsel %vm6870, 1, 0
      %v7127 = vsel %vm6871, 1, 0
      %v7128 = vsel %vm6872, 1, 0
      %v7129 = vsel %vm6873, 1, 0
      %v7130 = vsel %vm6874, 1, 0
      %v7131 = vsel %vm6875, 1, 0
      %v7132 = vsel %vm6876, 1, 0
      %v7133 = vsel %vm6877, 1, 0
      %v7134 = vsel %vm6878, 1, 0
      %v7135 = vsel %vm6879, 1, 0
      %v7136 = vsel %vm6880, 1, 0
      %v7137 = vsel %vm6881, 1, 0
      %v7138 = vsel %vm6882, 1, 0
      %v7139 = vsel %vm6883, 1, 0
      %v7140 = vsel %vm6884, 1, 0
      %v7141 = vsel %vm6885, 1, 0
      %v7142 = vsel %vm6886, 1, 0
      %v7143 = vsel %vm6887, 1, 0
      %v7144 = vsel %vm6888, 1, 0
      %v7145 = vsel %vm6889, 1, 0
      %v7146 = vsel %vm6890, 1, 0
      %v7147 = vsel %vm6891, 1, 0
      %v7148 = vsel %vm6892, 1, 0
      %v7149 = vsel %vm6893, 1, 0
      %v7150 = vsel %vm6894, 1, 0
      %v7151 = vsel %vm6895, 1, 0
      %v7152 = vsel %vm6896, 1, 0
      %v7153 = vsel %vm6897, 1, 0
      %v7154 = vsel %vm6898, 1, 0
      %v7155 = vsel %vm6899, 1, 0
      %v7156 = vsel %vm6900, 1, 0
      %v7157 = vsel %vm6901, 1, 0
      %v7158 = vsel %vm6902, 1, 0
      %v7159 = vsel %vm6903, 1, 0
      %v7160 = vsel %vm6904, 1, 0
      %v7161 = vsel %vm6905, 1, 0
      %v7162 = vsel %vm6906, 1, 0
      %v7163 = vsel %vm6907, 1, 0
      %v7164 = vsel %vm6908, 1, 0
      %v7165 = vsel %vm6909, 1, 0
      %v7166 = vsel %vm6910, 1, 0
      %v7167 = vsel %vm6911, 1, 0
      %v7168 = vsel %vm6912, 1, 0
      %v7169 = vsel %vm6913, 1, 0
      %v7170 = vsel %vm6914, 1, 0
      %v7171 = vsel %vm6915, 1, 0
      %v7172 = vsel %vm6916, 1, 0
      %v7173 = vsel %vm6917, 1, 0
      %v7174 = vsel %vm6918, 1, 0
      %v7175 = vsel %vm6919, 1, 0
      %v7176 = vsel %vm6920, 1, 0
      %v7177 = vsel %vm6921, 1, 0
      %v7178 = vsel %vm6922, 1, 0
      %v7179 = vsel %vm6923, 1, 0
      %v7180 = vsel %vm6924, 1, 0
      %v7181 = vsel %vm6925, 1, 0
      %v7182 = vsel %vm6926, 1, 0
      %v7183 = vsel %vm6927, 1, 0
      %v7184 = vsel %vm6928, 1, 0
      %v7185 = vsel %vm6929, 1, 0
      %v7186 = vsel %vm6930, 1, 0
      %v7187 = vsel %vm6931, 1, 0
      %v7188 = vsel %vm6932, 1, 0
      %v7189 = vsel %vm6933, 1, 0
      %v7190 = vsel %vm6934, 1, 0
      %v7191 = vsel %vm6935, 1, 0
      %v7192 = vsel %vm6936, 1, 0
      %v7193 = vsel %vm6937, 1, 0
      %v7194 = vsel %vm6938, 1, 0
      %v7195 = vsel %vm6939, 1, 0
      %v7196 = vsel %vm6940, 1, 0
      %v7197 = vcvt.s32.f32 %v6941
      %v7198 = vcvt.s32.f32 %v6942
      %v7199 = vcvt.s32.f32 %v6943
      %v7200 = vcvt.s32.f32 %v6944
      %v7201 = vcvt.s32.f32 %v6945
      %v7202 = vcvt.s32.f32 %v6946
      %v7203 = vcvt.s32.f32 %v6947
      %v7204 = vcvt.s32.f32 %v6948
      %v7205 = vcvt.s32.f32 %v6949
      %v7206 = vcvt.s32.f32 %v6950
      %v7207 = vcvt.s32.f32 %v6951
      %v7208 = vcvt.s32.f32 %v6952
      %v7209 = vcvt.s32.f32 %v6953
      %v7210 = vcvt.s32.f32 %v6954
      %v7211 = vcvt.s32.f32 %v6955
      %v7212 = vcvt.s32.f32 %v6956
      %v7213 = vcvt.s32.f32 %v6957
      %v7214 = vcvt.s32.f32 %v6958
      %v7215 = vcvt.s32.f32 %v6959
      %v7216 = vcvt.s32.f32 %v6960
      %v7217 = vcvt.s32.f32 %v6961
      %v7218 = vcvt.s32.f32 %v6962
      %v7219 = vcvt.s32.f32 %v6963
      %v7220 = vcvt.s32.f32 %v6964
      %v7221 = vcvt.s32.f32 %v6965
      %v7222 = vcvt.s32.f32 %v6966
      %v7223 = vcvt.s32.f32 %v6967
      %v7224 = vcvt.s32.f32 %v6968
      %v7225 = vcvt.s32.f32 %v6969
      %v7226 = vcvt.s32.f32 %v6970
      %v7227 = vcvt.s32.f32 %v6971
      %v7228 = vcvt.s32.f32 %v6972
      %v7229 = vcvt.s32.f32 %v6973
      %v7230 = vcvt.s32.f32 %v6974
      %v7231 = vcvt.s32.f32 %v6975
      %v7232 = vcvt.s32.f32 %v6976
      %v7233 = vcvt.s32.f32 %v6977
      %v7234 = vcvt.s32.f32 %v6978
      %v7235 = vcvt.s32.f32 %v6979
      %v7236 = vcvt.s32.f32 %v6980
      %v7237 = vcvt.s32.f32 %v6981
      %v7238 = vcvt.s32.f32 %v6982
      %v7239 = vcvt.s32.f32 %v6983
      %v7240 = vcvt.s32.f32 %v6984
      %v7241 = vcvt.s32.f32 %v6985
      %v7242 = vcvt.s32.f32 %v6986
      %v7243 = vcvt.s32.f32 %v6987
      %v7244 = vcvt.s32.f32 %v6988
      %v7245 = vcvt.s32.f32 %v6989
      %v7246 = vcvt.s32.f32 %v6990
      %v7247 = vcvt.s32.f32 %v6991
      %v7248 = vcvt.s32.f32 %v6992
      %v7249 = vcvt.s32.f32 %v6993
      %v7250 = vcvt.s32.f32 %v6994
      %v7251 = vcvt.s32.f32 %v6995
      %v7252 = vcvt.s32.f32 %v6996
      %v7253 = vcvt.s32.f32 %v6997
      %v7254 = vcvt.s32.f32 %v6998
      %v7255 = vcvt.s32.f32 %v6999
      %v7256 = vcvt.s32.f32 %v7000
      %v7257 = vcvt.s32.f32 %v7001
      %v7258 = vcvt.s32.f32 %v7002
      %v7259 = vcvt.s32.f32 %v7003
      %v7260 = vcvt.s32.f32 %v7004
      %v7261 = vcvt.s32.f32 %v7005
      %v7262 = vcvt.s32.f32 %v7006
      %v7263 = vcvt.s32.f32 %v7007
      %v7264 = vcvt.s32.f32 %v7008
      %v7265 = vcvt.s32.f32 %v7009
      %v7266 = vcvt.s32.f32 %v7010
      %v7267 = vcvt.s32.f32 %v7011
      %v7268 = vcvt.s32.f32 %v7012
      %v7269 = vcvt.s32.f32 %v7013
      %v7270 = vcvt.s32.f32 %v7014
      %v7271 = vcvt.s32.f32 %v7015
      %v7272 = vcvt.s32.f32 %v7016
      %v7273 = vcvt.s32.f32 %v7017
      %v7274 = vcvt.s32.f32 %v7018
      %v7275 = vcvt.s32.f32 %v7019
      %v7276 = vcvt.s32.f32 %v7020
      %v7277 = vcvt.s32.f32 %v7021
      %v7278 = vcvt.s32.f32 %v7022
      %v7279 = vcvt.s32.f32 %v7023
      %v7280 = vcvt.s32.f32 %v7024
      %v7281 = vcvt.s32.f32 %v7025
      %v7282 = vcvt.s32.f32 %v7026
      %v7283 = vcvt.s32.f32 %v7027
      %v7284 = vcvt.s32.f32 %v7028
      %v7285 = vcvt.s32.f32 %v7029
      %v7286 = vcvt.s32.f32 %v7030
      %v7287 = vcvt.s32.f32 %v7031
      %v7288 = vcvt.s32.f32 %v7032
      %v7289 = vcvt.s32.f32 %v7033
      %v7290 = vcvt.s32.f32 %v7034
      %v7291 = vcvt.s32.f32 %v7035
      %v7292 = vcvt.s32.f32 %v7036
      %v7293 = vcvt.s32.f32 %v7037
      %v7294 = vcvt.s32.f32 %v7038
      %v7295 = vcvt.s32.f32 %v7039
      %v7296 = vcvt.s32.f32 %v7040
      %v7297 = vcvt.s32.f32 %v7041
      %v7298 = vcvt.s32.f32 %v7042
      %v7299 = vcvt.s32.f32 %v7043
      %v7300 = vcvt.s32.f32 %v7044
      %v7301 = vcvt.s32.f32 %v7045
      %v7302 = vcvt.s32.f32 %v7046
      %v7303 = vcvt.s32.f32 %v7047
      %v7304 = vcvt.s32.f32 %v7048
      %v7305 = vcvt.s32.f32 %v7049
      %v7306 = vcvt.s32.f32 %v7050
      %v7307 = vcvt.s32.f32 %v7051
      %v7308 = vcvt.s32.f32 %v7052
      %v7309 = vcvt.s32.f32 %v7053
      %v7310 = vcvt.s32.f32 %v7054
      %v7311 = vcvt.s32.f32 %v7055
      %v7312 = vcvt.s32.f32 %v7056
      %v7313 = vcvt.s32.f32 %v7057
      %v7314 = vcvt.s32.f32 %v7058
      %v7315 = vcvt.s32.f32 %v7059
      %v7316 = vcvt.s32.f32 %v7060
      %v7317 = vcvt.s32.f32 %v7061
      %v7318 = vcvt.s32.f32 %v7062
      %v7319 = vcvt.s32.f32 %v7063
      %v7320 = vcvt.s32.f32 %v7064
      %v7321 = vcvt.s32.f32 %v7065
      %v7322 = vcvt.s32.f32 %v7066
      %v7323 = vcvt.s32.f32 %v7067
      %v7324 = vcvt.s32.f32 %v7068
      %v7325 = vcvt.s32.f32 %v7069
      %v7326 = vcvt.s32.f32 %v7070
      %v7327 = vcvt.s32.f32 %v7071
      %v7328 = vcvt.s32.f32 %v7072
      %v7329 = vcvt.s32.f32 %v7073
      %v7330 = vcvt.s32.f32 %v7074
      %v7331 = vcvt.s32.f32 %v7075
      %v7332 = vcvt.s32.f32 %v7076
      %v7333 = vcvt.s32.f32 %v7077
      %v7334 = vcvt.s32.f32 %v7078
      %v7335 = vcvt.s32.f32 %v7079
      %v7336 = vcvt.s32.f32 %v7080
      %v7337 = vcvt.s32.f32 %v7081
      %v7338 = vcvt.s32.f32 %v7082
      %v7339 = vcvt.s32.f32 %v7083
      %v7340 = vcvt.s32.f32 %v7084
      %v7341 = vcvt.s32.f32 %v7085
      %v7342 = vcvt.s32.f32 %v7086
      %v7343 = vcvt.s32.f32 %v7087
      %v7344 = vcvt.s32.f32 %v7088
      %v7345 = vcvt.s32.f32 %v7089
      %v7346 = vcvt.s32.f32 %v7090
      %v7347 = vcvt.s32.f32 %v7091
      %v7348 = vcvt.s32.f32 %v7092
      %v7349 = vcvt.s32.f32 %v7093
      %v7350 = vcvt.s32.f32 %v7094
      %v7351 = vcvt.s32.f32 %v7095
      %v7352 = vcvt.s32.f32 %v7096
      %v7353 = vcvt.s32.f32 %v7097
      %v7354 = vcvt.s32.f32 %v7098
      %v7355 = vcvt.s32.f32 %v7099
      %v7356 = vcvt.s32.f32 %v7100
      %v7357 = vcvt.s32.f32 %v7101
      %v7358 = vcvt.s32.f32 %v7102
      %v7359 = vcvt.s32.f32 %v7103
      %v7360 = vcvt.s32.f32 %v7104
      %v7361 = vcvt.s32.f32 %v7105
      %v7362 = vcvt.s32.f32 %v7106
      %v7363 = vcvt.s32.f32 %v7107
      %v7364 = vcvt.s32.f32 %v7108
      %v7365 = vcvt.s32.f32 %v7109
      %v7366 = vcvt.s32.f32 %v7110
      %v7367 = vcvt.s32.f32 %v7111
      %v7368 = vcvt.s32.f32 %v7112
      %v7369 = vcvt.s32.f32 %v7113
      %v7370 = vcvt.s32.f32 %v7114
      %v7371 = vcvt.s32.f32 %v7115
      %v7372 = vcvt.s32.f32 %v7116
      %v7373 = vcvt.s32.f32 %v7117
      %v7374 = vcvt.s32.f32 %v7118
      %v7375 = vcvt.s32.f32 %v7119
      %v7376 = vcvt.s32.f32 %v7120
      %v7377 = vcvt.s32.f32 %v7121
      %v7378 = vcvt.s32.f32 %v7122
      %v7379 = vcvt.s32.f32 %v7123
      %v7380 = vcvt.s32.f32 %v7124
      %v7381 = vcvt.s32.f32 %v7125
      %v7382 = vcvt.s32.f32 %v7126
      %v7383 = vcvt.s32.f32 %v7127
      %v7384 = vcvt.s32.f32 %v7128
      %v7385 = vcvt.s32.f32 %v7129
      %v7386 = vcvt.s32.f32 %v7130
      %v7387 = vcvt.s32.f32 %v7131
      %v7388 = vcvt.s32.f32 %v7132
      %v7389 = vcvt.s32.f32 %v7133
      %v7390 = vcvt.s32.f32 %v7134
      %v7391 = vcvt.s32.f32 %v7135
      %v7392 = vcvt.s32.f32 %v7136
      %v7393 = vcvt.s32.f32 %v7137
      %v7394 = vcvt.s32.f32 %v7138
      %v7395 = vcvt.s32.f32 %v7139
      %v7396 = vcvt.s32.f32 %v7140
      %v7397 = vcvt.s32.f32 %v7141
      %v7398 = vcvt.s32.f32 %v7142
      %v7399 = vcvt.s32.f32 %v7143
      %v7400 = vcvt.s32.f32 %v7144
      %v7401 = vcvt.s32.f32 %v7145
      %v7402 = vcvt.s32.f32 %v7146
      %v7403 = vcvt.s32.f32 %v7147
      %v7404 = vcvt.s32.f32 %v7148
      %v7405 = vcvt.s32.f32 %v7149
      %v7406 = vcvt.s32.f32 %v7150
      %v7407 = vcvt.s32.f32 %v7151
      %v7408 = vcvt.s32.f32 %v7152
      %v7409 = vcvt.s32.f32 %v7153
      %v7410 = vcvt.s32.f32 %v7154
      %v7411 = vcvt.s32.f32 %v7155
      %v7412 = vcvt.s32.f32 %v7156
      %v7413 = vcvt.s32.f32 %v7157
      %v7414 = vcvt.s32.f32 %v7158
      %v7415 = vcvt.s32.f32 %v7159
      %v7416 = vcvt.s32.f32 %v7160
      %v7417 = vcvt.s32.f32 %v7161
      %v7418 = vcvt.s32.f32 %v7162
      %v7419 = vcvt.s32.f32 %v7163
      %v7420 = vcvt.s32.f32 %v7164
      %v7421 = vcvt.s32.f32 %v7165
      %v7422 = vcvt.s32.f32 %v7166
      %v7423 = vcvt.s32.f32 %v7167
      %v7424 = vcvt.s32.f32 %v7168
      %v7425 = vcvt.s32.f32 %v7169
      %v7426 = vcvt.s32.f32 %v7170
      %v7427 = vcvt.s32.f32 %v7171
      %v7428 = vcvt.s32.f32 %v7172
      %v7429 = vcvt.s32.f32 %v7173
      %v7430 = vcvt.s32.f32 %v7174
      %v7431 = vcvt.s32.f32 %v7175
      %v7432 = vcvt.s32.f32 %v7176
      %v7433 = vcvt.s32.f32 %v7177
      %v7434 = vcvt.s32.f32 %v7178
      %v7435 = vcvt.s32.f32 %v7179
      %v7436 = vcvt.s32.f32 %v7180
      %v7437 = vcvt.s32.f32 %v7181
      %v7438 = vcvt.s32.f32 %v7182
      %v7439 = vcvt.s32.f32 %v7183
      %v7440 = vcvt.s32.f32 %v7184
      %v7441 = vcvt.s32.f32 %v7185
      %v7442 = vcvt.s32.f32 %v7186
      %v7443 = vcvt.s32.f32 %v7187
      %v7444 = vcvt.s32.f32 %v7188
      %v7445 = vcvt.s32.f32 %v7189
      %v7446 = vcvt.s32.f32 %v7190
      %v7447 = vcvt.s32.f32 %v7191
      %v7448 = vcvt.s32.f32 %v7192
      %v7449 = vcvt.s32.f32 %v7193
      %v7450 = vcvt.s32.f32 %v7194
      %v7451 = vcvt.s32.f32 %v7195
      %v7452 = vcvt.s32.f32 %v7196
      %s7453 = scalar_lea.vmem %s1, 192
      %v7454 = vld [vmem:[%s7453] sm:$0xff]
      %v7455 = vld [vmem:[%s7453 + $0x8] sm:$0xff]
      %v7456 = vld [vmem:[%s7453 + $0x10] sm:$0xff]
      %v7457 = vld [vmem:[%s7453 + $0x18] sm:$0xff]
      %7458 = vmatprep.subr.mxu0 %v7258
      %7459 = vmatpush1.msra.mxu0 %v7257
      %7460 = vmatprep.subr.mxu0 %v7254
      %7461 = vmatpush1.msra.mxu0 %v7253
      %7462 = vmatprep.subr.mxu0 %v7250
      %7463 = vmatpush1.msra.mxu0 %v7249
      %7464 = vmatprep.subr.mxu0 %v7246
      %7465 = vmatpush1.msra.mxu0 %v7245
      %7466 = vmatprep.subr.mxu0 %v7242
      %7467 = vmatpush1.msra.mxu0 %v7241
      %7468 = vmatprep.subr.mxu0 %v7238
      %7469 = vmatpush1.msra.mxu0 %v7237
      %7470 = vmatprep.subr.mxu0 %v7234
      %7471 = vmatpush1.msra.mxu0 %v7233
      %7472 = vmatprep.subr.mxu0 %v7230
      %7473 = vmatpush1.msra.mxu0 %v7229
      %7474 = vmatprep.subr.mxu0 %v7226
      %7475 = vmatpush1.msra.mxu0 %v7225
      %7476 = vmatprep.subr.mxu0 %v7222
      %7477 = vmatpush1.msra.mxu0 %v7221
      %7478 = vmatprep.subr.mxu0 %v7218
      %7479 = vmatpush1.msra.mxu0 %v7217
      %7480 = vmatprep.subr.mxu0 %v7214
      %7481 = vmatpush1.msra.mxu0 %v7213
      %7482 = vmatprep.subr.mxu0 %v7210
      %7483 = vmatpush1.msra.mxu0 %v7209
      %7484 = vmatprep.subr.mxu0 %v7206
      %7485 = vmatpush1.msra.mxu0 %v7205
      %7486 = vmatprep.subr.mxu0 %v7202
      %7487 = vmatpush1.msra.mxu0 %v7201
      %7488 = vmatprep.subr.mxu0 %v7198
      %7489 = vmatpush1.msra.mxu0 %v7197
      %7490 = vmatprep.subr.mxu0 %v7322
      %7491 = vmatpush2.msra.mxu0 %v7321
      %7492 = vmatprep.subr.mxu0 %v7318
      %7493 = vmatpush2.msra.mxu0 %v7317
      %7494 = vmatprep.subr.mxu0 %v7314
      %7495 = vmatpush2.msra.mxu0 %v7313
      %7496 = vmatprep.subr.mxu0 %v7310
      %7497 = vmatpush2.msra.mxu0 %v7309
      %7498 = vmatprep.subr.mxu0 %v7306
      %7499 = vmatpush2.msra.mxu0 %v7305
      %7500 = vmatprep.subr.mxu0 %v7302
      %7501 = vmatpush2.msra.mxu0 %v7301
      %7502 = vmatprep.subr.mxu0 %v7298
      %7503 = vmatpush2.msra.mxu0 %v7297
      %7504 = vmatprep.subr.mxu0 %v7294
      %7505 = vmatpush2.msra.mxu0 %v7293
      %7506 = vmatprep.subr.mxu0 %v7290
      %7507 = vmatpush2.msra.mxu0 %v7289
      %7508 = vmatprep.subr.mxu0 %v7286
      %7509 = vmatpush2.msra.mxu0 %v7285
      %7510 = vmatprep.subr.mxu0 %v7282
      %7511 = vmatpush2.msra.mxu0 %v7281
      %7512 = vmatprep.subr.mxu0 %v7278
      %7513 = vmatpush2.msra.mxu0 %v7277
      %7514 = vmatprep.subr.mxu0 %v7274
      %7515 = vmatpush2.msra.mxu0 %v7273
      %7516 = vmatprep.subr.mxu0 %v7270
      %7517 = vmatpush2.msra.mxu0 %v7269
      %7518 = vmatprep.subr.mxu0 %v7266
      %7519 = vmatpush2.msra.mxu0 %v7265
      %7520 = vmatprep.subr.mxu0 %v7262
      %7521 = vmatpush2.msra.mxu0 %v7261
      %7522 = vmatprep.mubr.f32.mxu0 %v7455
      %7523 = vmatmul.mubr.f32.gmra.mxu0 %v7454
      %v7524 = vpop.f32.mrf.mxu0
      %v7525 = vadd.f32 0.0, %v7524
      %v7526 = vpop.f32.mrf.mxu0
      %v7527 = vadd.f32 0.0, %v7526
      %7528 = vdwg.mxu0
      %7529 = vmatprep.subr.mxu0 %v7386
      %7530 = vmatpush1.msra.mxu0 %v7385
      %7531 = vmatprep.subr.mxu0 %v7382
      %7532 = vmatpush1.msra.mxu0 %v7381
      %7533 = vmatprep.subr.mxu0 %v7378
      %7534 = vmatpush1.msra.mxu0 %v7377
      %7535 = vmatprep.subr.mxu0 %v7374
      %7536 = vmatpush1.msra.mxu0 %v7373
      %7537 = vmatprep.subr.mxu0 %v7370
      %7538 = vmatpush1.msra.mxu0 %v7369
      %7539 = vmatprep.subr.mxu0 %v7366
      %7540 = vmatpush1.msra.mxu0 %v7365
      %7541 = vmatprep.subr.mxu0 %v7362
      %7542 = vmatpush1.msra.mxu0 %v7361
      %7543 = vmatprep.subr.mxu0 %v7358
      %7544 = vmatpush1.msra.mxu0 %v7357
      %7545 = vmatprep.subr.mxu0 %v7354
      %7546 = vmatpush1.msra.mxu0 %v7353
      %7547 = vmatprep.subr.mxu0 %v7350
      %7548 = vmatpush1.msra.mxu0 %v7349
      %7549 = vmatprep.subr.mxu0 %v7346
      %7550 = vmatpush1.msra.mxu0 %v7345
      %7551 = vmatprep.subr.mxu0 %v7342
      %7552 = vmatpush1.msra.mxu0 %v7341
      %7553 = vmatprep.subr.mxu0 %v7338
      %7554 = vmatpush1.msra.mxu0 %v7337
      %7555 = vmatprep.subr.mxu0 %v7334
      %7556 = vmatpush1.msra.mxu0 %v7333
      %7557 = vmatprep.subr.mxu0 %v7330
      %7558 = vmatpush1.msra.mxu0 %v7329
      %7559 = vmatprep.subr.mxu0 %v7326
      %7560 = vmatpush1.msra.mxu0 %v7325
      %7561 = vmatprep.subr.mxu0 %v7450
      %7562 = vmatpush2.msra.mxu0 %v7449
      %7563 = vmatprep.subr.mxu0 %v7446
      %7564 = vmatpush2.msra.mxu0 %v7445
      %7565 = vmatprep.subr.mxu0 %v7442
      %7566 = vmatpush2.msra.mxu0 %v7441
      %7567 = vmatprep.subr.mxu0 %v7438
      %7568 = vmatpush2.msra.mxu0 %v7437
      %7569 = vmatprep.subr.mxu0 %v7434
      %7570 = vmatpush2.msra.mxu0 %v7433
      %7571 = vmatprep.subr.mxu0 %v7430
      %7572 = vmatpush2.msra.mxu0 %v7429
      %7573 = vmatprep.subr.mxu0 %v7426
      %7574 = vmatpush2.msra.mxu0 %v7425
      %7575 = vmatprep.subr.mxu0 %v7422
      %7576 = vmatpush2.msra.mxu0 %v7421
      %7577 = vmatprep.subr.mxu0 %v7418
      %7578 = vmatpush2.msra.mxu0 %v7417
      %7579 = vmatprep.subr.mxu0 %v7414
      %7580 = vmatpush2.msra.mxu0 %v7413
      %7581 = vmatprep.subr.mxu0 %v7410
      %7582 = vmatpush2.msra.mxu0 %v7409
      %7583 = vmatprep.subr.mxu0 %v7406
      %7584 = vmatpush2.msra.mxu0 %v7405
      %7585 = vmatprep.subr.mxu0 %v7402
      %7586 = vmatpush2.msra.mxu0 %v7401
      %7587 = vmatprep.subr.mxu0 %v7398
      %7588 = vmatpush2.msra.mxu0 %v7397
      %7589 = vmatprep.subr.mxu0 %v7394
      %7590 = vmatpush2.msra.mxu0 %v7393
      %7591 = vmatprep.subr.mxu0 %v7390
      %7592 = vmatpush2.msra.mxu0 %v7389
      %7593 = vmatprep.mubr.f32.mxu0 %v7457
      %7594 = vmatmul.mubr.f32.gmra.mxu0 %v7456
      %v7595 = vpop.f32.mrf.mxu0
      %v7596 = vadd.f32 %v7525, %v7595
      %v7597 = vpop.f32.mrf.mxu0
      %v7598 = vadd.f32 %v7527, %v7597
      %7599 = vdwg.mxu0
      %7600 = vmatprep.subr.mxu0 %v7260
      %7601 = vmatpush1.msra.mxu0 %v7259
      %7602 = vmatprep.subr.mxu0 %v7256
      %7603 = vmatpush1.msra.mxu0 %v7255
      %7604 = vmatprep.subr.mxu0 %v7252
      %7605 = vmatpush1.msra.mxu0 %v7251
      %7606 = vmatprep.subr.mxu0 %v7248
      %7607 = vmatpush1.msra.mxu0 %v7247
      %7608 = vmatprep.subr.mxu0 %v7244
      %7609 = vmatpush1.msra.mxu0 %v7243
      %7610 = vmatprep.subr.mxu0 %v7240
      %7611 = vmatpush1.msra.mxu0 %v7239
      %7612 = vmatprep.subr.mxu0 %v7236
      %7613 = vmatpush1.msra.mxu0 %v7235
      %7614 = vmatprep.subr.mxu0 %v7232
      %7615 = vmatpush1.msra.mxu0 %v7231
      %7616 = vmatprep.subr.mxu0 %v7228
      %7617 = vmatpush1.msra.mxu0 %v7227
      %7618 = vmatprep.subr.mxu0 %v7224
      %7619 = vmatpush1.msra.mxu0 %v7223
      %7620 = vmatprep.subr.mxu0 %v7220
      %7621 = vmatpush1.msra.mxu0 %v7219
      %7622 = vmatprep.subr.mxu0 %v7216
      %7623 = vmatpush1.msra.mxu0 %v7215
      %7624 = vmatprep.subr.mxu0 %v7212
      %7625 = vmatpush1.msra.mxu0 %v7211
      %7626 = vmatprep.subr.mxu0 %v7208
      %7627 = vmatpush1.msra.mxu0 %v7207
      %7628 = vmatprep.subr.mxu0 %v7204
      %7629 = vmatpush1.msra.mxu0 %v7203
      %7630 = vmatprep.subr.mxu0 %v7200
      %7631 = vmatpush1.msra.mxu0 %v7199
      %7632 = vmatprep.subr.mxu0 %v7324
      %7633 = vmatpush2.msra.mxu0 %v7323
      %7634 = vmatprep.subr.mxu0 %v7320
      %7635 = vmatpush2.msra.mxu0 %v7319
      %7636 = vmatprep.subr.mxu0 %v7316
      %7637 = vmatpush2.msra.mxu0 %v7315
      %7638 = vmatprep.subr.mxu0 %v7312
      %7639 = vmatpush2.msra.mxu0 %v7311
      %7640 = vmatprep.subr.mxu0 %v7308
      %7641 = vmatpush2.msra.mxu0 %v7307
      %7642 = vmatprep.subr.mxu0 %v7304
      %7643 = vmatpush2.msra.mxu0 %v7303
      %7644 = vmatprep.subr.mxu0 %v7300
      %7645 = vmatpush2.msra.mxu0 %v7299
      %7646 = vmatprep.subr.mxu0 %v7296
      %7647 = vmatpush2.msra.mxu0 %v7295
      %7648 = vmatprep.subr.mxu0 %v7292
      %7649 = vmatpush2.msra.mxu0 %v7291
      %7650 = vmatprep.subr.mxu0 %v7288
      %7651 = vmatpush2.msra.mxu0 %v7287
      %7652 = vmatprep.subr.mxu0 %v7284
      %7653 = vmatpush2.msra.mxu0 %v7283
      %7654 = vmatprep.subr.mxu0 %v7280
      %7655 = vmatpush2.msra.mxu0 %v7279
      %7656 = vmatprep.subr.mxu0 %v7276
      %7657 = vmatpush2.msra.mxu0 %v7275
      %7658 = vmatprep.subr.mxu0 %v7272
      %7659 = vmatpush2.msra.mxu0 %v7271
      %7660 = vmatprep.subr.mxu0 %v7268
      %7661 = vmatpush2.msra.mxu0 %v7267
      %7662 = vmatprep.subr.mxu0 %v7264
      %7663 = vmatpush2.msra.mxu0 %v7263
      %7664 = vmatprep.mubr.f32.mxu0 %v7455
      %7665 = vmatmul.mubr.f32.gmra.mxu0 %v7454
      %v7666 = vpop.f32.mrf.mxu0
      %v7667 = vadd.f32 0.0, %v7666
      %v7668 = vpop.f32.mrf.mxu0
      %v7669 = vadd.f32 0.0, %v7668
      %7670 = vdwg.mxu0
      %7671 = vmatprep.subr.mxu0 %v7388
      %7672 = vmatpush1.msra.mxu0 %v7387
      %7673 = vmatprep.subr.mxu0 %v7384
      %7674 = vmatpush1.msra.mxu0 %v7383
      %7675 = vmatprep.subr.mxu0 %v7380
      %7676 = vmatpush1.msra.mxu0 %v7379
      %7677 = vmatprep.subr.mxu0 %v7376
      %7678 = vmatpush1.msra.mxu0 %v7375
      %7679 = vmatprep.subr.mxu0 %v7372
      %7680 = vmatpush1.msra.mxu0 %v7371
      %7681 = vmatprep.subr.mxu0 %v7368
      %7682 = vmatpush1.msra.mxu0 %v7367
      %7683 = vmatprep.subr.mxu0 %v7364
      %7684 = vmatpush1.msra.mxu0 %v7363
      %7685 = vmatprep.subr.mxu0 %v7360
      %7686 = vmatpush1.msra.mxu0 %v7359
      %7687 = vmatprep.subr.mxu0 %v7356
      %7688 = vmatpush1.msra.mxu0 %v7355
      %7689 = vmatprep.subr.mxu0 %v7352
      %7690 = vmatpush1.msra.mxu0 %v7351
      %7691 = vmatprep.subr.mxu0 %v7348
      %7692 = vmatpush1.msra.mxu0 %v7347
      %7693 = vmatprep.subr.mxu0 %v7344
      %7694 = vmatpush1.msra.mxu0 %v7343
      %7695 = vmatprep.subr.mxu0 %v7340
      %7696 = vmatpush1.msra.mxu0 %v7339
      %7697 = vmatprep.subr.mxu0 %v7336
      %7698 = vmatpush1.msra.mxu0 %v7335
      %7699 = vmatprep.subr.mxu0 %v7332
      %7700 = vmatpush1.msra.mxu0 %v7331
      %7701 = vmatprep.subr.mxu0 %v7328
      %7702 = vmatpush1.msra.mxu0 %v7327
      %7703 = vmatprep.subr.mxu0 %v7452
      %7704 = vmatpush2.msra.mxu0 %v7451
      %7705 = vmatprep.subr.mxu0 %v7448
      %7706 = vmatpush2.msra.mxu0 %v7447
      %7707 = vmatprep.subr.mxu0 %v7444
      %7708 = vmatpush2.msra.mxu0 %v7443
      %7709 = vmatprep.subr.mxu0 %v7440
      %7710 = vmatpush2.msra.mxu0 %v7439
      %7711 = vmatprep.subr.mxu0 %v7436
      %7712 = vmatpush2.msra.mxu0 %v7435
      %7713 = vmatprep.subr.mxu0 %v7432
      %7714 = vmatpush2.msra.mxu0 %v7431
      %7715 = vmatprep.subr.mxu0 %v7428
      %7716 = vmatpush2.msra.mxu0 %v7427
      %7717 = vmatprep.subr.mxu0 %v7424
      %7718 = vmatpush2.msra.mxu0 %v7423
      %7719 = vmatprep.subr.mxu0 %v7420
      %7720 = vmatpush2.msra.mxu0 %v7419
      %7721 = vmatprep.subr.mxu0 %v7416
      %7722 = vmatpush2.msra.mxu0 %v7415
      %7723 = vmatprep.subr.mxu0 %v7412
      %7724 = vmatpush2.msra.mxu0 %v7411
      %7725 = vmatprep.subr.mxu0 %v7408
      %7726 = vmatpush2.msra.mxu0 %v7407
      %7727 = vmatprep.subr.mxu0 %v7404
      %7728 = vmatpush2.msra.mxu0 %v7403
      %7729 = vmatprep.subr.mxu0 %v7400
      %7730 = vmatpush2.msra.mxu0 %v7399
      %7731 = vmatprep.subr.mxu0 %v7396
      %7732 = vmatpush2.msra.mxu0 %v7395
      %7733 = vmatprep.subr.mxu0 %v7392
      %7734 = vmatpush2.msra.mxu0 %v7391
      %7735 = vmatprep.mubr.f32.mxu0 %v7457
      %7736 = vmatmul.mubr.f32.gmra.mxu0 %v7456
      %v7737 = vpop.f32.mrf.mxu0
      %v7738 = vadd.f32 %v7667, %v7737
      %v7739 = vpop.f32.mrf.mxu0
      %v7740 = vadd.f32 %v7669, %v7739
      %7741 = vdwg.mxu0
      %v7742 = vadd.f32 %v6665, %v7596
      %v7743 = vadd.f32 %v6666, %v7598
      %v7744 = vadd.f32 %v6667, %v7738
      %v7745 = vadd.f32 %v6668, %v7740
      %v7746 = vlaneseq
      %v7747 = vshrl.u32 %v7746, 7
      %v7748 = vsub.s32 7, %v7747
      %v7749 = vrot.slane %v147, %v7748
      %v7750 = vlaneseq
      %v7751 = vshrl.u32 %v7750, 7
      %v7752 = vsub.s32 7, %v7751
      %v7753 = vrot.slane %v148, %v7752
      %v7754 = vlaneseq
      %v7755 = vshrl.u32 %v7754, 7
      %v7756 = vsub.s32 7, %v7755
      %v7757 = vrot.slane %v149, %v7756
      %v7758 = vlaneseq
      %v7759 = vshrl.u32 %v7758, 7
      %v7760 = vsub.s32 7, %v7759
      %v7761 = vrot.slane %v150, %v7760
      %vm7762 = vcmp.eq.s32.totalorder %v152, %v7749
      %vm7763 = vcmp.eq.s32.totalorder %v152, %v7753
      %vm7764 = vcmp.eq.s32.totalorder %v152, %v7757
      %vm7765 = vcmp.eq.s32.totalorder %v152, %v7761
      %vm7766 = vcmp.eq.s32.totalorder %v153, %v7749
      %vm7767 = vcmp.eq.s32.totalorder %v153, %v7753
      %vm7768 = vcmp.eq.s32.totalorder %v153, %v7757
      %vm7769 = vcmp.eq.s32.totalorder %v153, %v7761
      %vm7770 = vcmp.eq.s32.totalorder %v154, %v7749
      %vm7771 = vcmp.eq.s32.totalorder %v154, %v7753
      %vm7772 = vcmp.eq.s32.totalorder %v154, %v7757
      %vm7773 = vcmp.eq.s32.totalorder %v154, %v7761
      %vm7774 = vcmp.eq.s32.totalorder %v155, %v7749
      %vm7775 = vcmp.eq.s32.totalorder %v155, %v7753
      %vm7776 = vcmp.eq.s32.totalorder %v155, %v7757
      %vm7777 = vcmp.eq.s32.totalorder %v155, %v7761
      %vm7778 = vcmp.eq.s32.totalorder %v156, %v7749
      %vm7779 = vcmp.eq.s32.totalorder %v156, %v7753
      %vm7780 = vcmp.eq.s32.totalorder %v156, %v7757
      %vm7781 = vcmp.eq.s32.totalorder %v156, %v7761
      %vm7782 = vcmp.eq.s32.totalorder %v157, %v7749
      %vm7783 = vcmp.eq.s32.totalorder %v157, %v7753
      %vm7784 = vcmp.eq.s32.totalorder %v157, %v7757
      %vm7785 = vcmp.eq.s32.totalorder %v157, %v7761
      %vm7786 = vcmp.eq.s32.totalorder %v158, %v7749
      %vm7787 = vcmp.eq.s32.totalorder %v158, %v7753
      %vm7788 = vcmp.eq.s32.totalorder %v158, %v7757
      %vm7789 = vcmp.eq.s32.totalorder %v158, %v7761
      %vm7790 = vcmp.eq.s32.totalorder %v159, %v7749
      %vm7791 = vcmp.eq.s32.totalorder %v159, %v7753
      %vm7792 = vcmp.eq.s32.totalorder %v159, %v7757
      %vm7793 = vcmp.eq.s32.totalorder %v159, %v7761
      %vm7794 = vcmp.eq.s32.totalorder %v160, %v7749
      %vm7795 = vcmp.eq.s32.totalorder %v160, %v7753
      %vm7796 = vcmp.eq.s32.totalorder %v160, %v7757
      %vm7797 = vcmp.eq.s32.totalorder %v160, %v7761
      %vm7798 = vcmp.eq.s32.totalorder %v161, %v7749
      %vm7799 = vcmp.eq.s32.totalorder %v161, %v7753
      %vm7800 = vcmp.eq.s32.totalorder %v161, %v7757
      %vm7801 = vcmp.eq.s32.totalorder %v161, %v7761
      %vm7802 = vcmp.eq.s32.totalorder %v162, %v7749
      %vm7803 = vcmp.eq.s32.totalorder %v162, %v7753
      %vm7804 = vcmp.eq.s32.totalorder %v162, %v7757
      %vm7805 = vcmp.eq.s32.totalorder %v162, %v7761
      %vm7806 = vcmp.eq.s32.totalorder %v163, %v7749
      %vm7807 = vcmp.eq.s32.totalorder %v163, %v7753
      %vm7808 = vcmp.eq.s32.totalorder %v163, %v7757
      %vm7809 = vcmp.eq.s32.totalorder %v163, %v7761
      %vm7810 = vcmp.eq.s32.totalorder %v164, %v7749
      %vm7811 = vcmp.eq.s32.totalorder %v164, %v7753
      %vm7812 = vcmp.eq.s32.totalorder %v164, %v7757
      %vm7813 = vcmp.eq.s32.totalorder %v164, %v7761
      %vm7814 = vcmp.eq.s32.totalorder %v165, %v7749
      %vm7815 = vcmp.eq.s32.totalorder %v165, %v7753
      %vm7816 = vcmp.eq.s32.totalorder %v165, %v7757
      %vm7817 = vcmp.eq.s32.totalorder %v165, %v7761
      %vm7818 = vcmp.eq.s32.totalorder %v166, %v7749
      %vm7819 = vcmp.eq.s32.totalorder %v166, %v7753
      %vm7820 = vcmp.eq.s32.totalorder %v166, %v7757
      %vm7821 = vcmp.eq.s32.totalorder %v166, %v7761
      %vm7822 = vcmp.eq.s32.totalorder %v167, %v7749
      %vm7823 = vcmp.eq.s32.totalorder %v167, %v7753
      %vm7824 = vcmp.eq.s32.totalorder %v167, %v7757
      %vm7825 = vcmp.eq.s32.totalorder %v167, %v7761
      %vm7826 = vcmp.eq.s32.totalorder %v168, %v7749
      %vm7827 = vcmp.eq.s32.totalorder %v168, %v7753
      %vm7828 = vcmp.eq.s32.totalorder %v168, %v7757
      %vm7829 = vcmp.eq.s32.totalorder %v168, %v7761
      %vm7830 = vcmp.eq.s32.totalorder %v169, %v7749
      %vm7831 = vcmp.eq.s32.totalorder %v169, %v7753
      %vm7832 = vcmp.eq.s32.totalorder %v169, %v7757
      %vm7833 = vcmp.eq.s32.totalorder %v169, %v7761
      %vm7834 = vcmp.eq.s32.totalorder %v170, %v7749
      %vm7835 = vcmp.eq.s32.totalorder %v170, %v7753
      %vm7836 = vcmp.eq.s32.totalorder %v170, %v7757
      %vm7837 = vcmp.eq.s32.totalorder %v170, %v7761
      %vm7838 = vcmp.eq.s32.totalorder %v171, %v7749
      %vm7839 = vcmp.eq.s32.totalorder %v171, %v7753
      %vm7840 = vcmp.eq.s32.totalorder %v171, %v7757
      %vm7841 = vcmp.eq.s32.totalorder %v171, %v7761
      %vm7842 = vcmp.eq.s32.totalorder %v172, %v7749
      %vm7843 = vcmp.eq.s32.totalorder %v172, %v7753
      %vm7844 = vcmp.eq.s32.totalorder %v172, %v7757
      %vm7845 = vcmp.eq.s32.totalorder %v172, %v7761
      %vm7846 = vcmp.eq.s32.totalorder %v173, %v7749
      %vm7847 = vcmp.eq.s32.totalorder %v173, %v7753
      %vm7848 = vcmp.eq.s32.totalorder %v173, %v7757
      %vm7849 = vcmp.eq.s32.totalorder %v173, %v7761
      %vm7850 = vcmp.eq.s32.totalorder %v174, %v7749
      %vm7851 = vcmp.eq.s32.totalorder %v174, %v7753
      %vm7852 = vcmp.eq.s32.totalorder %v174, %v7757
      %vm7853 = vcmp.eq.s32.totalorder %v174, %v7761
      %vm7854 = vcmp.eq.s32.totalorder %v175, %v7749
      %vm7855 = vcmp.eq.s32.totalorder %v175, %v7753
      %vm7856 = vcmp.eq.s32.totalorder %v175, %v7757
      %vm7857 = vcmp.eq.s32.totalorder %v175, %v7761
      %vm7858 = vcmp.eq.s32.totalorder %v176, %v7749
      %vm7859 = vcmp.eq.s32.totalorder %v176, %v7753
      %vm7860 = vcmp.eq.s32.totalorder %v176, %v7757
      %vm7861 = vcmp.eq.s32.totalorder %v176, %v7761
      %vm7862 = vcmp.eq.s32.totalorder %v177, %v7749
      %vm7863 = vcmp.eq.s32.totalorder %v177, %v7753
      %vm7864 = vcmp.eq.s32.totalorder %v177, %v7757
      %vm7865 = vcmp.eq.s32.totalorder %v177, %v7761
      %vm7866 = vcmp.eq.s32.totalorder %v178, %v7749
      %vm7867 = vcmp.eq.s32.totalorder %v178, %v7753
      %vm7868 = vcmp.eq.s32.totalorder %v178, %v7757
      %vm7869 = vcmp.eq.s32.totalorder %v178, %v7761
      %vm7870 = vcmp.eq.s32.totalorder %v179, %v7749
      %vm7871 = vcmp.eq.s32.totalorder %v179, %v7753
      %vm7872 = vcmp.eq.s32.totalorder %v179, %v7757
      %vm7873 = vcmp.eq.s32.totalorder %v179, %v7761
      %vm7874 = vcmp.eq.s32.totalorder %v180, %v7749
      %vm7875 = vcmp.eq.s32.totalorder %v180, %v7753
      %vm7876 = vcmp.eq.s32.totalorder %v180, %v7757
      %vm7877 = vcmp.eq.s32.totalorder %v180, %v7761
      %vm7878 = vcmp.eq.s32.totalorder %v181, %v7749
      %vm7879 = vcmp.eq.s32.totalorder %v181, %v7753
      %vm7880 = vcmp.eq.s32.totalorder %v181, %v7757
      %vm7881 = vcmp.eq.s32.totalorder %v181, %v7761
      %vm7882 = vcmp.eq.s32.totalorder %v182, %v7749
      %vm7883 = vcmp.eq.s32.totalorder %v182, %v7753
      %vm7884 = vcmp.eq.s32.totalorder %v182, %v7757
      %vm7885 = vcmp.eq.s32.totalorder %v182, %v7761
      %vm7886 = vcmp.eq.s32.totalorder %v183, %v7749
      %vm7887 = vcmp.eq.s32.totalorder %v183, %v7753
      %vm7888 = vcmp.eq.s32.totalorder %v183, %v7757
      %vm7889 = vcmp.eq.s32.totalorder %v183, %v7761
      %vm7890 = vcmp.eq.s32.totalorder %v184, %v7749
      %vm7891 = vcmp.eq.s32.totalorder %v184, %v7753
      %vm7892 = vcmp.eq.s32.totalorder %v184, %v7757
      %vm7893 = vcmp.eq.s32.totalorder %v184, %v7761
      %vm7894 = vcmp.eq.s32.totalorder %v185, %v7749
      %vm7895 = vcmp.eq.s32.totalorder %v185, %v7753
      %vm7896 = vcmp.eq.s32.totalorder %v185, %v7757
      %vm7897 = vcmp.eq.s32.totalorder %v185, %v7761
      %vm7898 = vcmp.eq.s32.totalorder %v186, %v7749
      %vm7899 = vcmp.eq.s32.totalorder %v186, %v7753
      %vm7900 = vcmp.eq.s32.totalorder %v186, %v7757
      %vm7901 = vcmp.eq.s32.totalorder %v186, %v7761
      %vm7902 = vcmp.eq.s32.totalorder %v187, %v7749
      %vm7903 = vcmp.eq.s32.totalorder %v187, %v7753
      %vm7904 = vcmp.eq.s32.totalorder %v187, %v7757
      %vm7905 = vcmp.eq.s32.totalorder %v187, %v7761
      %vm7906 = vcmp.eq.s32.totalorder %v188, %v7749
      %vm7907 = vcmp.eq.s32.totalorder %v188, %v7753
      %vm7908 = vcmp.eq.s32.totalorder %v188, %v7757
      %vm7909 = vcmp.eq.s32.totalorder %v188, %v7761
      %vm7910 = vcmp.eq.s32.totalorder %v189, %v7749
      %vm7911 = vcmp.eq.s32.totalorder %v189, %v7753
      %vm7912 = vcmp.eq.s32.totalorder %v189, %v7757
      %vm7913 = vcmp.eq.s32.totalorder %v189, %v7761
      %vm7914 = vcmp.eq.s32.totalorder %v190, %v7749
      %vm7915 = vcmp.eq.s32.totalorder %v190, %v7753
      %vm7916 = vcmp.eq.s32.totalorder %v190, %v7757
      %vm7917 = vcmp.eq.s32.totalorder %v190, %v7761
      %vm7918 = vcmp.eq.s32.totalorder %v191, %v7749
      %vm7919 = vcmp.eq.s32.totalorder %v191, %v7753
      %vm7920 = vcmp.eq.s32.totalorder %v191, %v7757
      %vm7921 = vcmp.eq.s32.totalorder %v191, %v7761
      %vm7922 = vcmp.eq.s32.totalorder %v192, %v7749
      %vm7923 = vcmp.eq.s32.totalorder %v192, %v7753
      %vm7924 = vcmp.eq.s32.totalorder %v192, %v7757
      %vm7925 = vcmp.eq.s32.totalorder %v192, %v7761
      %vm7926 = vcmp.eq.s32.totalorder %v193, %v7749
      %vm7927 = vcmp.eq.s32.totalorder %v193, %v7753
      %vm7928 = vcmp.eq.s32.totalorder %v193, %v7757
      %vm7929 = vcmp.eq.s32.totalorder %v193, %v7761
      %vm7930 = vcmp.eq.s32.totalorder %v194, %v7749
      %vm7931 = vcmp.eq.s32.totalorder %v194, %v7753
      %vm7932 = vcmp.eq.s32.totalorder %v194, %v7757
      %vm7933 = vcmp.eq.s32.totalorder %v194, %v7761
      %vm7934 = vcmp.eq.s32.totalorder %v195, %v7749
      %vm7935 = vcmp.eq.s32.totalorder %v195, %v7753
      %vm7936 = vcmp.eq.s32.totalorder %v195, %v7757
      %vm7937 = vcmp.eq.s32.totalorder %v195, %v7761
      %vm7938 = vcmp.eq.s32.totalorder %v196, %v7749
      %vm7939 = vcmp.eq.s32.totalorder %v196, %v7753
      %vm7940 = vcmp.eq.s32.totalorder %v196, %v7757
      %vm7941 = vcmp.eq.s32.totalorder %v196, %v7761
      %vm7942 = vcmp.eq.s32.totalorder %v197, %v7749
      %vm7943 = vcmp.eq.s32.totalorder %v197, %v7753
      %vm7944 = vcmp.eq.s32.totalorder %v197, %v7757
      %vm7945 = vcmp.eq.s32.totalorder %v197, %v7761
      %vm7946 = vcmp.eq.s32.totalorder %v198, %v7749
      %vm7947 = vcmp.eq.s32.totalorder %v198, %v7753
      %vm7948 = vcmp.eq.s32.totalorder %v198, %v7757
      %vm7949 = vcmp.eq.s32.totalorder %v198, %v7761
      %vm7950 = vcmp.eq.s32.totalorder %v199, %v7749
      %vm7951 = vcmp.eq.s32.totalorder %v199, %v7753
      %vm7952 = vcmp.eq.s32.totalorder %v199, %v7757
      %vm7953 = vcmp.eq.s32.totalorder %v199, %v7761
      %vm7954 = vcmp.eq.s32.totalorder %v200, %v7749
      %vm7955 = vcmp.eq.s32.totalorder %v200, %v7753
      %vm7956 = vcmp.eq.s32.totalorder %v200, %v7757
      %vm7957 = vcmp.eq.s32.totalorder %v200, %v7761
      %vm7958 = vcmp.eq.s32.totalorder %v201, %v7749
      %vm7959 = vcmp.eq.s32.totalorder %v201, %v7753
      %vm7960 = vcmp.eq.s32.totalorder %v201, %v7757
      %vm7961 = vcmp.eq.s32.totalorder %v201, %v7761
      %vm7962 = vcmp.eq.s32.totalorder %v202, %v7749
      %vm7963 = vcmp.eq.s32.totalorder %v202, %v7753
      %vm7964 = vcmp.eq.s32.totalorder %v202, %v7757
      %vm7965 = vcmp.eq.s32.totalorder %v202, %v7761
      %vm7966 = vcmp.eq.s32.totalorder %v203, %v7749
      %vm7967 = vcmp.eq.s32.totalorder %v203, %v7753
      %vm7968 = vcmp.eq.s32.totalorder %v203, %v7757
      %vm7969 = vcmp.eq.s32.totalorder %v203, %v7761
      %vm7970 = vcmp.eq.s32.totalorder %v204, %v7749
      %vm7971 = vcmp.eq.s32.totalorder %v204, %v7753
      %vm7972 = vcmp.eq.s32.totalorder %v204, %v7757
      %vm7973 = vcmp.eq.s32.totalorder %v204, %v7761
      %vm7974 = vcmp.eq.s32.totalorder %v205, %v7749
      %vm7975 = vcmp.eq.s32.totalorder %v205, %v7753
      %vm7976 = vcmp.eq.s32.totalorder %v205, %v7757
      %vm7977 = vcmp.eq.s32.totalorder %v205, %v7761
      %vm7978 = vcmp.eq.s32.totalorder %v206, %v7749
      %vm7979 = vcmp.eq.s32.totalorder %v206, %v7753
      %vm7980 = vcmp.eq.s32.totalorder %v206, %v7757
      %vm7981 = vcmp.eq.s32.totalorder %v206, %v7761
      %vm7982 = vcmp.eq.s32.totalorder %v207, %v7749
      %vm7983 = vcmp.eq.s32.totalorder %v207, %v7753
      %vm7984 = vcmp.eq.s32.totalorder %v207, %v7757
      %vm7985 = vcmp.eq.s32.totalorder %v207, %v7761
      %vm7986 = vcmp.eq.s32.totalorder %v208, %v7749
      %vm7987 = vcmp.eq.s32.totalorder %v208, %v7753
      %vm7988 = vcmp.eq.s32.totalorder %v208, %v7757
      %vm7989 = vcmp.eq.s32.totalorder %v208, %v7761
      %vm7990 = vcmp.eq.s32.totalorder %v209, %v7749
      %vm7991 = vcmp.eq.s32.totalorder %v209, %v7753
      %vm7992 = vcmp.eq.s32.totalorder %v209, %v7757
      %vm7993 = vcmp.eq.s32.totalorder %v209, %v7761
      %vm7994 = vcmp.eq.s32.totalorder %v210, %v7749
      %vm7995 = vcmp.eq.s32.totalorder %v210, %v7753
      %vm7996 = vcmp.eq.s32.totalorder %v210, %v7757
      %vm7997 = vcmp.eq.s32.totalorder %v210, %v7761
      %vm7998 = vcmp.eq.s32.totalorder %v211, %v7749
      %vm7999 = vcmp.eq.s32.totalorder %v211, %v7753
      %vm8000 = vcmp.eq.s32.totalorder %v211, %v7757
      %vm8001 = vcmp.eq.s32.totalorder %v211, %v7761
      %vm8002 = vcmp.eq.s32.totalorder %v212, %v7749
      %vm8003 = vcmp.eq.s32.totalorder %v212, %v7753
      %vm8004 = vcmp.eq.s32.totalorder %v212, %v7757
      %vm8005 = vcmp.eq.s32.totalorder %v212, %v7761
      %vm8006 = vcmp.eq.s32.totalorder %v213, %v7749
      %vm8007 = vcmp.eq.s32.totalorder %v213, %v7753
      %vm8008 = vcmp.eq.s32.totalorder %v213, %v7757
      %vm8009 = vcmp.eq.s32.totalorder %v213, %v7761
      %vm8010 = vcmp.eq.s32.totalorder %v214, %v7749
      %vm8011 = vcmp.eq.s32.totalorder %v214, %v7753
      %vm8012 = vcmp.eq.s32.totalorder %v214, %v7757
      %vm8013 = vcmp.eq.s32.totalorder %v214, %v7761
      %vm8014 = vcmp.eq.s32.totalorder %v215, %v7749
      %vm8015 = vcmp.eq.s32.totalorder %v215, %v7753
      %vm8016 = vcmp.eq.s32.totalorder %v215, %v7757
      %vm8017 = vcmp.eq.s32.totalorder %v215, %v7761
      %v8018 = vsel %vm7762, 1, 0
      %v8019 = vsel %vm7763, 1, 0
      %v8020 = vsel %vm7764, 1, 0
      %v8021 = vsel %vm7765, 1, 0
      %v8022 = vsel %vm7766, 1, 0
      %v8023 = vsel %vm7767, 1, 0
      %v8024 = vsel %vm7768, 1, 0
      %v8025 = vsel %vm7769, 1, 0
      %v8026 = vsel %vm7770, 1, 0
      %v8027 = vsel %vm7771, 1, 0
      %v8028 = vsel %vm7772, 1, 0
      %v8029 = vsel %vm7773, 1, 0
      %v8030 = vsel %vm7774, 1, 0
      %v8031 = vsel %vm7775, 1, 0
      %v8032 = vsel %vm7776, 1, 0
      %v8033 = vsel %vm7777, 1, 0
      %v8034 = vsel %vm7778, 1, 0
      %v8035 = vsel %vm7779, 1, 0
      %v8036 = vsel %vm7780, 1, 0
      %v8037 = vsel %vm7781, 1, 0
      %v8038 = vsel %vm7782, 1, 0
      %v8039 = vsel %vm7783, 1, 0
      %v8040 = vsel %vm7784, 1, 0
      %v8041 = vsel %vm7785, 1, 0
      %v8042 = vsel %vm7786, 1, 0
      %v8043 = vsel %vm7787, 1, 0
      %v8044 = vsel %vm7788, 1, 0
      %v8045 = vsel %vm7789, 1, 0
      %v8046 = vsel %vm7790, 1, 0
      %v8047 = vsel %vm7791, 1, 0
      %v8048 = vsel %vm7792, 1, 0
      %v8049 = vsel %vm7793, 1, 0
      %v8050 = vsel %vm7794, 1, 0
      %v8051 = vsel %vm7795, 1, 0
      %v8052 = vsel %vm7796, 1, 0
      %v8053 = vsel %vm7797, 1, 0
      %v8054 = vsel %vm7798, 1, 0
      %v8055 = vsel %vm7799, 1, 0
      %v8056 = vsel %vm7800, 1, 0
      %v8057 = vsel %vm7801, 1, 0
      %v8058 = vsel %vm7802, 1, 0
      %v8059 = vsel %vm7803, 1, 0
      %v8060 = vsel %vm7804, 1, 0
      %v8061 = vsel %vm7805, 1, 0
      %v8062 = vsel %vm7806, 1, 0
      %v8063 = vsel %vm7807, 1, 0
      %v8064 = vsel %vm7808, 1, 0
      %v8065 = vsel %vm7809, 1, 0
      %v8066 = vsel %vm7810, 1, 0
      %v8067 = vsel %vm7811, 1, 0
      %v8068 = vsel %vm7812, 1, 0
      %v8069 = vsel %vm7813, 1, 0
      %v8070 = vsel %vm7814, 1, 0
      %v8071 = vsel %vm7815, 1, 0
      %v8072 = vsel %vm7816, 1, 0
      %v8073 = vsel %vm7817, 1, 0
      %v8074 = vsel %vm7818, 1, 0
      %v8075 = vsel %vm7819, 1, 0
      %v8076 = vsel %vm7820, 1, 0
      %v8077 = vsel %vm7821, 1, 0
      %v8078 = vsel %vm7822, 1, 0
      %v8079 = vsel %vm7823, 1, 0
      %v8080 = vsel %vm7824, 1, 0
      %v8081 = vsel %vm7825, 1, 0
      %v8082 = vsel %vm7826, 1, 0
      %v8083 = vsel %vm7827, 1, 0
      %v8084 = vsel %vm7828, 1, 0
      %v8085 = vsel %vm7829, 1, 0
      %v8086 = vsel %vm7830, 1, 0
      %v8087 = vsel %vm7831, 1, 0
      %v8088 = vsel %vm7832, 1, 0
      %v8089 = vsel %vm7833, 1, 0
      %v8090 = vsel %vm7834, 1, 0
      %v8091 = vsel %vm7835, 1, 0
      %v8092 = vsel %vm7836, 1, 0
      %v8093 = vsel %vm7837, 1, 0
      %v8094 = vsel %vm7838, 1, 0
      %v8095 = vsel %vm7839, 1, 0
      %v8096 = vsel %vm7840, 1, 0
      %v8097 = vsel %vm7841, 1, 0
      %v8098 = vsel %vm7842, 1, 0
      %v8099 = vsel %vm7843, 1, 0
      %v8100 = vsel %vm7844, 1, 0
      %v8101 = vsel %vm7845, 1, 0
      %v8102 = vsel %vm7846, 1, 0
      %v8103 = vsel %vm7847, 1, 0
      %v8104 = vsel %vm7848, 1, 0
      %v8105 = vsel %vm7849, 1, 0
      %v8106 = vsel %vm7850, 1, 0
      %v8107 = vsel %vm7851, 1, 0
      %v8108 = vsel %vm7852, 1, 0
      %v8109 = vsel %vm7853, 1, 0
      %v8110 = vsel %vm7854, 1, 0
      %v8111 = vsel %vm7855, 1, 0
      %v8112 = vsel %vm7856, 1, 0
      %v8113 = vsel %vm7857, 1, 0
      %v8114 = vsel %vm7858, 1, 0
      %v8115 = vsel %vm7859, 1, 0
      %v8116 = vsel %vm7860, 1, 0
      %v8117 = vsel %vm7861, 1, 0
      %v8118 = vsel %vm7862, 1, 0
      %v8119 = vsel %vm7863, 1, 0
      %v8120 = vsel %vm7864, 1, 0
      %v8121 = vsel %vm7865, 1, 0
      %v8122 = vsel %vm7866, 1, 0
      %v8123 = vsel %vm7867, 1, 0
      %v8124 = vsel %vm7868, 1, 0
      %v8125 = vsel %vm7869, 1, 0
      %v8126 = vsel %vm7870, 1, 0
      %v8127 = vsel %vm7871, 1, 0
      %v8128 = vsel %vm7872, 1, 0
      %v8129 = vsel %vm7873, 1, 0
      %v8130 = vsel %vm7874, 1, 0
      %v8131 = vsel %vm7875, 1, 0
      %v8132 = vsel %vm7876, 1, 0
      %v8133 = vsel %vm7877, 1, 0
      %v8134 = vsel %vm7878, 1, 0
      %v8135 = vsel %vm7879, 1, 0
      %v8136 = vsel %vm7880, 1, 0
      %v8137 = vsel %vm7881, 1, 0
      %v8138 = vsel %vm7882, 1, 0
      %v8139 = vsel %vm7883, 1, 0
      %v8140 = vsel %vm7884, 1, 0
      %v8141 = vsel %vm7885, 1, 0
      %v8142 = vsel %vm7886, 1, 0
      %v8143 = vsel %vm7887, 1, 0
      %v8144 = vsel %vm7888, 1, 0
      %v8145 = vsel %vm7889, 1, 0
      %v8146 = vsel %vm7890, 1, 0
      %v8147 = vsel %vm7891, 1, 0
      %v8148 = vsel %vm7892, 1, 0
      %v8149 = vsel %vm7893, 1, 0
      %v8150 = vsel %vm7894, 1, 0
      %v8151 = vsel %vm7895, 1, 0
      %v8152 = vsel %vm7896, 1, 0
      %v8153 = vsel %vm7897, 1, 0
      %v8154 = vsel %vm7898, 1, 0
      %v8155 = vsel %vm7899, 1, 0
      %v8156 = vsel %vm7900, 1, 0
      %v8157 = vsel %vm7901, 1, 0
      %v8158 = vsel %vm7902, 1, 0
      %v8159 = vsel %vm7903, 1, 0
      %v8160 = vsel %vm7904, 1, 0
      %v8161 = vsel %vm7905, 1, 0
      %v8162 = vsel %vm7906, 1, 0
      %v8163 = vsel %vm7907, 1, 0
      %v8164 = vsel %vm7908, 1, 0
      %v8165 = vsel %vm7909, 1, 0
      %v8166 = vsel %vm7910, 1, 0
      %v8167 = vsel %vm7911, 1, 0
      %v8168 = vsel %vm7912, 1, 0
      %v8169 = vsel %vm7913, 1, 0
      %v8170 = vsel %vm7914, 1, 0
      %v8171 = vsel %vm7915, 1, 0
      %v8172 = vsel %vm7916, 1, 0
      %v8173 = vsel %vm7917, 1, 0
      %v8174 = vsel %vm7918, 1, 0
      %v8175 = vsel %vm7919, 1, 0
      %v8176 = vsel %vm7920, 1, 0
      %v8177 = vsel %vm7921, 1, 0
      %v8178 = vsel %vm7922, 1, 0
      %v8179 = vsel %vm7923, 1, 0
      %v8180 = vsel %vm7924, 1, 0
      %v8181 = vsel %vm7925, 1, 0
      %v8182 = vsel %vm7926, 1, 0
      %v8183 = vsel %vm7927, 1, 0
      %v8184 = vsel %vm7928, 1, 0
      %v8185 = vsel %vm7929, 1, 0
      %v8186 = vsel %vm7930, 1, 0
      %v8187 = vsel %vm7931, 1, 0
      %v8188 = vsel %vm7932, 1, 0
      %v8189 = vsel %vm7933, 1, 0
      %v8190 = vsel %vm7934, 1, 0
      %v8191 = vsel %vm7935, 1, 0
      %v8192 = vsel %vm7936, 1, 0
      %v8193 = vsel %vm7937, 1, 0
      %v8194 = vsel %vm7938, 1, 0
      %v8195 = vsel %vm7939, 1, 0
      %v8196 = vsel %vm7940, 1, 0
      %v8197 = vsel %vm7941, 1, 0
      %v8198 = vsel %vm7942, 1, 0
      %v8199 = vsel %vm7943, 1, 0
      %v8200 = vsel %vm7944, 1, 0
      %v8201 = vsel %vm7945, 1, 0
      %v8202 = vsel %vm7946, 1, 0
      %v8203 = vsel %vm7947, 1, 0
      %v8204 = vsel %vm7948, 1, 0
      %v8205 = vsel %vm7949, 1, 0
      %v8206 = vsel %vm7950, 1, 0
      %v8207 = vsel %vm7951, 1, 0
      %v8208 = vsel %vm7952, 1, 0
      %v8209 = vsel %vm7953, 1, 0
      %v8210 = vsel %vm7954, 1, 0
      %v8211 = vsel %vm7955, 1, 0
      %v8212 = vsel %vm7956, 1, 0
      %v8213 = vsel %vm7957, 1, 0
      %v8214 = vsel %vm7958, 1, 0
      %v8215 = vsel %vm7959, 1, 0
      %v8216 = vsel %vm7960, 1, 0
      %v8217 = vsel %vm7961, 1, 0
      %v8218 = vsel %vm7962, 1, 0
      %v8219 = vsel %vm7963, 1, 0
      %v8220 = vsel %vm7964, 1, 0
      %v8221 = vsel %vm7965, 1, 0
      %v8222 = vsel %vm7966, 1, 0
      %v8223 = vsel %vm7967, 1, 0
      %v8224 = vsel %vm7968, 1, 0
      %v8225 = vsel %vm7969, 1, 0
      %v8226 = vsel %vm7970, 1, 0
      %v8227 = vsel %vm7971, 1, 0
      %v8228 = vsel %vm7972, 1, 0
      %v8229 = vsel %vm7973, 1, 0
      %v8230 = vsel %vm7974, 1, 0
      %v8231 = vsel %vm7975, 1, 0
      %v8232 = vsel %vm7976, 1, 0
      %v8233 = vsel %vm7977, 1, 0
      %v8234 = vsel %vm7978, 1, 0
      %v8235 = vsel %vm7979, 1, 0
      %v8236 = vsel %vm7980, 1, 0
      %v8237 = vsel %vm7981, 1, 0
      %v8238 = vsel %vm7982, 1, 0
      %v8239 = vsel %vm7983, 1, 0
      %v8240 = vsel %vm7984, 1, 0
      %v8241 = vsel %vm7985, 1, 0
      %v8242 = vsel %vm7986, 1, 0
      %v8243 = vsel %vm7987, 1, 0
      %v8244 = vsel %vm7988, 1, 0
      %v8245 = vsel %vm7989, 1, 0
      %v8246 = vsel %vm7990, 1, 0
      %v8247 = vsel %vm7991, 1, 0
      %v8248 = vsel %vm7992, 1, 0
      %v8249 = vsel %vm7993, 1, 0
      %v8250 = vsel %vm7994, 1, 0
      %v8251 = vsel %vm7995, 1, 0
      %v8252 = vsel %vm7996, 1, 0
      %v8253 = vsel %vm7997, 1, 0
      %v8254 = vsel %vm7998, 1, 0
      %v8255 = vsel %vm7999, 1, 0
      %v8256 = vsel %vm8000, 1, 0
      %v8257 = vsel %vm8001, 1, 0
      %v8258 = vsel %vm8002, 1, 0
      %v8259 = vsel %vm8003, 1, 0
      %v8260 = vsel %vm8004, 1, 0
      %v8261 = vsel %vm8005, 1, 0
      %v8262 = vsel %vm8006, 1, 0
      %v8263 = vsel %vm8007, 1, 0
      %v8264 = vsel %vm8008, 1, 0
      %v8265 = vsel %vm8009, 1, 0
      %v8266 = vsel %vm8010, 1, 0
      %v8267 = vsel %vm8011, 1, 0
      %v8268 = vsel %vm8012, 1, 0
      %v8269 = vsel %vm8013, 1, 0
      %v8270 = vsel %vm8014, 1, 0
      %v8271 = vsel %vm8015, 1, 0
      %v8272 = vsel %vm8016, 1, 0
      %v8273 = vsel %vm8017, 1, 0
      %v8274 = vcvt.s32.f32 %v8018
      %v8275 = vcvt.s32.f32 %v8019
      %v8276 = vcvt.s32.f32 %v8020
      %v8277 = vcvt.s32.f32 %v8021
      %v8278 = vcvt.s32.f32 %v8022
      %v8279 = vcvt.s32.f32 %v8023
      %v8280 = vcvt.s32.f32 %v8024
      %v8281 = vcvt.s32.f32 %v8025
      %v8282 = vcvt.s32.f32 %v8026
      %v8283 = vcvt.s32.f32 %v8027
      %v8284 = vcvt.s32.f32 %v8028
      %v8285 = vcvt.s32.f32 %v8029
      %v8286 = vcvt.s32.f32 %v8030
      %v8287 = vcvt.s32.f32 %v8031
      %v8288 = vcvt.s32.f32 %v8032
      %v8289 = vcvt.s32.f32 %v8033
      %v8290 = vcvt.s32.f32 %v8034
      %v8291 = vcvt.s32.f32 %v8035
      %v8292 = vcvt.s32.f32 %v8036
      %v8293 = vcvt.s32.f32 %v8037
      %v8294 = vcvt.s32.f32 %v8038
      %v8295 = vcvt.s32.f32 %v8039
      %v8296 = vcvt.s32.f32 %v8040
      %v8297 = vcvt.s32.f32 %v8041
      %v8298 = vcvt.s32.f32 %v8042
      %v8299 = vcvt.s32.f32 %v8043
      %v8300 = vcvt.s32.f32 %v8044
      %v8301 = vcvt.s32.f32 %v8045
      %v8302 = vcvt.s32.f32 %v8046
      %v8303 = vcvt.s32.f32 %v8047
      %v8304 = vcvt.s32.f32 %v8048
      %v8305 = vcvt.s32.f32 %v8049
      %v8306 = vcvt.s32.f32 %v8050
      %v8307 = vcvt.s32.f32 %v8051
      %v8308 = vcvt.s32.f32 %v8052
      %v8309 = vcvt.s32.f32 %v8053
      %v8310 = vcvt.s32.f32 %v8054
      %v8311 = vcvt.s32.f32 %v8055
      %v8312 = vcvt.s32.f32 %v8056
      %v8313 = vcvt.s32.f32 %v8057
      %v8314 = vcvt.s32.f32 %v8058
      %v8315 = vcvt.s32.f32 %v8059
      %v8316 = vcvt.s32.f32 %v8060
      %v8317 = vcvt.s32.f32 %v8061
      %v8318 = vcvt.s32.f32 %v8062
      %v8319 = vcvt.s32.f32 %v8063
      %v8320 = vcvt.s32.f32 %v8064
      %v8321 = vcvt.s32.f32 %v8065
      %v8322 = vcvt.s32.f32 %v8066
      %v8323 = vcvt.s32.f32 %v8067
      %v8324 = vcvt.s32.f32 %v8068
      %v8325 = vcvt.s32.f32 %v8069
      %v8326 = vcvt.s32.f32 %v8070
      %v8327 = vcvt.s32.f32 %v8071
      %v8328 = vcvt.s32.f32 %v8072
      %v8329 = vcvt.s32.f32 %v8073
      %v8330 = vcvt.s32.f32 %v8074
      %v8331 = vcvt.s32.f32 %v8075
      %v8332 = vcvt.s32.f32 %v8076
      %v8333 = vcvt.s32.f32 %v8077
      %v8334 = vcvt.s32.f32 %v8078
      %v8335 = vcvt.s32.f32 %v8079
      %v8336 = vcvt.s32.f32 %v8080
      %v8337 = vcvt.s32.f32 %v8081
      %v8338 = vcvt.s32.f32 %v8082
      %v8339 = vcvt.s32.f32 %v8083
      %v8340 = vcvt.s32.f32 %v8084
      %v8341 = vcvt.s32.f32 %v8085
      %v8342 = vcvt.s32.f32 %v8086
      %v8343 = vcvt.s32.f32 %v8087
      %v8344 = vcvt.s32.f32 %v8088
      %v8345 = vcvt.s32.f32 %v8089
      %v8346 = vcvt.s32.f32 %v8090
      %v8347 = vcvt.s32.f32 %v8091
      %v8348 = vcvt.s32.f32 %v8092
      %v8349 = vcvt.s32.f32 %v8093
      %v8350 = vcvt.s32.f32 %v8094
      %v8351 = vcvt.s32.f32 %v8095
      %v8352 = vcvt.s32.f32 %v8096
      %v8353 = vcvt.s32.f32 %v8097
      %v8354 = vcvt.s32.f32 %v8098
      %v8355 = vcvt.s32.f32 %v8099
      %v8356 = vcvt.s32.f32 %v8100
      %v8357 = vcvt.s32.f32 %v8101
      %v8358 = vcvt.s32.f32 %v8102
      %v8359 = vcvt.s32.f32 %v8103
      %v8360 = vcvt.s32.f32 %v8104
      %v8361 = vcvt.s32.f32 %v8105
      %v8362 = vcvt.s32.f32 %v8106
      %v8363 = vcvt.s32.f32 %v8107
      %v8364 = vcvt.s32.f32 %v8108
      %v8365 = vcvt.s32.f32 %v8109
      %v8366 = vcvt.s32.f32 %v8110
      %v8367 = vcvt.s32.f32 %v8111
      %v8368 = vcvt.s32.f32 %v8112
      %v8369 = vcvt.s32.f32 %v8113
      %v8370 = vcvt.s32.f32 %v8114
      %v8371 = vcvt.s32.f32 %v8115
      %v8372 = vcvt.s32.f32 %v8116
      %v8373 = vcvt.s32.f32 %v8117
      %v8374 = vcvt.s32.f32 %v8118
      %v8375 = vcvt.s32.f32 %v8119
      %v8376 = vcvt.s32.f32 %v8120
      %v8377 = vcvt.s32.f32 %v8121
      %v8378 = vcvt.s32.f32 %v8122
      %v8379 = vcvt.s32.f32 %v8123
      %v8380 = vcvt.s32.f32 %v8124
      %v8381 = vcvt.s32.f32 %v8125
      %v8382 = vcvt.s32.f32 %v8126
      %v8383 = vcvt.s32.f32 %v8127
      %v8384 = vcvt.s32.f32 %v8128
      %v8385 = vcvt.s32.f32 %v8129
      %v8386 = vcvt.s32.f32 %v8130
      %v8387 = vcvt.s32.f32 %v8131
      %v8388 = vcvt.s32.f32 %v8132
      %v8389 = vcvt.s32.f32 %v8133
      %v8390 = vcvt.s32.f32 %v8134
      %v8391 = vcvt.s32.f32 %v8135
      %v8392 = vcvt.s32.f32 %v8136
      %v8393 = vcvt.s32.f32 %v8137
      %v8394 = vcvt.s32.f32 %v8138
      %v8395 = vcvt.s32.f32 %v8139
      %v8396 = vcvt.s32.f32 %v8140
      %v8397 = vcvt.s32.f32 %v8141
      %v8398 = vcvt.s32.f32 %v8142
      %v8399 = vcvt.s32.f32 %v8143
      %v8400 = vcvt.s32.f32 %v8144
      %v8401 = vcvt.s32.f32 %v8145
      %v8402 = vcvt.s32.f32 %v8146
      %v8403 = vcvt.s32.f32 %v8147
      %v8404 = vcvt.s32.f32 %v8148
      %v8405 = vcvt.s32.f32 %v8149
      %v8406 = vcvt.s32.f32 %v8150
      %v8407 = vcvt.s32.f32 %v8151
      %v8408 = vcvt.s32.f32 %v8152
      %v8409 = vcvt.s32.f32 %v8153
      %v8410 = vcvt.s32.f32 %v8154
      %v8411 = vcvt.s32.f32 %v8155
      %v8412 = vcvt.s32.f32 %v8156
      %v8413 = vcvt.s32.f32 %v8157
      %v8414 = vcvt.s32.f32 %v8158
      %v8415 = vcvt.s32.f32 %v8159
      %v8416 = vcvt.s32.f32 %v8160
      %v8417 = vcvt.s32.f32 %v8161
      %v8418 = vcvt.s32.f32 %v8162
      %v8419 = vcvt.s32.f32 %v8163
      %v8420 = vcvt.s32.f32 %v8164
      %v8421 = vcvt.s32.f32 %v8165
      %v8422 = vcvt.s32.f32 %v8166
      %v8423 = vcvt.s32.f32 %v8167
      %v8424 = vcvt.s32.f32 %v8168
      %v8425 = vcvt.s32.f32 %v8169
      %v8426 = vcvt.s32.f32 %v8170
      %v8427 = vcvt.s32.f32 %v8171
      %v8428 = vcvt.s32.f32 %v8172
      %v8429 = vcvt.s32.f32 %v8173
      %v8430 = vcvt.s32.f32 %v8174
      %v8431 = vcvt.s32.f32 %v8175
      %v8432 = vcvt.s32.f32 %v8176
      %v8433 = vcvt.s32.f32 %v8177
      %v8434 = vcvt.s32.f32 %v8178
      %v8435 = vcvt.s32.f32 %v8179
      %v8436 = vcvt.s32.f32 %v8180
      %v8437 = vcvt.s32.f32 %v8181
      %v8438 = vcvt.s32.f32 %v8182
      %v8439 = vcvt.s32.f32 %v8183
      %v8440 = vcvt.s32.f32 %v8184
      %v8441 = vcvt.s32.f32 %v8185
      %v8442 = vcvt.s32.f32 %v8186
      %v8443 = vcvt.s32.f32 %v8187
      %v8444 = vcvt.s32.f32 %v8188
      %v8445 = vcvt.s32.f32 %v8189
      %v8446 = vcvt.s32.f32 %v8190
      %v8447 = vcvt.s32.f32 %v8191
      %v8448 = vcvt.s32.f32 %v8192
      %v8449 = vcvt.s32.f32 %v8193
      %v8450 = vcvt.s32.f32 %v8194
      %v8451 = vcvt.s32.f32 %v8195
      %v8452 = vcvt.s32.f32 %v8196
      %v8453 = vcvt.s32.f32 %v8197
      %v8454 = vcvt.s32.f32 %v8198
      %v8455 = vcvt.s32.f32 %v8199
      %v8456 = vcvt.s32.f32 %v8200
      %v8457 = vcvt.s32.f32 %v8201
      %v8458 = vcvt.s32.f32 %v8202
      %v8459 = vcvt.s32.f32 %v8203
      %v8460 = vcvt.s32.f32 %v8204
      %v8461 = vcvt.s32.f32 %v8205
      %v8462 = vcvt.s32.f32 %v8206
      %v8463 = vcvt.s32.f32 %v8207
      %v8464 = vcvt.s32.f32 %v8208
      %v8465 = vcvt.s32.f32 %v8209
      %v8466 = vcvt.s32.f32 %v8210
      %v8467 = vcvt.s32.f32 %v8211
      %v8468 = vcvt.s32.f32 %v8212
      %v8469 = vcvt.s32.f32 %v8213
      %v8470 = vcvt.s32.f32 %v8214
      %v8471 = vcvt.s32.f32 %v8215
      %v8472 = vcvt.s32.f32 %v8216
      %v8473 = vcvt.s32.f32 %v8217
      %v8474 = vcvt.s32.f32 %v8218
      %v8475 = vcvt.s32.f32 %v8219
      %v8476 = vcvt.s32.f32 %v8220
      %v8477 = vcvt.s32.f32 %v8221
      %v8478 = vcvt.s32.f32 %v8222
      %v8479 = vcvt.s32.f32 %v8223
      %v8480 = vcvt.s32.f32 %v8224
      %v8481 = vcvt.s32.f32 %v8225
      %v8482 = vcvt.s32.f32 %v8226
      %v8483 = vcvt.s32.f32 %v8227
      %v8484 = vcvt.s32.f32 %v8228
      %v8485 = vcvt.s32.f32 %v8229
      %v8486 = vcvt.s32.f32 %v8230
      %v8487 = vcvt.s32.f32 %v8231
      %v8488 = vcvt.s32.f32 %v8232
      %v8489 = vcvt.s32.f32 %v8233
      %v8490 = vcvt.s32.f32 %v8234
      %v8491 = vcvt.s32.f32 %v8235
      %v8492 = vcvt.s32.f32 %v8236
      %v8493 = vcvt.s32.f32 %v8237
      %v8494 = vcvt.s32.f32 %v8238
      %v8495 = vcvt.s32.f32 %v8239
      %v8496 = vcvt.s32.f32 %v8240
      %v8497 = vcvt.s32.f32 %v8241
      %v8498 = vcvt.s32.f32 %v8242
      %v8499 = vcvt.s32.f32 %v8243
      %v8500 = vcvt.s32.f32 %v8244
      %v8501 = vcvt.s32.f32 %v8245
      %v8502 = vcvt.s32.f32 %v8246
      %v8503 = vcvt.s32.f32 %v8247
      %v8504 = vcvt.s32.f32 %v8248
      %v8505 = vcvt.s32.f32 %v8249
      %v8506 = vcvt.s32.f32 %v8250
      %v8507 = vcvt.s32.f32 %v8251
      %v8508 = vcvt.s32.f32 %v8252
      %v8509 = vcvt.s32.f32 %v8253
      %v8510 = vcvt.s32.f32 %v8254
      %v8511 = vcvt.s32.f32 %v8255
      %v8512 = vcvt.s32.f32 %v8256
      %v8513 = vcvt.s32.f32 %v8257
      %v8514 = vcvt.s32.f32 %v8258
      %v8515 = vcvt.s32.f32 %v8259
      %v8516 = vcvt.s32.f32 %v8260
      %v8517 = vcvt.s32.f32 %v8261
      %v8518 = vcvt.s32.f32 %v8262
      %v8519 = vcvt.s32.f32 %v8263
      %v8520 = vcvt.s32.f32 %v8264
      %v8521 = vcvt.s32.f32 %v8265
      %v8522 = vcvt.s32.f32 %v8266
      %v8523 = vcvt.s32.f32 %v8267
      %v8524 = vcvt.s32.f32 %v8268
      %v8525 = vcvt.s32.f32 %v8269
      %v8526 = vcvt.s32.f32 %v8270
      %v8527 = vcvt.s32.f32 %v8271
      %v8528 = vcvt.s32.f32 %v8272
      %v8529 = vcvt.s32.f32 %v8273
      %s8530 = scalar_lea.vmem %s1, 224
      %v8531 = vld [vmem:[%s8530] sm:$0xff]
      %v8532 = vld [vmem:[%s8530 + $0x8] sm:$0xff]
      %v8533 = vld [vmem:[%s8530 + $0x10] sm:$0xff]
      %v8534 = vld [vmem:[%s8530 + $0x18] sm:$0xff]
      %8535 = vmatprep.subr.mxu0 %v8335
      %8536 = vmatpush1.msra.mxu0 %v8334
      %8537 = vmatprep.subr.mxu0 %v8331
      %8538 = vmatpush1.msra.mxu0 %v8330
      %8539 = vmatprep.subr.mxu0 %v8327
      %8540 = vmatpush1.msra.mxu0 %v8326
      %8541 = vmatprep.subr.mxu0 %v8323
      %8542 = vmatpush1.msra.mxu0 %v8322
      %8543 = vmatprep.subr.mxu0 %v8319
      %8544 = vmatpush1.msra.mxu0 %v8318
      %8545 = vmatprep.subr.mxu0 %v8315
      %8546 = vmatpush1.msra.mxu0 %v8314
      %8547 = vmatprep.subr.mxu0 %v8311
      %8548 = vmatpush1.msra.mxu0 %v8310
      %8549 = vmatprep.subr.mxu0 %v8307
      %8550 = vmatpush1.msra.mxu0 %v8306
      %8551 = vmatprep.subr.mxu0 %v8303
      %8552 = vmatpush1.msra.mxu0 %v8302
      %8553 = vmatprep.subr.mxu0 %v8299
      %8554 = vmatpush1.msra.mxu0 %v8298
      %8555 = vmatprep.subr.mxu0 %v8295
      %8556 = vmatpush1.msra.mxu0 %v8294
      %8557 = vmatprep.subr.mxu0 %v8291
      %8558 = vmatpush1.msra.mxu0 %v8290
      %8559 = vmatprep.subr.mxu0 %v8287
      %8560 = vmatpush1.msra.mxu0 %v8286
      %8561 = vmatprep.subr.mxu0 %v8283
      %8562 = vmatpush1.msra.mxu0 %v8282
      %8563 = vmatprep.subr.mxu0 %v8279
      %8564 = vmatpush1.msra.mxu0 %v8278
      %8565 = vmatprep.subr.mxu0 %v8275
      %8566 = vmatpush1.msra.mxu0 %v8274
      %8567 = vmatprep.subr.mxu0 %v8399
      %8568 = vmatpush2.msra.mxu0 %v8398
      %8569 = vmatprep.subr.mxu0 %v8395
      %8570 = vmatpush2.msra.mxu0 %v8394
      %8571 = vmatprep.subr.mxu0 %v8391
      %8572 = vmatpush2.msra.mxu0 %v8390
      %8573 = vmatprep.subr.mxu0 %v8387
      %8574 = vmatpush2.msra.mxu0 %v8386
      %8575 = vmatprep.subr.mxu0 %v8383
      %8576 = vmatpush2.msra.mxu0 %v8382
      %8577 = vmatprep.subr.mxu0 %v8379
      %8578 = vmatpush2.msra.mxu0 %v8378
      %8579 = vmatprep.subr.mxu0 %v8375
      %8580 = vmatpush2.msra.mxu0 %v8374
      %8581 = vmatprep.subr.mxu0 %v8371
      %8582 = vmatpush2.msra.mxu0 %v8370
      %8583 = vmatprep.subr.mxu0 %v8367
      %8584 = vmatpush2.msra.mxu0 %v8366
      %8585 = vmatprep.subr.mxu0 %v8363
      %8586 = vmatpush2.msra.mxu0 %v8362
      %8587 = vmatprep.subr.mxu0 %v8359
      %8588 = vmatpush2.msra.mxu0 %v8358
      %8589 = vmatprep.subr.mxu0 %v8355
      %8590 = vmatpush2.msra.mxu0 %v8354
      %8591 = vmatprep.subr.mxu0 %v8351
      %8592 = vmatpush2.msra.mxu0 %v8350
      %8593 = vmatprep.subr.mxu0 %v8347
      %8594 = vmatpush2.msra.mxu0 %v8346
      %8595 = vmatprep.subr.mxu0 %v8343
      %8596 = vmatpush2.msra.mxu0 %v8342
      %8597 = vmatprep.subr.mxu0 %v8339
      %8598 = vmatpush2.msra.mxu0 %v8338
      %8599 = vmatprep.mubr.f32.mxu0 %v8532
      %8600 = vmatmul.mubr.f32.gmra.mxu0 %v8531
      %v8601 = vpop.f32.mrf.mxu0
      %v8602 = vadd.f32 0.0, %v8601
      %v8603 = vpop.f32.mrf.mxu0
      %v8604 = vadd.f32 0.0, %v8603
      %8605 = vdwg.mxu0
      %8606 = vmatprep.subr.mxu0 %v8463
      %8607 = vmatpush1.msra.mxu0 %v8462
      %8608 = vmatprep.subr.mxu0 %v8459
      %8609 = vmatpush1.msra.mxu0 %v8458
      %8610 = vmatprep.subr.mxu0 %v8455
      %8611 = vmatpush1.msra.mxu0 %v8454
      %8612 = vmatprep.subr.mxu0 %v8451
      %8613 = vmatpush1.msra.mxu0 %v8450
      %8614 = vmatprep.subr.mxu0 %v8447
      %8615 = vmatpush1.msra.mxu0 %v8446
      %8616 = vmatprep.subr.mxu0 %v8443
      %8617 = vmatpush1.msra.mxu0 %v8442
      %8618 = vmatprep.subr.mxu0 %v8439
      %8619 = vmatpush1.msra.mxu0 %v8438
      %8620 = vmatprep.subr.mxu0 %v8435
      %8621 = vmatpush1.msra.mxu0 %v8434
      %8622 = vmatprep.subr.mxu0 %v8431
      %8623 = vmatpush1.msra.mxu0 %v8430
      %8624 = vmatprep.subr.mxu0 %v8427
      %8625 = vmatpush1.msra.mxu0 %v8426
      %8626 = vmatprep.subr.mxu0 %v8423
      %8627 = vmatpush1.msra.mxu0 %v8422
      %8628 = vmatprep.subr.mxu0 %v8419
      %8629 = vmatpush1.msra.mxu0 %v8418
      %8630 = vmatprep.subr.mxu0 %v8415
      %8631 = vmatpush1.msra.mxu0 %v8414
      %8632 = vmatprep.subr.mxu0 %v8411
      %8633 = vmatpush1.msra.mxu0 %v8410
      %8634 = vmatprep.subr.mxu0 %v8407
      %8635 = vmatpush1.msra.mxu0 %v8406
      %8636 = vmatprep.subr.mxu0 %v8403
      %8637 = vmatpush1.msra.mxu0 %v8402
      %8638 = vmatprep.subr.mxu0 %v8527
      %8639 = vmatpush2.msra.mxu0 %v8526
      %8640 = vmatprep.subr.mxu0 %v8523
      %8641 = vmatpush2.msra.mxu0 %v8522
      %8642 = vmatprep.subr.mxu0 %v8519
      %8643 = vmatpush2.msra.mxu0 %v8518
      %8644 = vmatprep.subr.mxu0 %v8515
      %8645 = vmatpush2.msra.mxu0 %v8514
      %8646 = vmatprep.subr.mxu0 %v8511
      %8647 = vmatpush2.msra.mxu0 %v8510
      %8648 = vmatprep.subr.mxu0 %v8507
      %8649 = vmatpush2.msra.mxu0 %v8506
      %8650 = vmatprep.subr.mxu0 %v8503
      %8651 = vmatpush2.msra.mxu0 %v8502
      %8652 = vmatprep.subr.mxu0 %v8499
      %8653 = vmatpush2.msra.mxu0 %v8498
      %8654 = vmatprep.subr.mxu0 %v8495
      %8655 = vmatpush2.msra.mxu0 %v8494
      %8656 = vmatprep.subr.mxu0 %v8491
      %8657 = vmatpush2.msra.mxu0 %v8490
      %8658 = vmatprep.subr.mxu0 %v8487
      %8659 = vmatpush2.msra.mxu0 %v8486
      %8660 = vmatprep.subr.mxu0 %v8483
      %8661 = vmatpush2.msra.mxu0 %v8482
      %8662 = vmatprep.subr.mxu0 %v8479
      %8663 = vmatpush2.msra.mxu0 %v8478
      %8664 = vmatprep.subr.mxu0 %v8475
      %8665 = vmatpush2.msra.mxu0 %v8474
      %8666 = vmatprep.subr.mxu0 %v8471
      %8667 = vmatpush2.msra.mxu0 %v8470
      %8668 = vmatprep.subr.mxu0 %v8467
      %8669 = vmatpush2.msra.mxu0 %v8466
      %8670 = vmatprep.mubr.f32.mxu0 %v8534
      %8671 = vmatmul.mubr.f32.gmra.mxu0 %v8533
      %v8672 = vpop.f32.mrf.mxu0
      %v8673 = vadd.f32 %v8602, %v8672
      %v8674 = vpop.f32.mrf.mxu0
      %v8675 = vadd.f32 %v8604, %v8674
      %8676 = vdwg.mxu0
      %8677 = vmatprep.subr.mxu0 %v8337
      %8678 = vmatpush1.msra.mxu0 %v8336
      %8679 = vmatprep.subr.mxu0 %v8333
      %8680 = vmatpush1.msra.mxu0 %v8332
      %8681 = vmatprep.subr.mxu0 %v8329
      %8682 = vmatpush1.msra.mxu0 %v8328
      %8683 = vmatprep.subr.mxu0 %v8325
      %8684 = vmatpush1.msra.mxu0 %v8324
      %8685 = vmatprep.subr.mxu0 %v8321
      %8686 = vmatpush1.msra.mxu0 %v8320
      %8687 = vmatprep.subr.mxu0 %v8317
      %8688 = vmatpush1.msra.mxu0 %v8316
      %8689 = vmatprep.subr.mxu0 %v8313
      %8690 = vmatpush1.msra.mxu0 %v8312
      %8691 = vmatprep.subr.mxu0 %v8309
      %8692 = vmatpush1.msra.mxu0 %v8308
      %8693 = vmatprep.subr.mxu0 %v8305
      %8694 = vmatpush1.msra.mxu0 %v8304
      %8695 = vmatprep.subr.mxu0 %v8301
      %8696 = vmatpush1.msra.mxu0 %v8300
      %8697 = vmatprep.subr.mxu0 %v8297
      %8698 = vmatpush1.msra.mxu0 %v8296
      %8699 = vmatprep.subr.mxu0 %v8293
      %8700 = vmatpush1.msra.mxu0 %v8292
      %8701 = vmatprep.subr.mxu0 %v8289
      %8702 = vmatpush1.msra.mxu0 %v8288
      %8703 = vmatprep.subr.mxu0 %v8285
      %8704 = vmatpush1.msra.mxu0 %v8284
      %8705 = vmatprep.subr.mxu0 %v8281
      %8706 = vmatpush1.msra.mxu0 %v8280
      %8707 = vmatprep.subr.mxu0 %v8277
      %8708 = vmatpush1.msra.mxu0 %v8276
      %8709 = vmatprep.subr.mxu0 %v8401
      %8710 = vmatpush2.msra.mxu0 %v8400
      %8711 = vmatprep.subr.mxu0 %v8397
      %8712 = vmatpush2.msra.mxu0 %v8396
      %8713 = vmatprep.subr.mxu0 %v8393
      %8714 = vmatpush2.msra.mxu0 %v8392
      %8715 = vmatprep.subr.mxu0 %v8389
      %8716 = vmatpush2.msra.mxu0 %v8388
      %8717 = vmatprep.subr.mxu0 %v8385
      %8718 = vmatpush2.msra.mxu0 %v8384
      %8719 = vmatprep.subr.mxu0 %v8381
      %8720 = vmatpush2.msra.mxu0 %v8380
      %8721 = vmatprep.subr.mxu0 %v8377
      %8722 = vmatpush2.msra.mxu0 %v8376
      %8723 = vmatprep.subr.mxu0 %v8373
      %8724 = vmatpush2.msra.mxu0 %v8372
      %8725 = vmatprep.subr.mxu0 %v8369
      %8726 = vmatpush2.msra.mxu0 %v8368
      %8727 = vmatprep.subr.mxu0 %v8365
      %8728 = vmatpush2.msra.mxu0 %v8364
      %8729 = vmatprep.subr.mxu0 %v8361
      %8730 = vmatpush2.msra.mxu0 %v8360
      %8731 = vmatprep.subr.mxu0 %v8357
      %8732 = vmatpush2.msra.mxu0 %v8356
      %8733 = vmatprep.subr.mxu0 %v8353
      %8734 = vmatpush2.msra.mxu0 %v8352
      %8735 = vmatprep.subr.mxu0 %v8349
      %8736 = vmatpush2.msra.mxu0 %v8348
      %8737 = vmatprep.subr.mxu0 %v8345
      %8738 = vmatpush2.msra.mxu0 %v8344
      %8739 = vmatprep.subr.mxu0 %v8341
      %8740 = vmatpush2.msra.mxu0 %v8340
      %8741 = vmatprep.mubr.f32.mxu0 %v8532
      %8742 = vmatmul.mubr.f32.gmra.mxu0 %v8531
      %v8743 = vpop.f32.mrf.mxu0
      %v8744 = vadd.f32 0.0, %v8743
      %v8745 = vpop.f32.mrf.mxu0
      %v8746 = vadd.f32 0.0, %v8745
      %8747 = vdwg.mxu0
      %8748 = vmatprep.subr.mxu0 %v8465
      %8749 = vmatpush1.msra.mxu0 %v8464
      %8750 = vmatprep.subr.mxu0 %v8461
      %8751 = vmatpush1.msra.mxu0 %v8460
      %8752 = vmatprep.subr.mxu0 %v8457
      %8753 = vmatpush1.msra.mxu0 %v8456
      %8754 = vmatprep.subr.mxu0 %v8453
      %8755 = vmatpush1.msra.mxu0 %v8452
      %8756 = vmatprep.subr.mxu0 %v8449
      %8757 = vmatpush1.msra.mxu0 %v8448
      %8758 = vmatprep.subr.mxu0 %v8445
      %8759 = vmatpush1.msra.mxu0 %v8444
      %8760 = vmatprep.subr.mxu0 %v8441
      %8761 = vmatpush1.msra.mxu0 %v8440
      %8762 = vmatprep.subr.mxu0 %v8437
      %8763 = vmatpush1.msra.mxu0 %v8436
      %8764 = vmatprep.subr.mxu0 %v8433
      %8765 = vmatpush1.msra.mxu0 %v8432
      %8766 = vmatprep.subr.mxu0 %v8429
      %8767 = vmatpush1.msra.mxu0 %v8428
      %8768 = vmatprep.subr.mxu0 %v8425
      %8769 = vmatpush1.msra.mxu0 %v8424
      %8770 = vmatprep.subr.mxu0 %v8421
      %8771 = vmatpush1.msra.mxu0 %v8420
      %8772 = vmatprep.subr.mxu0 %v8417
      %8773 = vmatpush1.msra.mxu0 %v8416
      %8774 = vmatprep.subr.mxu0 %v8413
      %8775 = vmatpush1.msra.mxu0 %v8412
      %8776 = vmatprep.subr.mxu0 %v8409
      %8777 = vmatpush1.msra.mxu0 %v8408
      %8778 = vmatprep.subr.mxu0 %v8405
      %8779 = vmatpush1.msra.mxu0 %v8404
      %8780 = vmatprep.subr.mxu0 %v8529
      %8781 = vmatpush2.msra.mxu0 %v8528
      %8782 = vmatprep.subr.mxu0 %v8525
      %8783 = vmatpush2.msra.mxu0 %v8524
      %8784 = vmatprep.subr.mxu0 %v8521
      %8785 = vmatpush2.msra.mxu0 %v8520
      %8786 = vmatprep.subr.mxu0 %v8517
      %8787 = vmatpush2.msra.mxu0 %v8516
      %8788 = vmatprep.subr.mxu0 %v8513
      %8789 = vmatpush2.msra.mxu0 %v8512
      %8790 = vmatprep.subr.mxu0 %v8509
      %8791 = vmatpush2.msra.mxu0 %v8508
      %8792 = vmatprep.subr.mxu0 %v8505
      %8793 = vmatpush2.msra.mxu0 %v8504
      %8794 = vmatprep.subr.mxu0 %v8501
      %8795 = vmatpush2.msra.mxu0 %v8500
      %8796 = vmatprep.subr.mxu0 %v8497
      %8797 = vmatpush2.msra.mxu0 %v8496
      %8798 = vmatprep.subr.mxu0 %v8493
      %8799 = vmatpush2.msra.mxu0 %v8492
      %8800 = vmatprep.subr.mxu0 %v8489
      %8801 = vmatpush2.msra.mxu0 %v8488
      %8802 = vmatprep.subr.mxu0 %v8485
      %8803 = vmatpush2.msra.mxu0 %v8484
      %8804 = vmatprep.subr.mxu0 %v8481
      %8805 = vmatpush2.msra.mxu0 %v8480
      %8806 = vmatprep.subr.mxu0 %v8477
      %8807 = vmatpush2.msra.mxu0 %v8476
      %8808 = vmatprep.subr.mxu0 %v8473
      %8809 = vmatpush2.msra.mxu0 %v8472
      %8810 = vmatprep.subr.mxu0 %v8469
      %8811 = vmatpush2.msra.mxu0 %v8468
      %8812 = vmatprep.mubr.f32.mxu0 %v8534
      %8813 = vmatmul.mubr.f32.gmra.mxu0 %v8533
      %v8814 = vpop.f32.mrf.mxu0
      %v8815 = vadd.f32 %v8744, %v8814
      %v8816 = vpop.f32.mrf.mxu0
      %v8817 = vadd.f32 %v8746, %v8816
      %8818 = vdwg.mxu0
      %v8819 = vadd.f32 %v7742, %v8673
      %v8820 = vadd.f32 %v7743, %v8675
      %v8821 = vadd.f32 %v7744, %v8815
      %v8822 = vadd.f32 %v7745, %v8817
      %v8823 = vmul.f32 %v8819, 0.5
      %v8824 = vmul.f32 %v8820, 0.5
      %v8825 = vmul.f32 %v8821, 0.5
      %v8826 = vmul.f32 %v8822, 0.5
      %8827 = vst [vmem:[%s145] sm:$0xff] %v8823
      %8828 = vst [vmem:[%s145 + $0x8] sm:$0xff] %v8824
      %8829 = vst [vmem:[%s145 + $0x10] sm:$0xff] %v8825
      %8830 = vst [vmem:[%s145 + $0x18] sm:$0xff] %v8826
      %s8831 = smul.u32 4, %s13
      %p8832 = scmp.lt.s32.totalorder %s8831, 15
      %s8833 = scalar_select %p8832, %s8831, 15
      %s8834 = smul.addr %s8833, 8
      %s8835 = scalar_lea.vmem %s2, %s8834
      // Predicated region
      $region29: #{hslut_forward.1} parent=27 // pred_check
        %p8836 = pneg %p78
      $region30: #{hslut_forward.1} parent=27 // pred_check_branch
        %8838 = sbr.rel (%p8836) target = $region32
      $region31: #{hslut_forward.1} parent=27 // pred_region
        %s8839 = smul.u32 4, %s13
      $region32: #{hslut_forward.1} parent=27 // pred_fallthru
        _
    $region28: #{hslut_forward.1} parent=5 // pred_fallthru
      _
    %p8840 = scmp.le.s32.totalorder 2, %s8
    // Predicated region
    $region33: #{hslut_forward.1} parent=5 // pred_check
      %p8841 = pneg %p8840
    $region34: #{hslut_forward.1} parent=5 // pred_check_branch
      %8843 = sbr.rel (%p8841) target = $region36
    $region35: #{hslut_forward.1} parent=5 // pred_region
      %s8844 = ssub.s32 %s8, 2
      // Predicated region
      $region37: #{hslut_forward.1} parent=35 // pred_check
        %p8845 = pneg %p84
      $region38: #{hslut_forward.1} parent=35 // pred_check_branch
        %8847 = sbr.rel (%p8845) target = $region40
      $region39: #{hslut_forward.1} parent=35 // pred_region
        %s8848 = smul.u32 4, %s14
        %p8849 = scmp.lt.s32.totalorder %s8848, 15
        %s8850 = scalar_select %p8849, %s8848, 15
        %s8851 = smul.addr %s8850, 8
        %s8852 = scalar_lea.vmem %s2, %s8851
      $region40: #{hslut_forward.1} parent=35 // pred_fallthru
        _
    $region36: #{hslut_forward.1} parent=5 // pred_fallthru
      _
  $region6: #{hslut_forward.1} parent=0 // loop_footer
    %s12 = sadd.s32 1, %s8
  $region7: #{hslut_forward.1} parent=0 // loop_footer_branch
    %7 = sbr.rel target = $region3
  $region8: #{hslut_forward.1} parent=0 // loop_exit
    _

</llo_original>
